<compile_context>
chip_gen: v7x
topology: tpu7x:2x2x1
jax: 0.10.0
libtpu: 0.0.40
codegen_flags: <defaults>
</compile_context>

<pallas_src>
import jax
import jax.numpy as jnp
from jax.experimental import pallas as pl
from jax.experimental.pallas import tpu as pltpu

BN_EPS = 1e-5

_DIMS = [(3, 64), (64, 128), (128, 128), (128, 64), (64, 64)]  # + (64, latent)


# ----------------------------------------------------------------------------
# Parameters (synthetic) and BN folding
# ----------------------------------------------------------------------------

def make_params(key, latent_dim):
    """Synthetic per-layer params:
    (w [Cin,Cout], bias [1,Cout], gamma, beta, running_mean, running_var)."""
    dims = _DIMS + [(64, latent_dim)]
    params = []
    for cin, cout in dims:
        key, kw, kb, kg, kbe, km, kv = jax.random.split(key, 7)
        w = jax.random.normal(kw, (cin, cout), jnp.float32) * 0.1
        bias = jax.random.normal(kb, (1, cout), jnp.float32) * 0.1
        gamma = 1.0 + 0.1 * jax.random.normal(kg, (1, cout), jnp.float32)
        beta = 0.1 * jax.random.normal(kbe, (1, cout), jnp.float32)
        mean = 0.1 * jax.random.normal(km, (1, cout), jnp.float32)
        var = jnp.abs(jax.random.normal(kv, (1, cout), jnp.float32)) + 0.5
        params.append((w, bias, gamma, beta, mean, var))
    return params


def fold_bn(w, bias, gamma, beta, mean, var):
    """Fold eval-mode BatchNorm1d into the conv:  y = x @ w_f + b_f."""
    scale = gamma * jax.lax.rsqrt(var + BN_EPS)          # (1, Cout)
    return w * scale, bias * scale + (beta - mean * scale)


def _largest_divisor_leq(n, cap):
    cap = max(1, min(n, cap))
    for d in range(cap, 0, -1):
        if n % d == 0:
            return d
    return 1


# ----------------------------------------------------------------------------
# Fused kernel: conv stack + max-pool + mlp3
# ----------------------------------------------------------------------------

def _make_kernel(N, TN, n_tiles, BB):
    ragged = (n_tiles * TN != N)

    def kernel(x_ref, w1_ref, b1_ref, w2_ref, b2_ref, w3_ref, b3_ref,
               w4_ref, b4_ref, w5_ref, b5_ref, w6_ref, b6_ref,
               out_ref, acc_ref):
        k = pl.program_id(1)

        @pl.when(k == 0)
        def _():
            acc_ref[...] = jnp.full(acc_ref.shape, -jnp.inf, acc_ref.dtype)

        w1v = w1_ref[...]                                    # (3, 64)  f32
        b1v = b1_ref[...]                                    # (1, 64)  f32

        for bb in range(BB):
            x = x_ref[bb]                                    # (TN, 3) f32

            # Layer 1: Conv1d(3->64, k=1) + folded BN + ReLU as three
            # broadcast FMAs on the VPU (avoids a K=3 MXU matmul and any
            # input transpose).
            h = (x[:, 0:1] * w1v[0:1, :]
                 + x[:, 1:2] * w1v[1:2, :]
                 + x[:, 2:3] * w1v[2:3, :]
                 + b1v)                                      # (TN, 64)
            h = jnp.maximum(h, 0.0)

            # Layer 2: Conv1d(64->128) + BN + ReLU  (bf16 MXU, f32 accumulate)
            h = jnp.dot(h.astype(jnp.bfloat16), w2_ref[...],
                        preferred_element_type=jnp.float32) + b2_ref[...]
            h = jnp.maximum(h, 0.0)                          # (TN, 128)

            # Layer 3: Conv1d(128->128) + BN (no ReLU)
            h = jnp.dot(h.astype(jnp.bfloat16), w3_ref[...],
                        preferred_element_type=jnp.float32) + b3_ref[...]

            # Running max over the point (sublane) axis == torch.max(dim=2).
            if not ragged:
                m = jnp.max(h, axis=0, keepdims=True)        # (1, 128)
                acc_ref[bb:bb + 1, :] = jnp.maximum(acc_ref[bb:bb + 1, :], m)
            else:
                # Only the final tile holds padded garbage rows: gate the
                # iota/compare/select so full tiles pay nothing.
                @pl.when(k < n_tiles - 1)
                def _(h=h, bb=bb):
                    m = jnp.max(h, axis=0, keepdims=True)
                    acc_ref[bb:bb + 1, :] = jnp.maximum(
                        acc_ref[bb:bb + 1, :], m)

                @pl.when(k == n_tiles - 1)
                def _(h=h, bb=bb):
                    rows = jax.lax.broadcasted_iota(jnp.int32, (TN, 1), 0)
                    hm = jnp.where(k * TN + rows < N, h, -jnp.inf)
                    m = jnp.max(hm, axis=0, keepdims=True)
                    acc_ref[bb:bb + 1, :] = jnp.maximum(
                        acc_ref[bb:bb + 1, :], m)

        # mlp3 fused into the last-tile epilogue: three tiny f32 matmuls on
        # the (BB, 128) pooled features + tanh, written lane-dense.
        @pl.when(k == n_tiles - 1)
        def _():
            g = acc_ref[...]                                 # (BB, 128)
            g = jnp.maximum(
                jnp.dot(g, w4_ref[...], preferred_element_type=jnp.float32)
                + b4_ref[...], 0.0)
            g = jnp.maximum(
                jnp.dot(g, w5_ref[...], preferred_element_type=jnp.float32)
                + b5_ref[...], 0.0)
            g = jnp.tanh(
                jnp.dot(g, w6_ref[...], preferred_element_type=jnp.float32)
                + b6_ref[...])
            out_ref[0] = g.astype(out_ref.dtype)             # (BB, latent)

    return kernel


# ----------------------------------------------------------------------------
# Wrapper
# ----------------------------------------------------------------------------

def pointnet_encoder(point_cloud, params, *, tile_n=2048):
    """point_cloud: [B, N, 3] float32  ->  [B, latent, 1] (matches PyTorch)."""
    B, N, C = point_cloud.shape
    assert C == 3
    assert tile_n % 8 == 0

    folded = [fold_bn(*p) for p in params]
    (w1, b1), (w2, b2), (w3, b3), (w4, b4), (w5, b5), (w6, b6) = folded
    latent = w6.shape[1]

    # Hot-layer MXU operands in bf16; everything else stays f32.
    w2b = w2.astype(jnp.bfloat16)                    # (64, 128)
    w3b = w3.astype(jnp.bfloat16)                    # (128, 128)

    x = point_cloud.astype(jnp.float32)              # [B, N, 3], read directly

    # Bounded point tile for any N (no TN = N fallback): a block's sublane dim
    # must be a multiple of 8 or the full N; both hold by construction.
    TN = N if N <= tile_n else tile_n
    n_tiles = pl.cdiv(N, TN)

    # Batch blocking: amortize per-grid-step overhead when N is small.
    BB = _largest_divisor_leq(B, max(1, min(8, 4096 // max(TN, 1))))

    kernel = _make_kernel(N, TN, n_tiles, BB)
    const = lambda b, k: (0, 0)

    out = pl.pallas_call(
        kernel,
        grid=(B // BB, n_tiles),
        in_specs=[
            pl.BlockSpec((BB, TN, 3), lambda b, k: (b, k, 0)),
            pl.BlockSpec(w1.shape, const), pl.BlockSpec(b1.shape, const),
            pl.BlockSpec(w2b.shape, const), pl.BlockSpec(b2.shape, const),
            pl.BlockSpec(w3b.shape, const), pl.BlockSpec(b3.shape, const),
            pl.BlockSpec(w4.shape, const), pl.BlockSpec(b4.shape, const),
            pl.BlockSpec(w5.shape, const), pl.BlockSpec(b5.shape, const),
            pl.BlockSpec(w6.shape, const), pl.BlockSpec(b6.shape, const),
        ],
        out_specs=pl.BlockSpec((1, BB, latent), lambda b, k: (b, 0, 0)),
        out_shape=jax.ShapeDtypeStruct((B // BB, BB, latent), jnp.float32),
        scratch_shapes=[pltpu.VMEM((BB, 128), jnp.float32)],
        compiler_params=pltpu.CompilerParams(
            # The point-tile axis is a reduction (the out block revisits the
            # same (b, 0, 0) index over k and is written at k == last), so it
            # must stay the innermost "arbitrary" axis.
            dimension_semantics=("parallel", "arbitrary"),
            vmem_limit_bytes=32 * 1024 * 1024),
    )(x, w1, b1, w2b, b2, w3b, b3, w4, b4, w5, b5, w6, b6)

    return out.reshape(B, latent)[:, :, None]        # [B, latent, 1]


# ----------------------------------------------------------------------------
# Pure-JAX reference (same numerics contract: bf16 MXU for layers 2-3)
# ----------------------------------------------------------------------------

def pointnet_reference(point_cloud, params):
    P = jax.lax.Precision.HIGHEST
    folded = [fold_bn(*p) for p in params]
    (w1, b1), (w2, b2), (w3, b3), (w4, b4), (w5, b5), (w6, b6) = folded
    x = point_cloud.astype(jnp.float32)                       # (B, N, 3)
    h = jnp.maximum(jnp.dot(x, w1, precision=P) + b1, 0.0)    # (B, N, 64)
    h = jnp.maximum(
        jnp.dot(h.astype(jnp.bfloat16), w2.astype(jnp.bfloat16),
                preferred_element_type=jnp.float32) + b2, 0.0)
    h = jnp.dot(h.astype(jnp.bfloat16), w3.astype(jnp.bfloat16),
                preferred_element_type=jnp.float32) + b3      # (B, N, 128)
    g = jnp.max(h, axis=1)                                    # (B, 128)
    g = jnp.maximum(jnp.dot(g, w4, precision=P) + b4, 0.0)
    g = jnp.maximum(jnp.dot(g, w5, precision=P) + b5, 0.0)
    g = jnp.tanh(jnp.dot(g, w6, precision=P) + b6)            # (B, latent)
    return g[:, :, None]                                      # (B, latent, 1)


if __name__ == "__main__":
    B, N, LATENT = 2, 1024, 32
    key = jax.random.PRNGKey(0)
    k_x, k_p = jax.random.split(key)
    point_cloud = jax.random.normal(k_x, (B, N, 3), jnp.float32)
    params = make_params(k_p, LATENT)

    fwd = jax.jit(pointnet_encoder)
    out = jax.block_until_ready(fwd(point_cloud, params))
    assert out.shape == (B, LATENT, 1), out.shape

    ref = jax.block_until_ready(pointnet_reference(point_cloud, params))
    err = float(jnp.max(jnp.abs(out - ref)))
    assert err < 2e-2, err

    print("KERNEL_OK")
</pallas_src>

<mosaic_0001>
module attributes {stable_mosaic.version = 11 : i64} {
  func.func @kernel(%arg0: i32, %arg1: i32, %arg2: memref<2x1024x3xf32, #tpu.memory_space<vmem>>, %arg3: memref<3x64xf32, #tpu.memory_space<vmem>>, %arg4: memref<1x64xf32, #tpu.memory_space<vmem>>, %arg5: memref<64x128xbf16, #tpu.memory_space<vmem>>, %arg6: memref<1x128xf32, #tpu.memory_space<vmem>>, %arg7: memref<128x128xbf16, #tpu.memory_space<vmem>>, %arg8: memref<1x128xf32, #tpu.memory_space<vmem>>, %arg9: memref<128x64xf32, #tpu.memory_space<vmem>>, %arg10: memref<1x64xf32, #tpu.memory_space<vmem>>, %arg11: memref<64x64xf32, #tpu.memory_space<vmem>>, %arg12: memref<1x64xf32, #tpu.memory_space<vmem>>, %arg13: memref<64x32xf32, #tpu.memory_space<vmem>>, %arg14: memref<1x32xf32, #tpu.memory_space<vmem>>, %arg15: memref<1x2x32xf32, #tpu.memory_space<vmem>>, %arg16: memref<2x128xf32, #tpu.memory_space<vmem>>) attributes {dimension_semantics = [#tpu.dimension_semantics<parallel>, #tpu.dimension_semantics<arbitrary>], iteration_bounds = array<i64: 1, 1>, scalar_prefetch = 0 : i64, scratch_operands = 1 : i64, tpu.core_type = #tpu.core_type<tc>, window_params = [{transform_indices = @transform_0, window_bounds = array<i64: 2, 1024, 3>}, {pipeline_mode = #tpu.pipeline_mode<synchronous>, transform_indices = @transform_1, window_bounds = array<i64: 3, 64>}, {pipeline_mode = #tpu.pipeline_mode<synchronous>, transform_indices = @transform_2, window_bounds = array<i64: 1, 64>}, {pipeline_mode = #tpu.pipeline_mode<synchronous>, transform_indices = @transform_3, window_bounds = array<i64: 64, 128>}, {pipeline_mode = #tpu.pipeline_mode<synchronous>, transform_indices = @transform_4, window_bounds = array<i64: 1, 128>}, {pipeline_mode = #tpu.pipeline_mode<synchronous>, transform_indices = @transform_5, window_bounds = array<i64: 128, 128>}, {pipeline_mode = #tpu.pipeline_mode<synchronous>, transform_indices = @transform_6, window_bounds = array<i64: 1, 128>}, {pipeline_mode = #tpu.pipeline_mode<synchronous>, transform_indices = @transform_7, window_bounds = array<i64: 128, 64>}, {pipeline_mode = #tpu.pipeline_mode<synchronous>, transform_indices = @transform_8, window_bounds = array<i64: 1, 64>}, {pipeline_mode = #tpu.pipeline_mode<synchronous>, transform_indices = @transform_9, window_bounds = array<i64: 64, 64>}, {pipeline_mode = #tpu.pipeline_mode<synchronous>, transform_indices = @transform_10, window_bounds = array<i64: 1, 64>}, {pipeline_mode = #tpu.pipeline_mode<synchronous>, transform_indices = @transform_11, window_bounds = array<i64: 64, 32>}, {pipeline_mode = #tpu.pipeline_mode<synchronous>, transform_indices = @transform_12, window_bounds = array<i64: 1, 32>}, {transform_indices = @transform_13, window_bounds = array<i64: 1, 2, 32>}]} {
    %c0_i32 = arith.constant 0 : i32
    %0 = arith.cmpi eq, %arg1, %c0_i32 : i32
    %1 = arith.extui %0 : i1 to i32
    %c0_i32_0 = arith.constant 0 : i32
    %2 = arith.cmpi ne, %1, %c0_i32_0 : i32
    scf.if %2 {
      %cst_44 = arith.constant 0xFF800000 : f32
      %92 = vector.broadcast %cst_44 : f32 to vector<2x128xf32>
      %c0_45 = arith.constant 0 : index
      %c0_46 = arith.constant 0 : index
      %93 = vector.load %arg16[%c0_45, %c0_46] : memref<2x128xf32, #tpu.memory_space<vmem>>, vector<2x128xf32>
      tpu.vector_store %arg16[%c0_45, %c0_46], %92 {strides = array<i32>} : memref<2x128xf32, #tpu.memory_space<vmem>>, vector<2x128xf32>,
    } else {
    }
    %c0 = arith.constant 0 : index
    %c0_1 = arith.constant 0 : index
    %3 = vector.load %arg3[%c0, %c0_1] : memref<3x64xf32, #tpu.memory_space<vmem>>, vector<3x64xf32>
    %c0_2 = arith.constant 0 : index
    %c0_3 = arith.constant 0 : index
    %4 = vector.load %arg4[%c0_2, %c0_3] : memref<1x64xf32, #tpu.memory_space<vmem>>, vector<1x64xf32>
    %c0_4 = arith.constant 0 : index
    %c0_5 = arith.constant 0 : index
    %c0_6 = arith.constant 0 : index
    %5 = vector.load %arg2[%c0_4, %c0_5, %c0_6] : memref<2x1024x3xf32, #tpu.memory_space<vmem>>, vector<1x1024x3xf32>
    %6 = vector.shape_cast %5 : vector<1x1024x3xf32> to vector<1024x3xf32>
    %7 = vector.extract_strided_slice %6 {offsets = [0, 0], sizes = [1024, 1], strides = [1, 1]} : vector<1024x3xf32> to vector<1024x1xf32>
    %8 = vector.extract_strided_slice %3 {offsets = [0, 0], sizes = [1, 64], strides = [1, 1]} : vector<3x64xf32> to vector<1x64xf32>
    %9 = vector.broadcast %7 : vector<1024x1xf32> to vector<1024x64xf32>
    %10 = vector.broadcast %8 : vector<1x64xf32> to vector<1024x64xf32>
    %11 = arith.mulf %9, %10 : vector<1024x64xf32>
    %12 = vector.extract_strided_slice %6 {offsets = [0, 1], sizes = [1024, 1], strides = [1, 1]} : vector<1024x3xf32> to vector<1024x1xf32>
    %13 = vector.extract_strided_slice %3 {offsets = [1, 0], sizes = [1, 64], strides = [1, 1]} : vector<3x64xf32> to vector<1x64xf32>
    %14 = vector.broadcast %12 : vector<1024x1xf32> to vector<1024x64xf32>
    %15 = vector.broadcast %13 : vector<1x64xf32> to vector<1024x64xf32>
    %16 = arith.mulf %14, %15 : vector<1024x64xf32>
    %17 = arith.addf %11, %16 : vector<1024x64xf32>
    %18 = vector.extract_strided_slice %6 {offsets = [0, 2], sizes = [1024, 1], strides = [1, 1]} : vector<1024x3xf32> to vector<1024x1xf32>
    %19 = vector.extract_strided_slice %3 {offsets = [2, 0], sizes = [1, 64], strides = [1, 1]} : vector<3x64xf32> to vector<1x64xf32>
    %20 = vector.broadcast %18 : vector<1024x1xf32> to vector<1024x64xf32>
    %21 = vector.broadcast %19 : vector<1x64xf32> to vector<1024x64xf32>
    %22 = arith.mulf %20, %21 : vector<1024x64xf32>
    %23 = arith.addf %17, %22 : vector<1024x64xf32>
    %24 = vector.broadcast %4 : vector<1x64xf32> to vector<1024x64xf32>
    %25 = arith.addf %23, %24 : vector<1024x64xf32>
    %cst = arith.constant 0.000000e+00 : f32
    %26 = vector.broadcast %cst : f32 to vector<1024x64xf32>
    %27 = arith.maximumf %25, %26 : vector<1024x64xf32>
    %28 = arith.truncf %27 : vector<1024x64xf32> to vector<1024x64xbf16>
    %c0_7 = arith.constant 0 : index
    %c0_8 = arith.constant 0 : index
    %29 = vector.load %arg5[%c0_7, %c0_8] : memref<64x128xbf16, #tpu.memory_space<vmem>>, vector<64x128xbf16>
    %cst_9 = arith.constant dense<0.000000e+00> : vector<1024x128xf32>
    %30 = tpu.matmul %28, %29, %cst_9 {dimension_numbers = #tpu.dot_dimension_numbers<[1], [0], [0], [1], [0, 0, 1, 1], [], []>} : vector<1024x64xbf16>, vector<64x128xbf16>, vector<1024x128xf32> -> vector<1024x128xf32>
    %c0_10 = arith.constant 0 : index
    %c0_11 = arith.constant 0 : index
    %31 = vector.load %arg6[%c0_10, %c0_11] : memref<1x128xf32, #tpu.memory_space<vmem>>, vector<1x128xf32>
    %32 = vector.broadcast %31 : vector<1x128xf32> to vector<1024x128xf32>
    %33 = arith.addf %30, %32 : vector<1024x128xf32>
    %cst_12 = arith.constant 0.000000e+00 : f32
    %34 = vector.broadcast %cst_12 : f32 to vector<1024x128xf32>
    %35 = arith.maximumf %33, %34 : vector<1024x128xf32>
    %36 = arith.truncf %35 : vector<1024x128xf32> to vector<1024x128xbf16>
    %c0_13 = arith.constant 0 : index
    %c0_14 = arith.constant 0 : index
    %37 = vector.load %arg7[%c0_13, %c0_14] : memref<128x128xbf16, #tpu.memory_space<vmem>>, vector<128x128xbf16>
    %cst_15 = arith.constant dense<0.000000e+00> : vector<1024x128xf32>
    %38 = tpu.matmul %36, %37, %cst_15 {dimension_numbers = #tpu.dot_dimension_numbers<[1], [0], [0], [1], [0, 0, 1, 1], [], []>} : vector<1024x128xbf16>, vector<128x128xbf16>, vector<1024x128xf32> -> vector<1024x128xf32>
    %c0_16 = arith.constant 0 : index
    %c0_17 = arith.constant 0 : index
    %39 = vector.load %arg8[%c0_16, %c0_17] : memref<1x128xf32, #tpu.memory_space<vmem>>, vector<1x128xf32>
    %40 = vector.broadcast %39 : vector<1x128xf32> to vector<1024x128xf32>
    %41 = arith.addf %38, %40 : vector<1024x128xf32>
    %cst_18 = arith.constant dense<0xFF800000> : vector<128xf32>
    %42 = vector.multi_reduction <maximumf>, %41, %cst_18 [0] : vector<1024x128xf32> to vector<128xf32>
    %43 = vector.shape_cast %42 : vector<128xf32> to vector<1x128xf32>
    %c0_19 = arith.constant 0 : index
    %c0_20 = arith.constant 0 : index
    %44 = vector.load %arg16[%c0_19, %c0_20] : memref<2x128xf32, #tpu.memory_space<vmem>>, vector<1x128xf32>
    %45 = arith.maximumf %44, %43 : vector<1x128xf32>
    %c0_21 = arith.constant 0 : index
    %c0_22 = arith.constant 0 : index
    %46 = vector.load %arg16[%c0_21, %c0_22] : memref<2x128xf32, #tpu.memory_space<vmem>>, vector<1x128xf32>
    tpu.vector_store %arg16[%c0_21, %c0_22], %45 {strides = array<i32>} : memref<2x128xf32, #tpu.memory_space<vmem>>, vector<1x128xf32>,
    %c1 = arith.constant 1 : index
    %c0_23 = arith.constant 0 : index
    %c0_24 = arith.constant 0 : index
    %47 = vector.load %arg2[%c1, %c0_23, %c0_24] : memref<2x1024x3xf32, #tpu.memory_space<vmem>>, vector<1x1024x3xf32>
    %48 = vector.shape_cast %47 : vector<1x1024x3xf32> to vector<1024x3xf32>
    %49 = vector.extract_strided_slice %48 {offsets = [0, 0], sizes = [1024, 1], strides = [1, 1]} : vector<1024x3xf32> to vector<1024x1xf32>
    %50 = vector.extract_strided_slice %3 {offsets = [0, 0], sizes = [1, 64], strides = [1, 1]} : vector<3x64xf32> to vector<1x64xf32>
    %51 = vector.broadcast %49 : vector<1024x1xf32> to vector<1024x64xf32>
    %52 = vector.broadcast %50 : vector<1x64xf32> to vector<1024x64xf32>
    %53 = arith.mulf %51, %52 : vector<1024x64xf32>
    %54 = vector.extract_strided_slice %48 {offsets = [0, 1], sizes = [1024, 1], strides = [1, 1]} : vector<1024x3xf32> to vector<1024x1xf32>
    %55 = vector.extract_strided_slice %3 {offsets = [1, 0], sizes = [1, 64], strides = [1, 1]} : vector<3x64xf32> to vector<1x64xf32>
    %56 = vector.broadcast %54 : vector<1024x1xf32> to vector<1024x64xf32>
    %57 = vector.broadcast %55 : vector<1x64xf32> to vector<1024x64xf32>
    %58 = arith.mulf %56, %57 : vector<1024x64xf32>
    %59 = arith.addf %53, %58 : vector<1024x64xf32>
    %60 = vector.extract_strided_slice %48 {offsets = [0, 2], sizes = [1024, 1], strides = [1, 1]} : vector<1024x3xf32> to vector<1024x1xf32>
    %61 = vector.extract_strided_slice %3 {offsets = [2, 0], sizes = [1, 64], strides = [1, 1]} : vector<3x64xf32> to vector<1x64xf32>
    %62 = vector.broadcast %60 : vector<1024x1xf32> to vector<1024x64xf32>
    %63 = vector.broadcast %61 : vector<1x64xf32> to vector<1024x64xf32>
    %64 = arith.mulf %62, %63 : vector<1024x64xf32>
    %65 = arith.addf %59, %64 : vector<1024x64xf32>
    %66 = vector.broadcast %4 : vector<1x64xf32> to vector<1024x64xf32>
    %67 = arith.addf %65, %66 : vector<1024x64xf32>
    %cst_25 = arith.constant 0.000000e+00 : f32
    %68 = vector.broadcast %cst_25 : f32 to vector<1024x64xf32>
    %69 = arith.maximumf %67, %68 : vector<1024x64xf32>
    %70 = arith.truncf %69 : vector<1024x64xf32> to vector<1024x64xbf16>
    %c0_26 = arith.constant 0 : index
    %c0_27 = arith.constant 0 : index
    %71 = vector.load %arg5[%c0_26, %c0_27] : memref<64x128xbf16, #tpu.memory_space<vmem>>, vector<64x128xbf16>
    %cst_28 = arith.constant dense<0.000000e+00> : vector<1024x128xf32>
    %72 = tpu.matmul %70, %71, %cst_28 {dimension_numbers = #tpu.dot_dimension_numbers<[1], [0], [0], [1], [0, 0, 1, 1], [], []>} : vector<1024x64xbf16>, vector<64x128xbf16>, vector<1024x128xf32> -> vector<1024x128xf32>
    %c0_29 = arith.constant 0 : index
    %c0_30 = arith.constant 0 : index
    %73 = vector.load %arg6[%c0_29, %c0_30] : memref<1x128xf32, #tpu.memory_space<vmem>>, vector<1x128xf32>
    %74 = vector.broadcast %73 : vector<1x128xf32> to vector<1024x128xf32>
    %75 = arith.addf %72, %74 : vector<1024x128xf32>
    %cst_31 = arith.constant 0.000000e+00 : f32
    %76 = vector.broadcast %cst_31 : f32 to vector<1024x128xf32>
    %77 = arith.maximumf %75, %76 : vector<1024x128xf32>
    %78 = arith.truncf %77 : vector<1024x128xf32> to vector<1024x128xbf16>
    %c0_32 = arith.constant 0 : index
    %c0_33 = arith.constant 0 : index
    %79 = vector.load %arg7[%c0_32, %c0_33] : memref<128x128xbf16, #tpu.memory_space<vmem>>, vector<128x128xbf16>
    %cst_34 = arith.constant dense<0.000000e+00> : vector<1024x128xf32>
    %80 = tpu.matmul %78, %79, %cst_34 {dimension_numbers = #tpu.dot_dimension_numbers<[1], [0], [0], [1], [0, 0, 1, 1], [], []>} : vector<1024x128xbf16>, vector<128x128xbf16>, vector<1024x128xf32> -> vector<1024x128xf32>
    %c0_35 = arith.constant 0 : index
    %c0_36 = arith.constant 0 : index
    %81 = vector.load %arg8[%c0_35, %c0_36] : memref<1x128xf32, #tpu.memory_space<vmem>>, vector<1x128xf32>
    %82 = vector.broadcast %81 : vector<1x128xf32> to vector<1024x128xf32>
    %83 = arith.addf %80, %82 : vector<1024x128xf32>
    %cst_37 = arith.constant dense<0xFF800000> : vector<128xf32>
    %84 = vector.multi_reduction <maximumf>, %83, %cst_37 [0] : vector<1024x128xf32> to vector<128xf32>
    %85 = vector.shape_cast %84 : vector<128xf32> to vector<1x128xf32>
    %c1_38 = arith.constant 1 : index
    %c0_39 = arith.constant 0 : index
    %86 = vector.load %arg16[%c1_38, %c0_39] : memref<2x128xf32, #tpu.memory_space<vmem>>, vector<1x128xf32>
    %87 = arith.maximumf %86, %85 : vector<1x128xf32>
    %c1_40 = arith.constant 1 : index
    %c0_41 = arith.constant 0 : index
    %88 = vector.load %arg16[%c1_40, %c0_41] : memref<2x128xf32, #tpu.memory_space<vmem>>, vector<1x128xf32>
    tpu.vector_store %arg16[%c1_40, %c0_41], %87 {strides = array<i32>} : memref<2x128xf32, #tpu.memory_space<vmem>>, vector<1x128xf32>,
    %c0_i32_42 = arith.constant 0 : i32
    %89 = arith.cmpi eq, %arg1, %c0_i32_42 : i32
    %90 = arith.extui %89 : i1 to i32
    %c0_i32_43 = arith.constant 0 : i32
    %91 = arith.cmpi ne, %90, %c0_i32_43 : i32
    scf.if %91 {
      %c0_44 = arith.constant 0 : index
      %c0_45 = arith.constant 0 : index
      %92 = vector.load %arg16[%c0_44, %c0_45] : memref<2x128xf32, #tpu.memory_space<vmem>>, vector<2x128xf32>
      %c0_46 = arith.constant 0 : index
      %c0_47 = arith.constant 0 : index
      %93 = vector.load %arg9[%c0_46, %c0_47] : memref<128x64xf32, #tpu.memory_space<vmem>>, vector<128x64xf32>
      %cst_48 = arith.constant dense<0.000000e+00> : vector<2x64xf32>
      %94 = tpu.matmul %92, %93, %cst_48 {dimension_numbers = #tpu.dot_dimension_numbers<[1], [0], [0], [1], [0, 0, 1, 1], [], []>} : vector<2x128xf32>, vector<128x64xf32>, vector<2x64xf32> -> vector<2x64xf32>
      %c0_49 = arith.constant 0 : index
      %c0_50 = arith.constant 0 : index
      %95 = vector.load %arg10[%c0_49, %c0_50] : memref<1x64xf32, #tpu.memory_space<vmem>>, vector<1x64xf32>
      %96 = vector.broadcast %95 : vector<1x64xf32> to vector<2x64xf32>
      %97 = arith.addf %94, %96 : vector<2x64xf32>
      %cst_51 = arith.constant 0.000000e+00 : f32
      %98 = vector.broadcast %cst_51 : f32 to vector<2x64xf32>
      %99 = arith.maximumf %97, %98 : vector<2x64xf32>
      %c0_52 = arith.constant 0 : index
      %c0_53 = arith.constant 0 : index
      %100 = vector.load %arg11[%c0_52, %c0_53] : memref<64x64xf32, #tpu.memory_space<vmem>>, vector<64x64xf32>
      %cst_54 = arith.constant dense<0.000000e+00> : vector<2x64xf32>
      %101 = tpu.matmul %99, %100, %cst_54 {dimension_numbers = #tpu.dot_dimension_numbers<[1], [0], [0], [1], [0, 0, 1, 1], [], []>} : vector<2x64xf32>, vector<64x64xf32>, vector<2x64xf32> -> vector<2x64xf32>
      %c0_55 = arith.constant 0 : index
      %c0_56 = arith.constant 0 : index
      %102 = vector.load %arg12[%c0_55, %c0_56] : memref<1x64xf32, #tpu.memory_space<vmem>>, vector<1x64xf32>
      %103 = vector.broadcast %102 : vector<1x64xf32> to vector<2x64xf32>
      %104 = arith.addf %101, %103 : vector<2x64xf32>
      %cst_57 = arith.constant 0.000000e+00 : f32
      %105 = vector.broadcast %cst_57 : f32 to vector<2x64xf32>
      %106 = arith.maximumf %104, %105 : vector<2x64xf32>
      %c0_58 = arith.constant 0 : index
      %c0_59 = arith.constant 0 : index
      %107 = vector.load %arg13[%c0_58, %c0_59] : memref<64x32xf32, #tpu.memory_space<vmem>>, vector<64x32xf32>
      %cst_60 = arith.constant dense<0.000000e+00> : vector<2x32xf32>
      %108 = tpu.matmul %106, %107, %cst_60 {dimension_numbers = #tpu.dot_dimension_numbers<[1], [0], [0], [1], [0, 0, 1, 1], [], []>} : vector<2x64xf32>, vector<64x32xf32>, vector<2x32xf32> -> vector<2x32xf32>
      %c0_61 = arith.constant 0 : index
      %c0_62 = arith.constant 0 : index
      %109 = vector.load %arg14[%c0_61, %c0_62] : memref<1x32xf32, #tpu.memory_space<vmem>>, vector<1x32xf32>
      %110 = vector.broadcast %109 : vector<1x32xf32> to vector<2x32xf32>
      %111 = arith.addf %108, %110 : vector<2x32xf32>
      %112 = math.tanh %111 : vector<2x32xf32>
      %c0_63 = arith.constant 0 : index
      %c0_64 = arith.constant 0 : index
      %c0_65 = arith.constant 0 : index
      %113 = vector.load %arg15[%c0_63, %c0_64, %c0_65] : memref<1x2x32xf32, #tpu.memory_space<vmem>>, vector<1x2x32xf32>
      %114 = vector.shape_cast %113 : vector<1x2x32xf32> to vector<2x32xf32>
      %115 = vector.shape_cast %112 : vector<2x32xf32> to vector<1x2x32xf32>
      tpu.vector_store %arg15[%c0_63, %c0_64, %c0_65], %115 {strides = array<i32>} : memref<1x2x32xf32, #tpu.memory_space<vmem>>, vector<1x2x32xf32>,
    } else {
    }
    return
  }
  func.func @transform_0(%arg0: i32, %arg1: i32) -> (i32, i32, i32) {
    %c0_i32 = arith.constant 0 : i32
    %c0_i32_0 = arith.constant 0 : i32
    return %arg0, %arg1, %c0_i32 : i32, i32, i32
  }
  func.func @transform_1(%arg0: i32, %arg1: i32) -> (i32, i32) {
    %c0_i32 = arith.constant 0 : i32
    %c0_i32_0 = arith.constant 0 : i32
    %c0_i32_1 = arith.constant 0 : i32
    return %c0_i32, %c0_i32_0 : i32, i32
  }
  func.func @transform_2(%arg0: i32, %arg1: i32) -> (i32, i32) {
    %c0_i32 = arith.constant 0 : i32
    %c0_i32_0 = arith.constant 0 : i32
    %c0_i32_1 = arith.constant 0 : i32
    return %c0_i32, %c0_i32_0 : i32, i32
  }
  func.func @transform_3(%arg0: i32, %arg1: i32) -> (i32, i32) {
    %c0_i32 = arith.constant 0 : i32
    %c0_i32_0 = arith.constant 0 : i32
    %c0_i32_1 = arith.constant 0 : i32
    return %c0_i32, %c0_i32_0 : i32, i32
  }
  func.func @transform_4(%arg0: i32, %arg1: i32) -> (i32, i32) {
    %c0_i32 = arith.constant 0 : i32
    %c0_i32_0 = arith.constant 0 : i32
    %c0_i32_1 = arith.constant 0 : i32
    return %c0_i32, %c0_i32_0 : i32, i32
  }
  func.func @transform_5(%arg0: i32, %arg1: i32) -> (i32, i32) {
    %c0_i32 = arith.constant 0 : i32
    %c0_i32_0 = arith.constant 0 : i32
    %c0_i32_1 = arith.constant 0 : i32
    return %c0_i32, %c0_i32_0 : i32, i32
  }
  func.func @transform_6(%arg0: i32, %arg1: i32) -> (i32, i32) {
    %c0_i32 = arith.constant 0 : i32
    %c0_i32_0 = arith.constant 0 : i32
    %c0_i32_1 = arith.constant 0 : i32
    return %c0_i32, %c0_i32_0 : i32, i32
  }
  func.func @transform_7(%arg0: i32, %arg1: i32) -> (i32, i32) {
    %c0_i32 = arith.constant 0 : i32
    %c0_i32_0 = arith.constant 0 : i32
    %c0_i32_1 = arith.constant 0 : i32
    return %c0_i32, %c0_i32_0 : i32, i32
  }
  func.func @transform_8(%arg0: i32, %arg1: i32) -> (i32, i32) {
    %c0_i32 = arith.constant 0 : i32
    %c0_i32_0 = arith.constant 0 : i32
    %c0_i32_1 = arith.constant 0 : i32
    return %c0_i32, %c0_i32_0 : i32, i32
  }
  func.func @transform_9(%arg0: i32, %arg1: i32) -> (i32, i32) {
    %c0_i32 = arith.constant 0 : i32
    %c0_i32_0 = arith.constant 0 : i32
    %c0_i32_1 = arith.constant 0 : i32
    return %c0_i32, %c0_i32_0 : i32, i32
  }
  func.func @transform_10(%arg0: i32, %arg1: i32) -> (i32, i32) {
    %c0_i32 = arith.constant 0 : i32
    %c0_i32_0 = arith.constant 0 : i32
    %c0_i32_1 = arith.constant 0 : i32
    return %c0_i32, %c0_i32_0 : i32, i32
  }
  func.func @transform_11(%arg0: i32, %arg1: i32) -> (i32, i32) {
    %c0_i32 = arith.constant 0 : i32
    %c0_i32_0 = arith.constant 0 : i32
    %c0_i32_1 = arith.constant 0 : i32
    return %c0_i32, %c0_i32_0 : i32, i32
  }
  func.func @transform_12(%arg0: i32, %arg1: i32) -> (i32, i32) {
    %c0_i32 = arith.constant 0 : i32
    %c0_i32_0 = arith.constant 0 : i32
    %c0_i32_1 = arith.constant 0 : i32
    return %c0_i32, %c0_i32_0 : i32, i32
  }
  func.func @transform_13(%arg0: i32, %arg1: i32) -> (i32, i32, i32) {
    %c0_i32 = arith.constant 0 : i32
    %c0_i32_0 = arith.constant 0 : i32
    %c0_i32_1 = arith.constant 0 : i32
    return %arg0, %c0_i32, %c0_i32_0 : i32, i32, i32
  }
}

</mosaic_0001>

<llo_original>
// kernel: pointnet_encoder.1
$region0: #{pointnet_encoder.1}
  #allocation0 [shape = 'u32[]', space=smem, size = 0x4, offset = 0x4, fixed_abs, tag = 'smem constant byte address 0x4 - core index']
  #allocation1 [shape = 'u32[144,128]{1,0:T(1,128)}', space=vmem, size = 0x12000, scoped, tag = 'internal scratch']
  #allocation2 [shape = 'f32[2,128]{1,0:T(2,128)}', space=vmem, size = 0x400, scoped, tag = 'scratch operand']
  %s0 = inlined_call_operand.vmem [shape: f32[2,1024,3], index: 0, kind: input, shape index: {}]
  %s1 = inlined_call_operand.vmem [shape: f32[3,64], index: 1, kind: input, shape index: {}]
  %s2 = inlined_call_operand.vmem [shape: f32[1,64], index: 2, kind: input, shape index: {}]
  %s3 = inlined_call_operand.vmem [shape: bf16[64,128], index: 3, kind: input, shape index: {}]
  %s4 = inlined_call_operand.vmem [shape: f32[1,128], index: 4, kind: input, shape index: {}]
  %s5 = inlined_call_operand.vmem [shape: bf16[128,128], index: 5, kind: input, shape index: {}]
  %s6 = inlined_call_operand.vmem [shape: f32[1,128], index: 6, kind: input, shape index: {}]
  %s7 = inlined_call_operand.vmem [shape: f32[128,64], index: 7, kind: input, shape index: {}]
  %s8 = inlined_call_operand.vmem [shape: f32[1,64], index: 8, kind: input, shape index: {}]
  %s9 = inlined_call_operand.vmem [shape: f32[64,64], index: 9, kind: input, shape index: {}]
  %s10 = inlined_call_operand.vmem [shape: f32[1,64], index: 10, kind: input, shape index: {}]
  %s11 = inlined_call_operand.vmem [shape: f32[64,32], index: 11, kind: input, shape index: {}]
  %s12 = inlined_call_operand.vmem [shape: f32[1,32], index: 12, kind: input, shape index: {}]
  %s13 = inlined_call_operand.hbm [shape: f32[1,2,32], index: 13, kind: output, shape index: {}]
  %s14 = sld [smem:[#allocation0]]
  $region70: #{pointnet_encoder.1} parent=0
    _
  %s16 = ssub.s32 1, %s14
  %s17 = scalar_select 0, %s16, %s14
  $region1: #{pointnet_encoder.1} parent=0
    #allocation3 [shape = 'u8[1024]{0}', space=vmem, size = 0x400, scoped, tag = 'output window, operand 0, single buffered']
    #allocation4 [shape = 's32[1]{0}', space=sflag, size = 0x4, scoped, tag = 'scoped memory for pointnet_encoder.1']
    %18 = vsyncpa [#allocation4], 0
    // Predicated region
    $region2: #{pointnet_encoder.1} parent=1 // pred_check
      _
    $region3: #{pointnet_encoder.1} parent=1 // pred_check_branch
      %20 = sbr.rel (0) target = $region5
    $region4: #{pointnet_encoder.1} parent=1 // pred_region
      _
    $region5: #{pointnet_encoder.1} parent=1 // pred_fallthru
      _
    // Predicated region
    $region6: #{pointnet_encoder.1} parent=1 // pred_check
      _
    $region7: #{pointnet_encoder.1} parent=1 // pred_check_branch
      %22 = sbr.rel (0) target = $region9
    $region8: #{pointnet_encoder.1} parent=1 // pred_region
      _
    $region9: #{pointnet_encoder.1} parent=1 // pred_fallthru
      _
    // Predicated region
    $region10: #{pointnet_encoder.1} parent=1 // pred_check
      _
    $region11: #{pointnet_encoder.1} parent=1 // pred_check_branch
      %24 = sbr.rel (0) target = $region13
    $region12: #{pointnet_encoder.1} parent=1 // pred_region
      _
    $region13: #{pointnet_encoder.1} parent=1 // pred_fallthru
      _
    // Predicated region
    $region14: #{pointnet_encoder.1} parent=1 // pred_check
      _
    $region15: #{pointnet_encoder.1} parent=1 // pred_check_branch
      %26 = sbr.rel (0) target = $region17
    $region16: #{pointnet_encoder.1} parent=1 // pred_region
      _
    $region17: #{pointnet_encoder.1} parent=1 // pred_fallthru
      _
    // Predicated region
    $region18: #{pointnet_encoder.1} parent=1 // pred_check
      _
    $region19: #{pointnet_encoder.1} parent=1 // pred_check_branch
      %28 = sbr.rel (0) target = $region21
    $region20: #{pointnet_encoder.1} parent=1 // pred_region
      _
    $region21: #{pointnet_encoder.1} parent=1 // pred_fallthru
      _
    // Predicated region
    $region22: #{pointnet_encoder.1} parent=1 // pred_check
      _
    $region23: #{pointnet_encoder.1} parent=1 // pred_check_branch
      %30 = sbr.rel (0) target = $region25
    $region24: #{pointnet_encoder.1} parent=1 // pred_region
      _
    $region25: #{pointnet_encoder.1} parent=1 // pred_fallthru
      _
    // Predicated region
    $region26: #{pointnet_encoder.1} parent=1 // pred_check
      _
    $region27: #{pointnet_encoder.1} parent=1 // pred_check_branch
      %32 = sbr.rel (0) target = $region29
    $region28: #{pointnet_encoder.1} parent=1 // pred_region
      _
    $region29: #{pointnet_encoder.1} parent=1 // pred_fallthru
      _
    // Predicated region
    $region30: #{pointnet_encoder.1} parent=1 // pred_check
      _
    $region31: #{pointnet_encoder.1} parent=1 // pred_check_branch
      %34 = sbr.rel (0) target = $region33
    $region32: #{pointnet_encoder.1} parent=1 // pred_region
      _
    $region33: #{pointnet_encoder.1} parent=1 // pred_fallthru
      _
    // Predicated region
    $region34: #{pointnet_encoder.1} parent=1 // pred_check
      _
    $region35: #{pointnet_encoder.1} parent=1 // pred_check_branch
      %36 = sbr.rel (0) target = $region37
    $region36: #{pointnet_encoder.1} parent=1 // pred_region
      _
    $region37: #{pointnet_encoder.1} parent=1 // pred_fallthru
      _
    // Predicated region
    $region38: #{pointnet_encoder.1} parent=1 // pred_check
      _
    $region39: #{pointnet_encoder.1} parent=1 // pred_check_branch
      %38 = sbr.rel (0) target = $region41
    $region40: #{pointnet_encoder.1} parent=1 // pred_region
      _
    $region41: #{pointnet_encoder.1} parent=1 // pred_fallthru
      _
    // Predicated region
    $region42: #{pointnet_encoder.1} parent=1 // pred_check
      _
    $region43: #{pointnet_encoder.1} parent=1 // pred_check_branch
      %40 = sbr.rel (0) target = $region45
    $region44: #{pointnet_encoder.1} parent=1 // pred_region
      _
    $region45: #{pointnet_encoder.1} parent=1 // pred_fallthru
      _
    // Predicated region
    $region46: #{pointnet_encoder.1} parent=1 // pred_check
      _
    $region47: #{pointnet_encoder.1} parent=1 // pred_check_branch
      %42 = sbr.rel (0) target = $region49
    $region48: #{pointnet_encoder.1} parent=1 // pred_region
      _
    $region49: #{pointnet_encoder.1} parent=1 // pred_fallthru
      _
    // Predicated region
    $region50: #{pointnet_encoder.1} parent=1 // pred_check
      _
    $region51: #{pointnet_encoder.1} parent=1 // pred_check_branch
      %44 = sbr.rel (0) target = $region53
    $region52: #{pointnet_encoder.1} parent=1 // pred_region
      _
    $region53: #{pointnet_encoder.1} parent=1 // pred_fallthru
      _
    %p46 = scmp.eq.s32.totalorder 0, 0
    // Predicated region
    $region54: #{pointnet_encoder.1} parent=1 // pred_check
      %p47 = pneg %p46
    $region55: #{pointnet_encoder.1} parent=1 // pred_check_branch
      %49 = sbr.rel (%p47) target = $region57
    $region56: #{pointnet_encoder.1} parent=1 // pred_region
      %50 = vst [vmem:[#allocation2] sm:$0x3] -inf
    $region57: #{pointnet_encoder.1} parent=1 // pred_fallthru
      _
    %v51 = vld [vmem:[%s1] sm:$0x7]
    %v52 = vld [vmem:[%s2] sm:$0x1]
    %v53 = vld [vmem:[%s0] sm:$0xff]
    %v54 = vld [vmem:[%s0 + $0x8] sm:$0xff]
    %v55 = vld [vmem:[%s0 + $0x10] sm:$0xff]
    %v56 = vld [vmem:[%s0 + $0x18] sm:$0xff]
    %v57 = vld [vmem:[%s0 + $0x20] sm:$0xff]
    %v58 = vld [vmem:[%s0 + $0x28] sm:$0xff]
    %v59 = vld [vmem:[%s0 + $0x30] sm:$0xff]
    %v60 = vld [vmem:[%s0 + $0x38] sm:$0xff]
    %v61 = vld [vmem:[%s0 + $0x40] sm:$0xff]
    %v62 = vld [vmem:[%s0 + $0x48] sm:$0xff]
    %v63 = vld [vmem:[%s0 + $0x50] sm:$0xff]
    %v64 = vld [vmem:[%s0 + $0x58] sm:$0xff]
    %v65 = vld [vmem:[%s0 + $0x60] sm:$0xff]
    %v66 = vld [vmem:[%s0 + $0x68] sm:$0xff]
    %v67 = vld [vmem:[%s0 + $0x70] sm:$0xff]
    %v68 = vld [vmem:[%s0 + $0x78] sm:$0xff]
    %v69 = vld [vmem:[%s0 + $0x80] sm:$0xff]
    %v70 = vld [vmem:[%s0 + $0x88] sm:$0xff]
    %v71 = vld [vmem:[%s0 + $0x90] sm:$0xff]
    %v72 = vld [vmem:[%s0 + $0x98] sm:$0xff]
    %v73 = vld [vmem:[%s0 + $0xa0] sm:$0xff]
    %v74 = vld [vmem:[%s0 + $0xa8] sm:$0xff]
    %v75 = vld [vmem:[%s0 + $0xb0] sm:$0xff]
    %v76 = vld [vmem:[%s0 + $0xb8] sm:$0xff]
    %v77 = vld [vmem:[%s0 + $0xc0] sm:$0xff]
    %v78 = vld [vmem:[%s0 + $0xc8] sm:$0xff]
    %v79 = vld [vmem:[%s0 + $0xd0] sm:$0xff]
    %v80 = vld [vmem:[%s0 + $0xd8] sm:$0xff]
    %v81 = vld [vmem:[%s0 + $0xe0] sm:$0xff]
    %v82 = vld [vmem:[%s0 + $0xe8] sm:$0xff]
    %v83 = vld [vmem:[%s0 + $0xf0] sm:$0xff]
    %v84 = vld [vmem:[%s0 + $0xf8] sm:$0xff]
    %v85 = vld [vmem:[%s0 + $0x100] sm:$0xff]
    %v86 = vld [vmem:[%s0 + $0x108] sm:$0xff]
    %v87 = vld [vmem:[%s0 + $0x110] sm:$0xff]
    %v88 = vld [vmem:[%s0 + $0x118] sm:$0xff]
    %v89 = vld [vmem:[%s0 + $0x120] sm:$0xff]
    %v90 = vld [vmem:[%s0 + $0x128] sm:$0xff]
    %v91 = vld [vmem:[%s0 + $0x130] sm:$0xff]
    %v92 = vld [vmem:[%s0 + $0x138] sm:$0xff]
    %v93 = vld [vmem:[%s0 + $0x140] sm:$0xff]
    %v94 = vld [vmem:[%s0 + $0x148] sm:$0xff]
    %v95 = vld [vmem:[%s0 + $0x150] sm:$0xff]
    %v96 = vld [vmem:[%s0 + $0x158] sm:$0xff]
    %v97 = vld [vmem:[%s0 + $0x160] sm:$0xff]
    %v98 = vld [vmem:[%s0 + $0x168] sm:$0xff]
    %v99 = vld [vmem:[%s0 + $0x170] sm:$0xff]
    %v100 = vld [vmem:[%s0 + $0x178] sm:$0xff]
    %v101 = vld [vmem:[%s0 + $0x180] sm:$0xff]
    %v102 = vld [vmem:[%s0 + $0x188] sm:$0xff]
    %v103 = vld [vmem:[%s0 + $0x190] sm:$0xff]
    %v104 = vld [vmem:[%s0 + $0x198] sm:$0xff]
    %v105 = vld [vmem:[%s0 + $0x1a0] sm:$0xff]
    %v106 = vld [vmem:[%s0 + $0x1a8] sm:$0xff]
    %v107 = vld [vmem:[%s0 + $0x1b0] sm:$0xff]
    %v108 = vld [vmem:[%s0 + $0x1b8] sm:$0xff]
    %v109 = vld [vmem:[%s0 + $0x1c0] sm:$0xff]
    %v110 = vld [vmem:[%s0 + $0x1c8] sm:$0xff]
    %v111 = vld [vmem:[%s0 + $0x1d0] sm:$0xff]
    %v112 = vld [vmem:[%s0 + $0x1d8] sm:$0xff]
    %v113 = vld [vmem:[%s0 + $0x1e0] sm:$0xff]
    %v114 = vld [vmem:[%s0 + $0x1e8] sm:$0xff]
    %v115 = vld [vmem:[%s0 + $0x1f0] sm:$0xff]
    %v116 = vld [vmem:[%s0 + $0x1f8] sm:$0xff]
    %v117 = vld [vmem:[%s0 + $0x200] sm:$0xff]
    %v118 = vld [vmem:[%s0 + $0x208] sm:$0xff]
    %v119 = vld [vmem:[%s0 + $0x210] sm:$0xff]
    %v120 = vld [vmem:[%s0 + $0x218] sm:$0xff]
    %v121 = vld [vmem:[%s0 + $0x220] sm:$0xff]
    %v122 = vld [vmem:[%s0 + $0x228] sm:$0xff]
    %v123 = vld [vmem:[%s0 + $0x230] sm:$0xff]
    %v124 = vld [vmem:[%s0 + $0x238] sm:$0xff]
    %v125 = vld [vmem:[%s0 + $0x240] sm:$0xff]
    %v126 = vld [vmem:[%s0 + $0x248] sm:$0xff]
    %v127 = vld [vmem:[%s0 + $0x250] sm:$0xff]
    %v128 = vld [vmem:[%s0 + $0x258] sm:$0xff]
    %v129 = vld [vmem:[%s0 + $0x260] sm:$0xff]
    %v130 = vld [vmem:[%s0 + $0x268] sm:$0xff]
    %v131 = vld [vmem:[%s0 + $0x270] sm:$0xff]
    %v132 = vld [vmem:[%s0 + $0x278] sm:$0xff]
    %v133 = vld [vmem:[%s0 + $0x280] sm:$0xff]
    %v134 = vld [vmem:[%s0 + $0x288] sm:$0xff]
    %v135 = vld [vmem:[%s0 + $0x290] sm:$0xff]
    %v136 = vld [vmem:[%s0 + $0x298] sm:$0xff]
    %v137 = vld [vmem:[%s0 + $0x2a0] sm:$0xff]
    %v138 = vld [vmem:[%s0 + $0x2a8] sm:$0xff]
    %v139 = vld [vmem:[%s0 + $0x2b0] sm:$0xff]
    %v140 = vld [vmem:[%s0 + $0x2b8] sm:$0xff]
    %v141 = vld [vmem:[%s0 + $0x2c0] sm:$0xff]
    %v142 = vld [vmem:[%s0 + $0x2c8] sm:$0xff]
    %v143 = vld [vmem:[%s0 + $0x2d0] sm:$0xff]
    %v144 = vld [vmem:[%s0 + $0x2d8] sm:$0xff]
    %v145 = vld [vmem:[%s0 + $0x2e0] sm:$0xff]
    %v146 = vld [vmem:[%s0 + $0x2e8] sm:$0xff]
    %v147 = vld [vmem:[%s0 + $0x2f0] sm:$0xff]
    %v148 = vld [vmem:[%s0 + $0x2f8] sm:$0xff]
    %v149 = vld [vmem:[%s0 + $0x300] sm:$0xff]
    %v150 = vld [vmem:[%s0 + $0x308] sm:$0xff]
    %v151 = vld [vmem:[%s0 + $0x310] sm:$0xff]
    %v152 = vld [vmem:[%s0 + $0x318] sm:$0xff]
    %v153 = vld [vmem:[%s0 + $0x320] sm:$0xff]
    %v154 = vld [vmem:[%s0 + $0x328] sm:$0xff]
    %v155 = vld [vmem:[%s0 + $0x330] sm:$0xff]
    %v156 = vld [vmem:[%s0 + $0x338] sm:$0xff]
    %v157 = vld [vmem:[%s0 + $0x340] sm:$0xff]
    %v158 = vld [vmem:[%s0 + $0x348] sm:$0xff]
    %v159 = vld [vmem:[%s0 + $0x350] sm:$0xff]
    %v160 = vld [vmem:[%s0 + $0x358] sm:$0xff]
    %v161 = vld [vmem:[%s0 + $0x360] sm:$0xff]
    %v162 = vld [vmem:[%s0 + $0x368] sm:$0xff]
    %v163 = vld [vmem:[%s0 + $0x370] sm:$0xff]
    %v164 = vld [vmem:[%s0 + $0x378] sm:$0xff]
    %v165 = vld [vmem:[%s0 + $0x380] sm:$0xff]
    %v166 = vld [vmem:[%s0 + $0x388] sm:$0xff]
    %v167 = vld [vmem:[%s0 + $0x390] sm:$0xff]
    %v168 = vld [vmem:[%s0 + $0x398] sm:$0xff]
    %v169 = vld [vmem:[%s0 + $0x3a0] sm:$0xff]
    %v170 = vld [vmem:[%s0 + $0x3a8] sm:$0xff]
    %v171 = vld [vmem:[%s0 + $0x3b0] sm:$0xff]
    %v172 = vld [vmem:[%s0 + $0x3b8] sm:$0xff]
    %v173 = vld [vmem:[%s0 + $0x3c0] sm:$0xff]
    %v174 = vld [vmem:[%s0 + $0x3c8] sm:$0xff]
    %v175 = vld [vmem:[%s0 + $0x3d0] sm:$0xff]
    %v176 = vld [vmem:[%s0 + $0x3d8] sm:$0xff]
    %v177 = vld [vmem:[%s0 + $0x3e0] sm:$0xff]
    %v178 = vld [vmem:[%s0 + $0x3e8] sm:$0xff]
    %v179 = vld [vmem:[%s0 + $0x3f0] sm:$0xff]
    %v180 = vld [vmem:[%s0 + $0x3f8] sm:$0xff]
    %182 = vset.pattern.permute.xlu0 0
    %183 = vperm.xlu0 %182, %v53
    %v184 = vpop.permute.xlu0 %183
    %187 = vset.pattern.permute.xlu0 0
    %188 = vperm.xlu0 %187, %v54
    %v189 = vpop.permute.xlu0 %188
    %192 = vset.pattern.permute.xlu0 0
    %193 = vperm.xlu0 %192, %v55
    %v194 = vpop.permute.xlu0 %193
    %197 = vset.pattern.permute.xlu0 0
    %198 = vperm.xlu0 %197, %v56
    %v199 = vpop.permute.xlu0 %198
    %202 = vset.pattern.permute.xlu0 0
    %203 = vperm.xlu0 %202, %v57
    %v204 = vpop.permute.xlu0 %203
    %207 = vset.pattern.permute.xlu0 0
    %208 = vperm.xlu0 %207, %v58
    %v209 = vpop.permute.xlu0 %208
    %212 = vset.pattern.permute.xlu0 0
    %213 = vperm.xlu0 %212, %v59
    %v214 = vpop.permute.xlu0 %213
    %217 = vset.pattern.permute.xlu0 0
    %218 = vperm.xlu0 %217, %v60
    %v219 = vpop.permute.xlu0 %218
    %222 = vset.pattern.permute.xlu0 0
    %223 = vperm.xlu0 %222, %v61
    %v224 = vpop.permute.xlu0 %223
    %227 = vset.pattern.permute.xlu0 0
    %228 = vperm.xlu0 %227, %v62
    %v229 = vpop.permute.xlu0 %228
    %232 = vset.pattern.permute.xlu0 0
    %233 = vperm.xlu0 %232, %v63
    %v234 = vpop.permute.xlu0 %233
    %237 = vset.pattern.permute.xlu0 0
    %238 = vperm.xlu0 %237, %v64
    %v239 = vpop.permute.xlu0 %238
    %242 = vset.pattern.permute.xlu0 0
    %243 = vperm.xlu0 %242, %v65
    %v244 = vpop.permute.xlu0 %243
    %247 = vset.pattern.permute.xlu0 0
    %248 = vperm.xlu0 %247, %v66
    %v249 = vpop.permute.xlu0 %248
    %252 = vset.pattern.permute.xlu0 0
    %253 = vperm.xlu0 %252, %v67
    %v254 = vpop.permute.xlu0 %253
    %257 = vset.pattern.permute.xlu0 0
    %258 = vperm.xlu0 %257, %v68
    %v259 = vpop.permute.xlu0 %258
    %262 = vset.pattern.permute.xlu0 0
    %263 = vperm.xlu0 %262, %v69
    %v264 = vpop.permute.xlu0 %263
    %267 = vset.pattern.permute.xlu0 0
    %268 = vperm.xlu0 %267, %v70
    %v269 = vpop.permute.xlu0 %268
    %272 = vset.pattern.permute.xlu0 0
    %273 = vperm.xlu0 %272, %v71
    %v274 = vpop.permute.xlu0 %273
    %277 = vset.pattern.permute.xlu0 0
    %278 = vperm.xlu0 %277, %v72
    %v279 = vpop.permute.xlu0 %278
    %282 = vset.pattern.permute.xlu0 0
    %283 = vperm.xlu0 %282, %v73
    %v284 = vpop.permute.xlu0 %283
    %287 = vset.pattern.permute.xlu0 0
    %288 = vperm.xlu0 %287, %v74
    %v289 = vpop.permute.xlu0 %288
    %292 = vset.pattern.permute.xlu0 0
    %293 = vperm.xlu0 %292, %v75
    %v294 = vpop.permute.xlu0 %293
    %297 = vset.pattern.permute.xlu0 0
    %298 = vperm.xlu0 %297, %v76
    %v299 = vpop.permute.xlu0 %298
    %302 = vset.pattern.permute.xlu0 0
    %303 = vperm.xlu0 %302, %v77
    %v304 = vpop.permute.xlu0 %303
    %307 = vset.pattern.permute.xlu0 0
    %308 = vperm.xlu0 %307, %v78
    %v309 = vpop.permute.xlu0 %308
    %312 = vset.pattern.permute.xlu0 0
    %313 = vperm.xlu0 %312, %v79
    %v314 = vpop.permute.xlu0 %313
    %317 = vset.pattern.permute.xlu0 0
    %318 = vperm.xlu0 %317, %v80
    %v319 = vpop.permute.xlu0 %318
    %322 = vset.pattern.permute.xlu0 0
    %323 = vperm.xlu0 %322, %v81
    %v324 = vpop.permute.xlu0 %323
    %327 = vset.pattern.permute.xlu0 0
    %328 = vperm.xlu0 %327, %v82
    %v329 = vpop.permute.xlu0 %328
    %332 = vset.pattern.permute.xlu0 0
    %333 = vperm.xlu0 %332, %v83
    %v334 = vpop.permute.xlu0 %333
    %337 = vset.pattern.permute.xlu0 0
    %338 = vperm.xlu0 %337, %v84
    %v339 = vpop.permute.xlu0 %338
    %342 = vset.pattern.permute.xlu0 0
    %343 = vperm.xlu0 %342, %v85
    %v344 = vpop.permute.xlu0 %343
    %347 = vset.pattern.permute.xlu0 0
    %348 = vperm.xlu0 %347, %v86
    %v349 = vpop.permute.xlu0 %348
    %352 = vset.pattern.permute.xlu0 0
    %353 = vperm.xlu0 %352, %v87
    %v354 = vpop.permute.xlu0 %353
    %357 = vset.pattern.permute.xlu0 0
    %358 = vperm.xlu0 %357, %v88
    %v359 = vpop.permute.xlu0 %358
    %362 = vset.pattern.permute.xlu0 0
    %363 = vperm.xlu0 %362, %v89
    %v364 = vpop.permute.xlu0 %363
    %367 = vset.pattern.permute.xlu0 0
    %368 = vperm.xlu0 %367, %v90
    %v369 = vpop.permute.xlu0 %368
    %372 = vset.pattern.permute.xlu0 0
    %373 = vperm.xlu0 %372, %v91
    %v374 = vpop.permute.xlu0 %373
    %377 = vset.pattern.permute.xlu0 0
    %378 = vperm.xlu0 %377, %v92
    %v379 = vpop.permute.xlu0 %378
    %382 = vset.pattern.permute.xlu0 0
    %383 = vperm.xlu0 %382, %v93
    %v384 = vpop.permute.xlu0 %383
    %387 = vset.pattern.permute.xlu0 0
    %388 = vperm.xlu0 %387, %v94
    %v389 = vpop.permute.xlu0 %388
    %392 = vset.pattern.permute.xlu0 0
    %393 = vperm.xlu0 %392, %v95
    %v394 = vpop.permute.xlu0 %393
    %397 = vset.pattern.permute.xlu0 0
    %398 = vperm.xlu0 %397, %v96
    %v399 = vpop.permute.xlu0 %398
    %402 = vset.pattern.permute.xlu0 0
    %403 = vperm.xlu0 %402, %v97
    %v404 = vpop.permute.xlu0 %403
    %407 = vset.pattern.permute.xlu0 0
    %408 = vperm.xlu0 %407, %v98
    %v409 = vpop.permute.xlu0 %408
    %412 = vset.pattern.permute.xlu0 0
    %413 = vperm.xlu0 %412, %v99
    %v414 = vpop.permute.xlu0 %413
    %417 = vset.pattern.permute.xlu0 0
    %418 = vperm.xlu0 %417, %v100
    %v419 = vpop.permute.xlu0 %418
    %422 = vset.pattern.permute.xlu0 0
    %423 = vperm.xlu0 %422, %v101
    %v424 = vpop.permute.xlu0 %423
    %427 = vset.pattern.permute.xlu0 0
    %428 = vperm.xlu0 %427, %v102
    %v429 = vpop.permute.xlu0 %428
    %432 = vset.pattern.permute.xlu0 0
    %433 = vperm.xlu0 %432, %v103
    %v434 = vpop.permute.xlu0 %433
    %437 = vset.pattern.permute.xlu0 0
    %438 = vperm.xlu0 %437, %v104
    %v439 = vpop.permute.xlu0 %438
    %442 = vset.pattern.permute.xlu0 0
    %443 = vperm.xlu0 %442, %v105
    %v444 = vpop.permute.xlu0 %443
    %447 = vset.pattern.permute.xlu0 0
    %448 = vperm.xlu0 %447, %v106
    %v449 = vpop.permute.xlu0 %448
    %452 = vset.pattern.permute.xlu0 0
    %453 = vperm.xlu0 %452, %v107
    %v454 = vpop.permute.xlu0 %453
    %457 = vset.pattern.permute.xlu0 0
    %458 = vperm.xlu0 %457, %v108
    %v459 = vpop.permute.xlu0 %458
    %462 = vset.pattern.permute.xlu0 0
    %463 = vperm.xlu0 %462, %v109
    %v464 = vpop.permute.xlu0 %463
    %467 = vset.pattern.permute.xlu0 0
    %468 = vperm.xlu0 %467, %v110
    %v469 = vpop.permute.xlu0 %468
    %472 = vset.pattern.permute.xlu0 0
    %473 = vperm.xlu0 %472, %v111
    %v474 = vpop.permute.xlu0 %473
    %477 = vset.pattern.permute.xlu0 0
    %478 = vperm.xlu0 %477, %v112
    %v479 = vpop.permute.xlu0 %478
    %482 = vset.pattern.permute.xlu0 0
    %483 = vperm.xlu0 %482, %v113
    %v484 = vpop.permute.xlu0 %483
    %487 = vset.pattern.permute.xlu0 0
    %488 = vperm.xlu0 %487, %v114
    %v489 = vpop.permute.xlu0 %488
    %492 = vset.pattern.permute.xlu0 0
    %493 = vperm.xlu0 %492, %v115
    %v494 = vpop.permute.xlu0 %493
    %497 = vset.pattern.permute.xlu0 0
    %498 = vperm.xlu0 %497, %v116
    %v499 = vpop.permute.xlu0 %498
    %502 = vset.pattern.permute.xlu0 0
    %503 = vperm.xlu0 %502, %v117
    %v504 = vpop.permute.xlu0 %503
    %507 = vset.pattern.permute.xlu0 0
    %508 = vperm.xlu0 %507, %v118
    %v509 = vpop.permute.xlu0 %508
    %512 = vset.pattern.permute.xlu0 0
    %513 = vperm.xlu0 %512, %v119
    %v514 = vpop.permute.xlu0 %513
    %517 = vset.pattern.permute.xlu0 0
    %518 = vperm.xlu0 %517, %v120
    %v519 = vpop.permute.xlu0 %518
    %522 = vset.pattern.permute.xlu0 0
    %523 = vperm.xlu0 %522, %v121
    %v524 = vpop.permute.xlu0 %523
    %527 = vset.pattern.permute.xlu0 0
    %528 = vperm.xlu0 %527, %v122
    %v529 = vpop.permute.xlu0 %528
    %532 = vset.pattern.permute.xlu0 0
    %533 = vperm.xlu0 %532, %v123
    %v534 = vpop.permute.xlu0 %533
    %537 = vset.pattern.permute.xlu0 0
    %538 = vperm.xlu0 %537, %v124
    %v539 = vpop.permute.xlu0 %538
    %542 = vset.pattern.permute.xlu0 0
    %543 = vperm.xlu0 %542, %v125
    %v544 = vpop.permute.xlu0 %543
    %547 = vset.pattern.permute.xlu0 0
    %548 = vperm.xlu0 %547, %v126
    %v549 = vpop.permute.xlu0 %548
    %552 = vset.pattern.permute.xlu0 0
    %553 = vperm.xlu0 %552, %v127
    %v554 = vpop.permute.xlu0 %553
    %557 = vset.pattern.permute.xlu0 0
    %558 = vperm.xlu0 %557, %v128
    %v559 = vpop.permute.xlu0 %558
    %562 = vset.pattern.permute.xlu0 0
    %563 = vperm.xlu0 %562, %v129
    %v564 = vpop.permute.xlu0 %563
    %567 = vset.pattern.permute.xlu0 0
    %568 = vperm.xlu0 %567, %v130
    %v569 = vpop.permute.xlu0 %568
    %572 = vset.pattern.permute.xlu0 0
    %573 = vperm.xlu0 %572, %v131
    %v574 = vpop.permute.xlu0 %573
    %577 = vset.pattern.permute.xlu0 0
    %578 = vperm.xlu0 %577, %v132
    %v579 = vpop.permute.xlu0 %578
    %582 = vset.pattern.permute.xlu0 0
    %583 = vperm.xlu0 %582, %v133
    %v584 = vpop.permute.xlu0 %583
    %587 = vset.pattern.permute.xlu0 0
    %588 = vperm.xlu0 %587, %v134
    %v589 = vpop.permute.xlu0 %588
    %592 = vset.pattern.permute.xlu0 0
    %593 = vperm.xlu0 %592, %v135
    %v594 = vpop.permute.xlu0 %593
    %597 = vset.pattern.permute.xlu0 0
    %598 = vperm.xlu0 %597, %v136
    %v599 = vpop.permute.xlu0 %598
    %602 = vset.pattern.permute.xlu0 0
    %603 = vperm.xlu0 %602, %v137
    %v604 = vpop.permute.xlu0 %603
    %607 = vset.pattern.permute.xlu0 0
    %608 = vperm.xlu0 %607, %v138
    %v609 = vpop.permute.xlu0 %608
    %612 = vset.pattern.permute.xlu0 0
    %613 = vperm.xlu0 %612, %v139
    %v614 = vpop.permute.xlu0 %613
    %617 = vset.pattern.permute.xlu0 0
    %618 = vperm.xlu0 %617, %v140
    %v619 = vpop.permute.xlu0 %618
    %622 = vset.pattern.permute.xlu0 0
    %623 = vperm.xlu0 %622, %v141
    %v624 = vpop.permute.xlu0 %623
    %627 = vset.pattern.permute.xlu0 0
    %628 = vperm.xlu0 %627, %v142
    %v629 = vpop.permute.xlu0 %628
    %632 = vset.pattern.permute.xlu0 0
    %633 = vperm.xlu0 %632, %v143
    %v634 = vpop.permute.xlu0 %633
    %637 = vset.pattern.permute.xlu0 0
    %638 = vperm.xlu0 %637, %v144
    %v639 = vpop.permute.xlu0 %638
    %642 = vset.pattern.permute.xlu0 0
    %643 = vperm.xlu0 %642, %v145
    %v644 = vpop.permute.xlu0 %643
    %647 = vset.pattern.permute.xlu0 0
    %648 = vperm.xlu0 %647, %v146
    %v649 = vpop.permute.xlu0 %648
    %652 = vset.pattern.permute.xlu0 0
    %653 = vperm.xlu0 %652, %v147
    %v654 = vpop.permute.xlu0 %653
    %657 = vset.pattern.permute.xlu0 0
    %658 = vperm.xlu0 %657, %v148
    %v659 = vpop.permute.xlu0 %658
    %662 = vset.pattern.permute.xlu0 0
    %663 = vperm.xlu0 %662, %v149
    %v664 = vpop.permute.xlu0 %663
    %667 = vset.pattern.permute.xlu0 0
    %668 = vperm.xlu0 %667, %v150
    %v669 = vpop.permute.xlu0 %668
    %672 = vset.pattern.permute.xlu0 0
    %673 = vperm.xlu0 %672, %v151
    %v674 = vpop.permute.xlu0 %673
    %677 = vset.pattern.permute.xlu0 0
    %678 = vperm.xlu0 %677, %v152
    %v679 = vpop.permute.xlu0 %678
    %682 = vset.pattern.permute.xlu0 0
    %683 = vperm.xlu0 %682, %v153
    %v684 = vpop.permute.xlu0 %683
    %687 = vset.pattern.permute.xlu0 0
    %688 = vperm.xlu0 %687, %v154
    %v689 = vpop.permute.xlu0 %688
    %692 = vset.pattern.permute.xlu0 0
    %693 = vperm.xlu0 %692, %v155
    %v694 = vpop.permute.xlu0 %693
    %697 = vset.pattern.permute.xlu0 0
    %698 = vperm.xlu0 %697, %v156
    %v699 = vpop.permute.xlu0 %698
    %702 = vset.pattern.permute.xlu0 0
    %703 = vperm.xlu0 %702, %v157
    %v704 = vpop.permute.xlu0 %703
    %707 = vset.pattern.permute.xlu0 0
    %708 = vperm.xlu0 %707, %v158
    %v709 = vpop.permute.xlu0 %708
    %712 = vset.pattern.permute.xlu0 0
    %713 = vperm.xlu0 %712, %v159
    %v714 = vpop.permute.xlu0 %713
    %717 = vset.pattern.permute.xlu0 0
    %718 = vperm.xlu0 %717, %v160
    %v719 = vpop.permute.xlu0 %718
    %722 = vset.pattern.permute.xlu0 0
    %723 = vperm.xlu0 %722, %v161
    %v724 = vpop.permute.xlu0 %723
    %727 = vset.pattern.permute.xlu0 0
    %728 = vperm.xlu0 %727, %v162
    %v729 = vpop.permute.xlu0 %728
    %732 = vset.pattern.permute.xlu0 0
    %733 = vperm.xlu0 %732, %v163
    %v734 = vpop.permute.xlu0 %733
    %737 = vset.pattern.permute.xlu0 0
    %738 = vperm.xlu0 %737, %v164
    %v739 = vpop.permute.xlu0 %738
    %742 = vset.pattern.permute.xlu0 0
    %743 = vperm.xlu0 %742, %v165
    %v744 = vpop.permute.xlu0 %743
    %747 = vset.pattern.permute.xlu0 0
    %748 = vperm.xlu0 %747, %v166
    %v749 = vpop.permute.xlu0 %748
    %752 = vset.pattern.permute.xlu0 0
    %753 = vperm.xlu0 %752, %v167
    %v754 = vpop.permute.xlu0 %753
    %757 = vset.pattern.permute.xlu0 0
    %758 = vperm.xlu0 %757, %v168
    %v759 = vpop.permute.xlu0 %758
    %762 = vset.pattern.permute.xlu0 0
    %763 = vperm.xlu0 %762, %v169
    %v764 = vpop.permute.xlu0 %763
    %767 = vset.pattern.permute.xlu0 0
    %768 = vperm.xlu0 %767, %v170
    %v769 = vpop.permute.xlu0 %768
    %772 = vset.pattern.permute.xlu0 0
    %773 = vperm.xlu0 %772, %v171
    %v774 = vpop.permute.xlu0 %773
    %777 = vset.pattern.permute.xlu0 0
    %778 = vperm.xlu0 %777, %v172
    %v779 = vpop.permute.xlu0 %778
    %782 = vset.pattern.permute.xlu0 0
    %783 = vperm.xlu0 %782, %v173
    %v784 = vpop.permute.xlu0 %783
    %787 = vset.pattern.permute.xlu0 0
    %788 = vperm.xlu0 %787, %v174
    %v789 = vpop.permute.xlu0 %788
    %792 = vset.pattern.permute.xlu0 0
    %793 = vperm.xlu0 %792, %v175
    %v794 = vpop.permute.xlu0 %793
    %797 = vset.pattern.permute.xlu0 0
    %798 = vperm.xlu0 %797, %v176
    %v799 = vpop.permute.xlu0 %798
    %802 = vset.pattern.permute.xlu0 0
    %803 = vperm.xlu0 %802, %v177
    %v804 = vpop.permute.xlu0 %803
    %807 = vset.pattern.permute.xlu0 0
    %808 = vperm.xlu0 %807, %v178
    %v809 = vpop.permute.xlu0 %808
    %812 = vset.pattern.permute.xlu0 0
    %813 = vperm.xlu0 %812, %v179
    %v814 = vpop.permute.xlu0 %813
    %817 = vset.pattern.permute.xlu0 0
    %818 = vperm.xlu0 %817, %v180
    %v819 = vpop.permute.xlu0 %818
    %v821 = vlaneseq
    %v822 = vshrl.u32 %v821, 7
    %v823 = vsub.s32 0, %v822
    %v824 = vrot.slane %v51, %v823
    %v825 = vmul.f32 %v184, %v824
    %v826 = vmul.f32 %v189, %v824
    %v827 = vmul.f32 %v194, %v824
    %v828 = vmul.f32 %v199, %v824
    %v829 = vmul.f32 %v204, %v824
    %v830 = vmul.f32 %v209, %v824
    %v831 = vmul.f32 %v214, %v824
    %v832 = vmul.f32 %v219, %v824
    %v833 = vmul.f32 %v224, %v824
    %v834 = vmul.f32 %v229, %v824
    %v835 = vmul.f32 %v234, %v824
    %v836 = vmul.f32 %v239, %v824
    %v837 = vmul.f32 %v244, %v824
    %v838 = vmul.f32 %v249, %v824
    %v839 = vmul.f32 %v254, %v824
    %v840 = vmul.f32 %v259, %v824
    %v841 = vmul.f32 %v264, %v824
    %v842 = vmul.f32 %v269, %v824
    %v843 = vmul.f32 %v274, %v824
    %v844 = vmul.f32 %v279, %v824
    %v845 = vmul.f32 %v284, %v824
    %v846 = vmul.f32 %v289, %v824
    %v847 = vmul.f32 %v294, %v824
    %v848 = vmul.f32 %v299, %v824
    %v849 = vmul.f32 %v304, %v824
    %v850 = vmul.f32 %v309, %v824
    %v851 = vmul.f32 %v314, %v824
    %v852 = vmul.f32 %v319, %v824
    %v853 = vmul.f32 %v324, %v824
    %v854 = vmul.f32 %v329, %v824
    %v855 = vmul.f32 %v334, %v824
    %v856 = vmul.f32 %v339, %v824
    %v857 = vmul.f32 %v344, %v824
    %v858 = vmul.f32 %v349, %v824
    %v859 = vmul.f32 %v354, %v824
    %v860 = vmul.f32 %v359, %v824
    %v861 = vmul.f32 %v364, %v824
    %v862 = vmul.f32 %v369, %v824
    %v863 = vmul.f32 %v374, %v824
    %v864 = vmul.f32 %v379, %v824
    %v865 = vmul.f32 %v384, %v824
    %v866 = vmul.f32 %v389, %v824
    %v867 = vmul.f32 %v394, %v824
    %v868 = vmul.f32 %v399, %v824
    %v869 = vmul.f32 %v404, %v824
    %v870 = vmul.f32 %v409, %v824
    %v871 = vmul.f32 %v414, %v824
    %v872 = vmul.f32 %v419, %v824
    %v873 = vmul.f32 %v424, %v824
    %v874 = vmul.f32 %v429, %v824
    %v875 = vmul.f32 %v434, %v824
    %v876 = vmul.f32 %v439, %v824
    %v877 = vmul.f32 %v444, %v824
    %v878 = vmul.f32 %v449, %v824
    %v879 = vmul.f32 %v454, %v824
    %v880 = vmul.f32 %v459, %v824
    %v881 = vmul.f32 %v464, %v824
    %v882 = vmul.f32 %v469, %v824
    %v883 = vmul.f32 %v474, %v824
    %v884 = vmul.f32 %v479, %v824
    %v885 = vmul.f32 %v484, %v824
    %v886 = vmul.f32 %v489, %v824
    %v887 = vmul.f32 %v494, %v824
    %v888 = vmul.f32 %v499, %v824
    %v889 = vmul.f32 %v504, %v824
    %v890 = vmul.f32 %v509, %v824
    %v891 = vmul.f32 %v514, %v824
    %v892 = vmul.f32 %v519, %v824
    %v893 = vmul.f32 %v524, %v824
    %v894 = vmul.f32 %v529, %v824
    %v895 = vmul.f32 %v534, %v824
    %v896 = vmul.f32 %v539, %v824
    %v897 = vmul.f32 %v544, %v824
    %v898 = vmul.f32 %v549, %v824
    %v899 = vmul.f32 %v554, %v824
    %v900 = vmul.f32 %v559, %v824
    %v901 = vmul.f32 %v564, %v824
    %v902 = vmul.f32 %v569, %v824
    %v903 = vmul.f32 %v574, %v824
    %v904 = vmul.f32 %v579, %v824
    %v905 = vmul.f32 %v584, %v824
    %v906 = vmul.f32 %v589, %v824
    %v907 = vmul.f32 %v594, %v824
    %v908 = vmul.f32 %v599, %v824
    %v909 = vmul.f32 %v604, %v824
    %v910 = vmul.f32 %v609, %v824
    %v911 = vmul.f32 %v614, %v824
    %v912 = vmul.f32 %v619, %v824
    %v913 = vmul.f32 %v624, %v824
    %v914 = vmul.f32 %v629, %v824
    %v915 = vmul.f32 %v634, %v824
    %v916 = vmul.f32 %v639, %v824
    %v917 = vmul.f32 %v644, %v824
    %v918 = vmul.f32 %v649, %v824
    %v919 = vmul.f32 %v654, %v824
    %v920 = vmul.f32 %v659, %v824
    %v921 = vmul.f32 %v664, %v824
    %v922 = vmul.f32 %v669, %v824
    %v923 = vmul.f32 %v674, %v824
    %v924 = vmul.f32 %v679, %v824
    %v925 = vmul.f32 %v684, %v824
    %v926 = vmul.f32 %v689, %v824
    %v927 = vmul.f32 %v694, %v824
    %v928 = vmul.f32 %v699, %v824
    %v929 = vmul.f32 %v704, %v824
    %v930 = vmul.f32 %v709, %v824
    %v931 = vmul.f32 %v714, %v824
    %v932 = vmul.f32 %v719, %v824
    %v933 = vmul.f32 %v724, %v824
    %v934 = vmul.f32 %v729, %v824
    %v935 = vmul.f32 %v734, %v824
    %v936 = vmul.f32 %v739, %v824
    %v937 = vmul.f32 %v744, %v824
    %v938 = vmul.f32 %v749, %v824
    %v939 = vmul.f32 %v754, %v824
    %v940 = vmul.f32 %v759, %v824
    %v941 = vmul.f32 %v764, %v824
    %v942 = vmul.f32 %v769, %v824
    %v943 = vmul.f32 %v774, %v824
    %v944 = vmul.f32 %v779, %v824
    %v945 = vmul.f32 %v784, %v824
    %v946 = vmul.f32 %v789, %v824
    %v947 = vmul.f32 %v794, %v824
    %v948 = vmul.f32 %v799, %v824
    %v949 = vmul.f32 %v804, %v824
    %v950 = vmul.f32 %v809, %v824
    %v951 = vmul.f32 %v814, %v824
    %v952 = vmul.f32 %v819, %v824
    %953 = vset.pattern.permute.xlu0 1
    %954 = vperm.xlu0 %953, %v53
    %v955 = vpop.permute.xlu0 %954
    %957 = vset.pattern.permute.xlu0 1
    %958 = vperm.xlu0 %957, %v54
    %v959 = vpop.permute.xlu0 %958
    %961 = vset.pattern.permute.xlu0 1
    %962 = vperm.xlu0 %961, %v55
    %v963 = vpop.permute.xlu0 %962
    %965 = vset.pattern.permute.xlu0 1
    %966 = vperm.xlu0 %965, %v56
    %v967 = vpop.permute.xlu0 %966
    %969 = vset.pattern.permute.xlu0 1
    %970 = vperm.xlu0 %969, %v57
    %v971 = vpop.permute.xlu0 %970
    %973 = vset.pattern.permute.xlu0 1
    %974 = vperm.xlu0 %973, %v58
    %v975 = vpop.permute.xlu0 %974
    %977 = vset.pattern.permute.xlu0 1
    %978 = vperm.xlu0 %977, %v59
    %v979 = vpop.permute.xlu0 %978
    %981 = vset.pattern.permute.xlu0 1
    %982 = vperm.xlu0 %981, %v60
    %v983 = vpop.permute.xlu0 %982
    %985 = vset.pattern.permute.xlu0 1
    %986 = vperm.xlu0 %985, %v61
    %v987 = vpop.permute.xlu0 %986
    %989 = vset.pattern.permute.xlu0 1
    %990 = vperm.xlu0 %989, %v62
    %v991 = vpop.permute.xlu0 %990
    %993 = vset.pattern.permute.xlu0 1
    %994 = vperm.xlu0 %993, %v63
    %v995 = vpop.permute.xlu0 %994
    %997 = vset.pattern.permute.xlu0 1
    %998 = vperm.xlu0 %997, %v64
    %v999 = vpop.permute.xlu0 %998
    %1001 = vset.pattern.permute.xlu0 1
    %1002 = vperm.xlu0 %1001, %v65
    %v1003 = vpop.permute.xlu0 %1002
    %1005 = vset.pattern.permute.xlu0 1
    %1006 = vperm.xlu0 %1005, %v66
    %v1007 = vpop.permute.xlu0 %1006
    %1009 = vset.pattern.permute.xlu0 1
    %1010 = vperm.xlu0 %1009, %v67
    %v1011 = vpop.permute.xlu0 %1010
    %1013 = vset.pattern.permute.xlu0 1
    %1014 = vperm.xlu0 %1013, %v68
    %v1015 = vpop.permute.xlu0 %1014
    %1017 = vset.pattern.permute.xlu0 1
    %1018 = vperm.xlu0 %1017, %v69
    %v1019 = vpop.permute.xlu0 %1018
    %1021 = vset.pattern.permute.xlu0 1
    %1022 = vperm.xlu0 %1021, %v70
    %v1023 = vpop.permute.xlu0 %1022
    %1025 = vset.pattern.permute.xlu0 1
    %1026 = vperm.xlu0 %1025, %v71
    %v1027 = vpop.permute.xlu0 %1026
    %1029 = vset.pattern.permute.xlu0 1
    %1030 = vperm.xlu0 %1029, %v72
    %v1031 = vpop.permute.xlu0 %1030
    %1033 = vset.pattern.permute.xlu0 1
    %1034 = vperm.xlu0 %1033, %v73
    %v1035 = vpop.permute.xlu0 %1034
    %1037 = vset.pattern.permute.xlu0 1
    %1038 = vperm.xlu0 %1037, %v74
    %v1039 = vpop.permute.xlu0 %1038
    %1041 = vset.pattern.permute.xlu0 1
    %1042 = vperm.xlu0 %1041, %v75
    %v1043 = vpop.permute.xlu0 %1042
    %1045 = vset.pattern.permute.xlu0 1
    %1046 = vperm.xlu0 %1045, %v76
    %v1047 = vpop.permute.xlu0 %1046
    %1049 = vset.pattern.permute.xlu0 1
    %1050 = vperm.xlu0 %1049, %v77
    %v1051 = vpop.permute.xlu0 %1050
    %1053 = vset.pattern.permute.xlu0 1
    %1054 = vperm.xlu0 %1053, %v78
    %v1055 = vpop.permute.xlu0 %1054
    %1057 = vset.pattern.permute.xlu0 1
    %1058 = vperm.xlu0 %1057, %v79
    %v1059 = vpop.permute.xlu0 %1058
    %1061 = vset.pattern.permute.xlu0 1
    %1062 = vperm.xlu0 %1061, %v80
    %v1063 = vpop.permute.xlu0 %1062
    %1065 = vset.pattern.permute.xlu0 1
    %1066 = vperm.xlu0 %1065, %v81
    %v1067 = vpop.permute.xlu0 %1066
    %1069 = vset.pattern.permute.xlu0 1
    %1070 = vperm.xlu0 %1069, %v82
    %v1071 = vpop.permute.xlu0 %1070
    %1073 = vset.pattern.permute.xlu0 1
    %1074 = vperm.xlu0 %1073, %v83
    %v1075 = vpop.permute.xlu0 %1074
    %1077 = vset.pattern.permute.xlu0 1
    %1078 = vperm.xlu0 %1077, %v84
    %v1079 = vpop.permute.xlu0 %1078
    %1081 = vset.pattern.permute.xlu0 1
    %1082 = vperm.xlu0 %1081, %v85
    %v1083 = vpop.permute.xlu0 %1082
    %1085 = vset.pattern.permute.xlu0 1
    %1086 = vperm.xlu0 %1085, %v86
    %v1087 = vpop.permute.xlu0 %1086
    %1089 = vset.pattern.permute.xlu0 1
    %1090 = vperm.xlu0 %1089, %v87
    %v1091 = vpop.permute.xlu0 %1090
    %1093 = vset.pattern.permute.xlu0 1
    %1094 = vperm.xlu0 %1093, %v88
    %v1095 = vpop.permute.xlu0 %1094
    %1097 = vset.pattern.permute.xlu0 1
    %1098 = vperm.xlu0 %1097, %v89
    %v1099 = vpop.permute.xlu0 %1098
    %1101 = vset.pattern.permute.xlu0 1
    %1102 = vperm.xlu0 %1101, %v90
    %v1103 = vpop.permute.xlu0 %1102
    %1105 = vset.pattern.permute.xlu0 1
    %1106 = vperm.xlu0 %1105, %v91
    %v1107 = vpop.permute.xlu0 %1106
    %1109 = vset.pattern.permute.xlu0 1
    %1110 = vperm.xlu0 %1109, %v92
    %v1111 = vpop.permute.xlu0 %1110
    %1113 = vset.pattern.permute.xlu0 1
    %1114 = vperm.xlu0 %1113, %v93
    %v1115 = vpop.permute.xlu0 %1114
    %1117 = vset.pattern.permute.xlu0 1
    %1118 = vperm.xlu0 %1117, %v94
    %v1119 = vpop.permute.xlu0 %1118
    %1121 = vset.pattern.permute.xlu0 1
    %1122 = vperm.xlu0 %1121, %v95
    %v1123 = vpop.permute.xlu0 %1122
    %1125 = vset.pattern.permute.xlu0 1
    %1126 = vperm.xlu0 %1125, %v96
    %v1127 = vpop.permute.xlu0 %1126
    %1129 = vset.pattern.permute.xlu0 1
    %1130 = vperm.xlu0 %1129, %v97
    %v1131 = vpop.permute.xlu0 %1130
    %1133 = vset.pattern.permute.xlu0 1
    %1134 = vperm.xlu0 %1133, %v98
    %v1135 = vpop.permute.xlu0 %1134
    %1137 = vset.pattern.permute.xlu0 1
    %1138 = vperm.xlu0 %1137, %v99
    %v1139 = vpop.permute.xlu0 %1138
    %1141 = vset.pattern.permute.xlu0 1
    %1142 = vperm.xlu0 %1141, %v100
    %v1143 = vpop.permute.xlu0 %1142
    %1145 = vset.pattern.permute.xlu0 1
    %1146 = vperm.xlu0 %1145, %v101
    %v1147 = vpop.permute.xlu0 %1146
    %1149 = vset.pattern.permute.xlu0 1
    %1150 = vperm.xlu0 %1149, %v102
    %v1151 = vpop.permute.xlu0 %1150
    %1153 = vset.pattern.permute.xlu0 1
    %1154 = vperm.xlu0 %1153, %v103
    %v1155 = vpop.permute.xlu0 %1154
    %1157 = vset.pattern.permute.xlu0 1
    %1158 = vperm.xlu0 %1157, %v104
    %v1159 = vpop.permute.xlu0 %1158
    %1161 = vset.pattern.permute.xlu0 1
    %1162 = vperm.xlu0 %1161, %v105
    %v1163 = vpop.permute.xlu0 %1162
    %1165 = vset.pattern.permute.xlu0 1
    %1166 = vperm.xlu0 %1165, %v106
    %v1167 = vpop.permute.xlu0 %1166
    %1169 = vset.pattern.permute.xlu0 1
    %1170 = vperm.xlu0 %1169, %v107
    %v1171 = vpop.permute.xlu0 %1170
    %1173 = vset.pattern.permute.xlu0 1
    %1174 = vperm.xlu0 %1173, %v108
    %v1175 = vpop.permute.xlu0 %1174
    %1177 = vset.pattern.permute.xlu0 1
    %1178 = vperm.xlu0 %1177, %v109
    %v1179 = vpop.permute.xlu0 %1178
    %1181 = vset.pattern.permute.xlu0 1
    %1182 = vperm.xlu0 %1181, %v110
    %v1183 = vpop.permute.xlu0 %1182
    %1185 = vset.pattern.permute.xlu0 1
    %1186 = vperm.xlu0 %1185, %v111
    %v1187 = vpop.permute.xlu0 %1186
    %1189 = vset.pattern.permute.xlu0 1
    %1190 = vperm.xlu0 %1189, %v112
    %v1191 = vpop.permute.xlu0 %1190
    %1193 = vset.pattern.permute.xlu0 1
    %1194 = vperm.xlu0 %1193, %v113
    %v1195 = vpop.permute.xlu0 %1194
    %1197 = vset.pattern.permute.xlu0 1
    %1198 = vperm.xlu0 %1197, %v114
    %v1199 = vpop.permute.xlu0 %1198
    %1201 = vset.pattern.permute.xlu0 1
    %1202 = vperm.xlu0 %1201, %v115
    %v1203 = vpop.permute.xlu0 %1202
    %1205 = vset.pattern.permute.xlu0 1
    %1206 = vperm.xlu0 %1205, %v116
    %v1207 = vpop.permute.xlu0 %1206
    %1209 = vset.pattern.permute.xlu0 1
    %1210 = vperm.xlu0 %1209, %v117
    %v1211 = vpop.permute.xlu0 %1210
    %1213 = vset.pattern.permute.xlu0 1
    %1214 = vperm.xlu0 %1213, %v118
    %v1215 = vpop.permute.xlu0 %1214
    %1217 = vset.pattern.permute.xlu0 1
    %1218 = vperm.xlu0 %1217, %v119
    %v1219 = vpop.permute.xlu0 %1218
    %1221 = vset.pattern.permute.xlu0 1
    %1222 = vperm.xlu0 %1221, %v120
    %v1223 = vpop.permute.xlu0 %1222
    %1225 = vset.pattern.permute.xlu0 1
    %1226 = vperm.xlu0 %1225, %v121
    %v1227 = vpop.permute.xlu0 %1226
    %1229 = vset.pattern.permute.xlu0 1
    %1230 = vperm.xlu0 %1229, %v122
    %v1231 = vpop.permute.xlu0 %1230
    %1233 = vset.pattern.permute.xlu0 1
    %1234 = vperm.xlu0 %1233, %v123
    %v1235 = vpop.permute.xlu0 %1234
    %1237 = vset.pattern.permute.xlu0 1
    %1238 = vperm.xlu0 %1237, %v124
    %v1239 = vpop.permute.xlu0 %1238
    %1241 = vset.pattern.permute.xlu0 1
    %1242 = vperm.xlu0 %1241, %v125
    %v1243 = vpop.permute.xlu0 %1242
    %1245 = vset.pattern.permute.xlu0 1
    %1246 = vperm.xlu0 %1245, %v126
    %v1247 = vpop.permute.xlu0 %1246
    %1249 = vset.pattern.permute.xlu0 1
    %1250 = vperm.xlu0 %1249, %v127
    %v1251 = vpop.permute.xlu0 %1250
    %1253 = vset.pattern.permute.xlu0 1
    %1254 = vperm.xlu0 %1253, %v128
    %v1255 = vpop.permute.xlu0 %1254
    %1257 = vset.pattern.permute.xlu0 1
    %1258 = vperm.xlu0 %1257, %v129
    %v1259 = vpop.permute.xlu0 %1258
    %1261 = vset.pattern.permute.xlu0 1
    %1262 = vperm.xlu0 %1261, %v130
    %v1263 = vpop.permute.xlu0 %1262
    %1265 = vset.pattern.permute.xlu0 1
    %1266 = vperm.xlu0 %1265, %v131
    %v1267 = vpop.permute.xlu0 %1266
    %1269 = vset.pattern.permute.xlu0 1
    %1270 = vperm.xlu0 %1269, %v132
    %v1271 = vpop.permute.xlu0 %1270
    %1273 = vset.pattern.permute.xlu0 1
    %1274 = vperm.xlu0 %1273, %v133
    %v1275 = vpop.permute.xlu0 %1274
    %1277 = vset.pattern.permute.xlu0 1
    %1278 = vperm.xlu0 %1277, %v134
    %v1279 = vpop.permute.xlu0 %1278
    %1281 = vset.pattern.permute.xlu0 1
    %1282 = vperm.xlu0 %1281, %v135
    %v1283 = vpop.permute.xlu0 %1282
    %1285 = vset.pattern.permute.xlu0 1
    %1286 = vperm.xlu0 %1285, %v136
    %v1287 = vpop.permute.xlu0 %1286
    %1289 = vset.pattern.permute.xlu0 1
    %1290 = vperm.xlu0 %1289, %v137
    %v1291 = vpop.permute.xlu0 %1290
    %1293 = vset.pattern.permute.xlu0 1
    %1294 = vperm.xlu0 %1293, %v138
    %v1295 = vpop.permute.xlu0 %1294
    %1297 = vset.pattern.permute.xlu0 1
    %1298 = vperm.xlu0 %1297, %v139
    %v1299 = vpop.permute.xlu0 %1298
    %1301 = vset.pattern.permute.xlu0 1
    %1302 = vperm.xlu0 %1301, %v140
    %v1303 = vpop.permute.xlu0 %1302
    %1305 = vset.pattern.permute.xlu0 1
    %1306 = vperm.xlu0 %1305, %v141
    %v1307 = vpop.permute.xlu0 %1306
    %1309 = vset.pattern.permute.xlu0 1
    %1310 = vperm.xlu0 %1309, %v142
    %v1311 = vpop.permute.xlu0 %1310
    %1313 = vset.pattern.permute.xlu0 1
    %1314 = vperm.xlu0 %1313, %v143
    %v1315 = vpop.permute.xlu0 %1314
    %1317 = vset.pattern.permute.xlu0 1
    %1318 = vperm.xlu0 %1317, %v144
    %v1319 = vpop.permute.xlu0 %1318
    %1321 = vset.pattern.permute.xlu0 1
    %1322 = vperm.xlu0 %1321, %v145
    %v1323 = vpop.permute.xlu0 %1322
    %1325 = vset.pattern.permute.xlu0 1
    %1326 = vperm.xlu0 %1325, %v146
    %v1327 = vpop.permute.xlu0 %1326
    %1329 = vset.pattern.permute.xlu0 1
    %1330 = vperm.xlu0 %1329, %v147
    %v1331 = vpop.permute.xlu0 %1330
    %1333 = vset.pattern.permute.xlu0 1
    %1334 = vperm.xlu0 %1333, %v148
    %v1335 = vpop.permute.xlu0 %1334
    %1337 = vset.pattern.permute.xlu0 1
    %1338 = vperm.xlu0 %1337, %v149
    %v1339 = vpop.permute.xlu0 %1338
    %1341 = vset.pattern.permute.xlu0 1
    %1342 = vperm.xlu0 %1341, %v150
    %v1343 = vpop.permute.xlu0 %1342
    %1345 = vset.pattern.permute.xlu0 1
    %1346 = vperm.xlu0 %1345, %v151
    %v1347 = vpop.permute.xlu0 %1346
    %1349 = vset.pattern.permute.xlu0 1
    %1350 = vperm.xlu0 %1349, %v152
    %v1351 = vpop.permute.xlu0 %1350
    %1353 = vset.pattern.permute.xlu0 1
    %1354 = vperm.xlu0 %1353, %v153
    %v1355 = vpop.permute.xlu0 %1354
    %1357 = vset.pattern.permute.xlu0 1
    %1358 = vperm.xlu0 %1357, %v154
    %v1359 = vpop.permute.xlu0 %1358
    %1361 = vset.pattern.permute.xlu0 1
    %1362 = vperm.xlu0 %1361, %v155
    %v1363 = vpop.permute.xlu0 %1362
    %1365 = vset.pattern.permute.xlu0 1
    %1366 = vperm.xlu0 %1365, %v156
    %v1367 = vpop.permute.xlu0 %1366
    %1369 = vset.pattern.permute.xlu0 1
    %1370 = vperm.xlu0 %1369, %v157
    %v1371 = vpop.permute.xlu0 %1370
    %1373 = vset.pattern.permute.xlu0 1
    %1374 = vperm.xlu0 %1373, %v158
    %v1375 = vpop.permute.xlu0 %1374
    %1377 = vset.pattern.permute.xlu0 1
    %1378 = vperm.xlu0 %1377, %v159
    %v1379 = vpop.permute.xlu0 %1378
    %1381 = vset.pattern.permute.xlu0 1
    %1382 = vperm.xlu0 %1381, %v160
    %v1383 = vpop.permute.xlu0 %1382
    %1385 = vset.pattern.permute.xlu0 1
    %1386 = vperm.xlu0 %1385, %v161
    %v1387 = vpop.permute.xlu0 %1386
    %1389 = vset.pattern.permute.xlu0 1
    %1390 = vperm.xlu0 %1389, %v162
    %v1391 = vpop.permute.xlu0 %1390
    %1393 = vset.pattern.permute.xlu0 1
    %1394 = vperm.xlu0 %1393, %v163
    %v1395 = vpop.permute.xlu0 %1394
    %1397 = vset.pattern.permute.xlu0 1
    %1398 = vperm.xlu0 %1397, %v164
    %v1399 = vpop.permute.xlu0 %1398
    %1401 = vset.pattern.permute.xlu0 1
    %1402 = vperm.xlu0 %1401, %v165
    %v1403 = vpop.permute.xlu0 %1402
    %1405 = vset.pattern.permute.xlu0 1
    %1406 = vperm.xlu0 %1405, %v166
    %v1407 = vpop.permute.xlu0 %1406
    %1409 = vset.pattern.permute.xlu0 1
    %1410 = vperm.xlu0 %1409, %v167
    %v1411 = vpop.permute.xlu0 %1410
    %1413 = vset.pattern.permute.xlu0 1
    %1414 = vperm.xlu0 %1413, %v168
    %v1415 = vpop.permute.xlu0 %1414
    %1417 = vset.pattern.permute.xlu0 1
    %1418 = vperm.xlu0 %1417, %v169
    %v1419 = vpop.permute.xlu0 %1418
    %1421 = vset.pattern.permute.xlu0 1
    %1422 = vperm.xlu0 %1421, %v170
    %v1423 = vpop.permute.xlu0 %1422
    %1425 = vset.pattern.permute.xlu0 1
    %1426 = vperm.xlu0 %1425, %v171
    %v1427 = vpop.permute.xlu0 %1426
    %1429 = vset.pattern.permute.xlu0 1
    %1430 = vperm.xlu0 %1429, %v172
    %v1431 = vpop.permute.xlu0 %1430
    %1433 = vset.pattern.permute.xlu0 1
    %1434 = vperm.xlu0 %1433, %v173
    %v1435 = vpop.permute.xlu0 %1434
    %1437 = vset.pattern.permute.xlu0 1
    %1438 = vperm.xlu0 %1437, %v174
    %v1439 = vpop.permute.xlu0 %1438
    %1441 = vset.pattern.permute.xlu0 1
    %1442 = vperm.xlu0 %1441, %v175
    %v1443 = vpop.permute.xlu0 %1442
    %1445 = vset.pattern.permute.xlu0 1
    %1446 = vperm.xlu0 %1445, %v176
    %v1447 = vpop.permute.xlu0 %1446
    %1449 = vset.pattern.permute.xlu0 1
    %1450 = vperm.xlu0 %1449, %v177
    %v1451 = vpop.permute.xlu0 %1450
    %1453 = vset.pattern.permute.xlu0 1
    %1454 = vperm.xlu0 %1453, %v178
    %v1455 = vpop.permute.xlu0 %1454
    %1457 = vset.pattern.permute.xlu0 1
    %1458 = vperm.xlu0 %1457, %v179
    %v1459 = vpop.permute.xlu0 %1458
    %1461 = vset.pattern.permute.xlu0 1
    %1462 = vperm.xlu0 %1461, %v180
    %v1463 = vpop.permute.xlu0 %1462
    %v1465 = vlaneseq
    %v1466 = vshrl.u32 %v1465, 7
    %v1467 = vsub.s32 1, %v1466
    %v1468 = vrot.slane %v51, %v1467
    %v1469 = vmul.f32 %v955, %v1468
    %v1470 = vmul.f32 %v959, %v1468
    %v1471 = vmul.f32 %v963, %v1468
    %v1472 = vmul.f32 %v967, %v1468
    %v1473 = vmul.f32 %v971, %v1468
    %v1474 = vmul.f32 %v975, %v1468
    %v1475 = vmul.f32 %v979, %v1468
    %v1476 = vmul.f32 %v983, %v1468
    %v1477 = vmul.f32 %v987, %v1468
    %v1478 = vmul.f32 %v991, %v1468
    %v1479 = vmul.f32 %v995, %v1468
    %v1480 = vmul.f32 %v999, %v1468
    %v1481 = vmul.f32 %v1003, %v1468
    %v1482 = vmul.f32 %v1007, %v1468
    %v1483 = vmul.f32 %v1011, %v1468
    %v1484 = vmul.f32 %v1015, %v1468
    %v1485 = vmul.f32 %v1019, %v1468
    %v1486 = vmul.f32 %v1023, %v1468
    %v1487 = vmul.f32 %v1027, %v1468
    %v1488 = vmul.f32 %v1031, %v1468
    %v1489 = vmul.f32 %v1035, %v1468
    %v1490 = vmul.f32 %v1039, %v1468
    %v1491 = vmul.f32 %v1043, %v1468
    %v1492 = vmul.f32 %v1047, %v1468
    %v1493 = vmul.f32 %v1051, %v1468
    %v1494 = vmul.f32 %v1055, %v1468
    %v1495 = vmul.f32 %v1059, %v1468
    %v1496 = vmul.f32 %v1063, %v1468
    %v1497 = vmul.f32 %v1067, %v1468
    %v1498 = vmul.f32 %v1071, %v1468
    %v1499 = vmul.f32 %v1075, %v1468
    %v1500 = vmul.f32 %v1079, %v1468
    %v1501 = vmul.f32 %v1083, %v1468
    %v1502 = vmul.f32 %v1087, %v1468
    %v1503 = vmul.f32 %v1091, %v1468
    %v1504 = vmul.f32 %v1095, %v1468
    %v1505 = vmul.f32 %v1099, %v1468
    %v1506 = vmul.f32 %v1103, %v1468
    %v1507 = vmul.f32 %v1107, %v1468
    %v1508 = vmul.f32 %v1111, %v1468
    %v1509 = vmul.f32 %v1115, %v1468
    %v1510 = vmul.f32 %v1119, %v1468
    %v1511 = vmul.f32 %v1123, %v1468
    %v1512 = vmul.f32 %v1127, %v1468
    %v1513 = vmul.f32 %v1131, %v1468
    %v1514 = vmul.f32 %v1135, %v1468
    %v1515 = vmul.f32 %v1139, %v1468
    %v1516 = vmul.f32 %v1143, %v1468
    %v1517 = vmul.f32 %v1147, %v1468
    %v1518 = vmul.f32 %v1151, %v1468
    %v1519 = vmul.f32 %v1155, %v1468
    %v1520 = vmul.f32 %v1159, %v1468
    %v1521 = vmul.f32 %v1163, %v1468
    %v1522 = vmul.f32 %v1167, %v1468
    %v1523 = vmul.f32 %v1171, %v1468
    %v1524 = vmul.f32 %v1175, %v1468
    %v1525 = vmul.f32 %v1179, %v1468
    %v1526 = vmul.f32 %v1183, %v1468
    %v1527 = vmul.f32 %v1187, %v1468
    %v1528 = vmul.f32 %v1191, %v1468
    %v1529 = vmul.f32 %v1195, %v1468
    %v1530 = vmul.f32 %v1199, %v1468
    %v1531 = vmul.f32 %v1203, %v1468
    %v1532 = vmul.f32 %v1207, %v1468
    %v1533 = vmul.f32 %v1211, %v1468
    %v1534 = vmul.f32 %v1215, %v1468
    %v1535 = vmul.f32 %v1219, %v1468
    %v1536 = vmul.f32 %v1223, %v1468
    %v1537 = vmul.f32 %v1227, %v1468
    %v1538 = vmul.f32 %v1231, %v1468
    %v1539 = vmul.f32 %v1235, %v1468
    %v1540 = vmul.f32 %v1239, %v1468
    %v1541 = vmul.f32 %v1243, %v1468
    %v1542 = vmul.f32 %v1247, %v1468
    %v1543 = vmul.f32 %v1251, %v1468
    %v1544 = vmul.f32 %v1255, %v1468
    %v1545 = vmul.f32 %v1259, %v1468
    %v1546 = vmul.f32 %v1263, %v1468
    %v1547 = vmul.f32 %v1267, %v1468
    %v1548 = vmul.f32 %v1271, %v1468
    %v1549 = vmul.f32 %v1275, %v1468
    %v1550 = vmul.f32 %v1279, %v1468
    %v1551 = vmul.f32 %v1283, %v1468
    %v1552 = vmul.f32 %v1287, %v1468
    %v1553 = vmul.f32 %v1291, %v1468
    %v1554 = vmul.f32 %v1295, %v1468
    %v1555 = vmul.f32 %v1299, %v1468
    %v1556 = vmul.f32 %v1303, %v1468
    %v1557 = vmul.f32 %v1307, %v1468
    %v1558 = vmul.f32 %v1311, %v1468
    %v1559 = vmul.f32 %v1315, %v1468
    %v1560 = vmul.f32 %v1319, %v1468
    %v1561 = vmul.f32 %v1323, %v1468
    %v1562 = vmul.f32 %v1327, %v1468
    %v1563 = vmul.f32 %v1331, %v1468
    %v1564 = vmul.f32 %v1335, %v1468
    %v1565 = vmul.f32 %v1339, %v1468
    %v1566 = vmul.f32 %v1343, %v1468
    %v1567 = vmul.f32 %v1347, %v1468
    %v1568 = vmul.f32 %v1351, %v1468
    %v1569 = vmul.f32 %v1355, %v1468
    %v1570 = vmul.f32 %v1359, %v1468
    %v1571 = vmul.f32 %v1363, %v1468
    %v1572 = vmul.f32 %v1367, %v1468
    %v1573 = vmul.f32 %v1371, %v1468
    %v1574 = vmul.f32 %v1375, %v1468
    %v1575 = vmul.f32 %v1379, %v1468
    %v1576 = vmul.f32 %v1383, %v1468
    %v1577 = vmul.f32 %v1387, %v1468
    %v1578 = vmul.f32 %v1391, %v1468
    %v1579 = vmul.f32 %v1395, %v1468
    %v1580 = vmul.f32 %v1399, %v1468
    %v1581 = vmul.f32 %v1403, %v1468
    %v1582 = vmul.f32 %v1407, %v1468
    %v1583 = vmul.f32 %v1411, %v1468
    %v1584 = vmul.f32 %v1415, %v1468
    %v1585 = vmul.f32 %v1419, %v1468
    %v1586 = vmul.f32 %v1423, %v1468
    %v1587 = vmul.f32 %v1427, %v1468
    %v1588 = vmul.f32 %v1431, %v1468
    %v1589 = vmul.f32 %v1435, %v1468
    %v1590 = vmul.f32 %v1439, %v1468
    %v1591 = vmul.f32 %v1443, %v1468
    %v1592 = vmul.f32 %v1447, %v1468
    %v1593 = vmul.f32 %v1451, %v1468
    %v1594 = vmul.f32 %v1455, %v1468
    %v1595 = vmul.f32 %v1459, %v1468
    %v1596 = vmul.f32 %v1463, %v1468
    %v1597 = vadd.f32 %v825, %v1469
    %v1598 = vadd.f32 %v826, %v1470
    %v1599 = vadd.f32 %v827, %v1471
    %v1600 = vadd.f32 %v828, %v1472
    %v1601 = vadd.f32 %v829, %v1473
    %v1602 = vadd.f32 %v830, %v1474
    %v1603 = vadd.f32 %v831, %v1475
    %v1604 = vadd.f32 %v832, %v1476
    %v1605 = vadd.f32 %v833, %v1477
    %v1606 = vadd.f32 %v834, %v1478
    %v1607 = vadd.f32 %v835, %v1479
    %v1608 = vadd.f32 %v836, %v1480
    %v1609 = vadd.f32 %v837, %v1481
    %v1610 = vadd.f32 %v838, %v1482
    %v1611 = vadd.f32 %v839, %v1483
    %v1612 = vadd.f32 %v840, %v1484
    %v1613 = vadd.f32 %v841, %v1485
    %v1614 = vadd.f32 %v842, %v1486
    %v1615 = vadd.f32 %v843, %v1487
    %v1616 = vadd.f32 %v844, %v1488
    %v1617 = vadd.f32 %v845, %v1489
    %v1618 = vadd.f32 %v846, %v1490
    %v1619 = vadd.f32 %v847, %v1491
    %v1620 = vadd.f32 %v848, %v1492
    %v1621 = vadd.f32 %v849, %v1493
    %v1622 = vadd.f32 %v850, %v1494
    %v1623 = vadd.f32 %v851, %v1495
    %v1624 = vadd.f32 %v852, %v1496
    %v1625 = vadd.f32 %v853, %v1497
    %v1626 = vadd.f32 %v854, %v1498
    %v1627 = vadd.f32 %v855, %v1499
    %v1628 = vadd.f32 %v856, %v1500
    %v1629 = vadd.f32 %v857, %v1501
    %v1630 = vadd.f32 %v858, %v1502
    %v1631 = vadd.f32 %v859, %v1503
    %v1632 = vadd.f32 %v860, %v1504
    %v1633 = vadd.f32 %v861, %v1505
    %v1634 = vadd.f32 %v862, %v1506
    %v1635 = vadd.f32 %v863, %v1507
    %v1636 = vadd.f32 %v864, %v1508
    %v1637 = vadd.f32 %v865, %v1509
    %v1638 = vadd.f32 %v866, %v1510
    %v1639 = vadd.f32 %v867, %v1511
    %v1640 = vadd.f32 %v868, %v1512
    %v1641 = vadd.f32 %v869, %v1513
    %v1642 = vadd.f32 %v870, %v1514
    %v1643 = vadd.f32 %v871, %v1515
    %v1644 = vadd.f32 %v872, %v1516
    %v1645 = vadd.f32 %v873, %v1517
    %v1646 = vadd.f32 %v874, %v1518
    %v1647 = vadd.f32 %v875, %v1519
    %v1648 = vadd.f32 %v876, %v1520
    %v1649 = vadd.f32 %v877, %v1521
    %v1650 = vadd.f32 %v878, %v1522
    %v1651 = vadd.f32 %v879, %v1523
    %v1652 = vadd.f32 %v880, %v1524
    %v1653 = vadd.f32 %v881, %v1525
    %v1654 = vadd.f32 %v882, %v1526
    %v1655 = vadd.f32 %v883, %v1527
    %v1656 = vadd.f32 %v884, %v1528
    %v1657 = vadd.f32 %v885, %v1529
    %v1658 = vadd.f32 %v886, %v1530
    %v1659 = vadd.f32 %v887, %v1531
    %v1660 = vadd.f32 %v888, %v1532
    %v1661 = vadd.f32 %v889, %v1533
    %v1662 = vadd.f32 %v890, %v1534
    %v1663 = vadd.f32 %v891, %v1535
    %v1664 = vadd.f32 %v892, %v1536
    %v1665 = vadd.f32 %v893, %v1537
    %v1666 = vadd.f32 %v894, %v1538
    %v1667 = vadd.f32 %v895, %v1539
    %v1668 = vadd.f32 %v896, %v1540
    %v1669 = vadd.f32 %v897, %v1541
    %v1670 = vadd.f32 %v898, %v1542
    %v1671 = vadd.f32 %v899, %v1543
    %v1672 = vadd.f32 %v900, %v1544
    %v1673 = vadd.f32 %v901, %v1545
    %v1674 = vadd.f32 %v902, %v1546
    %v1675 = vadd.f32 %v903, %v1547
    %v1676 = vadd.f32 %v904, %v1548
    %v1677 = vadd.f32 %v905, %v1549
    %v1678 = vadd.f32 %v906, %v1550
    %v1679 = vadd.f32 %v907, %v1551
    %v1680 = vadd.f32 %v908, %v1552
    %v1681 = vadd.f32 %v909, %v1553
    %v1682 = vadd.f32 %v910, %v1554
    %v1683 = vadd.f32 %v911, %v1555
    %v1684 = vadd.f32 %v912, %v1556
    %v1685 = vadd.f32 %v913, %v1557
    %v1686 = vadd.f32 %v914, %v1558
    %v1687 = vadd.f32 %v915, %v1559
    %v1688 = vadd.f32 %v916, %v1560
    %v1689 = vadd.f32 %v917, %v1561
    %v1690 = vadd.f32 %v918, %v1562
    %v1691 = vadd.f32 %v919, %v1563
    %v1692 = vadd.f32 %v920, %v1564
    %v1693 = vadd.f32 %v921, %v1565
    %v1694 = vadd.f32 %v922, %v1566
    %v1695 = vadd.f32 %v923, %v1567
    %v1696 = vadd.f32 %v924, %v1568
    %v1697 = vadd.f32 %v925, %v1569
    %v1698 = vadd.f32 %v926, %v1570
    %v1699 = vadd.f32 %v927, %v1571
    %v1700 = vadd.f32 %v928, %v1572
    %v1701 = vadd.f32 %v929, %v1573
    %v1702 = vadd.f32 %v930, %v1574
    %v1703 = vadd.f32 %v931, %v1575
    %v1704 = vadd.f32 %v932, %v1576
    %v1705 = vadd.f32 %v933, %v1577
    %v1706 = vadd.f32 %v934, %v1578
    %v1707 = vadd.f32 %v935, %v1579
    %v1708 = vadd.f32 %v936, %v1580
    %v1709 = vadd.f32 %v937, %v1581
    %v1710 = vadd.f32 %v938, %v1582
    %v1711 = vadd.f32 %v939, %v1583
    %v1712 = vadd.f32 %v940, %v1584
    %v1713 = vadd.f32 %v941, %v1585
    %v1714 = vadd.f32 %v942, %v1586
    %v1715 = vadd.f32 %v943, %v1587
    %v1716 = vadd.f32 %v944, %v1588
    %v1717 = vadd.f32 %v945, %v1589
    %v1718 = vadd.f32 %v946, %v1590
    %v1719 = vadd.f32 %v947, %v1591
    %v1720 = vadd.f32 %v948, %v1592
    %v1721 = vadd.f32 %v949, %v1593
    %v1722 = vadd.f32 %v950, %v1594
    %v1723 = vadd.f32 %v951, %v1595
    %v1724 = vadd.f32 %v952, %v1596
    %1725 = vset.pattern.permute.xlu0 2
    %1726 = vperm.xlu0 %1725, %v53
    %v1727 = vpop.permute.xlu0 %1726
    %1729 = vset.pattern.permute.xlu0 2
    %1730 = vperm.xlu0 %1729, %v54
    %v1731 = vpop.permute.xlu0 %1730
    %1733 = vset.pattern.permute.xlu0 2
    %1734 = vperm.xlu0 %1733, %v55
    %v1735 = vpop.permute.xlu0 %1734
    %1737 = vset.pattern.permute.xlu0 2
    %1738 = vperm.xlu0 %1737, %v56
    %v1739 = vpop.permute.xlu0 %1738
    %1741 = vset.pattern.permute.xlu0 2
    %1742 = vperm.xlu0 %1741, %v57
    %v1743 = vpop.permute.xlu0 %1742
    %1745 = vset.pattern.permute.xlu0 2
    %1746 = vperm.xlu0 %1745, %v58
    %v1747 = vpop.permute.xlu0 %1746
    %1749 = vset.pattern.permute.xlu0 2
    %1750 = vperm.xlu0 %1749, %v59
    %v1751 = vpop.permute.xlu0 %1750
    %1753 = vset.pattern.permute.xlu0 2
    %1754 = vperm.xlu0 %1753, %v60
    %v1755 = vpop.permute.xlu0 %1754
    %1757 = vset.pattern.permute.xlu0 2
    %1758 = vperm.xlu0 %1757, %v61
    %v1759 = vpop.permute.xlu0 %1758
    %1761 = vset.pattern.permute.xlu0 2
    %1762 = vperm.xlu0 %1761, %v62
    %v1763 = vpop.permute.xlu0 %1762
    %1765 = vset.pattern.permute.xlu0 2
    %1766 = vperm.xlu0 %1765, %v63
    %v1767 = vpop.permute.xlu0 %1766
    %1769 = vset.pattern.permute.xlu0 2
    %1770 = vperm.xlu0 %1769, %v64
    %v1771 = vpop.permute.xlu0 %1770
    %1773 = vset.pattern.permute.xlu0 2
    %1774 = vperm.xlu0 %1773, %v65
    %v1775 = vpop.permute.xlu0 %1774
    %1777 = vset.pattern.permute.xlu0 2
    %1778 = vperm.xlu0 %1777, %v66
    %v1779 = vpop.permute.xlu0 %1778
    %1781 = vset.pattern.permute.xlu0 2
    %1782 = vperm.xlu0 %1781, %v67
    %v1783 = vpop.permute.xlu0 %1782
    %1785 = vset.pattern.permute.xlu0 2
    %1786 = vperm.xlu0 %1785, %v68
    %v1787 = vpop.permute.xlu0 %1786
    %1789 = vset.pattern.permute.xlu0 2
    %1790 = vperm.xlu0 %1789, %v69
    %v1791 = vpop.permute.xlu0 %1790
    %1793 = vset.pattern.permute.xlu0 2
    %1794 = vperm.xlu0 %1793, %v70
    %v1795 = vpop.permute.xlu0 %1794
    %1797 = vset.pattern.permute.xlu0 2
    %1798 = vperm.xlu0 %1797, %v71
    %v1799 = vpop.permute.xlu0 %1798
    %1801 = vset.pattern.permute.xlu0 2
    %1802 = vperm.xlu0 %1801, %v72
    %v1803 = vpop.permute.xlu0 %1802
    %1805 = vset.pattern.permute.xlu0 2
    %1806 = vperm.xlu0 %1805, %v73
    %v1807 = vpop.permute.xlu0 %1806
    %1809 = vset.pattern.permute.xlu0 2
    %1810 = vperm.xlu0 %1809, %v74
    %v1811 = vpop.permute.xlu0 %1810
    %1813 = vset.pattern.permute.xlu0 2
    %1814 = vperm.xlu0 %1813, %v75
    %v1815 = vpop.permute.xlu0 %1814
    %1817 = vset.pattern.permute.xlu0 2
    %1818 = vperm.xlu0 %1817, %v76
    %v1819 = vpop.permute.xlu0 %1818
    %1821 = vset.pattern.permute.xlu0 2
    %1822 = vperm.xlu0 %1821, %v77
    %v1823 = vpop.permute.xlu0 %1822
    %1825 = vset.pattern.permute.xlu0 2
    %1826 = vperm.xlu0 %1825, %v78
    %v1827 = vpop.permute.xlu0 %1826
    %1829 = vset.pattern.permute.xlu0 2
    %1830 = vperm.xlu0 %1829, %v79
    %v1831 = vpop.permute.xlu0 %1830
    %1833 = vset.pattern.permute.xlu0 2
    %1834 = vperm.xlu0 %1833, %v80
    %v1835 = vpop.permute.xlu0 %1834
    %1837 = vset.pattern.permute.xlu0 2
    %1838 = vperm.xlu0 %1837, %v81
    %v1839 = vpop.permute.xlu0 %1838
    %1841 = vset.pattern.permute.xlu0 2
    %1842 = vperm.xlu0 %1841, %v82
    %v1843 = vpop.permute.xlu0 %1842
    %1845 = vset.pattern.permute.xlu0 2
    %1846 = vperm.xlu0 %1845, %v83
    %v1847 = vpop.permute.xlu0 %1846
    %1849 = vset.pattern.permute.xlu0 2
    %1850 = vperm.xlu0 %1849, %v84
    %v1851 = vpop.permute.xlu0 %1850
    %1853 = vset.pattern.permute.xlu0 2
    %1854 = vperm.xlu0 %1853, %v85
    %v1855 = vpop.permute.xlu0 %1854
    %1857 = vset.pattern.permute.xlu0 2
    %1858 = vperm.xlu0 %1857, %v86
    %v1859 = vpop.permute.xlu0 %1858
    %1861 = vset.pattern.permute.xlu0 2
    %1862 = vperm.xlu0 %1861, %v87
    %v1863 = vpop.permute.xlu0 %1862
    %1865 = vset.pattern.permute.xlu0 2
    %1866 = vperm.xlu0 %1865, %v88
    %v1867 = vpop.permute.xlu0 %1866
    %1869 = vset.pattern.permute.xlu0 2
    %1870 = vperm.xlu0 %1869, %v89
    %v1871 = vpop.permute.xlu0 %1870
    %1873 = vset.pattern.permute.xlu0 2
    %1874 = vperm.xlu0 %1873, %v90
    %v1875 = vpop.permute.xlu0 %1874
    %1877 = vset.pattern.permute.xlu0 2
    %1878 = vperm.xlu0 %1877, %v91
    %v1879 = vpop.permute.xlu0 %1878
    %1881 = vset.pattern.permute.xlu0 2
    %1882 = vperm.xlu0 %1881, %v92
    %v1883 = vpop.permute.xlu0 %1882
    %1885 = vset.pattern.permute.xlu0 2
    %1886 = vperm.xlu0 %1885, %v93
    %v1887 = vpop.permute.xlu0 %1886
    %1889 = vset.pattern.permute.xlu0 2
    %1890 = vperm.xlu0 %1889, %v94
    %v1891 = vpop.permute.xlu0 %1890
    %1893 = vset.pattern.permute.xlu0 2
    %1894 = vperm.xlu0 %1893, %v95
    %v1895 = vpop.permute.xlu0 %1894
    %1897 = vset.pattern.permute.xlu0 2
    %1898 = vperm.xlu0 %1897, %v96
    %v1899 = vpop.permute.xlu0 %1898
    %1901 = vset.pattern.permute.xlu0 2
    %1902 = vperm.xlu0 %1901, %v97
    %v1903 = vpop.permute.xlu0 %1902
    %1905 = vset.pattern.permute.xlu0 2
    %1906 = vperm.xlu0 %1905, %v98
    %v1907 = vpop.permute.xlu0 %1906
    %1909 = vset.pattern.permute.xlu0 2
    %1910 = vperm.xlu0 %1909, %v99
    %v1911 = vpop.permute.xlu0 %1910
    %1913 = vset.pattern.permute.xlu0 2
    %1914 = vperm.xlu0 %1913, %v100
    %v1915 = vpop.permute.xlu0 %1914
    %1917 = vset.pattern.permute.xlu0 2
    %1918 = vperm.xlu0 %1917, %v101
    %v1919 = vpop.permute.xlu0 %1918
    %1921 = vset.pattern.permute.xlu0 2
    %1922 = vperm.xlu0 %1921, %v102
    %v1923 = vpop.permute.xlu0 %1922
    %1925 = vset.pattern.permute.xlu0 2
    %1926 = vperm.xlu0 %1925, %v103
    %v1927 = vpop.permute.xlu0 %1926
    %1929 = vset.pattern.permute.xlu0 2
    %1930 = vperm.xlu0 %1929, %v104
    %v1931 = vpop.permute.xlu0 %1930
    %1933 = vset.pattern.permute.xlu0 2
    %1934 = vperm.xlu0 %1933, %v105
    %v1935 = vpop.permute.xlu0 %1934
    %1937 = vset.pattern.permute.xlu0 2
    %1938 = vperm.xlu0 %1937, %v106
    %v1939 = vpop.permute.xlu0 %1938
    %1941 = vset.pattern.permute.xlu0 2
    %1942 = vperm.xlu0 %1941, %v107
    %v1943 = vpop.permute.xlu0 %1942
    %1945 = vset.pattern.permute.xlu0 2
    %1946 = vperm.xlu0 %1945, %v108
    %v1947 = vpop.permute.xlu0 %1946
    %1949 = vset.pattern.permute.xlu0 2
    %1950 = vperm.xlu0 %1949, %v109
    %v1951 = vpop.permute.xlu0 %1950
    %1953 = vset.pattern.permute.xlu0 2
    %1954 = vperm.xlu0 %1953, %v110
    %v1955 = vpop.permute.xlu0 %1954
    %1957 = vset.pattern.permute.xlu0 2
    %1958 = vperm.xlu0 %1957, %v111
    %v1959 = vpop.permute.xlu0 %1958
    %1961 = vset.pattern.permute.xlu0 2
    %1962 = vperm.xlu0 %1961, %v112
    %v1963 = vpop.permute.xlu0 %1962
    %1965 = vset.pattern.permute.xlu0 2
    %1966 = vperm.xlu0 %1965, %v113
    %v1967 = vpop.permute.xlu0 %1966
    %1969 = vset.pattern.permute.xlu0 2
    %1970 = vperm.xlu0 %1969, %v114
    %v1971 = vpop.permute.xlu0 %1970
    %1973 = vset.pattern.permute.xlu0 2
    %1974 = vperm.xlu0 %1973, %v115
    %v1975 = vpop.permute.xlu0 %1974
    %1977 = vset.pattern.permute.xlu0 2
    %1978 = vperm.xlu0 %1977, %v116
    %v1979 = vpop.permute.xlu0 %1978
    %1981 = vset.pattern.permute.xlu0 2
    %1982 = vperm.xlu0 %1981, %v117
    %v1983 = vpop.permute.xlu0 %1982
    %1985 = vset.pattern.permute.xlu0 2
    %1986 = vperm.xlu0 %1985, %v118
    %v1987 = vpop.permute.xlu0 %1986
    %1989 = vset.pattern.permute.xlu0 2
    %1990 = vperm.xlu0 %1989, %v119
    %v1991 = vpop.permute.xlu0 %1990
    %1993 = vset.pattern.permute.xlu0 2
    %1994 = vperm.xlu0 %1993, %v120
    %v1995 = vpop.permute.xlu0 %1994
    %1997 = vset.pattern.permute.xlu0 2
    %1998 = vperm.xlu0 %1997, %v121
    %v1999 = vpop.permute.xlu0 %1998
    %2001 = vset.pattern.permute.xlu0 2
    %2002 = vperm.xlu0 %2001, %v122
    %v2003 = vpop.permute.xlu0 %2002
    %2005 = vset.pattern.permute.xlu0 2
    %2006 = vperm.xlu0 %2005, %v123
    %v2007 = vpop.permute.xlu0 %2006
    %2009 = vset.pattern.permute.xlu0 2
    %2010 = vperm.xlu0 %2009, %v124
    %v2011 = vpop.permute.xlu0 %2010
    %2013 = vset.pattern.permute.xlu0 2
    %2014 = vperm.xlu0 %2013, %v125
    %v2015 = vpop.permute.xlu0 %2014
    %2017 = vset.pattern.permute.xlu0 2
    %2018 = vperm.xlu0 %2017, %v126
    %v2019 = vpop.permute.xlu0 %2018
    %2021 = vset.pattern.permute.xlu0 2
    %2022 = vperm.xlu0 %2021, %v127
    %v2023 = vpop.permute.xlu0 %2022
    %2025 = vset.pattern.permute.xlu0 2
    %2026 = vperm.xlu0 %2025, %v128
    %v2027 = vpop.permute.xlu0 %2026
    %2029 = vset.pattern.permute.xlu0 2
    %2030 = vperm.xlu0 %2029, %v129
    %v2031 = vpop.permute.xlu0 %2030
    %2033 = vset.pattern.permute.xlu0 2
    %2034 = vperm.xlu0 %2033, %v130
    %v2035 = vpop.permute.xlu0 %2034
    %2037 = vset.pattern.permute.xlu0 2
    %2038 = vperm.xlu0 %2037, %v131
    %v2039 = vpop.permute.xlu0 %2038
    %2041 = vset.pattern.permute.xlu0 2
    %2042 = vperm.xlu0 %2041, %v132
    %v2043 = vpop.permute.xlu0 %2042
    %2045 = vset.pattern.permute.xlu0 2
    %2046 = vperm.xlu0 %2045, %v133
    %v2047 = vpop.permute.xlu0 %2046
    %2049 = vset.pattern.permute.xlu0 2
    %2050 = vperm.xlu0 %2049, %v134
    %v2051 = vpop.permute.xlu0 %2050
    %2053 = vset.pattern.permute.xlu0 2
    %2054 = vperm.xlu0 %2053, %v135
    %v2055 = vpop.permute.xlu0 %2054
    %2057 = vset.pattern.permute.xlu0 2
    %2058 = vperm.xlu0 %2057, %v136
    %v2059 = vpop.permute.xlu0 %2058
    %2061 = vset.pattern.permute.xlu0 2
    %2062 = vperm.xlu0 %2061, %v137
    %v2063 = vpop.permute.xlu0 %2062
    %2065 = vset.pattern.permute.xlu0 2
    %2066 = vperm.xlu0 %2065, %v138
    %v2067 = vpop.permute.xlu0 %2066
    %2069 = vset.pattern.permute.xlu0 2
    %2070 = vperm.xlu0 %2069, %v139
    %v2071 = vpop.permute.xlu0 %2070
    %2073 = vset.pattern.permute.xlu0 2
    %2074 = vperm.xlu0 %2073, %v140
    %v2075 = vpop.permute.xlu0 %2074
    %2077 = vset.pattern.permute.xlu0 2
    %2078 = vperm.xlu0 %2077, %v141
    %v2079 = vpop.permute.xlu0 %2078
    %2081 = vset.pattern.permute.xlu0 2
    %2082 = vperm.xlu0 %2081, %v142
    %v2083 = vpop.permute.xlu0 %2082
    %2085 = vset.pattern.permute.xlu0 2
    %2086 = vperm.xlu0 %2085, %v143
    %v2087 = vpop.permute.xlu0 %2086
    %2089 = vset.pattern.permute.xlu0 2
    %2090 = vperm.xlu0 %2089, %v144
    %v2091 = vpop.permute.xlu0 %2090
    %2093 = vset.pattern.permute.xlu0 2
    %2094 = vperm.xlu0 %2093, %v145
    %v2095 = vpop.permute.xlu0 %2094
    %2097 = vset.pattern.permute.xlu0 2
    %2098 = vperm.xlu0 %2097, %v146
    %v2099 = vpop.permute.xlu0 %2098
    %2101 = vset.pattern.permute.xlu0 2
    %2102 = vperm.xlu0 %2101, %v147
    %v2103 = vpop.permute.xlu0 %2102
    %2105 = vset.pattern.permute.xlu0 2
    %2106 = vperm.xlu0 %2105, %v148
    %v2107 = vpop.permute.xlu0 %2106
    %2109 = vset.pattern.permute.xlu0 2
    %2110 = vperm.xlu0 %2109, %v149
    %v2111 = vpop.permute.xlu0 %2110
    %2113 = vset.pattern.permute.xlu0 2
    %2114 = vperm.xlu0 %2113, %v150
    %v2115 = vpop.permute.xlu0 %2114
    %2117 = vset.pattern.permute.xlu0 2
    %2118 = vperm.xlu0 %2117, %v151
    %v2119 = vpop.permute.xlu0 %2118
    %2121 = vset.pattern.permute.xlu0 2
    %2122 = vperm.xlu0 %2121, %v152
    %v2123 = vpop.permute.xlu0 %2122
    %2125 = vset.pattern.permute.xlu0 2
    %2126 = vperm.xlu0 %2125, %v153
    %v2127 = vpop.permute.xlu0 %2126
    %2129 = vset.pattern.permute.xlu0 2
    %2130 = vperm.xlu0 %2129, %v154
    %v2131 = vpop.permute.xlu0 %2130
    %2133 = vset.pattern.permute.xlu0 2
    %2134 = vperm.xlu0 %2133, %v155
    %v2135 = vpop.permute.xlu0 %2134
    %2137 = vset.pattern.permute.xlu0 2
    %2138 = vperm.xlu0 %2137, %v156
    %v2139 = vpop.permute.xlu0 %2138
    %2141 = vset.pattern.permute.xlu0 2
    %2142 = vperm.xlu0 %2141, %v157
    %v2143 = vpop.permute.xlu0 %2142
    %2145 = vset.pattern.permute.xlu0 2
    %2146 = vperm.xlu0 %2145, %v158
    %v2147 = vpop.permute.xlu0 %2146
    %2149 = vset.pattern.permute.xlu0 2
    %2150 = vperm.xlu0 %2149, %v159
    %v2151 = vpop.permute.xlu0 %2150
    %2153 = vset.pattern.permute.xlu0 2
    %2154 = vperm.xlu0 %2153, %v160
    %v2155 = vpop.permute.xlu0 %2154
    %2157 = vset.pattern.permute.xlu0 2
    %2158 = vperm.xlu0 %2157, %v161
    %v2159 = vpop.permute.xlu0 %2158
    %2161 = vset.pattern.permute.xlu0 2
    %2162 = vperm.xlu0 %2161, %v162
    %v2163 = vpop.permute.xlu0 %2162
    %2165 = vset.pattern.permute.xlu0 2
    %2166 = vperm.xlu0 %2165, %v163
    %v2167 = vpop.permute.xlu0 %2166
    %2169 = vset.pattern.permute.xlu0 2
    %2170 = vperm.xlu0 %2169, %v164
    %v2171 = vpop.permute.xlu0 %2170
    %2173 = vset.pattern.permute.xlu0 2
    %2174 = vperm.xlu0 %2173, %v165
    %v2175 = vpop.permute.xlu0 %2174
    %2177 = vset.pattern.permute.xlu0 2
    %2178 = vperm.xlu0 %2177, %v166
    %v2179 = vpop.permute.xlu0 %2178
    %2181 = vset.pattern.permute.xlu0 2
    %2182 = vperm.xlu0 %2181, %v167
    %v2183 = vpop.permute.xlu0 %2182
    %2185 = vset.pattern.permute.xlu0 2
    %2186 = vperm.xlu0 %2185, %v168
    %v2187 = vpop.permute.xlu0 %2186
    %2189 = vset.pattern.permute.xlu0 2
    %2190 = vperm.xlu0 %2189, %v169
    %v2191 = vpop.permute.xlu0 %2190
    %2193 = vset.pattern.permute.xlu0 2
    %2194 = vperm.xlu0 %2193, %v170
    %v2195 = vpop.permute.xlu0 %2194
    %2197 = vset.pattern.permute.xlu0 2
    %2198 = vperm.xlu0 %2197, %v171
    %v2199 = vpop.permute.xlu0 %2198
    %2201 = vset.pattern.permute.xlu0 2
    %2202 = vperm.xlu0 %2201, %v172
    %v2203 = vpop.permute.xlu0 %2202
    %2205 = vset.pattern.permute.xlu0 2
    %2206 = vperm.xlu0 %2205, %v173
    %v2207 = vpop.permute.xlu0 %2206
    %2209 = vset.pattern.permute.xlu0 2
    %2210 = vperm.xlu0 %2209, %v174
    %v2211 = vpop.permute.xlu0 %2210
    %2213 = vset.pattern.permute.xlu0 2
    %2214 = vperm.xlu0 %2213, %v175
    %v2215 = vpop.permute.xlu0 %2214
    %2217 = vset.pattern.permute.xlu0 2
    %2218 = vperm.xlu0 %2217, %v176
    %v2219 = vpop.permute.xlu0 %2218
    %2221 = vset.pattern.permute.xlu0 2
    %2222 = vperm.xlu0 %2221, %v177
    %v2223 = vpop.permute.xlu0 %2222
    %2225 = vset.pattern.permute.xlu0 2
    %2226 = vperm.xlu0 %2225, %v178
    %v2227 = vpop.permute.xlu0 %2226
    %2229 = vset.pattern.permute.xlu0 2
    %2230 = vperm.xlu0 %2229, %v179
    %v2231 = vpop.permute.xlu0 %2230
    %2233 = vset.pattern.permute.xlu0 2
    %2234 = vperm.xlu0 %2233, %v180
    %v2235 = vpop.permute.xlu0 %2234
    %v2237 = vlaneseq
    %v2238 = vshrl.u32 %v2237, 7
    %v2239 = vsub.s32 2, %v2238
    %v2240 = vrot.slane %v51, %v2239
    %v2241 = vmul.f32 %v1727, %v2240
    %v2242 = vmul.f32 %v1731, %v2240
    %v2243 = vmul.f32 %v1735, %v2240
    %v2244 = vmul.f32 %v1739, %v2240
    %v2245 = vmul.f32 %v1743, %v2240
    %v2246 = vmul.f32 %v1747, %v2240
    %v2247 = vmul.f32 %v1751, %v2240
    %v2248 = vmul.f32 %v1755, %v2240
    %v2249 = vmul.f32 %v1759, %v2240
    %v2250 = vmul.f32 %v1763, %v2240
    %v2251 = vmul.f32 %v1767, %v2240
    %v2252 = vmul.f32 %v1771, %v2240
    %v2253 = vmul.f32 %v1775, %v2240
    %v2254 = vmul.f32 %v1779, %v2240
    %v2255 = vmul.f32 %v1783, %v2240
    %v2256 = vmul.f32 %v1787, %v2240
    %v2257 = vmul.f32 %v1791, %v2240
    %v2258 = vmul.f32 %v1795, %v2240
    %v2259 = vmul.f32 %v1799, %v2240
    %v2260 = vmul.f32 %v1803, %v2240
    %v2261 = vmul.f32 %v1807, %v2240
    %v2262 = vmul.f32 %v1811, %v2240
    %v2263 = vmul.f32 %v1815, %v2240
    %v2264 = vmul.f32 %v1819, %v2240
    %v2265 = vmul.f32 %v1823, %v2240
    %v2266 = vmul.f32 %v1827, %v2240
    %v2267 = vmul.f32 %v1831, %v2240
    %v2268 = vmul.f32 %v1835, %v2240
    %v2269 = vmul.f32 %v1839, %v2240
    %v2270 = vmul.f32 %v1843, %v2240
    %v2271 = vmul.f32 %v1847, %v2240
    %v2272 = vmul.f32 %v1851, %v2240
    %v2273 = vmul.f32 %v1855, %v2240
    %v2274 = vmul.f32 %v1859, %v2240
    %v2275 = vmul.f32 %v1863, %v2240
    %v2276 = vmul.f32 %v1867, %v2240
    %v2277 = vmul.f32 %v1871, %v2240
    %v2278 = vmul.f32 %v1875, %v2240
    %v2279 = vmul.f32 %v1879, %v2240
    %v2280 = vmul.f32 %v1883, %v2240
    %v2281 = vmul.f32 %v1887, %v2240
    %v2282 = vmul.f32 %v1891, %v2240
    %v2283 = vmul.f32 %v1895, %v2240
    %v2284 = vmul.f32 %v1899, %v2240
    %v2285 = vmul.f32 %v1903, %v2240
    %v2286 = vmul.f32 %v1907, %v2240
    %v2287 = vmul.f32 %v1911, %v2240
    %v2288 = vmul.f32 %v1915, %v2240
    %v2289 = vmul.f32 %v1919, %v2240
    %v2290 = vmul.f32 %v1923, %v2240
    %v2291 = vmul.f32 %v1927, %v2240
    %v2292 = vmul.f32 %v1931, %v2240
    %v2293 = vmul.f32 %v1935, %v2240
    %v2294 = vmul.f32 %v1939, %v2240
    %v2295 = vmul.f32 %v1943, %v2240
    %v2296 = vmul.f32 %v1947, %v2240
    %v2297 = vmul.f32 %v1951, %v2240
    %v2298 = vmul.f32 %v1955, %v2240
    %v2299 = vmul.f32 %v1959, %v2240
    %v2300 = vmul.f32 %v1963, %v2240
    %v2301 = vmul.f32 %v1967, %v2240
    %v2302 = vmul.f32 %v1971, %v2240
    %v2303 = vmul.f32 %v1975, %v2240
    %v2304 = vmul.f32 %v1979, %v2240
    %v2305 = vmul.f32 %v1983, %v2240
    %v2306 = vmul.f32 %v1987, %v2240
    %v2307 = vmul.f32 %v1991, %v2240
    %v2308 = vmul.f32 %v1995, %v2240
    %v2309 = vmul.f32 %v1999, %v2240
    %v2310 = vmul.f32 %v2003, %v2240
    %v2311 = vmul.f32 %v2007, %v2240
    %v2312 = vmul.f32 %v2011, %v2240
    %v2313 = vmul.f32 %v2015, %v2240
    %v2314 = vmul.f32 %v2019, %v2240
    %v2315 = vmul.f32 %v2023, %v2240
    %v2316 = vmul.f32 %v2027, %v2240
    %v2317 = vmul.f32 %v2031, %v2240
    %v2318 = vmul.f32 %v2035, %v2240
    %v2319 = vmul.f32 %v2039, %v2240
    %v2320 = vmul.f32 %v2043, %v2240
    %v2321 = vmul.f32 %v2047, %v2240
    %v2322 = vmul.f32 %v2051, %v2240
    %v2323 = vmul.f32 %v2055, %v2240
    %v2324 = vmul.f32 %v2059, %v2240
    %v2325 = vmul.f32 %v2063, %v2240
    %v2326 = vmul.f32 %v2067, %v2240
    %v2327 = vmul.f32 %v2071, %v2240
    %v2328 = vmul.f32 %v2075, %v2240
    %v2329 = vmul.f32 %v2079, %v2240
    %v2330 = vmul.f32 %v2083, %v2240
    %v2331 = vmul.f32 %v2087, %v2240
    %v2332 = vmul.f32 %v2091, %v2240
    %v2333 = vmul.f32 %v2095, %v2240
    %v2334 = vmul.f32 %v2099, %v2240
    %v2335 = vmul.f32 %v2103, %v2240
    %v2336 = vmul.f32 %v2107, %v2240
    %v2337 = vmul.f32 %v2111, %v2240
    %v2338 = vmul.f32 %v2115, %v2240
    %v2339 = vmul.f32 %v2119, %v2240
    %v2340 = vmul.f32 %v2123, %v2240
    %v2341 = vmul.f32 %v2127, %v2240
    %v2342 = vmul.f32 %v2131, %v2240
    %v2343 = vmul.f32 %v2135, %v2240
    %v2344 = vmul.f32 %v2139, %v2240
    %v2345 = vmul.f32 %v2143, %v2240
    %v2346 = vmul.f32 %v2147, %v2240
    %v2347 = vmul.f32 %v2151, %v2240
    %v2348 = vmul.f32 %v2155, %v2240
    %v2349 = vmul.f32 %v2159, %v2240
    %v2350 = vmul.f32 %v2163, %v2240
    %v2351 = vmul.f32 %v2167, %v2240
    %v2352 = vmul.f32 %v2171, %v2240
    %v2353 = vmul.f32 %v2175, %v2240
    %v2354 = vmul.f32 %v2179, %v2240
    %v2355 = vmul.f32 %v2183, %v2240
    %v2356 = vmul.f32 %v2187, %v2240
    %v2357 = vmul.f32 %v2191, %v2240
    %v2358 = vmul.f32 %v2195, %v2240
    %v2359 = vmul.f32 %v2199, %v2240
    %v2360 = vmul.f32 %v2203, %v2240
    %v2361 = vmul.f32 %v2207, %v2240
    %v2362 = vmul.f32 %v2211, %v2240
    %v2363 = vmul.f32 %v2215, %v2240
    %v2364 = vmul.f32 %v2219, %v2240
    %v2365 = vmul.f32 %v2223, %v2240
    %v2366 = vmul.f32 %v2227, %v2240
    %v2367 = vmul.f32 %v2231, %v2240
    %v2368 = vmul.f32 %v2235, %v2240
    %v2369 = vadd.f32 %v1597, %v2241
    %v2370 = vadd.f32 %v1598, %v2242
    %v2371 = vadd.f32 %v1599, %v2243
    %v2372 = vadd.f32 %v1600, %v2244
    %v2373 = vadd.f32 %v1601, %v2245
    %v2374 = vadd.f32 %v1602, %v2246
    %v2375 = vadd.f32 %v1603, %v2247
    %v2376 = vadd.f32 %v1604, %v2248
    %v2377 = vadd.f32 %v1605, %v2249
    %v2378 = vadd.f32 %v1606, %v2250
    %v2379 = vadd.f32 %v1607, %v2251
    %v2380 = vadd.f32 %v1608, %v2252
    %v2381 = vadd.f32 %v1609, %v2253
    %v2382 = vadd.f32 %v1610, %v2254
    %v2383 = vadd.f32 %v1611, %v2255
    %v2384 = vadd.f32 %v1612, %v2256
    %v2385 = vadd.f32 %v1613, %v2257
    %v2386 = vadd.f32 %v1614, %v2258
    %v2387 = vadd.f32 %v1615, %v2259
    %v2388 = vadd.f32 %v1616, %v2260
    %v2389 = vadd.f32 %v1617, %v2261
    %v2390 = vadd.f32 %v1618, %v2262
    %v2391 = vadd.f32 %v1619, %v2263
    %v2392 = vadd.f32 %v1620, %v2264
    %v2393 = vadd.f32 %v1621, %v2265
    %v2394 = vadd.f32 %v1622, %v2266
    %v2395 = vadd.f32 %v1623, %v2267
    %v2396 = vadd.f32 %v1624, %v2268
    %v2397 = vadd.f32 %v1625, %v2269
    %v2398 = vadd.f32 %v1626, %v2270
    %v2399 = vadd.f32 %v1627, %v2271
    %v2400 = vadd.f32 %v1628, %v2272
    %v2401 = vadd.f32 %v1629, %v2273
    %v2402 = vadd.f32 %v1630, %v2274
    %v2403 = vadd.f32 %v1631, %v2275
    %v2404 = vadd.f32 %v1632, %v2276
    %v2405 = vadd.f32 %v1633, %v2277
    %v2406 = vadd.f32 %v1634, %v2278
    %v2407 = vadd.f32 %v1635, %v2279
    %v2408 = vadd.f32 %v1636, %v2280
    %v2409 = vadd.f32 %v1637, %v2281
    %v2410 = vadd.f32 %v1638, %v2282
    %v2411 = vadd.f32 %v1639, %v2283
    %v2412 = vadd.f32 %v1640, %v2284
    %v2413 = vadd.f32 %v1641, %v2285
    %v2414 = vadd.f32 %v1642, %v2286
    %v2415 = vadd.f32 %v1643, %v2287
    %v2416 = vadd.f32 %v1644, %v2288
    %v2417 = vadd.f32 %v1645, %v2289
    %v2418 = vadd.f32 %v1646, %v2290
    %v2419 = vadd.f32 %v1647, %v2291
    %v2420 = vadd.f32 %v1648, %v2292
    %v2421 = vadd.f32 %v1649, %v2293
    %v2422 = vadd.f32 %v1650, %v2294
    %v2423 = vadd.f32 %v1651, %v2295
    %v2424 = vadd.f32 %v1652, %v2296
    %v2425 = vadd.f32 %v1653, %v2297
    %v2426 = vadd.f32 %v1654, %v2298
    %v2427 = vadd.f32 %v1655, %v2299
    %v2428 = vadd.f32 %v1656, %v2300
    %v2429 = vadd.f32 %v1657, %v2301
    %v2430 = vadd.f32 %v1658, %v2302
    %v2431 = vadd.f32 %v1659, %v2303
    %v2432 = vadd.f32 %v1660, %v2304
    %v2433 = vadd.f32 %v1661, %v2305
    %v2434 = vadd.f32 %v1662, %v2306
    %v2435 = vadd.f32 %v1663, %v2307
    %v2436 = vadd.f32 %v1664, %v2308
    %v2437 = vadd.f32 %v1665, %v2309
    %v2438 = vadd.f32 %v1666, %v2310
    %v2439 = vadd.f32 %v1667, %v2311
    %v2440 = vadd.f32 %v1668, %v2312
    %v2441 = vadd.f32 %v1669, %v2313
    %v2442 = vadd.f32 %v1670, %v2314
    %v2443 = vadd.f32 %v1671, %v2315
    %v2444 = vadd.f32 %v1672, %v2316
    %v2445 = vadd.f32 %v1673, %v2317
    %v2446 = vadd.f32 %v1674, %v2318
    %v2447 = vadd.f32 %v1675, %v2319
    %v2448 = vadd.f32 %v1676, %v2320
    %v2449 = vadd.f32 %v1677, %v2321
    %v2450 = vadd.f32 %v1678, %v2322
    %v2451 = vadd.f32 %v1679, %v2323
    %v2452 = vadd.f32 %v1680, %v2324
    %v2453 = vadd.f32 %v1681, %v2325
    %v2454 = vadd.f32 %v1682, %v2326
    %v2455 = vadd.f32 %v1683, %v2327
    %v2456 = vadd.f32 %v1684, %v2328
    %v2457 = vadd.f32 %v1685, %v2329
    %v2458 = vadd.f32 %v1686, %v2330
    %v2459 = vadd.f32 %v1687, %v2331
    %v2460 = vadd.f32 %v1688, %v2332
    %v2461 = vadd.f32 %v1689, %v2333
    %v2462 = vadd.f32 %v1690, %v2334
    %v2463 = vadd.f32 %v1691, %v2335
    %v2464 = vadd.f32 %v1692, %v2336
    %v2465 = vadd.f32 %v1693, %v2337
    %v2466 = vadd.f32 %v1694, %v2338
    %v2467 = vadd.f32 %v1695, %v2339
    %v2468 = vadd.f32 %v1696, %v2340
    %v2469 = vadd.f32 %v1697, %v2341
    %v2470 = vadd.f32 %v1698, %v2342
    %v2471 = vadd.f32 %v1699, %v2343
    %v2472 = vadd.f32 %v1700, %v2344
    %v2473 = vadd.f32 %v1701, %v2345
    %v2474 = vadd.f32 %v1702, %v2346
    %v2475 = vadd.f32 %v1703, %v2347
    %v2476 = vadd.f32 %v1704, %v2348
    %v2477 = vadd.f32 %v1705, %v2349
    %v2478 = vadd.f32 %v1706, %v2350
    %v2479 = vadd.f32 %v1707, %v2351
    %v2480 = vadd.f32 %v1708, %v2352
    %v2481 = vadd.f32 %v1709, %v2353
    %v2482 = vadd.f32 %v1710, %v2354
    %v2483 = vadd.f32 %v1711, %v2355
    %v2484 = vadd.f32 %v1712, %v2356
    %v2485 = vadd.f32 %v1713, %v2357
    %v2486 = vadd.f32 %v1714, %v2358
    %v2487 = vadd.f32 %v1715, %v2359
    %v2488 = vadd.f32 %v1716, %v2360
    %v2489 = vadd.f32 %v1717, %v2361
    %v2490 = vadd.f32 %v1718, %v2362
    %v2491 = vadd.f32 %v1719, %v2363
    %v2492 = vadd.f32 %v1720, %v2364
    %v2493 = vadd.f32 %v1721, %v2365
    %v2494 = vadd.f32 %v1722, %v2366
    %v2495 = vadd.f32 %v1723, %v2367
    %v2496 = vadd.f32 %v1724, %v2368
    %v2498 = vlaneseq
    %v2499 = vshrl.u32 %v2498, 7
    %v2500 = vsub.s32 0, %v2499
    %v2501 = vrot.slane %v52, %v2500
    %v2503 = vadd.f32 %v2369, %v2501
    %v2504 = vadd.f32 %v2370, %v2501
    %v2505 = vadd.f32 %v2371, %v2501
    %v2506 = vadd.f32 %v2372, %v2501
    %v2507 = vadd.f32 %v2373, %v2501
    %v2508 = vadd.f32 %v2374, %v2501
    %v2509 = vadd.f32 %v2375, %v2501
    %v2510 = vadd.f32 %v2376, %v2501
    %v2511 = vadd.f32 %v2377, %v2501
    %v2512 = vadd.f32 %v2378, %v2501
    %v2513 = vadd.f32 %v2379, %v2501
    %v2514 = vadd.f32 %v2380, %v2501
    %v2515 = vadd.f32 %v2381, %v2501
    %v2516 = vadd.f32 %v2382, %v2501
    %v2517 = vadd.f32 %v2383, %v2501
    %v2518 = vadd.f32 %v2384, %v2501
    %v2519 = vadd.f32 %v2385, %v2501
    %v2520 = vadd.f32 %v2386, %v2501
    %v2521 = vadd.f32 %v2387, %v2501
    %v2522 = vadd.f32 %v2388, %v2501
    %v2523 = vadd.f32 %v2389, %v2501
    %v2524 = vadd.f32 %v2390, %v2501
    %v2525 = vadd.f32 %v2391, %v2501
    %v2526 = vadd.f32 %v2392, %v2501
    %v2527 = vadd.f32 %v2393, %v2501
    %v2528 = vadd.f32 %v2394, %v2501
    %v2529 = vadd.f32 %v2395, %v2501
    %v2530 = vadd.f32 %v2396, %v2501
    %v2531 = vadd.f32 %v2397, %v2501
    %v2532 = vadd.f32 %v2398, %v2501
    %v2533 = vadd.f32 %v2399, %v2501
    %v2534 = vadd.f32 %v2400, %v2501
    %v2535 = vadd.f32 %v2401, %v2501
    %v2536 = vadd.f32 %v2402, %v2501
    %v2537 = vadd.f32 %v2403, %v2501
    %v2538 = vadd.f32 %v2404, %v2501
    %v2539 = vadd.f32 %v2405, %v2501
    %v2540 = vadd.f32 %v2406, %v2501
    %v2541 = vadd.f32 %v2407, %v2501
    %v2542 = vadd.f32 %v2408, %v2501
    %v2543 = vadd.f32 %v2409, %v2501
    %v2544 = vadd.f32 %v2410, %v2501
    %v2545 = vadd.f32 %v2411, %v2501
    %v2546 = vadd.f32 %v2412, %v2501
    %v2547 = vadd.f32 %v2413, %v2501
    %v2548 = vadd.f32 %v2414, %v2501
    %v2549 = vadd.f32 %v2415, %v2501
    %v2550 = vadd.f32 %v2416, %v2501
    %v2551 = vadd.f32 %v2417, %v2501
    %v2552 = vadd.f32 %v2418, %v2501
    %v2553 = vadd.f32 %v2419, %v2501
    %v2554 = vadd.f32 %v2420, %v2501
    %v2555 = vadd.f32 %v2421, %v2501
    %v2556 = vadd.f32 %v2422, %v2501
    %v2557 = vadd.f32 %v2423, %v2501
    %v2558 = vadd.f32 %v2424, %v2501
    %v2559 = vadd.f32 %v2425, %v2501
    %v2560 = vadd.f32 %v2426, %v2501
    %v2561 = vadd.f32 %v2427, %v2501
    %v2562 = vadd.f32 %v2428, %v2501
    %v2563 = vadd.f32 %v2429, %v2501
    %v2564 = vadd.f32 %v2430, %v2501
    %v2565 = vadd.f32 %v2431, %v2501
    %v2566 = vadd.f32 %v2432, %v2501
    %v2567 = vadd.f32 %v2433, %v2501
    %v2568 = vadd.f32 %v2434, %v2501
    %v2569 = vadd.f32 %v2435, %v2501
    %v2570 = vadd.f32 %v2436, %v2501
    %v2571 = vadd.f32 %v2437, %v2501
    %v2572 = vadd.f32 %v2438, %v2501
    %v2573 = vadd.f32 %v2439, %v2501
    %v2574 = vadd.f32 %v2440, %v2501
    %v2575 = vadd.f32 %v2441, %v2501
    %v2576 = vadd.f32 %v2442, %v2501
    %v2577 = vadd.f32 %v2443, %v2501
    %v2578 = vadd.f32 %v2444, %v2501
    %v2579 = vadd.f32 %v2445, %v2501
    %v2580 = vadd.f32 %v2446, %v2501
    %v2581 = vadd.f32 %v2447, %v2501
    %v2582 = vadd.f32 %v2448, %v2501
    %v2583 = vadd.f32 %v2449, %v2501
    %v2584 = vadd.f32 %v2450, %v2501
    %v2585 = vadd.f32 %v2451, %v2501
    %v2586 = vadd.f32 %v2452, %v2501
    %v2587 = vadd.f32 %v2453, %v2501
    %v2588 = vadd.f32 %v2454, %v2501
    %v2589 = vadd.f32 %v2455, %v2501
    %v2590 = vadd.f32 %v2456, %v2501
    %v2591 = vadd.f32 %v2457, %v2501
    %v2592 = vadd.f32 %v2458, %v2501
    %v2593 = vadd.f32 %v2459, %v2501
    %v2594 = vadd.f32 %v2460, %v2501
    %v2595 = vadd.f32 %v2461, %v2501
    %v2596 = vadd.f32 %v2462, %v2501
    %v2597 = vadd.f32 %v2463, %v2501
    %v2598 = vadd.f32 %v2464, %v2501
    %v2599 = vadd.f32 %v2465, %v2501
    %v2600 = vadd.f32 %v2466, %v2501
    %v2601 = vadd.f32 %v2467, %v2501
    %v2602 = vadd.f32 %v2468, %v2501
    %v2603 = vadd.f32 %v2469, %v2501
    %v2604 = vadd.f32 %v2470, %v2501
    %v2605 = vadd.f32 %v2471, %v2501
    %v2606 = vadd.f32 %v2472, %v2501
    %v2607 = vadd.f32 %v2473, %v2501
    %v2608 = vadd.f32 %v2474, %v2501
    %v2609 = vadd.f32 %v2475, %v2501
    %v2610 = vadd.f32 %v2476, %v2501
    %v2611 = vadd.f32 %v2477, %v2501
    %v2612 = vadd.f32 %v2478, %v2501
    %v2613 = vadd.f32 %v2479, %v2501
    %v2614 = vadd.f32 %v2480, %v2501
    %v2615 = vadd.f32 %v2481, %v2501
    %v2616 = vadd.f32 %v2482, %v2501
    %v2617 = vadd.f32 %v2483, %v2501
    %v2618 = vadd.f32 %v2484, %v2501
    %v2619 = vadd.f32 %v2485, %v2501
    %v2620 = vadd.f32 %v2486, %v2501
    %v2621 = vadd.f32 %v2487, %v2501
    %v2622 = vadd.f32 %v2488, %v2501
    %v2623 = vadd.f32 %v2489, %v2501
    %v2624 = vadd.f32 %v2490, %v2501
    %v2625 = vadd.f32 %v2491, %v2501
    %v2626 = vadd.f32 %v2492, %v2501
    %v2627 = vadd.f32 %v2493, %v2501
    %v2628 = vadd.f32 %v2494, %v2501
    %v2629 = vadd.f32 %v2495, %v2501
    %v2630 = vadd.f32 %v2496, %v2501
    %v2631 = vmax.f32 %v2503, 0.0
    %v2632 = vmax.f32 %v2504, 0.0
    %v2633 = vmax.f32 %v2505, 0.0
    %v2634 = vmax.f32 %v2506, 0.0
    %v2635 = vmax.f32 %v2507, 0.0
    %v2636 = vmax.f32 %v2508, 0.0
    %v2637 = vmax.f32 %v2509, 0.0
    %v2638 = vmax.f32 %v2510, 0.0
    %v2639 = vmax.f32 %v2511, 0.0
    %v2640 = vmax.f32 %v2512, 0.0
    %v2641 = vmax.f32 %v2513, 0.0
    %v2642 = vmax.f32 %v2514, 0.0
    %v2643 = vmax.f32 %v2515, 0.0
    %v2644 = vmax.f32 %v2516, 0.0
    %v2645 = vmax.f32 %v2517, 0.0
    %v2646 = vmax.f32 %v2518, 0.0
    %v2647 = vmax.f32 %v2519, 0.0
    %v2648 = vmax.f32 %v2520, 0.0
    %v2649 = vmax.f32 %v2521, 0.0
    %v2650 = vmax.f32 %v2522, 0.0
    %v2651 = vmax.f32 %v2523, 0.0
    %v2652 = vmax.f32 %v2524, 0.0
    %v2653 = vmax.f32 %v2525, 0.0
    %v2654 = vmax.f32 %v2526, 0.0
    %v2655 = vmax.f32 %v2527, 0.0
    %v2656 = vmax.f32 %v2528, 0.0
    %v2657 = vmax.f32 %v2529, 0.0
    %v2658 = vmax.f32 %v2530, 0.0
    %v2659 = vmax.f32 %v2531, 0.0
    %v2660 = vmax.f32 %v2532, 0.0
    %v2661 = vmax.f32 %v2533, 0.0
    %v2662 = vmax.f32 %v2534, 0.0
    %v2663 = vmax.f32 %v2535, 0.0
    %v2664 = vmax.f32 %v2536, 0.0
    %v2665 = vmax.f32 %v2537, 0.0
    %v2666 = vmax.f32 %v2538, 0.0
    %v2667 = vmax.f32 %v2539, 0.0
    %v2668 = vmax.f32 %v2540, 0.0
    %v2669 = vmax.f32 %v2541, 0.0
    %v2670 = vmax.f32 %v2542, 0.0
    %v2671 = vmax.f32 %v2543, 0.0
    %v2672 = vmax.f32 %v2544, 0.0
    %v2673 = vmax.f32 %v2545, 0.0
    %v2674 = vmax.f32 %v2546, 0.0
    %v2675 = vmax.f32 %v2547, 0.0
    %v2676 = vmax.f32 %v2548, 0.0
    %v2677 = vmax.f32 %v2549, 0.0
    %v2678 = vmax.f32 %v2550, 0.0
    %v2679 = vmax.f32 %v2551, 0.0
    %v2680 = vmax.f32 %v2552, 0.0
    %v2681 = vmax.f32 %v2553, 0.0
    %v2682 = vmax.f32 %v2554, 0.0
    %v2683 = vmax.f32 %v2555, 0.0
    %v2684 = vmax.f32 %v2556, 0.0
    %v2685 = vmax.f32 %v2557, 0.0
    %v2686 = vmax.f32 %v2558, 0.0
    %v2687 = vmax.f32 %v2559, 0.0
    %v2688 = vmax.f32 %v2560, 0.0
    %v2689 = vmax.f32 %v2561, 0.0
    %v2690 = vmax.f32 %v2562, 0.0
    %v2691 = vmax.f32 %v2563, 0.0
    %v2692 = vmax.f32 %v2564, 0.0
    %v2693 = vmax.f32 %v2565, 0.0
    %v2694 = vmax.f32 %v2566, 0.0
    %v2695 = vmax.f32 %v2567, 0.0
    %v2696 = vmax.f32 %v2568, 0.0
    %v2697 = vmax.f32 %v2569, 0.0
    %v2698 = vmax.f32 %v2570, 0.0
    %v2699 = vmax.f32 %v2571, 0.0
    %v2700 = vmax.f32 %v2572, 0.0
    %v2701 = vmax.f32 %v2573, 0.0
    %v2702 = vmax.f32 %v2574, 0.0
    %v2703 = vmax.f32 %v2575, 0.0
    %v2704 = vmax.f32 %v2576, 0.0
    %v2705 = vmax.f32 %v2577, 0.0
    %v2706 = vmax.f32 %v2578, 0.0
    %v2707 = vmax.f32 %v2579, 0.0
    %v2708 = vmax.f32 %v2580, 0.0
    %v2709 = vmax.f32 %v2581, 0.0
    %v2710 = vmax.f32 %v2582, 0.0
    %v2711 = vmax.f32 %v2583, 0.0
    %v2712 = vmax.f32 %v2584, 0.0
    %v2713 = vmax.f32 %v2585, 0.0
    %v2714 = vmax.f32 %v2586, 0.0
    %v2715 = vmax.f32 %v2587, 0.0
    %v2716 = vmax.f32 %v2588, 0.0
    %v2717 = vmax.f32 %v2589, 0.0
    %v2718 = vmax.f32 %v2590, 0.0
    %v2719 = vmax.f32 %v2591, 0.0
    %v2720 = vmax.f32 %v2592, 0.0
    %v2721 = vmax.f32 %v2593, 0.0
    %v2722 = vmax.f32 %v2594, 0.0
    %v2723 = vmax.f32 %v2595, 0.0
    %v2724 = vmax.f32 %v2596, 0.0
    %v2725 = vmax.f32 %v2597, 0.0
    %v2726 = vmax.f32 %v2598, 0.0
    %v2727 = vmax.f32 %v2599, 0.0
    %v2728 = vmax.f32 %v2600, 0.0
    %v2729 = vmax.f32 %v2601, 0.0
    %v2730 = vmax.f32 %v2602, 0.0
    %v2731 = vmax.f32 %v2603, 0.0
    %v2732 = vmax.f32 %v2604, 0.0
    %v2733 = vmax.f32 %v2605, 0.0
    %v2734 = vmax.f32 %v2606, 0.0
    %v2735 = vmax.f32 %v2607, 0.0
    %v2736 = vmax.f32 %v2608, 0.0
    %v2737 = vmax.f32 %v2609, 0.0
    %v2738 = vmax.f32 %v2610, 0.0
    %v2739 = vmax.f32 %v2611, 0.0
    %v2740 = vmax.f32 %v2612, 0.0
    %v2741 = vmax.f32 %v2613, 0.0
    %v2742 = vmax.f32 %v2614, 0.0
    %v2743 = vmax.f32 %v2615, 0.0
    %v2744 = vmax.f32 %v2616, 0.0
    %v2745 = vmax.f32 %v2617, 0.0
    %v2746 = vmax.f32 %v2618, 0.0
    %v2747 = vmax.f32 %v2619, 0.0
    %v2748 = vmax.f32 %v2620, 0.0
    %v2749 = vmax.f32 %v2621, 0.0
    %v2750 = vmax.f32 %v2622, 0.0
    %v2751 = vmax.f32 %v2623, 0.0
    %v2752 = vmax.f32 %v2624, 0.0
    %v2753 = vmax.f32 %v2625, 0.0
    %v2754 = vmax.f32 %v2626, 0.0
    %v2755 = vmax.f32 %v2627, 0.0
    %v2756 = vmax.f32 %v2628, 0.0
    %v2757 = vmax.f32 %v2629, 0.0
    %v2758 = vmax.f32 %v2630, 0.0
    %v2759 = vpack.c.bf16 %v2632, %v2631
    %v2760 = vpack.c.bf16 %v2634, %v2633
    %v2761 = vpack.c.bf16 %v2636, %v2635
    %v2762 = vpack.c.bf16 %v2638, %v2637
    %v2763 = vpack.c.bf16 %v2640, %v2639
    %v2764 = vpack.c.bf16 %v2642, %v2641
    %v2765 = vpack.c.bf16 %v2644, %v2643
    %v2766 = vpack.c.bf16 %v2646, %v2645
    %v2767 = vpack.c.bf16 %v2648, %v2647
    %v2768 = vpack.c.bf16 %v2650, %v2649
    %v2769 = vpack.c.bf16 %v2652, %v2651
    %v2770 = vpack.c.bf16 %v2654, %v2653
    %v2771 = vpack.c.bf16 %v2656, %v2655
    %v2772 = vpack.c.bf16 %v2658, %v2657
    %v2773 = vpack.c.bf16 %v2660, %v2659
    %v2774 = vpack.c.bf16 %v2662, %v2661
    %v2775 = vpack.c.bf16 %v2664, %v2663
    %v2776 = vpack.c.bf16 %v2666, %v2665
    %v2777 = vpack.c.bf16 %v2668, %v2667
    %v2778 = vpack.c.bf16 %v2670, %v2669
    %v2779 = vpack.c.bf16 %v2672, %v2671
    %v2780 = vpack.c.bf16 %v2674, %v2673
    %v2781 = vpack.c.bf16 %v2676, %v2675
    %v2782 = vpack.c.bf16 %v2678, %v2677
    %v2783 = vpack.c.bf16 %v2680, %v2679
    %v2784 = vpack.c.bf16 %v2682, %v2681
    %v2785 = vpack.c.bf16 %v2684, %v2683
    %v2786 = vpack.c.bf16 %v2686, %v2685
    %v2787 = vpack.c.bf16 %v2688, %v2687
    %v2788 = vpack.c.bf16 %v2690, %v2689
    %v2789 = vpack.c.bf16 %v2692, %v2691
    %v2790 = vpack.c.bf16 %v2694, %v2693
    %v2791 = vpack.c.bf16 %v2696, %v2695
    %v2792 = vpack.c.bf16 %v2698, %v2697
    %v2793 = vpack.c.bf16 %v2700, %v2699
    %v2794 = vpack.c.bf16 %v2702, %v2701
    %v2795 = vpack.c.bf16 %v2704, %v2703
    %v2796 = vpack.c.bf16 %v2706, %v2705
    %v2797 = vpack.c.bf16 %v2708, %v2707
    %v2798 = vpack.c.bf16 %v2710, %v2709
    %v2799 = vpack.c.bf16 %v2712, %v2711
    %v2800 = vpack.c.bf16 %v2714, %v2713
    %v2801 = vpack.c.bf16 %v2716, %v2715
    %v2802 = vpack.c.bf16 %v2718, %v2717
    %v2803 = vpack.c.bf16 %v2720, %v2719
    %v2804 = vpack.c.bf16 %v2722, %v2721
    %v2805 = vpack.c.bf16 %v2724, %v2723
    %v2806 = vpack.c.bf16 %v2726, %v2725
    %v2807 = vpack.c.bf16 %v2728, %v2727
    %v2808 = vpack.c.bf16 %v2730, %v2729
    %v2809 = vpack.c.bf16 %v2732, %v2731
    %v2810 = vpack.c.bf16 %v2734, %v2733
    %v2811 = vpack.c.bf16 %v2736, %v2735
    %v2812 = vpack.c.bf16 %v2738, %v2737
    %v2813 = vpack.c.bf16 %v2740, %v2739
    %v2814 = vpack.c.bf16 %v2742, %v2741
    %v2815 = vpack.c.bf16 %v2744, %v2743
    %v2816 = vpack.c.bf16 %v2746, %v2745
    %v2817 = vpack.c.bf16 %v2748, %v2747
    %v2818 = vpack.c.bf16 %v2750, %v2749
    %v2819 = vpack.c.bf16 %v2752, %v2751
    %v2820 = vpack.c.bf16 %v2754, %v2753
    %v2821 = vpack.c.bf16 %v2756, %v2755
    %v2822 = vpack.c.bf16 %v2758, %v2757
    %v2823 = vld [vmem:[%s3] sm:$0xf]
    %v2824 = vld [vmem:[%s3 + $0x4] sm:$0xf]
    %v2825 = vld [vmem:[%s3 + $0x8] sm:$0xf]
    %v2826 = vld [vmem:[%s3 + $0xc] sm:$0xf]
    %v2827 = vld [vmem:[%s3 + $0x10] sm:$0xf]
    %v2828 = vld [vmem:[%s3 + $0x14] sm:$0xf]
    %v2829 = vld [vmem:[%s3 + $0x18] sm:$0xf]
    %v2830 = vld [vmem:[%s3 + $0x1c] sm:$0xf]
    %v2831 = vld [vmem:[%s4] sm:$0x1]
    %v2833 = vlaneseq
    %v2834 = vshrl.u32 %v2833, 7
    %v2835 = vsub.s32 0, %v2834
    %v2836 = vrot.slane %v2831, %v2835
    %v2846 = vunpack.c.l.b16 %v2823
    %v2847 = vunpack.c.l.b16 %v2824
    %v2848 = vunpack.c.l.b16 %v2825
    %v2849 = vunpack.c.l.b16 %v2826
    %v2850 = vunpack.c.l.b16 %v2827
    %v2851 = vunpack.c.l.b16 %v2828
    %v2852 = vunpack.c.l.b16 %v2829
    %v2853 = vunpack.c.l.b16 %v2830
    %v2854 = vpack.c.b16 %v2847, %v2846
    %v2855 = vpack.c.b16 %v2849, %v2848
    %v2856 = vpack.c.b16 %v2851, %v2850
    %v2857 = vpack.c.b16 %v2853, %v2852
    %vm2862 = vcmask 523264
    %v2864 = vsel %vm2862, %v2759, 0
    %v2867 = vsel %vm2862, %v2760, 0
    %v2870 = vsel %vm2862, %v2761, 0
    %v2873 = vsel %vm2862, %v2762, 0
    %v2876 = vsel %vm2862, %v2763, 0
    %v2879 = vsel %vm2862, %v2764, 0
    %v2882 = vsel %vm2862, %v2765, 0
    %v2885 = vsel %vm2862, %v2766, 0
    %v2888 = vsel %vm2862, %v2767, 0
    %v2891 = vsel %vm2862, %v2768, 0
    %v2894 = vsel %vm2862, %v2769, 0
    %v2897 = vsel %vm2862, %v2770, 0
    %v2900 = vsel %vm2862, %v2771, 0
    %v2903 = vsel %vm2862, %v2772, 0
    %v2906 = vsel %vm2862, %v2773, 0
    %v2909 = vsel %vm2862, %v2774, 0
    %v2912 = vsel %vm2862, %v2775, 0
    %v2915 = vsel %vm2862, %v2776, 0
    %v2918 = vsel %vm2862, %v2777, 0
    %v2921 = vsel %vm2862, %v2778, 0
    %v2924 = vsel %vm2862, %v2779, 0
    %v2927 = vsel %vm2862, %v2780, 0
    %v2930 = vsel %vm2862, %v2781, 0
    %v2933 = vsel %vm2862, %v2782, 0
    %v2936 = vsel %vm2862, %v2783, 0
    %v2939 = vsel %vm2862, %v2784, 0
    %v2942 = vsel %vm2862, %v2785, 0
    %v2945 = vsel %vm2862, %v2786, 0
    %v2948 = vsel %vm2862, %v2787, 0
    %v2951 = vsel %vm2862, %v2788, 0
    %v2954 = vsel %vm2862, %v2789, 0
    %v2957 = vsel %vm2862, %v2790, 0
    %v2960 = vsel %vm2862, %v2791, 0
    %v2963 = vsel %vm2862, %v2792, 0
    %v2966 = vsel %vm2862, %v2793, 0
    %v2969 = vsel %vm2862, %v2794, 0
    %v2972 = vsel %vm2862, %v2795, 0
    %v2975 = vsel %vm2862, %v2796, 0
    %v2978 = vsel %vm2862, %v2797, 0
    %v2981 = vsel %vm2862, %v2798, 0
    %v2984 = vsel %vm2862, %v2799, 0
    %v2987 = vsel %vm2862, %v2800, 0
    %v2990 = vsel %vm2862, %v2801, 0
    %v2993 = vsel %vm2862, %v2802, 0
    %v2996 = vsel %vm2862, %v2803, 0
    %v2999 = vsel %vm2862, %v2804, 0
    %v3002 = vsel %vm2862, %v2805, 0
    %v3005 = vsel %vm2862, %v2806, 0
    %v3008 = vsel %vm2862, %v2807, 0
    %v3011 = vsel %vm2862, %v2808, 0
    %v3014 = vsel %vm2862, %v2809, 0
    %v3017 = vsel %vm2862, %v2810, 0
    %v3020 = vsel %vm2862, %v2811, 0
    %v3023 = vsel %vm2862, %v2812, 0
    %v3026 = vsel %vm2862, %v2813, 0
    %v3029 = vsel %vm2862, %v2814, 0
    %v3032 = vsel %vm2862, %v2815, 0
    %v3035 = vsel %vm2862, %v2816, 0
    %v3038 = vsel %vm2862, %v2817, 0
    %v3041 = vsel %vm2862, %v2818, 0
    %v3044 = vsel %vm2862, %v2819, 0
    %v3047 = vsel %vm2862, %v2820, 0
    %v3050 = vsel %vm2862, %v2821, 0
    %v3053 = vsel %vm2862, %v2822, 0
    %3055 = vmatprep.subr.bf16.mxu0 0
    %3056 = vmatpush1.bf16.msra.mxu0 %v2854
    %3057 = vmatprep.subr.bf16.mxu0 0
    %3058 = vmatpush1.bf16.msra.mxu0 %v2855
    %3059 = vmatprep.subr.bf16.mxu0 0
    %3060 = vmatpush1.bf16.msra.mxu0 %v2856
    %3061 = vmatprep.subr.bf16.mxu0 0
    %3062 = vmatpush1.bf16.msra.mxu0 %v2857
    %3063 = vmatprep.subr.bf16.mxu0 0
    %3064 = vmatpush1.bf16.msra.mxu0 0
    %3065 = vmatprep.subr.bf16.mxu0 0
    %3066 = vmatpush1.bf16.msra.mxu0 0
    %3067 = vmatprep.subr.bf16.mxu0 0
    %3068 = vmatpush1.bf16.msra.mxu0 0
    %3069 = vmatprep.subr.bf16.mxu0 0
    %3070 = vmatpush1.bf16.msra.mxu0 0
    %3071 = vmatprep.subr.bf16.mxu0 0
    %3072 = vmatpush1.bf16.msra.mxu0 0
    %3073 = vmatprep.subr.bf16.mxu0 0
    %3074 = vmatpush1.bf16.msra.mxu0 0
    %3075 = vmatprep.subr.bf16.mxu0 0
    %3076 = vmatpush1.bf16.msra.mxu0 0
    %3077 = vmatprep.subr.bf16.mxu0 0
    %3078 = vmatpush1.bf16.msra.mxu0 0
    %3079 = vmatprep.subr.bf16.mxu0 0
    %3080 = vmatpush1.bf16.msra.mxu0 0
    %3081 = vmatprep.subr.bf16.mxu0 0
    %3082 = vmatpush1.bf16.msra.mxu0 0
    %3083 = vmatprep.subr.bf16.mxu0 0
    %3084 = vmatpush1.bf16.msra.mxu0 0
    %3085 = vmatprep.subr.bf16.mxu0 0
    %3086 = vmatpush1.bf16.msra.mxu0 0
    %3087 = vmatprep.mubr.bf16.mxu0 0
    %3088 = vmatmul.mubr.bf16.gmra.mrb[0].mxu0 %v2864
    %v3089 = vpop.f32.mrb[0].mxu0
    %v3090 = vadd.f32 %v2836, %v3089
    %v3091 = vpop.f32.mrb[0].mxu0
    %v3092 = vpop.f32.mrb[0].mxu0
    %v3093 = vadd.f32 %v2836, %v3092
    %v3094 = vpop.f32.mrb[0].mxu0
    %3095 = vmatprep.mubr.bf16.mxu0 0
    %3096 = vmatmul.mubr.bf16.gmra.mrb[0].mxu0 %v2867
    %v3097 = vpop.f32.mrb[0].mxu0
    %v3098 = vadd.f32 %v2836, %v3097
    %v3099 = vpop.f32.mrb[0].mxu0
    %v3100 = vpop.f32.mrb[0].mxu0
    %v3101 = vadd.f32 %v2836, %v3100
    %v3102 = vpop.f32.mrb[0].mxu0
    %3103 = vmatprep.mubr.bf16.mxu0 0
    %3104 = vmatmul.mubr.bf16.gmra.mrb[0].mxu0 %v2870
    %v3105 = vpop.f32.mrb[0].mxu0
    %v3106 = vadd.f32 %v2836, %v3105
    %v3107 = vpop.f32.mrb[0].mxu0
    %v3108 = vpop.f32.mrb[0].mxu0
    %v3109 = vadd.f32 %v2836, %v3108
    %v3110 = vpop.f32.mrb[0].mxu0
    %3111 = vmatprep.mubr.bf16.mxu0 0
    %3112 = vmatmul.mubr.bf16.gmra.mrb[0].mxu0 %v2873
    %v3113 = vpop.f32.mrb[0].mxu0
    %v3114 = vadd.f32 %v2836, %v3113
    %v3115 = vpop.f32.mrb[0].mxu0
    %v3116 = vpop.f32.mrb[0].mxu0
    %v3117 = vadd.f32 %v2836, %v3116
    %v3118 = vpop.f32.mrb[0].mxu0
    %3119 = vmatprep.mubr.bf16.mxu0 0
    %3120 = vmatmul.mubr.bf16.gmra.mrb[0].mxu0 %v2876
    %v3121 = vpop.f32.mrb[0].mxu0
    %v3122 = vadd.f32 %v2836, %v3121
    %v3123 = vpop.f32.mrb[0].mxu0
    %v3124 = vpop.f32.mrb[0].mxu0
    %v3125 = vadd.f32 %v2836, %v3124
    %v3126 = vpop.f32.mrb[0].mxu0
    %3127 = vmatprep.mubr.bf16.mxu0 0
    %3128 = vmatmul.mubr.bf16.gmra.mrb[0].mxu0 %v2879
    %v3129 = vpop.f32.mrb[0].mxu0
    %v3130 = vadd.f32 %v2836, %v3129
    %v3131 = vpop.f32.mrb[0].mxu0
    %v3132 = vpop.f32.mrb[0].mxu0
    %v3133 = vadd.f32 %v2836, %v3132
    %v3134 = vpop.f32.mrb[0].mxu0
    %3135 = vmatprep.mubr.bf16.mxu0 0
    %3136 = vmatmul.mubr.bf16.gmra.mrb[0].mxu0 %v2882
    %v3137 = vpop.f32.mrb[0].mxu0
    %v3138 = vadd.f32 %v2836, %v3137
    %v3139 = vpop.f32.mrb[0].mxu0
    %v3140 = vpop.f32.mrb[0].mxu0
    %v3141 = vadd.f32 %v2836, %v3140
    %v3142 = vpop.f32.mrb[0].mxu0
    %3143 = vmatprep.mubr.bf16.mxu0 0
    %3144 = vmatmul.mubr.bf16.gmra.mrb[0].mxu0 %v2885
    %v3145 = vpop.f32.mrb[0].mxu0
    %v3146 = vadd.f32 %v2836, %v3145
    %v3147 = vpop.f32.mrb[0].mxu0
    %v3148 = vpop.f32.mrb[0].mxu0
    %v3149 = vadd.f32 %v2836, %v3148
    %v3150 = vpop.f32.mrb[0].mxu0
    %3151 = vmatprep.mubr.bf16.mxu0 0
    %3152 = vmatmul.mubr.bf16.gmra.mrb[0].mxu0 %v2888
    %v3153 = vpop.f32.mrb[0].mxu0
    %v3154 = vadd.f32 %v2836, %v3153
    %v3155 = vpop.f32.mrb[0].mxu0
    %v3156 = vpop.f32.mrb[0].mxu0
    %v3157 = vadd.f32 %v2836, %v3156
    %v3158 = vpop.f32.mrb[0].mxu0
    %3159 = vmatprep.mubr.bf16.mxu0 0
    %3160 = vmatmul.mubr.bf16.gmra.mrb[0].mxu0 %v2891
    %v3161 = vpop.f32.mrb[0].mxu0
    %v3162 = vadd.f32 %v2836, %v3161
    %v3163 = vpop.f32.mrb[0].mxu0
    %v3164 = vpop.f32.mrb[0].mxu0
    %v3165 = vadd.f32 %v2836, %v3164
    %v3166 = vpop.f32.mrb[0].mxu0
    %3167 = vmatprep.mubr.bf16.mxu0 0
    %3168 = vmatmul.mubr.bf16.gmra.mrb[0].mxu0 %v2894
    %v3169 = vpop.f32.mrb[0].mxu0
    %v3170 = vadd.f32 %v2836, %v3169
    %v3171 = vpop.f32.mrb[0].mxu0
    %v3172 = vpop.f32.mrb[0].mxu0
    %v3173 = vadd.f32 %v2836, %v3172
    %v3174 = vpop.f32.mrb[0].mxu0
    %3175 = vmatprep.mubr.bf16.mxu0 0
    %3176 = vmatmul.mubr.bf16.gmra.mrb[0].mxu0 %v2897
    %v3177 = vpop.f32.mrb[0].mxu0
    %v3178 = vadd.f32 %v2836, %v3177
    %v3179 = vpop.f32.mrb[0].mxu0
    %v3180 = vpop.f32.mrb[0].mxu0
    %v3181 = vadd.f32 %v2836, %v3180
    %v3182 = vpop.f32.mrb[0].mxu0
    %3183 = vmatprep.mubr.bf16.mxu0 0
    %3184 = vmatmul.mubr.bf16.gmra.mrb[0].mxu0 %v2900
    %v3185 = vpop.f32.mrb[0].mxu0
    %v3186 = vadd.f32 %v2836, %v3185
    %v3187 = vpop.f32.mrb[0].mxu0
    %v3188 = vpop.f32.mrb[0].mxu0
    %v3189 = vadd.f32 %v2836, %v3188
    %v3190 = vpop.f32.mrb[0].mxu0
    %3191 = vmatprep.mubr.bf16.mxu0 0
    %3192 = vmatmul.mubr.bf16.gmra.mrb[0].mxu0 %v2903
    %v3193 = vpop.f32.mrb[0].mxu0
    %v3194 = vadd.f32 %v2836, %v3193
    %v3195 = vpop.f32.mrb[0].mxu0
    %v3196 = vpop.f32.mrb[0].mxu0
    %v3197 = vadd.f32 %v2836, %v3196
    %v3198 = vpop.f32.mrb[0].mxu0
    %3199 = vmatprep.mubr.bf16.mxu0 0
    %3200 = vmatmul.mubr.bf16.gmra.mrb[0].mxu0 %v2906
    %v3201 = vpop.f32.mrb[0].mxu0
    %v3202 = vadd.f32 %v2836, %v3201
    %v3203 = vpop.f32.mrb[0].mxu0
    %v3204 = vpop.f32.mrb[0].mxu0
    %v3205 = vadd.f32 %v2836, %v3204
    %v3206 = vpop.f32.mrb[0].mxu0
    %3207 = vmatprep.mubr.bf16.mxu0 0
    %3208 = vmatmul.mubr.bf16.gmra.mrb[0].mxu0 %v2909
    %v3209 = vpop.f32.mrb[0].mxu0
    %v3210 = vadd.f32 %v2836, %v3209
    %v3211 = vpop.f32.mrb[0].mxu0
    %v3212 = vpop.f32.mrb[0].mxu0
    %v3213 = vadd.f32 %v2836, %v3212
    %v3214 = vpop.f32.mrb[0].mxu0
    %3215 = vmatprep.mubr.bf16.mxu0 0
    %3216 = vmatmul.mubr.bf16.gmra.mrb[0].mxu0 %v2912
    %v3217 = vpop.f32.mrb[0].mxu0
    %v3218 = vadd.f32 %v2836, %v3217
    %v3219 = vpop.f32.mrb[0].mxu0
    %v3220 = vpop.f32.mrb[0].mxu0
    %v3221 = vadd.f32 %v2836, %v3220
    %v3222 = vpop.f32.mrb[0].mxu0
    %3223 = vmatprep.mubr.bf16.mxu0 0
    %3224 = vmatmul.mubr.bf16.gmra.mrb[0].mxu0 %v2915
    %v3225 = vpop.f32.mrb[0].mxu0
    %v3226 = vadd.f32 %v2836, %v3225
    %v3227 = vpop.f32.mrb[0].mxu0
    %v3228 = vpop.f32.mrb[0].mxu0
    %v3229 = vadd.f32 %v2836, %v3228
    %v3230 = vpop.f32.mrb[0].mxu0
    %3231 = vmatprep.mubr.bf16.mxu0 0
    %3232 = vmatmul.mubr.bf16.gmra.mrb[0].mxu0 %v2918
    %v3233 = vpop.f32.mrb[0].mxu0
    %v3234 = vadd.f32 %v2836, %v3233
    %v3235 = vpop.f32.mrb[0].mxu0
    %v3236 = vpop.f32.mrb[0].mxu0
    %v3237 = vadd.f32 %v2836, %v3236
    %v3238 = vpop.f32.mrb[0].mxu0
    %3239 = vmatprep.mubr.bf16.mxu0 0
    %3240 = vmatmul.mubr.bf16.gmra.mrb[0].mxu0 %v2921
    %v3241 = vpop.f32.mrb[0].mxu0
    %v3242 = vadd.f32 %v2836, %v3241
    %v3243 = vpop.f32.mrb[0].mxu0
    %v3244 = vpop.f32.mrb[0].mxu0
    %v3245 = vadd.f32 %v2836, %v3244
    %v3246 = vpop.f32.mrb[0].mxu0
    %3247 = vmatprep.mubr.bf16.mxu0 0
    %3248 = vmatmul.mubr.bf16.gmra.mrb[0].mxu0 %v2924
    %v3249 = vpop.f32.mrb[0].mxu0
    %v3250 = vadd.f32 %v2836, %v3249
    %v3251 = vpop.f32.mrb[0].mxu0
    %v3252 = vpop.f32.mrb[0].mxu0
    %v3253 = vadd.f32 %v2836, %v3252
    %v3254 = vpop.f32.mrb[0].mxu0
    %3255 = vmatprep.mubr.bf16.mxu0 0
    %3256 = vmatmul.mubr.bf16.gmra.mrb[0].mxu0 %v2927
    %v3257 = vpop.f32.mrb[0].mxu0
    %v3258 = vadd.f32 %v2836, %v3257
    %v3259 = vpop.f32.mrb[0].mxu0
    %v3260 = vpop.f32.mrb[0].mxu0
    %v3261 = vadd.f32 %v2836, %v3260
    %v3262 = vpop.f32.mrb[0].mxu0
    %3263 = vmatprep.mubr.bf16.mxu0 0
    %3264 = vmatmul.mubr.bf16.gmra.mrb[0].mxu0 %v2930
    %v3265 = vpop.f32.mrb[0].mxu0
    %v3266 = vadd.f32 %v2836, %v3265
    %v3267 = vpop.f32.mrb[0].mxu0
    %v3268 = vpop.f32.mrb[0].mxu0
    %v3269 = vadd.f32 %v2836, %v3268
    %v3270 = vpop.f32.mrb[0].mxu0
    %3271 = vmatprep.mubr.bf16.mxu0 0
    %3272 = vmatmul.mubr.bf16.gmra.mrb[0].mxu0 %v2933
    %v3273 = vpop.f32.mrb[0].mxu0
    %v3274 = vadd.f32 %v2836, %v3273
    %v3275 = vpop.f32.mrb[0].mxu0
    %v3276 = vpop.f32.mrb[0].mxu0
    %v3277 = vadd.f32 %v2836, %v3276
    %v3278 = vpop.f32.mrb[0].mxu0
    %3279 = vmatprep.mubr.bf16.mxu0 0
    %3280 = vmatmul.mubr.bf16.gmra.mrb[0].mxu0 %v2936
    %v3281 = vpop.f32.mrb[0].mxu0
    %v3282 = vadd.f32 %v2836, %v3281
    %v3283 = vpop.f32.mrb[0].mxu0
    %v3284 = vpop.f32.mrb[0].mxu0
    %v3285 = vadd.f32 %v2836, %v3284
    %v3286 = vpop.f32.mrb[0].mxu0
    %3287 = vmatprep.mubr.bf16.mxu0 0
    %3288 = vmatmul.mubr.bf16.gmra.mrb[0].mxu0 %v2939
    %v3289 = vpop.f32.mrb[0].mxu0
    %v3290 = vadd.f32 %v2836, %v3289
    %v3291 = vpop.f32.mrb[0].mxu0
    %v3292 = vpop.f32.mrb[0].mxu0
    %v3293 = vadd.f32 %v2836, %v3292
    %v3294 = vpop.f32.mrb[0].mxu0
    %3295 = vmatprep.mubr.bf16.mxu0 0
    %3296 = vmatmul.mubr.bf16.gmra.mrb[0].mxu0 %v2942
    %v3297 = vpop.f32.mrb[0].mxu0
    %v3298 = vadd.f32 %v2836, %v3297
    %v3299 = vpop.f32.mrb[0].mxu0
    %v3300 = vpop.f32.mrb[0].mxu0
    %v3301 = vadd.f32 %v2836, %v3300
    %v3302 = vpop.f32.mrb[0].mxu0
    %3303 = vmatprep.mubr.bf16.mxu0 0
    %3304 = vmatmul.mubr.bf16.gmra.mrb[0].mxu0 %v2945
    %v3305 = vpop.f32.mrb[0].mxu0
    %v3306 = vadd.f32 %v2836, %v3305
    %v3307 = vpop.f32.mrb[0].mxu0
    %v3308 = vpop.f32.mrb[0].mxu0
    %v3309 = vadd.f32 %v2836, %v3308
    %v3310 = vpop.f32.mrb[0].mxu0
    %3311 = vmatprep.mubr.bf16.mxu0 0
    %3312 = vmatmul.mubr.bf16.gmra.mrb[0].mxu0 %v2948
    %v3313 = vpop.f32.mrb[0].mxu0
    %v3314 = vadd.f32 %v2836, %v3313
    %v3315 = vpop.f32.mrb[0].mxu0
    %v3316 = vpop.f32.mrb[0].mxu0
    %v3317 = vadd.f32 %v2836, %v3316
    %v3318 = vpop.f32.mrb[0].mxu0
    %3319 = vmatprep.mubr.bf16.mxu0 0
    %3320 = vmatmul.mubr.bf16.gmra.mrb[0].mxu0 %v2951
    %v3321 = vpop.f32.mrb[0].mxu0
    %v3322 = vadd.f32 %v2836, %v3321
    %v3323 = vpop.f32.mrb[0].mxu0
    %v3324 = vpop.f32.mrb[0].mxu0
    %v3325 = vadd.f32 %v2836, %v3324
    %v3326 = vpop.f32.mrb[0].mxu0
    %3327 = vmatprep.mubr.bf16.mxu0 0
    %3328 = vmatmul.mubr.bf16.gmra.mrb[0].mxu0 %v2954
    %v3329 = vpop.f32.mrb[0].mxu0
    %v3330 = vadd.f32 %v2836, %v3329
    %v3331 = vpop.f32.mrb[0].mxu0
    %v3332 = vpop.f32.mrb[0].mxu0
    %v3333 = vadd.f32 %v2836, %v3332
    %v3334 = vpop.f32.mrb[0].mxu0
    %3335 = vmatprep.mubr.bf16.mxu0 0
    %3336 = vmatmul.mubr.bf16.gmra.mrb[0].mxu0 %v2957
    %v3337 = vpop.f32.mrb[0].mxu0
    %v3338 = vadd.f32 %v2836, %v3337
    %v3339 = vpop.f32.mrb[0].mxu0
    %v3340 = vpop.f32.mrb[0].mxu0
    %v3341 = vadd.f32 %v2836, %v3340
    %v3342 = vpop.f32.mrb[0].mxu0
    %3343 = vmatprep.mubr.bf16.mxu0 0
    %3344 = vmatmul.mubr.bf16.gmra.mrb[0].mxu0 %v2960
    %v3345 = vpop.f32.mrb[0].mxu0
    %v3346 = vadd.f32 %v2836, %v3345
    %v3347 = vpop.f32.mrb[0].mxu0
    %v3348 = vpop.f32.mrb[0].mxu0
    %v3349 = vadd.f32 %v2836, %v3348
    %v3350 = vpop.f32.mrb[0].mxu0
    %3351 = vmatprep.mubr.bf16.mxu0 0
    %3352 = vmatmul.mubr.bf16.gmra.mrb[0].mxu0 %v2963
    %v3353 = vpop.f32.mrb[0].mxu0
    %v3354 = vadd.f32 %v2836, %v3353
    %v3355 = vpop.f32.mrb[0].mxu0
    %v3356 = vpop.f32.mrb[0].mxu0
    %v3357 = vadd.f32 %v2836, %v3356
    %v3358 = vpop.f32.mrb[0].mxu0
    %3359 = vmatprep.mubr.bf16.mxu0 0
    %3360 = vmatmul.mubr.bf16.gmra.mrb[0].mxu0 %v2966
    %v3361 = vpop.f32.mrb[0].mxu0
    %v3362 = vadd.f32 %v2836, %v3361
    %v3363 = vpop.f32.mrb[0].mxu0
    %v3364 = vpop.f32.mrb[0].mxu0
    %v3365 = vadd.f32 %v2836, %v3364
    %v3366 = vpop.f32.mrb[0].mxu0
    %3367 = vmatprep.mubr.bf16.mxu0 0
    %3368 = vmatmul.mubr.bf16.gmra.mrb[0].mxu0 %v2969
    %v3369 = vpop.f32.mrb[0].mxu0
    %v3370 = vadd.f32 %v2836, %v3369
    %v3371 = vpop.f32.mrb[0].mxu0
    %v3372 = vpop.f32.mrb[0].mxu0
    %v3373 = vadd.f32 %v2836, %v3372
    %v3374 = vpop.f32.mrb[0].mxu0
    %3375 = vmatprep.mubr.bf16.mxu0 0
    %3376 = vmatmul.mubr.bf16.gmra.mrb[0].mxu0 %v2972
    %v3377 = vpop.f32.mrb[0].mxu0
    %v3378 = vadd.f32 %v2836, %v3377
    %v3379 = vpop.f32.mrb[0].mxu0
    %v3380 = vpop.f32.mrb[0].mxu0
    %v3381 = vadd.f32 %v2836, %v3380
    %v3382 = vpop.f32.mrb[0].mxu0
    %3383 = vmatprep.mubr.bf16.mxu0 0
    %3384 = vmatmul.mubr.bf16.gmra.mrb[0].mxu0 %v2975
    %v3385 = vpop.f32.mrb[0].mxu0
    %v3386 = vadd.f32 %v2836, %v3385
    %v3387 = vpop.f32.mrb[0].mxu0
    %v3388 = vpop.f32.mrb[0].mxu0
    %v3389 = vadd.f32 %v2836, %v3388
    %v3390 = vpop.f32.mrb[0].mxu0
    %3391 = vmatprep.mubr.bf16.mxu0 0
    %3392 = vmatmul.mubr.bf16.gmra.mrb[0].mxu0 %v2978
    %v3393 = vpop.f32.mrb[0].mxu0
    %v3394 = vadd.f32 %v2836, %v3393
    %v3395 = vpop.f32.mrb[0].mxu0
    %v3396 = vpop.f32.mrb[0].mxu0
    %v3397 = vadd.f32 %v2836, %v3396
    %v3398 = vpop.f32.mrb[0].mxu0
    %3399 = vmatprep.mubr.bf16.mxu0 0
    %3400 = vmatmul.mubr.bf16.gmra.mrb[0].mxu0 %v2981
    %v3401 = vpop.f32.mrb[0].mxu0
    %v3402 = vadd.f32 %v2836, %v3401
    %v3403 = vpop.f32.mrb[0].mxu0
    %v3404 = vpop.f32.mrb[0].mxu0
    %v3405 = vadd.f32 %v2836, %v3404
    %v3406 = vpop.f32.mrb[0].mxu0
    %3407 = vmatprep.mubr.bf16.mxu0 0
    %3408 = vmatmul.mubr.bf16.gmra.mrb[0].mxu0 %v2984
    %v3409 = vpop.f32.mrb[0].mxu0
    %v3410 = vadd.f32 %v2836, %v3409
    %v3411 = vpop.f32.mrb[0].mxu0
    %v3412 = vpop.f32.mrb[0].mxu0
    %v3413 = vadd.f32 %v2836, %v3412
    %v3414 = vpop.f32.mrb[0].mxu0
    %3415 = vmatprep.mubr.bf16.mxu0 0
    %3416 = vmatmul.mubr.bf16.gmra.mrb[0].mxu0 %v2987
    %v3417 = vpop.f32.mrb[0].mxu0
    %v3418 = vadd.f32 %v2836, %v3417
    %v3419 = vpop.f32.mrb[0].mxu0
    %v3420 = vpop.f32.mrb[0].mxu0
    %v3421 = vadd.f32 %v2836, %v3420
    %v3422 = vpop.f32.mrb[0].mxu0
    %3423 = vmatprep.mubr.bf16.mxu0 0
    %3424 = vmatmul.mubr.bf16.gmra.mrb[0].mxu0 %v2990
    %v3425 = vpop.f32.mrb[0].mxu0
    %v3426 = vadd.f32 %v2836, %v3425
    %v3427 = vpop.f32.mrb[0].mxu0
    %v3428 = vpop.f32.mrb[0].mxu0
    %v3429 = vadd.f32 %v2836, %v3428
    %v3430 = vpop.f32.mrb[0].mxu0
    %3431 = vmatprep.mubr.bf16.mxu0 0
    %3432 = vmatmul.mubr.bf16.gmra.mrb[0].mxu0 %v2993
    %v3433 = vpop.f32.mrb[0].mxu0
    %v3434 = vadd.f32 %v2836, %v3433
    %v3435 = vpop.f32.mrb[0].mxu0
    %v3436 = vpop.f32.mrb[0].mxu0
    %v3437 = vadd.f32 %v2836, %v3436
    %v3438 = vpop.f32.mrb[0].mxu0
    %3439 = vmatprep.mubr.bf16.mxu0 0
    %3440 = vmatmul.mubr.bf16.gmra.mrb[0].mxu0 %v2996
    %v3441 = vpop.f32.mrb[0].mxu0
    %v3442 = vadd.f32 %v2836, %v3441
    %v3443 = vpop.f32.mrb[0].mxu0
    %v3444 = vpop.f32.mrb[0].mxu0
    %v3445 = vadd.f32 %v2836, %v3444
    %v3446 = vpop.f32.mrb[0].mxu0
    %3447 = vmatprep.mubr.bf16.mxu0 0
    %3448 = vmatmul.mubr.bf16.gmra.mrb[0].mxu0 %v2999
    %v3449 = vpop.f32.mrb[0].mxu0
    %v3450 = vadd.f32 %v2836, %v3449
    %v3451 = vpop.f32.mrb[0].mxu0
    %v3452 = vpop.f32.mrb[0].mxu0
    %v3453 = vadd.f32 %v2836, %v3452
    %v3454 = vpop.f32.mrb[0].mxu0
    %3455 = vmatprep.mubr.bf16.mxu0 0
    %3456 = vmatmul.mubr.bf16.gmra.mrb[0].mxu0 %v3002
    %v3457 = vpop.f32.mrb[0].mxu0
    %v3458 = vadd.f32 %v2836, %v3457
    %v3459 = vpop.f32.mrb[0].mxu0
    %v3460 = vpop.f32.mrb[0].mxu0
    %v3461 = vadd.f32 %v2836, %v3460
    %v3462 = vpop.f32.mrb[0].mxu0
    %3463 = vmatprep.mubr.bf16.mxu0 0
    %3464 = vmatmul.mubr.bf16.gmra.mrb[0].mxu0 %v3005
    %v3465 = vpop.f32.mrb[0].mxu0
    %v3466 = vadd.f32 %v2836, %v3465
    %v3467 = vpop.f32.mrb[0].mxu0
    %v3468 = vpop.f32.mrb[0].mxu0
    %v3469 = vadd.f32 %v2836, %v3468
    %v3470 = vpop.f32.mrb[0].mxu0
    %3471 = vmatprep.mubr.bf16.mxu0 0
    %3472 = vmatmul.mubr.bf16.gmra.mrb[0].mxu0 %v3008
    %v3473 = vpop.f32.mrb[0].mxu0
    %v3474 = vadd.f32 %v2836, %v3473
    %v3475 = vpop.f32.mrb[0].mxu0
    %v3476 = vpop.f32.mrb[0].mxu0
    %v3477 = vadd.f32 %v2836, %v3476
    %v3478 = vpop.f32.mrb[0].mxu0
    %3479 = vmatprep.mubr.bf16.mxu0 0
    %3480 = vmatmul.mubr.bf16.gmra.mrb[0].mxu0 %v3011
    %v3481 = vpop.f32.mrb[0].mxu0
    %v3482 = vadd.f32 %v2836, %v3481
    %v3483 = vpop.f32.mrb[0].mxu0
    %v3484 = vpop.f32.mrb[0].mxu0
    %v3485 = vadd.f32 %v2836, %v3484
    %v3486 = vpop.f32.mrb[0].mxu0
    %3487 = vmatprep.mubr.bf16.mxu0 0
    %3488 = vmatmul.mubr.bf16.gmra.mrb[0].mxu0 %v3014
    %v3489 = vpop.f32.mrb[0].mxu0
    %v3490 = vadd.f32 %v2836, %v3489
    %v3491 = vpop.f32.mrb[0].mxu0
    %v3492 = vpop.f32.mrb[0].mxu0
    %v3493 = vadd.f32 %v2836, %v3492
    %v3494 = vpop.f32.mrb[0].mxu0
    %3495 = vmatprep.mubr.bf16.mxu0 0
    %3496 = vmatmul.mubr.bf16.gmra.mrb[0].mxu0 %v3017
    %v3497 = vpop.f32.mrb[0].mxu0
    %v3498 = vadd.f32 %v2836, %v3497
    %v3499 = vpop.f32.mrb[0].mxu0
    %v3500 = vpop.f32.mrb[0].mxu0
    %v3501 = vadd.f32 %v2836, %v3500
    %v3502 = vpop.f32.mrb[0].mxu0
    %3503 = vmatprep.mubr.bf16.mxu0 0
    %3504 = vmatmul.mubr.bf16.gmra.mrb[0].mxu0 %v3020
    %v3505 = vpop.f32.mrb[0].mxu0
    %v3506 = vadd.f32 %v2836, %v3505
    %v3507 = vpop.f32.mrb[0].mxu0
    %v3508 = vpop.f32.mrb[0].mxu0
    %v3509 = vadd.f32 %v2836, %v3508
    %v3510 = vpop.f32.mrb[0].mxu0
    %3511 = vmatprep.mubr.bf16.mxu0 0
    %3512 = vmatmul.mubr.bf16.gmra.mrb[0].mxu0 %v3023
    %v3513 = vpop.f32.mrb[0].mxu0
    %v3514 = vadd.f32 %v2836, %v3513
    %v3515 = vpop.f32.mrb[0].mxu0
    %v3516 = vpop.f32.mrb[0].mxu0
    %v3517 = vadd.f32 %v2836, %v3516
    %v3518 = vpop.f32.mrb[0].mxu0
    %3519 = vmatprep.mubr.bf16.mxu0 0
    %3520 = vmatmul.mubr.bf16.gmra.mrb[0].mxu0 %v3026
    %v3521 = vpop.f32.mrb[0].mxu0
    %v3522 = vadd.f32 %v2836, %v3521
    %v3523 = vpop.f32.mrb[0].mxu0
    %v3524 = vpop.f32.mrb[0].mxu0
    %v3525 = vadd.f32 %v2836, %v3524
    %v3526 = vpop.f32.mrb[0].mxu0
    %3527 = vmatprep.mubr.bf16.mxu0 0
    %3528 = vmatmul.mubr.bf16.gmra.mrb[0].mxu0 %v3029
    %v3529 = vpop.f32.mrb[0].mxu0
    %v3530 = vadd.f32 %v2836, %v3529
    %v3531 = vpop.f32.mrb[0].mxu0
    %v3532 = vpop.f32.mrb[0].mxu0
    %v3533 = vadd.f32 %v2836, %v3532
    %v3534 = vpop.f32.mrb[0].mxu0
    %3535 = vmatprep.mubr.bf16.mxu0 0
    %3536 = vmatmul.mubr.bf16.gmra.mrb[0].mxu0 %v3032
    %v3537 = vpop.f32.mrb[0].mxu0
    %v3538 = vadd.f32 %v2836, %v3537
    %v3539 = vpop.f32.mrb[0].mxu0
    %v3540 = vpop.f32.mrb[0].mxu0
    %v3541 = vadd.f32 %v2836, %v3540
    %v3542 = vpop.f32.mrb[0].mxu0
    %3543 = vmatprep.mubr.bf16.mxu0 0
    %3544 = vmatmul.mubr.bf16.gmra.mrb[0].mxu0 %v3035
    %v3545 = vpop.f32.mrb[0].mxu0
    %v3546 = vadd.f32 %v2836, %v3545
    %v3547 = vpop.f32.mrb[0].mxu0
    %v3548 = vpop.f32.mrb[0].mxu0
    %v3549 = vadd.f32 %v2836, %v3548
    %v3550 = vpop.f32.mrb[0].mxu0
    %3551 = vmatprep.mubr.bf16.mxu0 0
    %3552 = vmatmul.mubr.bf16.gmra.mrb[0].mxu0 %v3038
    %v3553 = vpop.f32.mrb[0].mxu0
    %v3554 = vadd.f32 %v2836, %v3553
    %v3555 = vpop.f32.mrb[0].mxu0
    %v3556 = vpop.f32.mrb[0].mxu0
    %v3557 = vadd.f32 %v2836, %v3556
    %v3558 = vpop.f32.mrb[0].mxu0
    %3559 = vmatprep.mubr.bf16.mxu0 0
    %3560 = vmatmul.mubr.bf16.gmra.mrb[0].mxu0 %v3041
    %v3561 = vpop.f32.mrb[0].mxu0
    %v3562 = vadd.f32 %v2836, %v3561
    %v3563 = vpop.f32.mrb[0].mxu0
    %v3564 = vpop.f32.mrb[0].mxu0
    %v3565 = vadd.f32 %v2836, %v3564
    %v3566 = vpop.f32.mrb[0].mxu0
    %3567 = vmatprep.mubr.bf16.mxu0 0
    %3568 = vmatmul.mubr.bf16.gmra.mrb[0].mxu0 %v3044
    %v3569 = vpop.f32.mrb[0].mxu0
    %v3570 = vadd.f32 %v2836, %v3569
    %v3571 = vpop.f32.mrb[0].mxu0
    %v3572 = vpop.f32.mrb[0].mxu0
    %v3573 = vadd.f32 %v2836, %v3572
    %v3574 = vpop.f32.mrb[0].mxu0
    %3575 = vmatprep.mubr.bf16.mxu0 0
    %3576 = vmatmul.mubr.bf16.gmra.mrb[0].mxu0 %v3047
    %v3577 = vpop.f32.mrb[0].mxu0
    %v3578 = vadd.f32 %v2836, %v3577
    %v3579 = vpop.f32.mrb[0].mxu0
    %v3580 = vpop.f32.mrb[0].mxu0
    %v3581 = vadd.f32 %v2836, %v3580
    %v3582 = vpop.f32.mrb[0].mxu0
    %3583 = vmatprep.mubr.bf16.mxu0 0
    %3584 = vmatmul.mubr.bf16.gmra.mrb[0].mxu0 %v3050
    %v3585 = vpop.f32.mrb[0].mxu0
    %v3586 = vadd.f32 %v2836, %v3585
    %v3587 = vpop.f32.mrb[0].mxu0
    %v3588 = vpop.f32.mrb[0].mxu0
    %v3589 = vadd.f32 %v2836, %v3588
    %v3590 = vpop.f32.mrb[0].mxu0
    %3591 = vmatprep.mubr.bf16.mxu0 0
    %3592 = vmatmul.mubr.bf16.gmra.mrb[0].mxu0 %v3053
    %v3593 = vpop.f32.mrb[0].mxu0
    %v3594 = vadd.f32 %v2836, %v3593
    %v3595 = vpop.f32.mrb[0].mxu0
    %v3596 = vpop.f32.mrb[0].mxu0
    %v3597 = vadd.f32 %v2836, %v3596
    %v3598 = vpop.f32.mrb[0].mxu0
    %3599 = vdwg.mxu0
    %v3600 = vmax.f32 %v3090, 0.0
    %v3601 = vmax.f32 %v3093, 0.0
    %v3602 = vmax.f32 %v3098, 0.0
    %v3603 = vmax.f32 %v3101, 0.0
    %v3604 = vmax.f32 %v3106, 0.0
    %v3605 = vmax.f32 %v3109, 0.0
    %v3606 = vmax.f32 %v3114, 0.0
    %v3607 = vmax.f32 %v3117, 0.0
    %v3608 = vmax.f32 %v3122, 0.0
    %v3609 = vmax.f32 %v3125, 0.0
    %v3610 = vmax.f32 %v3130, 0.0
    %v3611 = vmax.f32 %v3133, 0.0
    %v3612 = vmax.f32 %v3138, 0.0
    %v3613 = vmax.f32 %v3141, 0.0
    %v3614 = vmax.f32 %v3146, 0.0
    %v3615 = vmax.f32 %v3149, 0.0
    %v3616 = vmax.f32 %v3154, 0.0
    %v3617 = vmax.f32 %v3157, 0.0
    %v3618 = vmax.f32 %v3162, 0.0
    %v3619 = vmax.f32 %v3165, 0.0
    %v3620 = vmax.f32 %v3170, 0.0
    %v3621 = vmax.f32 %v3173, 0.0
    %v3622 = vmax.f32 %v3178, 0.0
    %v3623 = vmax.f32 %v3181, 0.0
    %v3624 = vmax.f32 %v3186, 0.0
    %v3625 = vmax.f32 %v3189, 0.0
    %v3626 = vmax.f32 %v3194, 0.0
    %v3627 = vmax.f32 %v3197, 0.0
    %v3628 = vmax.f32 %v3202, 0.0
    %v3629 = vmax.f32 %v3205, 0.0
    %v3630 = vmax.f32 %v3210, 0.0
    %v3631 = vmax.f32 %v3213, 0.0
    %v3632 = vmax.f32 %v3218, 0.0
    %v3633 = vmax.f32 %v3221, 0.0
    %v3634 = vmax.f32 %v3226, 0.0
    %v3635 = vmax.f32 %v3229, 0.0
    %v3636 = vmax.f32 %v3234, 0.0
    %v3637 = vmax.f32 %v3237, 0.0
    %v3638 = vmax.f32 %v3242, 0.0
    %v3639 = vmax.f32 %v3245, 0.0
    %v3640 = vmax.f32 %v3250, 0.0
    %v3641 = vmax.f32 %v3253, 0.0
    %v3642 = vmax.f32 %v3258, 0.0
    %v3643 = vmax.f32 %v3261, 0.0
    %v3644 = vmax.f32 %v3266, 0.0
    %v3645 = vmax.f32 %v3269, 0.0
    %v3646 = vmax.f32 %v3274, 0.0
    %v3647 = vmax.f32 %v3277, 0.0
    %v3648 = vmax.f32 %v3282, 0.0
    %v3649 = vmax.f32 %v3285, 0.0
    %v3650 = vmax.f32 %v3290, 0.0
    %v3651 = vmax.f32 %v3293, 0.0
    %v3652 = vmax.f32 %v3298, 0.0
    %v3653 = vmax.f32 %v3301, 0.0
    %v3654 = vmax.f32 %v3306, 0.0
    %v3655 = vmax.f32 %v3309, 0.0
    %v3656 = vmax.f32 %v3314, 0.0
    %v3657 = vmax.f32 %v3317, 0.0
    %v3658 = vmax.f32 %v3322, 0.0
    %v3659 = vmax.f32 %v3325, 0.0
    %v3660 = vmax.f32 %v3330, 0.0
    %v3661 = vmax.f32 %v3333, 0.0
    %v3662 = vmax.f32 %v3338, 0.0
    %v3663 = vmax.f32 %v3341, 0.0
    %v3664 = vmax.f32 %v3346, 0.0
    %v3665 = vmax.f32 %v3349, 0.0
    %v3666 = vmax.f32 %v3354, 0.0
    %v3667 = vmax.f32 %v3357, 0.0
    %v3668 = vmax.f32 %v3362, 0.0
    %v3669 = vmax.f32 %v3365, 0.0
    %v3670 = vmax.f32 %v3370, 0.0
    %v3671 = vmax.f32 %v3373, 0.0
    %v3672 = vmax.f32 %v3378, 0.0
    %v3673 = vmax.f32 %v3381, 0.0
    %v3674 = vmax.f32 %v3386, 0.0
    %v3675 = vmax.f32 %v3389, 0.0
    %v3676 = vmax.f32 %v3394, 0.0
    %v3677 = vmax.f32 %v3397, 0.0
    %v3678 = vmax.f32 %v3402, 0.0
    %v3679 = vmax.f32 %v3405, 0.0
    %v3680 = vmax.f32 %v3410, 0.0
    %v3681 = vmax.f32 %v3413, 0.0
    %v3682 = vmax.f32 %v3418, 0.0
    %v3683 = vmax.f32 %v3421, 0.0
    %v3684 = vmax.f32 %v3426, 0.0
    %v3685 = vmax.f32 %v3429, 0.0
    %v3686 = vmax.f32 %v3434, 0.0
    %v3687 = vmax.f32 %v3437, 0.0
    %v3688 = vmax.f32 %v3442, 0.0
    %v3689 = vmax.f32 %v3445, 0.0
    %v3690 = vmax.f32 %v3450, 0.0
    %v3691 = vmax.f32 %v3453, 0.0
    %v3692 = vmax.f32 %v3458, 0.0
    %v3693 = vmax.f32 %v3461, 0.0
    %v3694 = vmax.f32 %v3466, 0.0
    %v3695 = vmax.f32 %v3469, 0.0
    %v3696 = vmax.f32 %v3474, 0.0
    %v3697 = vmax.f32 %v3477, 0.0
    %v3698 = vmax.f32 %v3482, 0.0
    %v3699 = vmax.f32 %v3485, 0.0
    %v3700 = vmax.f32 %v3490, 0.0
    %v3701 = vmax.f32 %v3493, 0.0
    %v3702 = vmax.f32 %v3498, 0.0
    %v3703 = vmax.f32 %v3501, 0.0
    %v3704 = vmax.f32 %v3506, 0.0
    %v3705 = vmax.f32 %v3509, 0.0
    %v3706 = vmax.f32 %v3514, 0.0
    %v3707 = vmax.f32 %v3517, 0.0
    %v3708 = vmax.f32 %v3522, 0.0
    %v3709 = vmax.f32 %v3525, 0.0
    %v3710 = vmax.f32 %v3530, 0.0
    %v3711 = vmax.f32 %v3533, 0.0
    %v3712 = vmax.f32 %v3538, 0.0
    %v3713 = vmax.f32 %v3541, 0.0
    %v3714 = vmax.f32 %v3546, 0.0
    %v3715 = vmax.f32 %v3549, 0.0
    %v3716 = vmax.f32 %v3554, 0.0
    %v3717 = vmax.f32 %v3557, 0.0
    %v3718 = vmax.f32 %v3562, 0.0
    %v3719 = vmax.f32 %v3565, 0.0
    %v3720 = vmax.f32 %v3570, 0.0
    %v3721 = vmax.f32 %v3573, 0.0
    %v3722 = vmax.f32 %v3578, 0.0
    %v3723 = vmax.f32 %v3581, 0.0
    %v3724 = vmax.f32 %v3586, 0.0
    %v3725 = vmax.f32 %v3589, 0.0
    %v3726 = vmax.f32 %v3594, 0.0
    %v3727 = vmax.f32 %v3597, 0.0
    %v3728 = vpack.c.bf16 %v3601, %v3600
    %v3729 = vpack.c.bf16 %v3603, %v3602
    %v3730 = vpack.c.bf16 %v3605, %v3604
    %v3731 = vpack.c.bf16 %v3607, %v3606
    %v3732 = vpack.c.bf16 %v3609, %v3608
    %v3733 = vpack.c.bf16 %v3611, %v3610
    %v3734 = vpack.c.bf16 %v3613, %v3612
    %v3735 = vpack.c.bf16 %v3615, %v3614
    %v3736 = vpack.c.bf16 %v3617, %v3616
    %v3737 = vpack.c.bf16 %v3619, %v3618
    %v3738 = vpack.c.bf16 %v3621, %v3620
    %v3739 = vpack.c.bf16 %v3623, %v3622
    %v3740 = vpack.c.bf16 %v3625, %v3624
    %v3741 = vpack.c.bf16 %v3627, %v3626
    %v3742 = vpack.c.bf16 %v3629, %v3628
    %v3743 = vpack.c.bf16 %v3631, %v3630
    %v3744 = vpack.c.bf16 %v3633, %v3632
    %v3745 = vpack.c.bf16 %v3635, %v3634
    %v3746 = vpack.c.bf16 %v3637, %v3636
    %v3747 = vpack.c.bf16 %v3639, %v3638
    %v3748 = vpack.c.bf16 %v3641, %v3640
    %v3749 = vpack.c.bf16 %v3643, %v3642
    %v3750 = vpack.c.bf16 %v3645, %v3644
    %v3751 = vpack.c.bf16 %v3647, %v3646
    %v3752 = vpack.c.bf16 %v3649, %v3648
    %v3753 = vpack.c.bf16 %v3651, %v3650
    %v3754 = vpack.c.bf16 %v3653, %v3652
    %v3755 = vpack.c.bf16 %v3655, %v3654
    %v3756 = vpack.c.bf16 %v3657, %v3656
    %v3757 = vpack.c.bf16 %v3659, %v3658
    %v3758 = vpack.c.bf16 %v3661, %v3660
    %v3759 = vpack.c.bf16 %v3663, %v3662
    %v3760 = vpack.c.bf16 %v3665, %v3664
    %v3761 = vpack.c.bf16 %v3667, %v3666
    %v3762 = vpack.c.bf16 %v3669, %v3668
    %v3763 = vpack.c.bf16 %v3671, %v3670
    %v3764 = vpack.c.bf16 %v3673, %v3672
    %v3765 = vpack.c.bf16 %v3675, %v3674
    %v3766 = vpack.c.bf16 %v3677, %v3676
    %v3767 = vpack.c.bf16 %v3679, %v3678
    %v3768 = vpack.c.bf16 %v3681, %v3680
    %v3769 = vpack.c.bf16 %v3683, %v3682
    %v3770 = vpack.c.bf16 %v3685, %v3684
    %v3771 = vpack.c.bf16 %v3687, %v3686
    %v3772 = vpack.c.bf16 %v3689, %v3688
    %v3773 = vpack.c.bf16 %v3691, %v3690
    %v3774 = vpack.c.bf16 %v3693, %v3692
    %v3775 = vpack.c.bf16 %v3695, %v3694
    %v3776 = vpack.c.bf16 %v3697, %v3696
    %v3777 = vpack.c.bf16 %v3699, %v3698
    %v3778 = vpack.c.bf16 %v3701, %v3700
    %v3779 = vpack.c.bf16 %v3703, %v3702
    %v3780 = vpack.c.bf16 %v3705, %v3704
    %v3781 = vpack.c.bf16 %v3707, %v3706
    %v3782 = vpack.c.bf16 %v3709, %v3708
    %v3783 = vpack.c.bf16 %v3711, %v3710
    %v3784 = vpack.c.bf16 %v3713, %v3712
    %v3785 = vpack.c.bf16 %v3715, %v3714
    %v3786 = vpack.c.bf16 %v3717, %v3716
    %v3787 = vpack.c.bf16 %v3719, %v3718
    %v3788 = vpack.c.bf16 %v3721, %v3720
    %v3789 = vpack.c.bf16 %v3723, %v3722
    %v3790 = vpack.c.bf16 %v3725, %v3724
    %v3791 = vpack.c.bf16 %v3727, %v3726
    %v3792 = vld [vmem:[%s5] sm:$0xf]
    %v3793 = vld [vmem:[%s5 + $0x4] sm:$0xf]
    %v3794 = vld [vmem:[%s5 + $0x8] sm:$0xf]
    %v3795 = vld [vmem:[%s5 + $0xc] sm:$0xf]
    %v3796 = vld [vmem:[%s5 + $0x10] sm:$0xf]
    %v3797 = vld [vmem:[%s5 + $0x14] sm:$0xf]
    %v3798 = vld [vmem:[%s5 + $0x18] sm:$0xf]
    %v3799 = vld [vmem:[%s5 + $0x1c] sm:$0xf]
    %v3800 = vld [vmem:[%s5 + $0x20] sm:$0xf]
    %v3801 = vld [vmem:[%s5 + $0x24] sm:$0xf]
    %v3802 = vld [vmem:[%s5 + $0x28] sm:$0xf]
    %v3803 = vld [vmem:[%s5 + $0x2c] sm:$0xf]
    %v3804 = vld [vmem:[%s5 + $0x30] sm:$0xf]
    %v3805 = vld [vmem:[%s5 + $0x34] sm:$0xf]
    %v3806 = vld [vmem:[%s5 + $0x38] sm:$0xf]
    %v3807 = vld [vmem:[%s5 + $0x3c] sm:$0xf]
    %v3808 = vld [vmem:[%s6] sm:$0x1]
    %v3810 = vlaneseq
    %v3811 = vshrl.u32 %v3810, 7
    %v3812 = vsub.s32 0, %v3811
    %v3813 = vrot.slane %v3808, %v3812
    %v3831 = vunpack.c.l.b16 %v3792
    %v3832 = vunpack.c.l.b16 %v3793
    %v3833 = vunpack.c.l.b16 %v3794
    %v3834 = vunpack.c.l.b16 %v3795
    %v3835 = vunpack.c.l.b16 %v3796
    %v3836 = vunpack.c.l.b16 %v3797
    %v3837 = vunpack.c.l.b16 %v3798
    %v3838 = vunpack.c.l.b16 %v3799
    %v3839 = vunpack.c.l.b16 %v3800
    %v3840 = vunpack.c.l.b16 %v3801
    %v3841 = vunpack.c.l.b16 %v3802
    %v3842 = vunpack.c.l.b16 %v3803
    %v3843 = vunpack.c.l.b16 %v3804
    %v3844 = vunpack.c.l.b16 %v3805
    %v3845 = vunpack.c.l.b16 %v3806
    %v3846 = vunpack.c.l.b16 %v3807
    %v3847 = vpack.c.b16 %v3832, %v3831
    %v3848 = vpack.c.b16 %v3834, %v3833
    %v3849 = vpack.c.b16 %v3836, %v3835
    %v3850 = vpack.c.b16 %v3838, %v3837
    %v3851 = vpack.c.b16 %v3840, %v3839
    %v3852 = vpack.c.b16 %v3842, %v3841
    %v3853 = vpack.c.b16 %v3844, %v3843
    %v3854 = vpack.c.b16 %v3846, %v3845
    %3863 = vmatprep.subr.bf16.mxu0 0
    %3864 = vmatpush1.bf16.msra.mxu0 %v3847
    %3865 = vmatprep.subr.bf16.mxu0 0
    %3866 = vmatpush1.bf16.msra.mxu0 %v3848
    %3867 = vmatprep.subr.bf16.mxu0 0
    %3868 = vmatpush1.bf16.msra.mxu0 %v3849
    %3869 = vmatprep.subr.bf16.mxu0 0
    %3870 = vmatpush1.bf16.msra.mxu0 %v3850
    %3871 = vmatprep.subr.bf16.mxu0 0
    %3872 = vmatpush1.bf16.msra.mxu0 %v3851
    %3873 = vmatprep.subr.bf16.mxu0 0
    %3874 = vmatpush1.bf16.msra.mxu0 %v3852
    %3875 = vmatprep.subr.bf16.mxu0 0
    %3876 = vmatpush1.bf16.msra.mxu0 %v3853
    %3877 = vmatprep.subr.bf16.mxu0 0
    %3878 = vmatpush1.bf16.msra.mxu0 %v3854
    %3879 = vmatprep.subr.bf16.mxu0 0
    %3880 = vmatpush1.bf16.msra.mxu0 0
    %3881 = vmatprep.subr.bf16.mxu0 0
    %3882 = vmatpush1.bf16.msra.mxu0 0
    %3883 = vmatprep.subr.bf16.mxu0 0
    %3884 = vmatpush1.bf16.msra.mxu0 0
    %3885 = vmatprep.subr.bf16.mxu0 0
    %3886 = vmatpush1.bf16.msra.mxu0 0
    %3887 = vmatprep.subr.bf16.mxu0 0
    %3888 = vmatpush1.bf16.msra.mxu0 0
    %3889 = vmatprep.subr.bf16.mxu0 0
    %3890 = vmatpush1.bf16.msra.mxu0 0
    %3891 = vmatprep.subr.bf16.mxu0 0
    %3892 = vmatpush1.bf16.msra.mxu0 0
    %3893 = vmatprep.subr.bf16.mxu0 0
    %3894 = vmatpush1.bf16.msra.mxu0 0
    %3895 = vmatprep.mubr.bf16.mxu0 0
    %3896 = vmatmul.mubr.bf16.gmra.mrb[0].mxu0 %v3728
    %v3897 = vpop.f32.mrb[0].mxu0
    %v3898 = vadd.f32 %v3813, %v3897
    %v3899 = vpop.f32.mrb[0].mxu0
    %v3900 = vpop.f32.mrb[0].mxu0
    %v3901 = vadd.f32 %v3813, %v3900
    %v3902 = vpop.f32.mrb[0].mxu0
    %3903 = vmatprep.mubr.bf16.mxu0 0
    %3904 = vmatmul.mubr.bf16.gmra.mrb[0].mxu0 %v3729
    %v3905 = vpop.f32.mrb[0].mxu0
    %v3906 = vadd.f32 %v3813, %v3905
    %v3907 = vpop.f32.mrb[0].mxu0
    %v3908 = vpop.f32.mrb[0].mxu0
    %v3909 = vadd.f32 %v3813, %v3908
    %v3910 = vpop.f32.mrb[0].mxu0
    %3911 = vmatprep.mubr.bf16.mxu0 0
    %3912 = vmatmul.mubr.bf16.gmra.mrb[0].mxu0 %v3730
    %v3913 = vpop.f32.mrb[0].mxu0
    %v3914 = vadd.f32 %v3813, %v3913
    %v3915 = vpop.f32.mrb[0].mxu0
    %v3916 = vpop.f32.mrb[0].mxu0
    %v3917 = vadd.f32 %v3813, %v3916
    %v3918 = vpop.f32.mrb[0].mxu0
    %3919 = vmatprep.mubr.bf16.mxu0 0
    %3920 = vmatmul.mubr.bf16.gmra.mrb[0].mxu0 %v3731
    %v3921 = vpop.f32.mrb[0].mxu0
    %v3922 = vadd.f32 %v3813, %v3921
    %v3923 = vpop.f32.mrb[0].mxu0
    %v3924 = vpop.f32.mrb[0].mxu0
    %v3925 = vadd.f32 %v3813, %v3924
    %v3926 = vpop.f32.mrb[0].mxu0
    %3927 = vmatprep.mubr.bf16.mxu0 0
    %3928 = vmatmul.mubr.bf16.gmra.mrb[0].mxu0 %v3732
    %v3929 = vpop.f32.mrb[0].mxu0
    %v3930 = vadd.f32 %v3813, %v3929
    %v3931 = vpop.f32.mrb[0].mxu0
    %v3932 = vpop.f32.mrb[0].mxu0
    %v3933 = vadd.f32 %v3813, %v3932
    %v3934 = vpop.f32.mrb[0].mxu0
    %3935 = vmatprep.mubr.bf16.mxu0 0
    %3936 = vmatmul.mubr.bf16.gmra.mrb[0].mxu0 %v3733
    %v3937 = vpop.f32.mrb[0].mxu0
    %v3938 = vadd.f32 %v3813, %v3937
    %v3939 = vpop.f32.mrb[0].mxu0
    %v3940 = vpop.f32.mrb[0].mxu0
    %v3941 = vadd.f32 %v3813, %v3940
    %v3942 = vpop.f32.mrb[0].mxu0
    %3943 = vmatprep.mubr.bf16.mxu0 0
    %3944 = vmatmul.mubr.bf16.gmra.mrb[0].mxu0 %v3734
    %v3945 = vpop.f32.mrb[0].mxu0
    %v3946 = vadd.f32 %v3813, %v3945
    %v3947 = vpop.f32.mrb[0].mxu0
    %v3948 = vpop.f32.mrb[0].mxu0
    %v3949 = vadd.f32 %v3813, %v3948
    %v3950 = vpop.f32.mrb[0].mxu0
    %3951 = vmatprep.mubr.bf16.mxu0 0
    %3952 = vmatmul.mubr.bf16.gmra.mrb[0].mxu0 %v3735
    %v3953 = vpop.f32.mrb[0].mxu0
    %v3954 = vadd.f32 %v3813, %v3953
    %v3955 = vpop.f32.mrb[0].mxu0
    %v3956 = vpop.f32.mrb[0].mxu0
    %v3957 = vadd.f32 %v3813, %v3956
    %v3958 = vpop.f32.mrb[0].mxu0
    %3959 = vmatprep.mubr.bf16.mxu0 0
    %3960 = vmatmul.mubr.bf16.gmra.mrb[0].mxu0 %v3736
    %v3961 = vpop.f32.mrb[0].mxu0
    %v3962 = vadd.f32 %v3813, %v3961
    %v3963 = vpop.f32.mrb[0].mxu0
    %v3964 = vpop.f32.mrb[0].mxu0
    %v3965 = vadd.f32 %v3813, %v3964
    %v3966 = vpop.f32.mrb[0].mxu0
    %3967 = vmatprep.mubr.bf16.mxu0 0
    %3968 = vmatmul.mubr.bf16.gmra.mrb[0].mxu0 %v3737
    %v3969 = vpop.f32.mrb[0].mxu0
    %v3970 = vadd.f32 %v3813, %v3969
    %v3971 = vpop.f32.mrb[0].mxu0
    %v3972 = vpop.f32.mrb[0].mxu0
    %v3973 = vadd.f32 %v3813, %v3972
    %v3974 = vpop.f32.mrb[0].mxu0
    %3975 = vmatprep.mubr.bf16.mxu0 0
    %3976 = vmatmul.mubr.bf16.gmra.mrb[0].mxu0 %v3738
    %v3977 = vpop.f32.mrb[0].mxu0
    %v3978 = vadd.f32 %v3813, %v3977
    %v3979 = vpop.f32.mrb[0].mxu0
    %v3980 = vpop.f32.mrb[0].mxu0
    %v3981 = vadd.f32 %v3813, %v3980
    %v3982 = vpop.f32.mrb[0].mxu0
    %3983 = vmatprep.mubr.bf16.mxu0 0
    %3984 = vmatmul.mubr.bf16.gmra.mrb[0].mxu0 %v3739
    %v3985 = vpop.f32.mrb[0].mxu0
    %v3986 = vadd.f32 %v3813, %v3985
    %v3987 = vpop.f32.mrb[0].mxu0
    %v3988 = vpop.f32.mrb[0].mxu0
    %v3989 = vadd.f32 %v3813, %v3988
    %v3990 = vpop.f32.mrb[0].mxu0
    %3991 = vmatprep.mubr.bf16.mxu0 0
    %3992 = vmatmul.mubr.bf16.gmra.mrb[0].mxu0 %v3740
    %v3993 = vpop.f32.mrb[0].mxu0
    %v3994 = vadd.f32 %v3813, %v3993
    %v3995 = vpop.f32.mrb[0].mxu0
    %v3996 = vpop.f32.mrb[0].mxu0
    %v3997 = vadd.f32 %v3813, %v3996
    %v3998 = vpop.f32.mrb[0].mxu0
    %3999 = vmatprep.mubr.bf16.mxu0 0
    %4000 = vmatmul.mubr.bf16.gmra.mrb[0].mxu0 %v3741
    %v4001 = vpop.f32.mrb[0].mxu0
    %v4002 = vadd.f32 %v3813, %v4001
    %v4003 = vpop.f32.mrb[0].mxu0
    %v4004 = vpop.f32.mrb[0].mxu0
    %v4005 = vadd.f32 %v3813, %v4004
    %v4006 = vpop.f32.mrb[0].mxu0
    %4007 = vmatprep.mubr.bf16.mxu0 0
    %4008 = vmatmul.mubr.bf16.gmra.mrb[0].mxu0 %v3742
    %v4009 = vpop.f32.mrb[0].mxu0
    %v4010 = vadd.f32 %v3813, %v4009
    %v4011 = vpop.f32.mrb[0].mxu0
    %v4012 = vpop.f32.mrb[0].mxu0
    %v4013 = vadd.f32 %v3813, %v4012
    %v4014 = vpop.f32.mrb[0].mxu0
    %4015 = vmatprep.mubr.bf16.mxu0 0
    %4016 = vmatmul.mubr.bf16.gmra.mrb[0].mxu0 %v3743
    %v4017 = vpop.f32.mrb[0].mxu0
    %v4018 = vadd.f32 %v3813, %v4017
    %v4019 = vpop.f32.mrb[0].mxu0
    %v4020 = vpop.f32.mrb[0].mxu0
    %v4021 = vadd.f32 %v3813, %v4020
    %v4022 = vpop.f32.mrb[0].mxu0
    %4023 = vmatprep.mubr.bf16.mxu0 0
    %4024 = vmatmul.mubr.bf16.gmra.mrb[0].mxu0 %v3744
    %v4025 = vpop.f32.mrb[0].mxu0
    %v4026 = vadd.f32 %v3813, %v4025
    %v4027 = vpop.f32.mrb[0].mxu0
    %v4028 = vpop.f32.mrb[0].mxu0
    %v4029 = vadd.f32 %v3813, %v4028
    %v4030 = vpop.f32.mrb[0].mxu0
    %4031 = vmatprep.mubr.bf16.mxu0 0
    %4032 = vmatmul.mubr.bf16.gmra.mrb[0].mxu0 %v3745
    %v4033 = vpop.f32.mrb[0].mxu0
    %v4034 = vadd.f32 %v3813, %v4033
    %v4035 = vpop.f32.mrb[0].mxu0
    %v4036 = vpop.f32.mrb[0].mxu0
    %v4037 = vadd.f32 %v3813, %v4036
    %v4038 = vpop.f32.mrb[0].mxu0
    %4039 = vmatprep.mubr.bf16.mxu0 0
    %4040 = vmatmul.mubr.bf16.gmra.mrb[0].mxu0 %v3746
    %v4041 = vpop.f32.mrb[0].mxu0
    %v4042 = vadd.f32 %v3813, %v4041
    %v4043 = vpop.f32.mrb[0].mxu0
    %v4044 = vpop.f32.mrb[0].mxu0
    %v4045 = vadd.f32 %v3813, %v4044
    %v4046 = vpop.f32.mrb[0].mxu0
    %4047 = vmatprep.mubr.bf16.mxu0 0
    %4048 = vmatmul.mubr.bf16.gmra.mrb[0].mxu0 %v3747
    %v4049 = vpop.f32.mrb[0].mxu0
    %v4050 = vadd.f32 %v3813, %v4049
    %v4051 = vpop.f32.mrb[0].mxu0
    %v4052 = vpop.f32.mrb[0].mxu0
    %v4053 = vadd.f32 %v3813, %v4052
    %v4054 = vpop.f32.mrb[0].mxu0
    %4055 = vmatprep.mubr.bf16.mxu0 0
    %4056 = vmatmul.mubr.bf16.gmra.mrb[0].mxu0 %v3748
    %v4057 = vpop.f32.mrb[0].mxu0
    %v4058 = vadd.f32 %v3813, %v4057
    %v4059 = vpop.f32.mrb[0].mxu0
    %v4060 = vpop.f32.mrb[0].mxu0
    %v4061 = vadd.f32 %v3813, %v4060
    %v4062 = vpop.f32.mrb[0].mxu0
    %4063 = vmatprep.mubr.bf16.mxu0 0
    %4064 = vmatmul.mubr.bf16.gmra.mrb[0].mxu0 %v3749
    %v4065 = vpop.f32.mrb[0].mxu0
    %v4066 = vadd.f32 %v3813, %v4065
    %v4067 = vpop.f32.mrb[0].mxu0
    %v4068 = vpop.f32.mrb[0].mxu0
    %v4069 = vadd.f32 %v3813, %v4068
    %v4070 = vpop.f32.mrb[0].mxu0
    %4071 = vmatprep.mubr.bf16.mxu0 0
    %4072 = vmatmul.mubr.bf16.gmra.mrb[0].mxu0 %v3750
    %v4073 = vpop.f32.mrb[0].mxu0
    %v4074 = vadd.f32 %v3813, %v4073
    %v4075 = vpop.f32.mrb[0].mxu0
    %v4076 = vpop.f32.mrb[0].mxu0
    %v4077 = vadd.f32 %v3813, %v4076
    %v4078 = vpop.f32.mrb[0].mxu0
    %4079 = vmatprep.mubr.bf16.mxu0 0
    %4080 = vmatmul.mubr.bf16.gmra.mrb[0].mxu0 %v3751
    %v4081 = vpop.f32.mrb[0].mxu0
    %v4082 = vadd.f32 %v3813, %v4081
    %v4083 = vpop.f32.mrb[0].mxu0
    %v4084 = vpop.f32.mrb[0].mxu0
    %v4085 = vadd.f32 %v3813, %v4084
    %v4086 = vpop.f32.mrb[0].mxu0
    %4087 = vmatprep.mubr.bf16.mxu0 0
    %4088 = vmatmul.mubr.bf16.gmra.mrb[0].mxu0 %v3752
    %v4089 = vpop.f32.mrb[0].mxu0
    %v4090 = vadd.f32 %v3813, %v4089
    %v4091 = vpop.f32.mrb[0].mxu0
    %v4092 = vpop.f32.mrb[0].mxu0
    %v4093 = vadd.f32 %v3813, %v4092
    %v4094 = vpop.f32.mrb[0].mxu0
    %4095 = vmatprep.mubr.bf16.mxu0 0
    %4096 = vmatmul.mubr.bf16.gmra.mrb[0].mxu0 %v3753
    %v4097 = vpop.f32.mrb[0].mxu0
    %v4098 = vadd.f32 %v3813, %v4097
    %v4099 = vpop.f32.mrb[0].mxu0
    %v4100 = vpop.f32.mrb[0].mxu0
    %v4101 = vadd.f32 %v3813, %v4100
    %v4102 = vpop.f32.mrb[0].mxu0
    %4103 = vmatprep.mubr.bf16.mxu0 0
    %4104 = vmatmul.mubr.bf16.gmra.mrb[0].mxu0 %v3754
    %v4105 = vpop.f32.mrb[0].mxu0
    %v4106 = vadd.f32 %v3813, %v4105
    %v4107 = vpop.f32.mrb[0].mxu0
    %v4108 = vpop.f32.mrb[0].mxu0
    %v4109 = vadd.f32 %v3813, %v4108
    %v4110 = vpop.f32.mrb[0].mxu0
    %4111 = vmatprep.mubr.bf16.mxu0 0
    %4112 = vmatmul.mubr.bf16.gmra.mrb[0].mxu0 %v3755
    %v4113 = vpop.f32.mrb[0].mxu0
    %v4114 = vadd.f32 %v3813, %v4113
    %v4115 = vpop.f32.mrb[0].mxu0
    %v4116 = vpop.f32.mrb[0].mxu0
    %v4117 = vadd.f32 %v3813, %v4116
    %v4118 = vpop.f32.mrb[0].mxu0
    %4119 = vmatprep.mubr.bf16.mxu0 0
    %4120 = vmatmul.mubr.bf16.gmra.mrb[0].mxu0 %v3756
    %v4121 = vpop.f32.mrb[0].mxu0
    %v4122 = vadd.f32 %v3813, %v4121
    %v4123 = vpop.f32.mrb[0].mxu0
    %v4124 = vpop.f32.mrb[0].mxu0
    %v4125 = vadd.f32 %v3813, %v4124
    %v4126 = vpop.f32.mrb[0].mxu0
    %4127 = vmatprep.mubr.bf16.mxu0 0
    %4128 = vmatmul.mubr.bf16.gmra.mrb[0].mxu0 %v3757
    %v4129 = vpop.f32.mrb[0].mxu0
    %v4130 = vadd.f32 %v3813, %v4129
    %v4131 = vpop.f32.mrb[0].mxu0
    %v4132 = vpop.f32.mrb[0].mxu0
    %v4133 = vadd.f32 %v3813, %v4132
    %v4134 = vpop.f32.mrb[0].mxu0
    %4135 = vmatprep.mubr.bf16.mxu0 0
    %4136 = vmatmul.mubr.bf16.gmra.mrb[0].mxu0 %v3758
    %v4137 = vpop.f32.mrb[0].mxu0
    %v4138 = vadd.f32 %v3813, %v4137
    %v4139 = vpop.f32.mrb[0].mxu0
    %v4140 = vpop.f32.mrb[0].mxu0
    %v4141 = vadd.f32 %v3813, %v4140
    %v4142 = vpop.f32.mrb[0].mxu0
    %4143 = vmatprep.mubr.bf16.mxu0 0
    %4144 = vmatmul.mubr.bf16.gmra.mrb[0].mxu0 %v3759
    %v4145 = vpop.f32.mrb[0].mxu0
    %v4146 = vadd.f32 %v3813, %v4145
    %v4147 = vpop.f32.mrb[0].mxu0
    %v4148 = vpop.f32.mrb[0].mxu0
    %v4149 = vadd.f32 %v3813, %v4148
    %v4150 = vpop.f32.mrb[0].mxu0
    %4151 = vmatprep.mubr.bf16.mxu0 0
    %4152 = vmatmul.mubr.bf16.gmra.mrb[0].mxu0 %v3760
    %v4153 = vpop.f32.mrb[0].mxu0
    %v4154 = vadd.f32 %v3813, %v4153
    %v4155 = vpop.f32.mrb[0].mxu0
    %v4156 = vpop.f32.mrb[0].mxu0
    %v4157 = vadd.f32 %v3813, %v4156
    %v4158 = vpop.f32.mrb[0].mxu0
    %4159 = vmatprep.mubr.bf16.mxu0 0
    %4160 = vmatmul.mubr.bf16.gmra.mrb[0].mxu0 %v3761
    %v4161 = vpop.f32.mrb[0].mxu0
    %v4162 = vadd.f32 %v3813, %v4161
    %v4163 = vpop.f32.mrb[0].mxu0
    %v4164 = vpop.f32.mrb[0].mxu0
    %v4165 = vadd.f32 %v3813, %v4164
    %v4166 = vpop.f32.mrb[0].mxu0
    %4167 = vmatprep.mubr.bf16.mxu0 0
    %4168 = vmatmul.mubr.bf16.gmra.mrb[0].mxu0 %v3762
    %v4169 = vpop.f32.mrb[0].mxu0
    %v4170 = vadd.f32 %v3813, %v4169
    %v4171 = vpop.f32.mrb[0].mxu0
    %v4172 = vpop.f32.mrb[0].mxu0
    %v4173 = vadd.f32 %v3813, %v4172
    %v4174 = vpop.f32.mrb[0].mxu0
    %4175 = vmatprep.mubr.bf16.mxu0 0
    %4176 = vmatmul.mubr.bf16.gmra.mrb[0].mxu0 %v3763
    %v4177 = vpop.f32.mrb[0].mxu0
    %v4178 = vadd.f32 %v3813, %v4177
    %v4179 = vpop.f32.mrb[0].mxu0
    %v4180 = vpop.f32.mrb[0].mxu0
    %v4181 = vadd.f32 %v3813, %v4180
    %v4182 = vpop.f32.mrb[0].mxu0
    %4183 = vmatprep.mubr.bf16.mxu0 0
    %4184 = vmatmul.mubr.bf16.gmra.mrb[0].mxu0 %v3764
    %v4185 = vpop.f32.mrb[0].mxu0
    %v4186 = vadd.f32 %v3813, %v4185
    %v4187 = vpop.f32.mrb[0].mxu0
    %v4188 = vpop.f32.mrb[0].mxu0
    %v4189 = vadd.f32 %v3813, %v4188
    %v4190 = vpop.f32.mrb[0].mxu0
    %4191 = vmatprep.mubr.bf16.mxu0 0
    %4192 = vmatmul.mubr.bf16.gmra.mrb[0].mxu0 %v3765
    %v4193 = vpop.f32.mrb[0].mxu0
    %v4194 = vadd.f32 %v3813, %v4193
    %v4195 = vpop.f32.mrb[0].mxu0
    %v4196 = vpop.f32.mrb[0].mxu0
    %v4197 = vadd.f32 %v3813, %v4196
    %v4198 = vpop.f32.mrb[0].mxu0
    %4199 = vmatprep.mubr.bf16.mxu0 0
    %4200 = vmatmul.mubr.bf16.gmra.mrb[0].mxu0 %v3766
    %v4201 = vpop.f32.mrb[0].mxu0
    %v4202 = vadd.f32 %v3813, %v4201
    %v4203 = vpop.f32.mrb[0].mxu0
    %v4204 = vpop.f32.mrb[0].mxu0
    %v4205 = vadd.f32 %v3813, %v4204
    %v4206 = vpop.f32.mrb[0].mxu0
    %4207 = vmatprep.mubr.bf16.mxu0 0
    %4208 = vmatmul.mubr.bf16.gmra.mrb[0].mxu0 %v3767
    %v4209 = vpop.f32.mrb[0].mxu0
    %v4210 = vadd.f32 %v3813, %v4209
    %v4211 = vpop.f32.mrb[0].mxu0
    %v4212 = vpop.f32.mrb[0].mxu0
    %v4213 = vadd.f32 %v3813, %v4212
    %v4214 = vpop.f32.mrb[0].mxu0
    %4215 = vmatprep.mubr.bf16.mxu0 0
    %4216 = vmatmul.mubr.bf16.gmra.mrb[0].mxu0 %v3768
    %v4217 = vpop.f32.mrb[0].mxu0
    %v4218 = vadd.f32 %v3813, %v4217
    %v4219 = vpop.f32.mrb[0].mxu0
    %v4220 = vpop.f32.mrb[0].mxu0
    %v4221 = vadd.f32 %v3813, %v4220
    %v4222 = vpop.f32.mrb[0].mxu0
    %4223 = vmatprep.mubr.bf16.mxu0 0
    %4224 = vmatmul.mubr.bf16.gmra.mrb[0].mxu0 %v3769
    %v4225 = vpop.f32.mrb[0].mxu0
    %v4226 = vadd.f32 %v3813, %v4225
    %v4227 = vpop.f32.mrb[0].mxu0
    %v4228 = vpop.f32.mrb[0].mxu0
    %v4229 = vadd.f32 %v3813, %v4228
    %v4230 = vpop.f32.mrb[0].mxu0
    %4231 = vmatprep.mubr.bf16.mxu0 0
    %4232 = vmatmul.mubr.bf16.gmra.mrb[0].mxu0 %v3770
    %v4233 = vpop.f32.mrb[0].mxu0
    %v4234 = vadd.f32 %v3813, %v4233
    %v4235 = vpop.f32.mrb[0].mxu0
    %v4236 = vpop.f32.mrb[0].mxu0
    %v4237 = vadd.f32 %v3813, %v4236
    %v4238 = vpop.f32.mrb[0].mxu0
    %4239 = vmatprep.mubr.bf16.mxu0 0
    %4240 = vmatmul.mubr.bf16.gmra.mrb[0].mxu0 %v3771
    %v4241 = vpop.f32.mrb[0].mxu0
    %v4242 = vadd.f32 %v3813, %v4241
    %v4243 = vpop.f32.mrb[0].mxu0
    %v4244 = vpop.f32.mrb[0].mxu0
    %v4245 = vadd.f32 %v3813, %v4244
    %v4246 = vpop.f32.mrb[0].mxu0
    %4247 = vmatprep.mubr.bf16.mxu0 0
    %4248 = vmatmul.mubr.bf16.gmra.mrb[0].mxu0 %v3772
    %v4249 = vpop.f32.mrb[0].mxu0
    %v4250 = vadd.f32 %v3813, %v4249
    %v4251 = vpop.f32.mrb[0].mxu0
    %v4252 = vpop.f32.mrb[0].mxu0
    %v4253 = vadd.f32 %v3813, %v4252
    %v4254 = vpop.f32.mrb[0].mxu0
    %4255 = vmatprep.mubr.bf16.mxu0 0
    %4256 = vmatmul.mubr.bf16.gmra.mrb[0].mxu0 %v3773
    %v4257 = vpop.f32.mrb[0].mxu0
    %v4258 = vadd.f32 %v3813, %v4257
    %v4259 = vpop.f32.mrb[0].mxu0
    %v4260 = vpop.f32.mrb[0].mxu0
    %v4261 = vadd.f32 %v3813, %v4260
    %v4262 = vpop.f32.mrb[0].mxu0
    %4263 = vmatprep.mubr.bf16.mxu0 0
    %4264 = vmatmul.mubr.bf16.gmra.mrb[0].mxu0 %v3774
    %v4265 = vpop.f32.mrb[0].mxu0
    %v4266 = vadd.f32 %v3813, %v4265
    %v4267 = vpop.f32.mrb[0].mxu0
    %v4268 = vpop.f32.mrb[0].mxu0
    %v4269 = vadd.f32 %v3813, %v4268
    %v4270 = vpop.f32.mrb[0].mxu0
    %4271 = vmatprep.mubr.bf16.mxu0 0
    %4272 = vmatmul.mubr.bf16.gmra.mrb[0].mxu0 %v3775
    %v4273 = vpop.f32.mrb[0].mxu0
    %v4274 = vadd.f32 %v3813, %v4273
    %v4275 = vpop.f32.mrb[0].mxu0
    %v4276 = vpop.f32.mrb[0].mxu0
    %v4277 = vadd.f32 %v3813, %v4276
    %v4278 = vpop.f32.mrb[0].mxu0
    %4279 = vmatprep.mubr.bf16.mxu0 0
    %4280 = vmatmul.mubr.bf16.gmra.mrb[0].mxu0 %v3776
    %v4281 = vpop.f32.mrb[0].mxu0
    %v4282 = vadd.f32 %v3813, %v4281
    %v4283 = vpop.f32.mrb[0].mxu0
    %v4284 = vpop.f32.mrb[0].mxu0
    %v4285 = vadd.f32 %v3813, %v4284
    %v4286 = vpop.f32.mrb[0].mxu0
    %4287 = vmatprep.mubr.bf16.mxu0 0
    %4288 = vmatmul.mubr.bf16.gmra.mrb[0].mxu0 %v3777
    %v4289 = vpop.f32.mrb[0].mxu0
    %v4290 = vadd.f32 %v3813, %v4289
    %v4291 = vpop.f32.mrb[0].mxu0
    %v4292 = vpop.f32.mrb[0].mxu0
    %v4293 = vadd.f32 %v3813, %v4292
    %v4294 = vpop.f32.mrb[0].mxu0
    %4295 = vmatprep.mubr.bf16.mxu0 0
    %4296 = vmatmul.mubr.bf16.gmra.mrb[0].mxu0 %v3778
    %v4297 = vpop.f32.mrb[0].mxu0
    %v4298 = vadd.f32 %v3813, %v4297
    %v4299 = vpop.f32.mrb[0].mxu0
    %v4300 = vpop.f32.mrb[0].mxu0
    %v4301 = vadd.f32 %v3813, %v4300
    %v4302 = vpop.f32.mrb[0].mxu0
    %4303 = vmatprep.mubr.bf16.mxu0 0
    %4304 = vmatmul.mubr.bf16.gmra.mrb[0].mxu0 %v3779
    %v4305 = vpop.f32.mrb[0].mxu0
    %v4306 = vadd.f32 %v3813, %v4305
    %v4307 = vpop.f32.mrb[0].mxu0
    %v4308 = vpop.f32.mrb[0].mxu0
    %v4309 = vadd.f32 %v3813, %v4308
    %v4310 = vpop.f32.mrb[0].mxu0
    %4311 = vmatprep.mubr.bf16.mxu0 0
    %4312 = vmatmul.mubr.bf16.gmra.mrb[0].mxu0 %v3780
    %v4313 = vpop.f32.mrb[0].mxu0
    %v4314 = vadd.f32 %v3813, %v4313
    %v4315 = vpop.f32.mrb[0].mxu0
    %v4316 = vpop.f32.mrb[0].mxu0
    %v4317 = vadd.f32 %v3813, %v4316
    %v4318 = vpop.f32.mrb[0].mxu0
    %4319 = vmatprep.mubr.bf16.mxu0 0
    %4320 = vmatmul.mubr.bf16.gmra.mrb[0].mxu0 %v3781
    %v4321 = vpop.f32.mrb[0].mxu0
    %v4322 = vadd.f32 %v3813, %v4321
    %v4323 = vpop.f32.mrb[0].mxu0
    %v4324 = vpop.f32.mrb[0].mxu0
    %v4325 = vadd.f32 %v3813, %v4324
    %v4326 = vpop.f32.mrb[0].mxu0
    %4327 = vmatprep.mubr.bf16.mxu0 0
    %4328 = vmatmul.mubr.bf16.gmra.mrb[0].mxu0 %v3782
    %v4329 = vpop.f32.mrb[0].mxu0
    %v4330 = vadd.f32 %v3813, %v4329
    %v4331 = vpop.f32.mrb[0].mxu0
    %v4332 = vpop.f32.mrb[0].mxu0
    %v4333 = vadd.f32 %v3813, %v4332
    %v4334 = vpop.f32.mrb[0].mxu0
    %4335 = vmatprep.mubr.bf16.mxu0 0
    %4336 = vmatmul.mubr.bf16.gmra.mrb[0].mxu0 %v3783
    %v4337 = vpop.f32.mrb[0].mxu0
    %v4338 = vadd.f32 %v3813, %v4337
    %v4339 = vpop.f32.mrb[0].mxu0
    %v4340 = vpop.f32.mrb[0].mxu0
    %v4341 = vadd.f32 %v3813, %v4340
    %v4342 = vpop.f32.mrb[0].mxu0
    %4343 = vmatprep.mubr.bf16.mxu0 0
    %4344 = vmatmul.mubr.bf16.gmra.mrb[0].mxu0 %v3784
    %v4345 = vpop.f32.mrb[0].mxu0
    %v4346 = vadd.f32 %v3813, %v4345
    %v4347 = vpop.f32.mrb[0].mxu0
    %v4348 = vpop.f32.mrb[0].mxu0
    %v4349 = vadd.f32 %v3813, %v4348
    %v4350 = vpop.f32.mrb[0].mxu0
    %4351 = vmatprep.mubr.bf16.mxu0 0
    %4352 = vmatmul.mubr.bf16.gmra.mrb[0].mxu0 %v3785
    %v4353 = vpop.f32.mrb[0].mxu0
    %v4354 = vadd.f32 %v3813, %v4353
    %v4355 = vpop.f32.mrb[0].mxu0
    %v4356 = vpop.f32.mrb[0].mxu0
    %v4357 = vadd.f32 %v3813, %v4356
    %v4358 = vpop.f32.mrb[0].mxu0
    %4359 = vmatprep.mubr.bf16.mxu0 0
    %4360 = vmatmul.mubr.bf16.gmra.mrb[0].mxu0 %v3786
    %v4361 = vpop.f32.mrb[0].mxu0
    %v4362 = vadd.f32 %v3813, %v4361
    %v4363 = vpop.f32.mrb[0].mxu0
    %v4364 = vpop.f32.mrb[0].mxu0
    %v4365 = vadd.f32 %v3813, %v4364
    %v4366 = vpop.f32.mrb[0].mxu0
    %4367 = vmatprep.mubr.bf16.mxu0 0
    %4368 = vmatmul.mubr.bf16.gmra.mrb[0].mxu0 %v3787
    %v4369 = vpop.f32.mrb[0].mxu0
    %v4370 = vadd.f32 %v3813, %v4369
    %v4371 = vpop.f32.mrb[0].mxu0
    %v4372 = vpop.f32.mrb[0].mxu0
    %v4373 = vadd.f32 %v3813, %v4372
    %v4374 = vpop.f32.mrb[0].mxu0
    %4375 = vmatprep.mubr.bf16.mxu0 0
    %4376 = vmatmul.mubr.bf16.gmra.mrb[0].mxu0 %v3788
    %v4377 = vpop.f32.mrb[0].mxu0
    %v4378 = vadd.f32 %v3813, %v4377
    %v4379 = vpop.f32.mrb[0].mxu0
    %v4380 = vpop.f32.mrb[0].mxu0
    %v4381 = vadd.f32 %v3813, %v4380
    %v4382 = vpop.f32.mrb[0].mxu0
    %4383 = vmatprep.mubr.bf16.mxu0 0
    %4384 = vmatmul.mubr.bf16.gmra.mrb[0].mxu0 %v3789
    %v4385 = vpop.f32.mrb[0].mxu0
    %v4386 = vadd.f32 %v3813, %v4385
    %v4387 = vpop.f32.mrb[0].mxu0
    %v4388 = vpop.f32.mrb[0].mxu0
    %v4389 = vadd.f32 %v3813, %v4388
    %v4390 = vpop.f32.mrb[0].mxu0
    %4391 = vmatprep.mubr.bf16.mxu0 0
    %4392 = vmatmul.mubr.bf16.gmra.mrb[0].mxu0 %v3790
    %v4393 = vpop.f32.mrb[0].mxu0
    %v4394 = vadd.f32 %v3813, %v4393
    %v4395 = vpop.f32.mrb[0].mxu0
    %v4396 = vpop.f32.mrb[0].mxu0
    %v4397 = vadd.f32 %v3813, %v4396
    %v4398 = vpop.f32.mrb[0].mxu0
    %4399 = vmatprep.mubr.bf16.mxu0 0
    %4400 = vmatmul.mubr.bf16.gmra.mrb[0].mxu0 %v3791
    %v4401 = vpop.f32.mrb[0].mxu0
    %v4402 = vadd.f32 %v3813, %v4401
    %v4403 = vpop.f32.mrb[0].mxu0
    %v4404 = vpop.f32.mrb[0].mxu0
    %v4405 = vadd.f32 %v3813, %v4404
    %v4406 = vpop.f32.mrb[0].mxu0
    %4407 = vdwg.mxu0
    %v4408 = vmax.f32 %v3898, %v3914
    %v4409 = vmax.f32 %v3901, %v3917
    %v4410 = vmax.f32 %v3906, %v3922
    %v4411 = vmax.f32 %v3909, %v3925
    %v4412 = vmax.f32 %v4408, %v3930
    %v4413 = vmax.f32 %v4409, %v3933
    %v4414 = vmax.f32 %v4410, %v3938
    %v4415 = vmax.f32 %v4411, %v3941
    %v4416 = vmax.f32 %v4412, %v3946
    %v4417 = vmax.f32 %v4413, %v3949
    %v4418 = vmax.f32 %v4414, %v3954
    %v4419 = vmax.f32 %v4415, %v3957
    %v4420 = vmax.f32 %v4416, %v3962
    %v4421 = vmax.f32 %v4417, %v3965
    %v4422 = vmax.f32 %v4418, %v3970
    %v4423 = vmax.f32 %v4419, %v3973
    %v4424 = vmax.f32 %v4420, %v3978
    %v4425 = vmax.f32 %v4421, %v3981
    %v4426 = vmax.f32 %v4422, %v3986
    %v4427 = vmax.f32 %v4423, %v3989
    %v4428 = vmax.f32 %v4424, %v3994
    %v4429 = vmax.f32 %v4425, %v3997
    %v4430 = vmax.f32 %v4426, %v4002
    %v4431 = vmax.f32 %v4427, %v4005
    %v4432 = vmax.f32 %v4428, %v4010
    %v4433 = vmax.f32 %v4429, %v4013
    %v4434 = vmax.f32 %v4430, %v4018
    %v4435 = vmax.f32 %v4431, %v4021
    %v4436 = vmax.f32 %v4432, %v4026
    %v4437 = vmax.f32 %v4433, %v4029
    %v4438 = vmax.f32 %v4434, %v4034
    %v4439 = vmax.f32 %v4435, %v4037
    %v4440 = vmax.f32 %v4436, %v4042
    %v4441 = vmax.f32 %v4437, %v4045
    %v4442 = vmax.f32 %v4438, %v4050
    %v4443 = vmax.f32 %v4439, %v4053
    %v4444 = vmax.f32 %v4440, %v4058
    %v4445 = vmax.f32 %v4441, %v4061
    %v4446 = vmax.f32 %v4442, %v4066
    %v4447 = vmax.f32 %v4443, %v4069
    %v4448 = vmax.f32 %v4444, %v4074
    %v4449 = vmax.f32 %v4445, %v4077
    %v4450 = vmax.f32 %v4446, %v4082
    %v4451 = vmax.f32 %v4447, %v4085
    %v4452 = vmax.f32 %v4448, %v4090
    %v4453 = vmax.f32 %v4449, %v4093
    %v4454 = vmax.f32 %v4450, %v4098
    %v4455 = vmax.f32 %v4451, %v4101
    %v4456 = vmax.f32 %v4452, %v4106
    %v4457 = vmax.f32 %v4453, %v4109
    %v4458 = vmax.f32 %v4454, %v4114
    %v4459 = vmax.f32 %v4455, %v4117
    %v4460 = vmax.f32 %v4456, %v4122
    %v4461 = vmax.f32 %v4457, %v4125
    %v4462 = vmax.f32 %v4458, %v4130
    %v4463 = vmax.f32 %v4459, %v4133
    %v4464 = vmax.f32 %v4460, %v4138
    %v4465 = vmax.f32 %v4461, %v4141
    %v4466 = vmax.f32 %v4462, %v4146
    %v4467 = vmax.f32 %v4463, %v4149
    %v4468 = vmax.f32 %v4464, %v4154
    %v4469 = vmax.f32 %v4465, %v4157
    %v4470 = vmax.f32 %v4466, %v4162
    %v4471 = vmax.f32 %v4467, %v4165
    %v4472 = vmax.f32 %v4468, %v4170
    %v4473 = vmax.f32 %v4469, %v4173
    %v4474 = vmax.f32 %v4470, %v4178
    %v4475 = vmax.f32 %v4471, %v4181
    %v4476 = vmax.f32 %v4472, %v4186
    %v4477 = vmax.f32 %v4473, %v4189
    %v4478 = vmax.f32 %v4474, %v4194
    %v4479 = vmax.f32 %v4475, %v4197
    %v4480 = vmax.f32 %v4476, %v4202
    %v4481 = vmax.f32 %v4477, %v4205
    %v4482 = vmax.f32 %v4478, %v4210
    %v4483 = vmax.f32 %v4479, %v4213
    %v4484 = vmax.f32 %v4480, %v4218
    %v4485 = vmax.f32 %v4481, %v4221
    %v4486 = vmax.f32 %v4482, %v4226
    %v4487 = vmax.f32 %v4483, %v4229
    %v4488 = vmax.f32 %v4484, %v4234
    %v4489 = vmax.f32 %v4485, %v4237
    %v4490 = vmax.f32 %v4486, %v4242
    %v4491 = vmax.f32 %v4487, %v4245
    %v4492 = vmax.f32 %v4488, %v4250
    %v4493 = vmax.f32 %v4489, %v4253
    %v4494 = vmax.f32 %v4490, %v4258
    %v4495 = vmax.f32 %v4491, %v4261
    %v4496 = vmax.f32 %v4492, %v4266
    %v4497 = vmax.f32 %v4493, %v4269
    %v4498 = vmax.f32 %v4494, %v4274
    %v4499 = vmax.f32 %v4495, %v4277
    %v4500 = vmax.f32 %v4496, %v4282
    %v4501 = vmax.f32 %v4497, %v4285
    %v4502 = vmax.f32 %v4498, %v4290
    %v4503 = vmax.f32 %v4499, %v4293
    %v4504 = vmax.f32 %v4500, %v4298
    %v4505 = vmax.f32 %v4501, %v4301
    %v4506 = vmax.f32 %v4502, %v4306
    %v4507 = vmax.f32 %v4503, %v4309
    %v4508 = vmax.f32 %v4504, %v4314
    %v4509 = vmax.f32 %v4505, %v4317
    %v4510 = vmax.f32 %v4506, %v4322
    %v4511 = vmax.f32 %v4507, %v4325
    %v4512 = vmax.f32 %v4508, %v4330
    %v4513 = vmax.f32 %v4509, %v4333
    %v4514 = vmax.f32 %v4510, %v4338
    %v4515 = vmax.f32 %v4511, %v4341
    %v4516 = vmax.f32 %v4512, %v4346
    %v4517 = vmax.f32 %v4513, %v4349
    %v4518 = vmax.f32 %v4514, %v4354
    %v4519 = vmax.f32 %v4515, %v4357
    %v4520 = vmax.f32 %v4516, %v4362
    %v4521 = vmax.f32 %v4517, %v4365
    %v4522 = vmax.f32 %v4518, %v4370
    %v4523 = vmax.f32 %v4519, %v4373
    %v4524 = vmax.f32 %v4520, %v4378
    %v4525 = vmax.f32 %v4521, %v4381
    %v4526 = vmax.f32 %v4522, %v4386
    %v4527 = vmax.f32 %v4523, %v4389
    %v4528 = vmax.f32 %v4524, %v4394
    %v4529 = vmax.f32 %v4525, %v4397
    %v4530 = vmax.f32 %v4526, %v4402
    %v4531 = vmax.f32 %v4527, %v4405
    %v4532 = vmax.f32 %v4528, %v4529
    %v4533 = vmax.f32 %v4530, %v4531
    %v4534 = vmax.f32 %v4532, %v4533
    %v4535 = vrot.slane %v4534, 4
    %v4536 = vmax.f32 %v4534, %v4535
    %v4537 = vrot.slane %v4536, 2
    %v4538 = vmax.f32 %v4536, %v4537
    %v4539 = vrot.slane %v4538, 1
    %v4540 = vmax.f32 %v4538, %v4539
    %v4541 = vld [vmem:[#allocation2] sm:$0x1]
    %v4542 = vmax.f32 %v4541, %v4540
    %4543 = vst [vmem:[#allocation2] sm:$0x1] %v4542
    %s4544 = scalar_lea.vmem %s0, 1024
    %v4545 = vld [vmem:[%s4544] sm:$0xff]
    %v4546 = vld [vmem:[%s4544 + $0x8] sm:$0xff]
    %v4547 = vld [vmem:[%s4544 + $0x10] sm:$0xff]
    %v4548 = vld [vmem:[%s4544 + $0x18] sm:$0xff]
    %v4549 = vld [vmem:[%s4544 + $0x20] sm:$0xff]
    %v4550 = vld [vmem:[%s4544 + $0x28] sm:$0xff]
    %v4551 = vld [vmem:[%s4544 + $0x30] sm:$0xff]
    %v4552 = vld [vmem:[%s4544 + $0x38] sm:$0xff]
    %v4553 = vld [vmem:[%s4544 + $0x40] sm:$0xff]
    %v4554 = vld [vmem:[%s4544 + $0x48] sm:$0xff]
    %v4555 = vld [vmem:[%s4544 + $0x50] sm:$0xff]
    %v4556 = vld [vmem:[%s4544 + $0x58] sm:$0xff]
    %v4557 = vld [vmem:[%s4544 + $0x60] sm:$0xff]
    %v4558 = vld [vmem:[%s4544 + $0x68] sm:$0xff]
    %v4559 = vld [vmem:[%s4544 + $0x70] sm:$0xff]
    %v4560 = vld [vmem:[%s4544 + $0x78] sm:$0xff]
    %v4561 = vld [vmem:[%s4544 + $0x80] sm:$0xff]
    %v4562 = vld [vmem:[%s4544 + $0x88] sm:$0xff]
    %v4563 = vld [vmem:[%s4544 + $0x90] sm:$0xff]
    %v4564 = vld [vmem:[%s4544 + $0x98] sm:$0xff]
    %v4565 = vld [vmem:[%s4544 + $0xa0] sm:$0xff]
    %v4566 = vld [vmem:[%s4544 + $0xa8] sm:$0xff]
    %v4567 = vld [vmem:[%s4544 + $0xb0] sm:$0xff]
    %v4568 = vld [vmem:[%s4544 + $0xb8] sm:$0xff]
    %v4569 = vld [vmem:[%s4544 + $0xc0] sm:$0xff]
    %v4570 = vld [vmem:[%s4544 + $0xc8] sm:$0xff]
    %v4571 = vld [vmem:[%s4544 + $0xd0] sm:$0xff]
    %v4572 = vld [vmem:[%s4544 + $0xd8] sm:$0xff]
    %v4573 = vld [vmem:[%s4544 + $0xe0] sm:$0xff]
    %v4574 = vld [vmem:[%s4544 + $0xe8] sm:$0xff]
    %v4575 = vld [vmem:[%s4544 + $0xf0] sm:$0xff]
    %v4576 = vld [vmem:[%s4544 + $0xf8] sm:$0xff]
    %v4577 = vld [vmem:[%s4544 + $0x100] sm:$0xff]
    %v4578 = vld [vmem:[%s4544 + $0x108] sm:$0xff]
    %v4579 = vld [vmem:[%s4544 + $0x110] sm:$0xff]
    %v4580 = vld [vmem:[%s4544 + $0x118] sm:$0xff]
    %v4581 = vld [vmem:[%s4544 + $0x120] sm:$0xff]
    %v4582 = vld [vmem:[%s4544 + $0x128] sm:$0xff]
    %v4583 = vld [vmem:[%s4544 + $0x130] sm:$0xff]
    %v4584 = vld [vmem:[%s4544 + $0x138] sm:$0xff]
    %v4585 = vld [vmem:[%s4544 + $0x140] sm:$0xff]
    %v4586 = vld [vmem:[%s4544 + $0x148] sm:$0xff]
    %v4587 = vld [vmem:[%s4544 + $0x150] sm:$0xff]
    %v4588 = vld [vmem:[%s4544 + $0x158] sm:$0xff]
    %v4589 = vld [vmem:[%s4544 + $0x160] sm:$0xff]
    %v4590 = vld [vmem:[%s4544 + $0x168] sm:$0xff]
    %v4591 = vld [vmem:[%s4544 + $0x170] sm:$0xff]
    %v4592 = vld [vmem:[%s4544 + $0x178] sm:$0xff]
    %v4593 = vld [vmem:[%s4544 + $0x180] sm:$0xff]
    %v4594 = vld [vmem:[%s4544 + $0x188] sm:$0xff]
    %v4595 = vld [vmem:[%s4544 + $0x190] sm:$0xff]
    %v4596 = vld [vmem:[%s4544 + $0x198] sm:$0xff]
    %v4597 = vld [vmem:[%s4544 + $0x1a0] sm:$0xff]
    %v4598 = vld [vmem:[%s4544 + $0x1a8] sm:$0xff]
    %v4599 = vld [vmem:[%s4544 + $0x1b0] sm:$0xff]
    %v4600 = vld [vmem:[%s4544 + $0x1b8] sm:$0xff]
    %v4601 = vld [vmem:[%s4544 + $0x1c0] sm:$0xff]
    %v4602 = vld [vmem:[%s4544 + $0x1c8] sm:$0xff]
    %v4603 = vld [vmem:[%s4544 + $0x1d0] sm:$0xff]
    %v4604 = vld [vmem:[%s4544 + $0x1d8] sm:$0xff]
    %v4605 = vld [vmem:[%s4544 + $0x1e0] sm:$0xff]
    %v4606 = vld [vmem:[%s4544 + $0x1e8] sm:$0xff]
    %v4607 = vld [vmem:[%s4544 + $0x1f0] sm:$0xff]
    %v4608 = vld [vmem:[%s4544 + $0x1f8] sm:$0xff]
    %v4609 = vld [vmem:[%s4544 + $0x200] sm:$0xff]
    %v4610 = vld [vmem:[%s4544 + $0x208] sm:$0xff]
    %v4611 = vld [vmem:[%s4544 + $0x210] sm:$0xff]
    %v4612 = vld [vmem:[%s4544 + $0x218] sm:$0xff]
    %v4613 = vld [vmem:[%s4544 + $0x220] sm:$0xff]
    %v4614 = vld [vmem:[%s4544 + $0x228] sm:$0xff]
    %v4615 = vld [vmem:[%s4544 + $0x230] sm:$0xff]
    %v4616 = vld [vmem:[%s4544 + $0x238] sm:$0xff]
    %v4617 = vld [vmem:[%s4544 + $0x240] sm:$0xff]
    %v4618 = vld [vmem:[%s4544 + $0x248] sm:$0xff]
    %v4619 = vld [vmem:[%s4544 + $0x250] sm:$0xff]
    %v4620 = vld [vmem:[%s4544 + $0x258] sm:$0xff]
    %v4621 = vld [vmem:[%s4544 + $0x260] sm:$0xff]
    %v4622 = vld [vmem:[%s4544 + $0x268] sm:$0xff]
    %v4623 = vld [vmem:[%s4544 + $0x270] sm:$0xff]
    %v4624 = vld [vmem:[%s4544 + $0x278] sm:$0xff]
    %v4625 = vld [vmem:[%s4544 + $0x280] sm:$0xff]
    %v4626 = vld [vmem:[%s4544 + $0x288] sm:$0xff]
    %v4627 = vld [vmem:[%s4544 + $0x290] sm:$0xff]
    %v4628 = vld [vmem:[%s4544 + $0x298] sm:$0xff]
    %v4629 = vld [vmem:[%s4544 + $0x2a0] sm:$0xff]
    %v4630 = vld [vmem:[%s4544 + $0x2a8] sm:$0xff]
    %v4631 = vld [vmem:[%s4544 + $0x2b0] sm:$0xff]
    %v4632 = vld [vmem:[%s4544 + $0x2b8] sm:$0xff]
    %v4633 = vld [vmem:[%s4544 + $0x2c0] sm:$0xff]
    %v4634 = vld [vmem:[%s4544 + $0x2c8] sm:$0xff]
    %v4635 = vld [vmem:[%s4544 + $0x2d0] sm:$0xff]
    %v4636 = vld [vmem:[%s4544 + $0x2d8] sm:$0xff]
    %v4637 = vld [vmem:[%s4544 + $0x2e0] sm:$0xff]
    %v4638 = vld [vmem:[%s4544 + $0x2e8] sm:$0xff]
    %v4639 = vld [vmem:[%s4544 + $0x2f0] sm:$0xff]
    %v4640 = vld [vmem:[%s4544 + $0x2f8] sm:$0xff]
    %v4641 = vld [vmem:[%s4544 + $0x300] sm:$0xff]
    %v4642 = vld [vmem:[%s4544 + $0x308] sm:$0xff]
    %v4643 = vld [vmem:[%s4544 + $0x310] sm:$0xff]
    %v4644 = vld [vmem:[%s4544 + $0x318] sm:$0xff]
    %v4645 = vld [vmem:[%s4544 + $0x320] sm:$0xff]
    %v4646 = vld [vmem:[%s4544 + $0x328] sm:$0xff]
    %v4647 = vld [vmem:[%s4544 + $0x330] sm:$0xff]
    %v4648 = vld [vmem:[%s4544 + $0x338] sm:$0xff]
    %v4649 = vld [vmem:[%s4544 + $0x340] sm:$0xff]
    %v4650 = vld [vmem:[%s4544 + $0x348] sm:$0xff]
    %v4651 = vld [vmem:[%s4544 + $0x350] sm:$0xff]
    %v4652 = vld [vmem:[%s4544 + $0x358] sm:$0xff]
    %v4653 = vld [vmem:[%s4544 + $0x360] sm:$0xff]
    %v4654 = vld [vmem:[%s4544 + $0x368] sm:$0xff]
    %v4655 = vld [vmem:[%s4544 + $0x370] sm:$0xff]
    %v4656 = vld [vmem:[%s4544 + $0x378] sm:$0xff]
    %v4657 = vld [vmem:[%s4544 + $0x380] sm:$0xff]
    %v4658 = vld [vmem:[%s4544 + $0x388] sm:$0xff]
    %v4659 = vld [vmem:[%s4544 + $0x390] sm:$0xff]
    %v4660 = vld [vmem:[%s4544 + $0x398] sm:$0xff]
    %v4661 = vld [vmem:[%s4544 + $0x3a0] sm:$0xff]
    %v4662 = vld [vmem:[%s4544 + $0x3a8] sm:$0xff]
    %v4663 = vld [vmem:[%s4544 + $0x3b0] sm:$0xff]
    %v4664 = vld [vmem:[%s4544 + $0x3b8] sm:$0xff]
    %v4665 = vld [vmem:[%s4544 + $0x3c0] sm:$0xff]
    %v4666 = vld [vmem:[%s4544 + $0x3c8] sm:$0xff]
    %v4667 = vld [vmem:[%s4544 + $0x3d0] sm:$0xff]
    %v4668 = vld [vmem:[%s4544 + $0x3d8] sm:$0xff]
    %v4669 = vld [vmem:[%s4544 + $0x3e0] sm:$0xff]
    %v4670 = vld [vmem:[%s4544 + $0x3e8] sm:$0xff]
    %v4671 = vld [vmem:[%s4544 + $0x3f0] sm:$0xff]
    %v4672 = vld [vmem:[%s4544 + $0x3f8] sm:$0xff]
    %4674 = vset.pattern.permute.xlu0 0
    %4675 = vperm.xlu0 %4674, %v4545
    %v4676 = vpop.permute.xlu0 %4675
    %4679 = vset.pattern.permute.xlu0 0
    %4680 = vperm.xlu0 %4679, %v4546
    %v4681 = vpop.permute.xlu0 %4680
    %4684 = vset.pattern.permute.xlu0 0
    %4685 = vperm.xlu0 %4684, %v4547
    %v4686 = vpop.permute.xlu0 %4685
    %4689 = vset.pattern.permute.xlu0 0
    %4690 = vperm.xlu0 %4689, %v4548
    %v4691 = vpop.permute.xlu0 %4690
    %4694 = vset.pattern.permute.xlu0 0
    %4695 = vperm.xlu0 %4694, %v4549
    %v4696 = vpop.permute.xlu0 %4695
    %4699 = vset.pattern.permute.xlu0 0
    %4700 = vperm.xlu0 %4699, %v4550
    %v4701 = vpop.permute.xlu0 %4700
    %4704 = vset.pattern.permute.xlu0 0
    %4705 = vperm.xlu0 %4704, %v4551
    %v4706 = vpop.permute.xlu0 %4705
    %4709 = vset.pattern.permute.xlu0 0
    %4710 = vperm.xlu0 %4709, %v4552
    %v4711 = vpop.permute.xlu0 %4710
    %4714 = vset.pattern.permute.xlu0 0
    %4715 = vperm.xlu0 %4714, %v4553
    %v4716 = vpop.permute.xlu0 %4715
    %4719 = vset.pattern.permute.xlu0 0
    %4720 = vperm.xlu0 %4719, %v4554
    %v4721 = vpop.permute.xlu0 %4720
    %4724 = vset.pattern.permute.xlu0 0
    %4725 = vperm.xlu0 %4724, %v4555
    %v4726 = vpop.permute.xlu0 %4725
    %4729 = vset.pattern.permute.xlu0 0
    %4730 = vperm.xlu0 %4729, %v4556
    %v4731 = vpop.permute.xlu0 %4730
    %4734 = vset.pattern.permute.xlu0 0
    %4735 = vperm.xlu0 %4734, %v4557
    %v4736 = vpop.permute.xlu0 %4735
    %4739 = vset.pattern.permute.xlu0 0
    %4740 = vperm.xlu0 %4739, %v4558
    %v4741 = vpop.permute.xlu0 %4740
    %4744 = vset.pattern.permute.xlu0 0
    %4745 = vperm.xlu0 %4744, %v4559
    %v4746 = vpop.permute.xlu0 %4745
    %4749 = vset.pattern.permute.xlu0 0
    %4750 = vperm.xlu0 %4749, %v4560
    %v4751 = vpop.permute.xlu0 %4750
    %4754 = vset.pattern.permute.xlu0 0
    %4755 = vperm.xlu0 %4754, %v4561
    %v4756 = vpop.permute.xlu0 %4755
    %4759 = vset.pattern.permute.xlu0 0
    %4760 = vperm.xlu0 %4759, %v4562
    %v4761 = vpop.permute.xlu0 %4760
    %4764 = vset.pattern.permute.xlu0 0
    %4765 = vperm.xlu0 %4764, %v4563
    %v4766 = vpop.permute.xlu0 %4765
    %4769 = vset.pattern.permute.xlu0 0
    %4770 = vperm.xlu0 %4769, %v4564
    %v4771 = vpop.permute.xlu0 %4770
    %4774 = vset.pattern.permute.xlu0 0
    %4775 = vperm.xlu0 %4774, %v4565
    %v4776 = vpop.permute.xlu0 %4775
    %4779 = vset.pattern.permute.xlu0 0
    %4780 = vperm.xlu0 %4779, %v4566
    %v4781 = vpop.permute.xlu0 %4780
    %4784 = vset.pattern.permute.xlu0 0
    %4785 = vperm.xlu0 %4784, %v4567
    %v4786 = vpop.permute.xlu0 %4785
    %4789 = vset.pattern.permute.xlu0 0
    %4790 = vperm.xlu0 %4789, %v4568
    %v4791 = vpop.permute.xlu0 %4790
    %4794 = vset.pattern.permute.xlu0 0
    %4795 = vperm.xlu0 %4794, %v4569
    %v4796 = vpop.permute.xlu0 %4795
    %4799 = vset.pattern.permute.xlu0 0
    %4800 = vperm.xlu0 %4799, %v4570
    %v4801 = vpop.permute.xlu0 %4800
    %4804 = vset.pattern.permute.xlu0 0
    %4805 = vperm.xlu0 %4804, %v4571
    %v4806 = vpop.permute.xlu0 %4805
    %4809 = vset.pattern.permute.xlu0 0
    %4810 = vperm.xlu0 %4809, %v4572
    %v4811 = vpop.permute.xlu0 %4810
    %4814 = vset.pattern.permute.xlu0 0
    %4815 = vperm.xlu0 %4814, %v4573
    %v4816 = vpop.permute.xlu0 %4815
    %4819 = vset.pattern.permute.xlu0 0
    %4820 = vperm.xlu0 %4819, %v4574
    %v4821 = vpop.permute.xlu0 %4820
    %4824 = vset.pattern.permute.xlu0 0
    %4825 = vperm.xlu0 %4824, %v4575
    %v4826 = vpop.permute.xlu0 %4825
    %4829 = vset.pattern.permute.xlu0 0
    %4830 = vperm.xlu0 %4829, %v4576
    %v4831 = vpop.permute.xlu0 %4830
    %4834 = vset.pattern.permute.xlu0 0
    %4835 = vperm.xlu0 %4834, %v4577
    %v4836 = vpop.permute.xlu0 %4835
    %4839 = vset.pattern.permute.xlu0 0
    %4840 = vperm.xlu0 %4839, %v4578
    %v4841 = vpop.permute.xlu0 %4840
    %4844 = vset.pattern.permute.xlu0 0
    %4845 = vperm.xlu0 %4844, %v4579
    %v4846 = vpop.permute.xlu0 %4845
    %4849 = vset.pattern.permute.xlu0 0
    %4850 = vperm.xlu0 %4849, %v4580
    %v4851 = vpop.permute.xlu0 %4850
    %4854 = vset.pattern.permute.xlu0 0
    %4855 = vperm.xlu0 %4854, %v4581
    %v4856 = vpop.permute.xlu0 %4855
    %4859 = vset.pattern.permute.xlu0 0
    %4860 = vperm.xlu0 %4859, %v4582
    %v4861 = vpop.permute.xlu0 %4860
    %4864 = vset.pattern.permute.xlu0 0
    %4865 = vperm.xlu0 %4864, %v4583
    %v4866 = vpop.permute.xlu0 %4865
    %4869 = vset.pattern.permute.xlu0 0
    %4870 = vperm.xlu0 %4869, %v4584
    %v4871 = vpop.permute.xlu0 %4870
    %4874 = vset.pattern.permute.xlu0 0
    %4875 = vperm.xlu0 %4874, %v4585
    %v4876 = vpop.permute.xlu0 %4875
    %4879 = vset.pattern.permute.xlu0 0
    %4880 = vperm.xlu0 %4879, %v4586
    %v4881 = vpop.permute.xlu0 %4880
    %4884 = vset.pattern.permute.xlu0 0
    %4885 = vperm.xlu0 %4884, %v4587
    %v4886 = vpop.permute.xlu0 %4885
    %4889 = vset.pattern.permute.xlu0 0
    %4890 = vperm.xlu0 %4889, %v4588
    %v4891 = vpop.permute.xlu0 %4890
    %4894 = vset.pattern.permute.xlu0 0
    %4895 = vperm.xlu0 %4894, %v4589
    %v4896 = vpop.permute.xlu0 %4895
    %4899 = vset.pattern.permute.xlu0 0
    %4900 = vperm.xlu0 %4899, %v4590
    %v4901 = vpop.permute.xlu0 %4900
    %4904 = vset.pattern.permute.xlu0 0
    %4905 = vperm.xlu0 %4904, %v4591
    %v4906 = vpop.permute.xlu0 %4905
    %4909 = vset.pattern.permute.xlu0 0
    %4910 = vperm.xlu0 %4909, %v4592
    %v4911 = vpop.permute.xlu0 %4910
    %4914 = vset.pattern.permute.xlu0 0
    %4915 = vperm.xlu0 %4914, %v4593
    %v4916 = vpop.permute.xlu0 %4915
    %4919 = vset.pattern.permute.xlu0 0
    %4920 = vperm.xlu0 %4919, %v4594
    %v4921 = vpop.permute.xlu0 %4920
    %4924 = vset.pattern.permute.xlu0 0
    %4925 = vperm.xlu0 %4924, %v4595
    %v4926 = vpop.permute.xlu0 %4925
    %4929 = vset.pattern.permute.xlu0 0
    %4930 = vperm.xlu0 %4929, %v4596
    %v4931 = vpop.permute.xlu0 %4930
    %4934 = vset.pattern.permute.xlu0 0
    %4935 = vperm.xlu0 %4934, %v4597
    %v4936 = vpop.permute.xlu0 %4935
    %4939 = vset.pattern.permute.xlu0 0
    %4940 = vperm.xlu0 %4939, %v4598
    %v4941 = vpop.permute.xlu0 %4940
    %4944 = vset.pattern.permute.xlu0 0
    %4945 = vperm.xlu0 %4944, %v4599
    %v4946 = vpop.permute.xlu0 %4945
    %4949 = vset.pattern.permute.xlu0 0
    %4950 = vperm.xlu0 %4949, %v4600
    %v4951 = vpop.permute.xlu0 %4950
    %4954 = vset.pattern.permute.xlu0 0
    %4955 = vperm.xlu0 %4954, %v4601
    %v4956 = vpop.permute.xlu0 %4955
    %4959 = vset.pattern.permute.xlu0 0
    %4960 = vperm.xlu0 %4959, %v4602
    %v4961 = vpop.permute.xlu0 %4960
    %4964 = vset.pattern.permute.xlu0 0
    %4965 = vperm.xlu0 %4964, %v4603
    %v4966 = vpop.permute.xlu0 %4965
    %4969 = vset.pattern.permute.xlu0 0
    %4970 = vperm.xlu0 %4969, %v4604
    %v4971 = vpop.permute.xlu0 %4970
    %4974 = vset.pattern.permute.xlu0 0
    %4975 = vperm.xlu0 %4974, %v4605
    %v4976 = vpop.permute.xlu0 %4975
    %4979 = vset.pattern.permute.xlu0 0
    %4980 = vperm.xlu0 %4979, %v4606
    %v4981 = vpop.permute.xlu0 %4980
    %4984 = vset.pattern.permute.xlu0 0
    %4985 = vperm.xlu0 %4984, %v4607
    %v4986 = vpop.permute.xlu0 %4985
    %4989 = vset.pattern.permute.xlu0 0
    %4990 = vperm.xlu0 %4989, %v4608
    %v4991 = vpop.permute.xlu0 %4990
    %4994 = vset.pattern.permute.xlu0 0
    %4995 = vperm.xlu0 %4994, %v4609
    %v4996 = vpop.permute.xlu0 %4995
    %4999 = vset.pattern.permute.xlu0 0
    %5000 = vperm.xlu0 %4999, %v4610
    %v5001 = vpop.permute.xlu0 %5000
    %5004 = vset.pattern.permute.xlu0 0
    %5005 = vperm.xlu0 %5004, %v4611
    %v5006 = vpop.permute.xlu0 %5005
    %5009 = vset.pattern.permute.xlu0 0
    %5010 = vperm.xlu0 %5009, %v4612
    %v5011 = vpop.permute.xlu0 %5010
    %5014 = vset.pattern.permute.xlu0 0
    %5015 = vperm.xlu0 %5014, %v4613
    %v5016 = vpop.permute.xlu0 %5015
    %5019 = vset.pattern.permute.xlu0 0
    %5020 = vperm.xlu0 %5019, %v4614
    %v5021 = vpop.permute.xlu0 %5020
    %5024 = vset.pattern.permute.xlu0 0
    %5025 = vperm.xlu0 %5024, %v4615
    %v5026 = vpop.permute.xlu0 %5025
    %5029 = vset.pattern.permute.xlu0 0
    %5030 = vperm.xlu0 %5029, %v4616
    %v5031 = vpop.permute.xlu0 %5030
    %5034 = vset.pattern.permute.xlu0 0
    %5035 = vperm.xlu0 %5034, %v4617
    %v5036 = vpop.permute.xlu0 %5035
    %5039 = vset.pattern.permute.xlu0 0
    %5040 = vperm.xlu0 %5039, %v4618
    %v5041 = vpop.permute.xlu0 %5040
    %5044 = vset.pattern.permute.xlu0 0
    %5045 = vperm.xlu0 %5044, %v4619
    %v5046 = vpop.permute.xlu0 %5045
    %5049 = vset.pattern.permute.xlu0 0
    %5050 = vperm.xlu0 %5049, %v4620
    %v5051 = vpop.permute.xlu0 %5050
    %5054 = vset.pattern.permute.xlu0 0
    %5055 = vperm.xlu0 %5054, %v4621
    %v5056 = vpop.permute.xlu0 %5055
    %5059 = vset.pattern.permute.xlu0 0
    %5060 = vperm.xlu0 %5059, %v4622
    %v5061 = vpop.permute.xlu0 %5060
    %5064 = vset.pattern.permute.xlu0 0
    %5065 = vperm.xlu0 %5064, %v4623
    %v5066 = vpop.permute.xlu0 %5065
    %5069 = vset.pattern.permute.xlu0 0
    %5070 = vperm.xlu0 %5069, %v4624
    %v5071 = vpop.permute.xlu0 %5070
    %5074 = vset.pattern.permute.xlu0 0
    %5075 = vperm.xlu0 %5074, %v4625
    %v5076 = vpop.permute.xlu0 %5075
    %5079 = vset.pattern.permute.xlu0 0
    %5080 = vperm.xlu0 %5079, %v4626
    %v5081 = vpop.permute.xlu0 %5080
    %5084 = vset.pattern.permute.xlu0 0
    %5085 = vperm.xlu0 %5084, %v4627
    %v5086 = vpop.permute.xlu0 %5085
    %5089 = vset.pattern.permute.xlu0 0
    %5090 = vperm.xlu0 %5089, %v4628
    %v5091 = vpop.permute.xlu0 %5090
    %5094 = vset.pattern.permute.xlu0 0
    %5095 = vperm.xlu0 %5094, %v4629
    %v5096 = vpop.permute.xlu0 %5095
    %5099 = vset.pattern.permute.xlu0 0
    %5100 = vperm.xlu0 %5099, %v4630
    %v5101 = vpop.permute.xlu0 %5100
    %5104 = vset.pattern.permute.xlu0 0
    %5105 = vperm.xlu0 %5104, %v4631
    %v5106 = vpop.permute.xlu0 %5105
    %5109 = vset.pattern.permute.xlu0 0
    %5110 = vperm.xlu0 %5109, %v4632
    %v5111 = vpop.permute.xlu0 %5110
    %5114 = vset.pattern.permute.xlu0 0
    %5115 = vperm.xlu0 %5114, %v4633
    %v5116 = vpop.permute.xlu0 %5115
    %5119 = vset.pattern.permute.xlu0 0
    %5120 = vperm.xlu0 %5119, %v4634
    %v5121 = vpop.permute.xlu0 %5120
    %5124 = vset.pattern.permute.xlu0 0
    %5125 = vperm.xlu0 %5124, %v4635
    %v5126 = vpop.permute.xlu0 %5125
    %5129 = vset.pattern.permute.xlu0 0
    %5130 = vperm.xlu0 %5129, %v4636
    %v5131 = vpop.permute.xlu0 %5130
    %5134 = vset.pattern.permute.xlu0 0
    %5135 = vperm.xlu0 %5134, %v4637
    %v5136 = vpop.permute.xlu0 %5135
    %5139 = vset.pattern.permute.xlu0 0
    %5140 = vperm.xlu0 %5139, %v4638
    %v5141 = vpop.permute.xlu0 %5140
    %5144 = vset.pattern.permute.xlu0 0
    %5145 = vperm.xlu0 %5144, %v4639
    %v5146 = vpop.permute.xlu0 %5145
    %5149 = vset.pattern.permute.xlu0 0
    %5150 = vperm.xlu0 %5149, %v4640
    %v5151 = vpop.permute.xlu0 %5150
    %5154 = vset.pattern.permute.xlu0 0
    %5155 = vperm.xlu0 %5154, %v4641
    %v5156 = vpop.permute.xlu0 %5155
    %5159 = vset.pattern.permute.xlu0 0
    %5160 = vperm.xlu0 %5159, %v4642
    %v5161 = vpop.permute.xlu0 %5160
    %5164 = vset.pattern.permute.xlu0 0
    %5165 = vperm.xlu0 %5164, %v4643
    %v5166 = vpop.permute.xlu0 %5165
    %5169 = vset.pattern.permute.xlu0 0
    %5170 = vperm.xlu0 %5169, %v4644
    %v5171 = vpop.permute.xlu0 %5170
    %5174 = vset.pattern.permute.xlu0 0
    %5175 = vperm.xlu0 %5174, %v4645
    %v5176 = vpop.permute.xlu0 %5175
    %5179 = vset.pattern.permute.xlu0 0
    %5180 = vperm.xlu0 %5179, %v4646
    %v5181 = vpop.permute.xlu0 %5180
    %5184 = vset.pattern.permute.xlu0 0
    %5185 = vperm.xlu0 %5184, %v4647
    %v5186 = vpop.permute.xlu0 %5185
    %5189 = vset.pattern.permute.xlu0 0
    %5190 = vperm.xlu0 %5189, %v4648
    %v5191 = vpop.permute.xlu0 %5190
    %5194 = vset.pattern.permute.xlu0 0
    %5195 = vperm.xlu0 %5194, %v4649
    %v5196 = vpop.permute.xlu0 %5195
    %5199 = vset.pattern.permute.xlu0 0
    %5200 = vperm.xlu0 %5199, %v4650
    %v5201 = vpop.permute.xlu0 %5200
    %5204 = vset.pattern.permute.xlu0 0
    %5205 = vperm.xlu0 %5204, %v4651
    %v5206 = vpop.permute.xlu0 %5205
    %5209 = vset.pattern.permute.xlu0 0
    %5210 = vperm.xlu0 %5209, %v4652
    %v5211 = vpop.permute.xlu0 %5210
    %5214 = vset.pattern.permute.xlu0 0
    %5215 = vperm.xlu0 %5214, %v4653
    %v5216 = vpop.permute.xlu0 %5215
    %5219 = vset.pattern.permute.xlu0 0
    %5220 = vperm.xlu0 %5219, %v4654
    %v5221 = vpop.permute.xlu0 %5220
    %5224 = vset.pattern.permute.xlu0 0
    %5225 = vperm.xlu0 %5224, %v4655
    %v5226 = vpop.permute.xlu0 %5225
    %5229 = vset.pattern.permute.xlu0 0
    %5230 = vperm.xlu0 %5229, %v4656
    %v5231 = vpop.permute.xlu0 %5230
    %5234 = vset.pattern.permute.xlu0 0
    %5235 = vperm.xlu0 %5234, %v4657
    %v5236 = vpop.permute.xlu0 %5235
    %5239 = vset.pattern.permute.xlu0 0
    %5240 = vperm.xlu0 %5239, %v4658
    %v5241 = vpop.permute.xlu0 %5240
    %5244 = vset.pattern.permute.xlu0 0
    %5245 = vperm.xlu0 %5244, %v4659
    %v5246 = vpop.permute.xlu0 %5245
    %5249 = vset.pattern.permute.xlu0 0
    %5250 = vperm.xlu0 %5249, %v4660
    %v5251 = vpop.permute.xlu0 %5250
    %5254 = vset.pattern.permute.xlu0 0
    %5255 = vperm.xlu0 %5254, %v4661
    %v5256 = vpop.permute.xlu0 %5255
    %5259 = vset.pattern.permute.xlu0 0
    %5260 = vperm.xlu0 %5259, %v4662
    %v5261 = vpop.permute.xlu0 %5260
    %5264 = vset.pattern.permute.xlu0 0
    %5265 = vperm.xlu0 %5264, %v4663
    %v5266 = vpop.permute.xlu0 %5265
    %5269 = vset.pattern.permute.xlu0 0
    %5270 = vperm.xlu0 %5269, %v4664
    %v5271 = vpop.permute.xlu0 %5270
    %5274 = vset.pattern.permute.xlu0 0
    %5275 = vperm.xlu0 %5274, %v4665
    %v5276 = vpop.permute.xlu0 %5275
    %5279 = vset.pattern.permute.xlu0 0
    %5280 = vperm.xlu0 %5279, %v4666
    %v5281 = vpop.permute.xlu0 %5280
    %5284 = vset.pattern.permute.xlu0 0
    %5285 = vperm.xlu0 %5284, %v4667
    %v5286 = vpop.permute.xlu0 %5285
    %5289 = vset.pattern.permute.xlu0 0
    %5290 = vperm.xlu0 %5289, %v4668
    %v5291 = vpop.permute.xlu0 %5290
    %5294 = vset.pattern.permute.xlu0 0
    %5295 = vperm.xlu0 %5294, %v4669
    %v5296 = vpop.permute.xlu0 %5295
    %5299 = vset.pattern.permute.xlu0 0
    %5300 = vperm.xlu0 %5299, %v4670
    %v5301 = vpop.permute.xlu0 %5300
    %5304 = vset.pattern.permute.xlu0 0
    %5305 = vperm.xlu0 %5304, %v4671
    %v5306 = vpop.permute.xlu0 %5305
    %5309 = vset.pattern.permute.xlu0 0
    %5310 = vperm.xlu0 %5309, %v4672
    %v5311 = vpop.permute.xlu0 %5310
    %v5313 = vmul.f32 %v4676, %v824
    %v5314 = vmul.f32 %v4681, %v824
    %v5315 = vmul.f32 %v4686, %v824
    %v5316 = vmul.f32 %v4691, %v824
    %v5317 = vmul.f32 %v4696, %v824
    %v5318 = vmul.f32 %v4701, %v824
    %v5319 = vmul.f32 %v4706, %v824
    %v5320 = vmul.f32 %v4711, %v824
    %v5321 = vmul.f32 %v4716, %v824
    %v5322 = vmul.f32 %v4721, %v824
    %v5323 = vmul.f32 %v4726, %v824
    %v5324 = vmul.f32 %v4731, %v824
    %v5325 = vmul.f32 %v4736, %v824
    %v5326 = vmul.f32 %v4741, %v824
    %v5327 = vmul.f32 %v4746, %v824
    %v5328 = vmul.f32 %v4751, %v824
    %v5329 = vmul.f32 %v4756, %v824
    %v5330 = vmul.f32 %v4761, %v824
    %v5331 = vmul.f32 %v4766, %v824
    %v5332 = vmul.f32 %v4771, %v824
    %v5333 = vmul.f32 %v4776, %v824
    %v5334 = vmul.f32 %v4781, %v824
    %v5335 = vmul.f32 %v4786, %v824
    %v5336 = vmul.f32 %v4791, %v824
    %v5337 = vmul.f32 %v4796, %v824
    %v5338 = vmul.f32 %v4801, %v824
    %v5339 = vmul.f32 %v4806, %v824
    %v5340 = vmul.f32 %v4811, %v824
    %v5341 = vmul.f32 %v4816, %v824
    %v5342 = vmul.f32 %v4821, %v824
    %v5343 = vmul.f32 %v4826, %v824
    %v5344 = vmul.f32 %v4831, %v824
    %v5345 = vmul.f32 %v4836, %v824
    %v5346 = vmul.f32 %v4841, %v824
    %v5347 = vmul.f32 %v4846, %v824
    %v5348 = vmul.f32 %v4851, %v824
    %v5349 = vmul.f32 %v4856, %v824
    %v5350 = vmul.f32 %v4861, %v824
    %v5351 = vmul.f32 %v4866, %v824
    %v5352 = vmul.f32 %v4871, %v824
    %v5353 = vmul.f32 %v4876, %v824
    %v5354 = vmul.f32 %v4881, %v824
    %v5355 = vmul.f32 %v4886, %v824
    %v5356 = vmul.f32 %v4891, %v824
    %v5357 = vmul.f32 %v4896, %v824
    %v5358 = vmul.f32 %v4901, %v824
    %v5359 = vmul.f32 %v4906, %v824
    %v5360 = vmul.f32 %v4911, %v824
    %v5361 = vmul.f32 %v4916, %v824
    %v5362 = vmul.f32 %v4921, %v824
    %v5363 = vmul.f32 %v4926, %v824
    %v5364 = vmul.f32 %v4931, %v824
    %v5365 = vmul.f32 %v4936, %v824
    %v5366 = vmul.f32 %v4941, %v824
    %v5367 = vmul.f32 %v4946, %v824
    %v5368 = vmul.f32 %v4951, %v824
    %v5369 = vmul.f32 %v4956, %v824
    %v5370 = vmul.f32 %v4961, %v824
    %v5371 = vmul.f32 %v4966, %v824
    %v5372 = vmul.f32 %v4971, %v824
    %v5373 = vmul.f32 %v4976, %v824
    %v5374 = vmul.f32 %v4981, %v824
    %v5375 = vmul.f32 %v4986, %v824
    %v5376 = vmul.f32 %v4991, %v824
    %v5377 = vmul.f32 %v4996, %v824
    %v5378 = vmul.f32 %v5001, %v824
    %v5379 = vmul.f32 %v5006, %v824
    %v5380 = vmul.f32 %v5011, %v824
    %v5381 = vmul.f32 %v5016, %v824
    %v5382 = vmul.f32 %v5021, %v824
    %v5383 = vmul.f32 %v5026, %v824
    %v5384 = vmul.f32 %v5031, %v824
    %v5385 = vmul.f32 %v5036, %v824
    %v5386 = vmul.f32 %v5041, %v824
    %v5387 = vmul.f32 %v5046, %v824
    %v5388 = vmul.f32 %v5051, %v824
    %v5389 = vmul.f32 %v5056, %v824
    %v5390 = vmul.f32 %v5061, %v824
    %v5391 = vmul.f32 %v5066, %v824
    %v5392 = vmul.f32 %v5071, %v824
    %v5393 = vmul.f32 %v5076, %v824
    %v5394 = vmul.f32 %v5081, %v824
    %v5395 = vmul.f32 %v5086, %v824
    %v5396 = vmul.f32 %v5091, %v824
    %v5397 = vmul.f32 %v5096, %v824
    %v5398 = vmul.f32 %v5101, %v824
    %v5399 = vmul.f32 %v5106, %v824
    %v5400 = vmul.f32 %v5111, %v824
    %v5401 = vmul.f32 %v5116, %v824
    %v5402 = vmul.f32 %v5121, %v824
    %v5403 = vmul.f32 %v5126, %v824
    %v5404 = vmul.f32 %v5131, %v824
    %v5405 = vmul.f32 %v5136, %v824
    %v5406 = vmul.f32 %v5141, %v824
    %v5407 = vmul.f32 %v5146, %v824
    %v5408 = vmul.f32 %v5151, %v824
    %v5409 = vmul.f32 %v5156, %v824
    %v5410 = vmul.f32 %v5161, %v824
    %v5411 = vmul.f32 %v5166, %v824
    %v5412 = vmul.f32 %v5171, %v824
    %v5413 = vmul.f32 %v5176, %v824
    %v5414 = vmul.f32 %v5181, %v824
    %v5415 = vmul.f32 %v5186, %v824
    %v5416 = vmul.f32 %v5191, %v824
    %v5417 = vmul.f32 %v5196, %v824
    %v5418 = vmul.f32 %v5201, %v824
    %v5419 = vmul.f32 %v5206, %v824
    %v5420 = vmul.f32 %v5211, %v824
    %v5421 = vmul.f32 %v5216, %v824
    %v5422 = vmul.f32 %v5221, %v824
    %v5423 = vmul.f32 %v5226, %v824
    %v5424 = vmul.f32 %v5231, %v824
    %v5425 = vmul.f32 %v5236, %v824
    %v5426 = vmul.f32 %v5241, %v824
    %v5427 = vmul.f32 %v5246, %v824
    %v5428 = vmul.f32 %v5251, %v824
    %v5429 = vmul.f32 %v5256, %v824
    %v5430 = vmul.f32 %v5261, %v824
    %v5431 = vmul.f32 %v5266, %v824
    %v5432 = vmul.f32 %v5271, %v824
    %v5433 = vmul.f32 %v5276, %v824
    %v5434 = vmul.f32 %v5281, %v824
    %v5435 = vmul.f32 %v5286, %v824
    %v5436 = vmul.f32 %v5291, %v824
    %v5437 = vmul.f32 %v5296, %v824
    %v5438 = vmul.f32 %v5301, %v824
    %v5439 = vmul.f32 %v5306, %v824
    %v5440 = vmul.f32 %v5311, %v824
    %5441 = vset.pattern.permute.xlu0 1
    %5442 = vperm.xlu0 %5441, %v4545
    %v5443 = vpop.permute.xlu0 %5442
    %5445 = vset.pattern.permute.xlu0 1
    %5446 = vperm.xlu0 %5445, %v4546
    %v5447 = vpop.permute.xlu0 %5446
    %5449 = vset.pattern.permute.xlu0 1
    %5450 = vperm.xlu0 %5449, %v4547
    %v5451 = vpop.permute.xlu0 %5450
    %5453 = vset.pattern.permute.xlu0 1
    %5454 = vperm.xlu0 %5453, %v4548
    %v5455 = vpop.permute.xlu0 %5454
    %5457 = vset.pattern.permute.xlu0 1
    %5458 = vperm.xlu0 %5457, %v4549
    %v5459 = vpop.permute.xlu0 %5458
    %5461 = vset.pattern.permute.xlu0 1
    %5462 = vperm.xlu0 %5461, %v4550
    %v5463 = vpop.permute.xlu0 %5462
    %5465 = vset.pattern.permute.xlu0 1
    %5466 = vperm.xlu0 %5465, %v4551
    %v5467 = vpop.permute.xlu0 %5466
    %5469 = vset.pattern.permute.xlu0 1
    %5470 = vperm.xlu0 %5469, %v4552
    %v5471 = vpop.permute.xlu0 %5470
    %5473 = vset.pattern.permute.xlu0 1
    %5474 = vperm.xlu0 %5473, %v4553
    %v5475 = vpop.permute.xlu0 %5474
    %5477 = vset.pattern.permute.xlu0 1
    %5478 = vperm.xlu0 %5477, %v4554
    %v5479 = vpop.permute.xlu0 %5478
    %5481 = vset.pattern.permute.xlu0 1
    %5482 = vperm.xlu0 %5481, %v4555
    %v5483 = vpop.permute.xlu0 %5482
    %5485 = vset.pattern.permute.xlu0 1
    %5486 = vperm.xlu0 %5485, %v4556
    %v5487 = vpop.permute.xlu0 %5486
    %5489 = vset.pattern.permute.xlu0 1
    %5490 = vperm.xlu0 %5489, %v4557
    %v5491 = vpop.permute.xlu0 %5490
    %5493 = vset.pattern.permute.xlu0 1
    %5494 = vperm.xlu0 %5493, %v4558
    %v5495 = vpop.permute.xlu0 %5494
    %5497 = vset.pattern.permute.xlu0 1
    %5498 = vperm.xlu0 %5497, %v4559
    %v5499 = vpop.permute.xlu0 %5498
    %5501 = vset.pattern.permute.xlu0 1
    %5502 = vperm.xlu0 %5501, %v4560
    %v5503 = vpop.permute.xlu0 %5502
    %5505 = vset.pattern.permute.xlu0 1
    %5506 = vperm.xlu0 %5505, %v4561
    %v5507 = vpop.permute.xlu0 %5506
    %5509 = vset.pattern.permute.xlu0 1
    %5510 = vperm.xlu0 %5509, %v4562
    %v5511 = vpop.permute.xlu0 %5510
    %5513 = vset.pattern.permute.xlu0 1
    %5514 = vperm.xlu0 %5513, %v4563
    %v5515 = vpop.permute.xlu0 %5514
    %5517 = vset.pattern.permute.xlu0 1
    %5518 = vperm.xlu0 %5517, %v4564
    %v5519 = vpop.permute.xlu0 %5518
    %5521 = vset.pattern.permute.xlu0 1
    %5522 = vperm.xlu0 %5521, %v4565
    %v5523 = vpop.permute.xlu0 %5522
    %5525 = vset.pattern.permute.xlu0 1
    %5526 = vperm.xlu0 %5525, %v4566
    %v5527 = vpop.permute.xlu0 %5526
    %5529 = vset.pattern.permute.xlu0 1
    %5530 = vperm.xlu0 %5529, %v4567
    %v5531 = vpop.permute.xlu0 %5530
    %5533 = vset.pattern.permute.xlu0 1
    %5534 = vperm.xlu0 %5533, %v4568
    %v5535 = vpop.permute.xlu0 %5534
    %5537 = vset.pattern.permute.xlu0 1
    %5538 = vperm.xlu0 %5537, %v4569
    %v5539 = vpop.permute.xlu0 %5538
    %5541 = vset.pattern.permute.xlu0 1
    %5542 = vperm.xlu0 %5541, %v4570
    %v5543 = vpop.permute.xlu0 %5542
    %5545 = vset.pattern.permute.xlu0 1
    %5546 = vperm.xlu0 %5545, %v4571
    %v5547 = vpop.permute.xlu0 %5546
    %5549 = vset.pattern.permute.xlu0 1
    %5550 = vperm.xlu0 %5549, %v4572
    %v5551 = vpop.permute.xlu0 %5550
    %5553 = vset.pattern.permute.xlu0 1
    %5554 = vperm.xlu0 %5553, %v4573
    %v5555 = vpop.permute.xlu0 %5554
    %5557 = vset.pattern.permute.xlu0 1
    %5558 = vperm.xlu0 %5557, %v4574
    %v5559 = vpop.permute.xlu0 %5558
    %5561 = vset.pattern.permute.xlu0 1
    %5562 = vperm.xlu0 %5561, %v4575
    %v5563 = vpop.permute.xlu0 %5562
    %5565 = vset.pattern.permute.xlu0 1
    %5566 = vperm.xlu0 %5565, %v4576
    %v5567 = vpop.permute.xlu0 %5566
    %5569 = vset.pattern.permute.xlu0 1
    %5570 = vperm.xlu0 %5569, %v4577
    %v5571 = vpop.permute.xlu0 %5570
    %5573 = vset.pattern.permute.xlu0 1
    %5574 = vperm.xlu0 %5573, %v4578
    %v5575 = vpop.permute.xlu0 %5574
    %5577 = vset.pattern.permute.xlu0 1
    %5578 = vperm.xlu0 %5577, %v4579
    %v5579 = vpop.permute.xlu0 %5578
    %5581 = vset.pattern.permute.xlu0 1
    %5582 = vperm.xlu0 %5581, %v4580
    %v5583 = vpop.permute.xlu0 %5582
    %5585 = vset.pattern.permute.xlu0 1
    %5586 = vperm.xlu0 %5585, %v4581
    %v5587 = vpop.permute.xlu0 %5586
    %5589 = vset.pattern.permute.xlu0 1
    %5590 = vperm.xlu0 %5589, %v4582
    %v5591 = vpop.permute.xlu0 %5590
    %5593 = vset.pattern.permute.xlu0 1
    %5594 = vperm.xlu0 %5593, %v4583
    %v5595 = vpop.permute.xlu0 %5594
    %5597 = vset.pattern.permute.xlu0 1
    %5598 = vperm.xlu0 %5597, %v4584
    %v5599 = vpop.permute.xlu0 %5598
    %5601 = vset.pattern.permute.xlu0 1
    %5602 = vperm.xlu0 %5601, %v4585
    %v5603 = vpop.permute.xlu0 %5602
    %5605 = vset.pattern.permute.xlu0 1
    %5606 = vperm.xlu0 %5605, %v4586
    %v5607 = vpop.permute.xlu0 %5606
    %5609 = vset.pattern.permute.xlu0 1
    %5610 = vperm.xlu0 %5609, %v4587
    %v5611 = vpop.permute.xlu0 %5610
    %5613 = vset.pattern.permute.xlu0 1
    %5614 = vperm.xlu0 %5613, %v4588
    %v5615 = vpop.permute.xlu0 %5614
    %5617 = vset.pattern.permute.xlu0 1
    %5618 = vperm.xlu0 %5617, %v4589
    %v5619 = vpop.permute.xlu0 %5618
    %5621 = vset.pattern.permute.xlu0 1
    %5622 = vperm.xlu0 %5621, %v4590
    %v5623 = vpop.permute.xlu0 %5622
    %5625 = vset.pattern.permute.xlu0 1
    %5626 = vperm.xlu0 %5625, %v4591
    %v5627 = vpop.permute.xlu0 %5626
    %5629 = vset.pattern.permute.xlu0 1
    %5630 = vperm.xlu0 %5629, %v4592
    %v5631 = vpop.permute.xlu0 %5630
    %5633 = vset.pattern.permute.xlu0 1
    %5634 = vperm.xlu0 %5633, %v4593
    %v5635 = vpop.permute.xlu0 %5634
    %5637 = vset.pattern.permute.xlu0 1
    %5638 = vperm.xlu0 %5637, %v4594
    %v5639 = vpop.permute.xlu0 %5638
    %5641 = vset.pattern.permute.xlu0 1
    %5642 = vperm.xlu0 %5641, %v4595
    %v5643 = vpop.permute.xlu0 %5642
    %5645 = vset.pattern.permute.xlu0 1
    %5646 = vperm.xlu0 %5645, %v4596
    %v5647 = vpop.permute.xlu0 %5646
    %5649 = vset.pattern.permute.xlu0 1
    %5650 = vperm.xlu0 %5649, %v4597
    %v5651 = vpop.permute.xlu0 %5650
    %5653 = vset.pattern.permute.xlu0 1
    %5654 = vperm.xlu0 %5653, %v4598
    %v5655 = vpop.permute.xlu0 %5654
    %5657 = vset.pattern.permute.xlu0 1
    %5658 = vperm.xlu0 %5657, %v4599
    %v5659 = vpop.permute.xlu0 %5658
    %5661 = vset.pattern.permute.xlu0 1
    %5662 = vperm.xlu0 %5661, %v4600
    %v5663 = vpop.permute.xlu0 %5662
    %5665 = vset.pattern.permute.xlu0 1
    %5666 = vperm.xlu0 %5665, %v4601
    %v5667 = vpop.permute.xlu0 %5666
    %5669 = vset.pattern.permute.xlu0 1
    %5670 = vperm.xlu0 %5669, %v4602
    %v5671 = vpop.permute.xlu0 %5670
    %5673 = vset.pattern.permute.xlu0 1
    %5674 = vperm.xlu0 %5673, %v4603
    %v5675 = vpop.permute.xlu0 %5674
    %5677 = vset.pattern.permute.xlu0 1
    %5678 = vperm.xlu0 %5677, %v4604
    %v5679 = vpop.permute.xlu0 %5678
    %5681 = vset.pattern.permute.xlu0 1
    %5682 = vperm.xlu0 %5681, %v4605
    %v5683 = vpop.permute.xlu0 %5682
    %5685 = vset.pattern.permute.xlu0 1
    %5686 = vperm.xlu0 %5685, %v4606
    %v5687 = vpop.permute.xlu0 %5686
    %5689 = vset.pattern.permute.xlu0 1
    %5690 = vperm.xlu0 %5689, %v4607
    %v5691 = vpop.permute.xlu0 %5690
    %5693 = vset.pattern.permute.xlu0 1
    %5694 = vperm.xlu0 %5693, %v4608
    %v5695 = vpop.permute.xlu0 %5694
    %5697 = vset.pattern.permute.xlu0 1
    %5698 = vperm.xlu0 %5697, %v4609
    %v5699 = vpop.permute.xlu0 %5698
    %5701 = vset.pattern.permute.xlu0 1
    %5702 = vperm.xlu0 %5701, %v4610
    %v5703 = vpop.permute.xlu0 %5702
    %5705 = vset.pattern.permute.xlu0 1
    %5706 = vperm.xlu0 %5705, %v4611
    %v5707 = vpop.permute.xlu0 %5706
    %5709 = vset.pattern.permute.xlu0 1
    %5710 = vperm.xlu0 %5709, %v4612
    %v5711 = vpop.permute.xlu0 %5710
    %5713 = vset.pattern.permute.xlu0 1
    %5714 = vperm.xlu0 %5713, %v4613
    %v5715 = vpop.permute.xlu0 %5714
    %5717 = vset.pattern.permute.xlu0 1
    %5718 = vperm.xlu0 %5717, %v4614
    %v5719 = vpop.permute.xlu0 %5718
    %5721 = vset.pattern.permute.xlu0 1
    %5722 = vperm.xlu0 %5721, %v4615
    %v5723 = vpop.permute.xlu0 %5722
    %5725 = vset.pattern.permute.xlu0 1
    %5726 = vperm.xlu0 %5725, %v4616
    %v5727 = vpop.permute.xlu0 %5726
    %5729 = vset.pattern.permute.xlu0 1
    %5730 = vperm.xlu0 %5729, %v4617
    %v5731 = vpop.permute.xlu0 %5730
    %5733 = vset.pattern.permute.xlu0 1
    %5734 = vperm.xlu0 %5733, %v4618
    %v5735 = vpop.permute.xlu0 %5734
    %5737 = vset.pattern.permute.xlu0 1
    %5738 = vperm.xlu0 %5737, %v4619
    %v5739 = vpop.permute.xlu0 %5738
    %5741 = vset.pattern.permute.xlu0 1
    %5742 = vperm.xlu0 %5741, %v4620
    %v5743 = vpop.permute.xlu0 %5742
    %5745 = vset.pattern.permute.xlu0 1
    %5746 = vperm.xlu0 %5745, %v4621
    %v5747 = vpop.permute.xlu0 %5746
    %5749 = vset.pattern.permute.xlu0 1
    %5750 = vperm.xlu0 %5749, %v4622
    %v5751 = vpop.permute.xlu0 %5750
    %5753 = vset.pattern.permute.xlu0 1
    %5754 = vperm.xlu0 %5753, %v4623
    %v5755 = vpop.permute.xlu0 %5754
    %5757 = vset.pattern.permute.xlu0 1
    %5758 = vperm.xlu0 %5757, %v4624
    %v5759 = vpop.permute.xlu0 %5758
    %5761 = vset.pattern.permute.xlu0 1
    %5762 = vperm.xlu0 %5761, %v4625
    %v5763 = vpop.permute.xlu0 %5762
    %5765 = vset.pattern.permute.xlu0 1
    %5766 = vperm.xlu0 %5765, %v4626
    %v5767 = vpop.permute.xlu0 %5766
    %5769 = vset.pattern.permute.xlu0 1
    %5770 = vperm.xlu0 %5769, %v4627
    %v5771 = vpop.permute.xlu0 %5770
    %5773 = vset.pattern.permute.xlu0 1
    %5774 = vperm.xlu0 %5773, %v4628
    %v5775 = vpop.permute.xlu0 %5774
    %5777 = vset.pattern.permute.xlu0 1
    %5778 = vperm.xlu0 %5777, %v4629
    %v5779 = vpop.permute.xlu0 %5778
    %5781 = vset.pattern.permute.xlu0 1
    %5782 = vperm.xlu0 %5781, %v4630
    %v5783 = vpop.permute.xlu0 %5782
    %5785 = vset.pattern.permute.xlu0 1
    %5786 = vperm.xlu0 %5785, %v4631
    %v5787 = vpop.permute.xlu0 %5786
    %5789 = vset.pattern.permute.xlu0 1
    %5790 = vperm.xlu0 %5789, %v4632
    %v5791 = vpop.permute.xlu0 %5790
    %5793 = vset.pattern.permute.xlu0 1
    %5794 = vperm.xlu0 %5793, %v4633
    %v5795 = vpop.permute.xlu0 %5794
    %5797 = vset.pattern.permute.xlu0 1
    %5798 = vperm.xlu0 %5797, %v4634
    %v5799 = vpop.permute.xlu0 %5798
    %5801 = vset.pattern.permute.xlu0 1
    %5802 = vperm.xlu0 %5801, %v4635
    %v5803 = vpop.permute.xlu0 %5802
    %5805 = vset.pattern.permute.xlu0 1
    %5806 = vperm.xlu0 %5805, %v4636
    %v5807 = vpop.permute.xlu0 %5806
    %5809 = vset.pattern.permute.xlu0 1
    %5810 = vperm.xlu0 %5809, %v4637
    %v5811 = vpop.permute.xlu0 %5810
    %5813 = vset.pattern.permute.xlu0 1
    %5814 = vperm.xlu0 %5813, %v4638
    %v5815 = vpop.permute.xlu0 %5814
    %5817 = vset.pattern.permute.xlu0 1
    %5818 = vperm.xlu0 %5817, %v4639
    %v5819 = vpop.permute.xlu0 %5818
    %5821 = vset.pattern.permute.xlu0 1
    %5822 = vperm.xlu0 %5821, %v4640
    %v5823 = vpop.permute.xlu0 %5822
    %5825 = vset.pattern.permute.xlu0 1
    %5826 = vperm.xlu0 %5825, %v4641
    %v5827 = vpop.permute.xlu0 %5826
    %5829 = vset.pattern.permute.xlu0 1
    %5830 = vperm.xlu0 %5829, %v4642
    %v5831 = vpop.permute.xlu0 %5830
    %5833 = vset.pattern.permute.xlu0 1
    %5834 = vperm.xlu0 %5833, %v4643
    %v5835 = vpop.permute.xlu0 %5834
    %5837 = vset.pattern.permute.xlu0 1
    %5838 = vperm.xlu0 %5837, %v4644
    %v5839 = vpop.permute.xlu0 %5838
    %5841 = vset.pattern.permute.xlu0 1
    %5842 = vperm.xlu0 %5841, %v4645
    %v5843 = vpop.permute.xlu0 %5842
    %5845 = vset.pattern.permute.xlu0 1
    %5846 = vperm.xlu0 %5845, %v4646
    %v5847 = vpop.permute.xlu0 %5846
    %5849 = vset.pattern.permute.xlu0 1
    %5850 = vperm.xlu0 %5849, %v4647
    %v5851 = vpop.permute.xlu0 %5850
    %5853 = vset.pattern.permute.xlu0 1
    %5854 = vperm.xlu0 %5853, %v4648
    %v5855 = vpop.permute.xlu0 %5854
    %5857 = vset.pattern.permute.xlu0 1
    %5858 = vperm.xlu0 %5857, %v4649
    %v5859 = vpop.permute.xlu0 %5858
    %5861 = vset.pattern.permute.xlu0 1
    %5862 = vperm.xlu0 %5861, %v4650
    %v5863 = vpop.permute.xlu0 %5862
    %5865 = vset.pattern.permute.xlu0 1
    %5866 = vperm.xlu0 %5865, %v4651
    %v5867 = vpop.permute.xlu0 %5866
    %5869 = vset.pattern.permute.xlu0 1
    %5870 = vperm.xlu0 %5869, %v4652
    %v5871 = vpop.permute.xlu0 %5870
    %5873 = vset.pattern.permute.xlu0 1
    %5874 = vperm.xlu0 %5873, %v4653
    %v5875 = vpop.permute.xlu0 %5874
    %5877 = vset.pattern.permute.xlu0 1
    %5878 = vperm.xlu0 %5877, %v4654
    %v5879 = vpop.permute.xlu0 %5878
    %5881 = vset.pattern.permute.xlu0 1
    %5882 = vperm.xlu0 %5881, %v4655
    %v5883 = vpop.permute.xlu0 %5882
    %5885 = vset.pattern.permute.xlu0 1
    %5886 = vperm.xlu0 %5885, %v4656
    %v5887 = vpop.permute.xlu0 %5886
    %5889 = vset.pattern.permute.xlu0 1
    %5890 = vperm.xlu0 %5889, %v4657
    %v5891 = vpop.permute.xlu0 %5890
    %5893 = vset.pattern.permute.xlu0 1
    %5894 = vperm.xlu0 %5893, %v4658
    %v5895 = vpop.permute.xlu0 %5894
    %5897 = vset.pattern.permute.xlu0 1
    %5898 = vperm.xlu0 %5897, %v4659
    %v5899 = vpop.permute.xlu0 %5898
    %5901 = vset.pattern.permute.xlu0 1
    %5902 = vperm.xlu0 %5901, %v4660
    %v5903 = vpop.permute.xlu0 %5902
    %5905 = vset.pattern.permute.xlu0 1
    %5906 = vperm.xlu0 %5905, %v4661
    %v5907 = vpop.permute.xlu0 %5906
    %5909 = vset.pattern.permute.xlu0 1
    %5910 = vperm.xlu0 %5909, %v4662
    %v5911 = vpop.permute.xlu0 %5910
    %5913 = vset.pattern.permute.xlu0 1
    %5914 = vperm.xlu0 %5913, %v4663
    %v5915 = vpop.permute.xlu0 %5914
    %5917 = vset.pattern.permute.xlu0 1
    %5918 = vperm.xlu0 %5917, %v4664
    %v5919 = vpop.permute.xlu0 %5918
    %5921 = vset.pattern.permute.xlu0 1
    %5922 = vperm.xlu0 %5921, %v4665
    %v5923 = vpop.permute.xlu0 %5922
    %5925 = vset.pattern.permute.xlu0 1
    %5926 = vperm.xlu0 %5925, %v4666
    %v5927 = vpop.permute.xlu0 %5926
    %5929 = vset.pattern.permute.xlu0 1
    %5930 = vperm.xlu0 %5929, %v4667
    %v5931 = vpop.permute.xlu0 %5930
    %5933 = vset.pattern.permute.xlu0 1
    %5934 = vperm.xlu0 %5933, %v4668
    %v5935 = vpop.permute.xlu0 %5934
    %5937 = vset.pattern.permute.xlu0 1
    %5938 = vperm.xlu0 %5937, %v4669
    %v5939 = vpop.permute.xlu0 %5938
    %5941 = vset.pattern.permute.xlu0 1
    %5942 = vperm.xlu0 %5941, %v4670
    %v5943 = vpop.permute.xlu0 %5942
    %5945 = vset.pattern.permute.xlu0 1
    %5946 = vperm.xlu0 %5945, %v4671
    %v5947 = vpop.permute.xlu0 %5946
    %5949 = vset.pattern.permute.xlu0 1
    %5950 = vperm.xlu0 %5949, %v4672
    %v5951 = vpop.permute.xlu0 %5950
    %v5953 = vmul.f32 %v5443, %v1468
    %v5954 = vmul.f32 %v5447, %v1468
    %v5955 = vmul.f32 %v5451, %v1468
    %v5956 = vmul.f32 %v5455, %v1468
    %v5957 = vmul.f32 %v5459, %v1468
    %v5958 = vmul.f32 %v5463, %v1468
    %v5959 = vmul.f32 %v5467, %v1468
    %v5960 = vmul.f32 %v5471, %v1468
    %v5961 = vmul.f32 %v5475, %v1468
    %v5962 = vmul.f32 %v5479, %v1468
    %v5963 = vmul.f32 %v5483, %v1468
    %v5964 = vmul.f32 %v5487, %v1468
    %v5965 = vmul.f32 %v5491, %v1468
    %v5966 = vmul.f32 %v5495, %v1468
    %v5967 = vmul.f32 %v5499, %v1468
    %v5968 = vmul.f32 %v5503, %v1468
    %v5969 = vmul.f32 %v5507, %v1468
    %v5970 = vmul.f32 %v5511, %v1468
    %v5971 = vmul.f32 %v5515, %v1468
    %v5972 = vmul.f32 %v5519, %v1468
    %v5973 = vmul.f32 %v5523, %v1468
    %v5974 = vmul.f32 %v5527, %v1468
    %v5975 = vmul.f32 %v5531, %v1468
    %v5976 = vmul.f32 %v5535, %v1468
    %v5977 = vmul.f32 %v5539, %v1468
    %v5978 = vmul.f32 %v5543, %v1468
    %v5979 = vmul.f32 %v5547, %v1468
    %v5980 = vmul.f32 %v5551, %v1468
    %v5981 = vmul.f32 %v5555, %v1468
    %v5982 = vmul.f32 %v5559, %v1468
    %v5983 = vmul.f32 %v5563, %v1468
    %v5984 = vmul.f32 %v5567, %v1468
    %v5985 = vmul.f32 %v5571, %v1468
    %v5986 = vmul.f32 %v5575, %v1468
    %v5987 = vmul.f32 %v5579, %v1468
    %v5988 = vmul.f32 %v5583, %v1468
    %v5989 = vmul.f32 %v5587, %v1468
    %v5990 = vmul.f32 %v5591, %v1468
    %v5991 = vmul.f32 %v5595, %v1468
    %v5992 = vmul.f32 %v5599, %v1468
    %v5993 = vmul.f32 %v5603, %v1468
    %v5994 = vmul.f32 %v5607, %v1468
    %v5995 = vmul.f32 %v5611, %v1468
    %v5996 = vmul.f32 %v5615, %v1468
    %v5997 = vmul.f32 %v5619, %v1468
    %v5998 = vmul.f32 %v5623, %v1468
    %v5999 = vmul.f32 %v5627, %v1468
    %v6000 = vmul.f32 %v5631, %v1468
    %v6001 = vmul.f32 %v5635, %v1468
    %v6002 = vmul.f32 %v5639, %v1468
    %v6003 = vmul.f32 %v5643, %v1468
    %v6004 = vmul.f32 %v5647, %v1468
    %v6005 = vmul.f32 %v5651, %v1468
    %v6006 = vmul.f32 %v5655, %v1468
    %v6007 = vmul.f32 %v5659, %v1468
    %v6008 = vmul.f32 %v5663, %v1468
    %v6009 = vmul.f32 %v5667, %v1468
    %v6010 = vmul.f32 %v5671, %v1468
    %v6011 = vmul.f32 %v5675, %v1468
    %v6012 = vmul.f32 %v5679, %v1468
    %v6013 = vmul.f32 %v5683, %v1468
    %v6014 = vmul.f32 %v5687, %v1468
    %v6015 = vmul.f32 %v5691, %v1468
    %v6016 = vmul.f32 %v5695, %v1468
    %v6017 = vmul.f32 %v5699, %v1468
    %v6018 = vmul.f32 %v5703, %v1468
    %v6019 = vmul.f32 %v5707, %v1468
    %v6020 = vmul.f32 %v5711, %v1468
    %v6021 = vmul.f32 %v5715, %v1468
    %v6022 = vmul.f32 %v5719, %v1468
    %v6023 = vmul.f32 %v5723, %v1468
    %v6024 = vmul.f32 %v5727, %v1468
    %v6025 = vmul.f32 %v5731, %v1468
    %v6026 = vmul.f32 %v5735, %v1468
    %v6027 = vmul.f32 %v5739, %v1468
    %v6028 = vmul.f32 %v5743, %v1468
    %v6029 = vmul.f32 %v5747, %v1468
    %v6030 = vmul.f32 %v5751, %v1468
    %v6031 = vmul.f32 %v5755, %v1468
    %v6032 = vmul.f32 %v5759, %v1468
    %v6033 = vmul.f32 %v5763, %v1468
    %v6034 = vmul.f32 %v5767, %v1468
    %v6035 = vmul.f32 %v5771, %v1468
    %v6036 = vmul.f32 %v5775, %v1468
    %v6037 = vmul.f32 %v5779, %v1468
    %v6038 = vmul.f32 %v5783, %v1468
    %v6039 = vmul.f32 %v5787, %v1468
    %v6040 = vmul.f32 %v5791, %v1468
    %v6041 = vmul.f32 %v5795, %v1468
    %v6042 = vmul.f32 %v5799, %v1468
    %v6043 = vmul.f32 %v5803, %v1468
    %v6044 = vmul.f32 %v5807, %v1468
    %v6045 = vmul.f32 %v5811, %v1468
    %v6046 = vmul.f32 %v5815, %v1468
    %v6047 = vmul.f32 %v5819, %v1468
    %v6048 = vmul.f32 %v5823, %v1468
    %v6049 = vmul.f32 %v5827, %v1468
    %v6050 = vmul.f32 %v5831, %v1468
    %v6051 = vmul.f32 %v5835, %v1468
    %v6052 = vmul.f32 %v5839, %v1468
    %v6053 = vmul.f32 %v5843, %v1468
    %v6054 = vmul.f32 %v5847, %v1468
    %v6055 = vmul.f32 %v5851, %v1468
    %v6056 = vmul.f32 %v5855, %v1468
    %v6057 = vmul.f32 %v5859, %v1468
    %v6058 = vmul.f32 %v5863, %v1468
    %v6059 = vmul.f32 %v5867, %v1468
    %v6060 = vmul.f32 %v5871, %v1468
    %v6061 = vmul.f32 %v5875, %v1468
    %v6062 = vmul.f32 %v5879, %v1468
    %v6063 = vmul.f32 %v5883, %v1468
    %v6064 = vmul.f32 %v5887, %v1468
    %v6065 = vmul.f32 %v5891, %v1468
    %v6066 = vmul.f32 %v5895, %v1468
    %v6067 = vmul.f32 %v5899, %v1468
    %v6068 = vmul.f32 %v5903, %v1468
    %v6069 = vmul.f32 %v5907, %v1468
    %v6070 = vmul.f32 %v5911, %v1468
    %v6071 = vmul.f32 %v5915, %v1468
    %v6072 = vmul.f32 %v5919, %v1468
    %v6073 = vmul.f32 %v5923, %v1468
    %v6074 = vmul.f32 %v5927, %v1468
    %v6075 = vmul.f32 %v5931, %v1468
    %v6076 = vmul.f32 %v5935, %v1468
    %v6077 = vmul.f32 %v5939, %v1468
    %v6078 = vmul.f32 %v5943, %v1468
    %v6079 = vmul.f32 %v5947, %v1468
    %v6080 = vmul.f32 %v5951, %v1468
    %v6081 = vadd.f32 %v5313, %v5953
    %v6082 = vadd.f32 %v5314, %v5954
    %v6083 = vadd.f32 %v5315, %v5955
    %v6084 = vadd.f32 %v5316, %v5956
    %v6085 = vadd.f32 %v5317, %v5957
    %v6086 = vadd.f32 %v5318, %v5958
    %v6087 = vadd.f32 %v5319, %v5959
    %v6088 = vadd.f32 %v5320, %v5960
    %v6089 = vadd.f32 %v5321, %v5961
    %v6090 = vadd.f32 %v5322, %v5962
    %v6091 = vadd.f32 %v5323, %v5963
    %v6092 = vadd.f32 %v5324, %v5964
    %v6093 = vadd.f32 %v5325, %v5965
    %v6094 = vadd.f32 %v5326, %v5966
    %v6095 = vadd.f32 %v5327, %v5967
    %v6096 = vadd.f32 %v5328, %v5968
    %v6097 = vadd.f32 %v5329, %v5969
    %v6098 = vadd.f32 %v5330, %v5970
    %v6099 = vadd.f32 %v5331, %v5971
    %v6100 = vadd.f32 %v5332, %v5972
    %v6101 = vadd.f32 %v5333, %v5973
    %v6102 = vadd.f32 %v5334, %v5974
    %v6103 = vadd.f32 %v5335, %v5975
    %v6104 = vadd.f32 %v5336, %v5976
    %v6105 = vadd.f32 %v5337, %v5977
    %v6106 = vadd.f32 %v5338, %v5978
    %v6107 = vadd.f32 %v5339, %v5979
    %v6108 = vadd.f32 %v5340, %v5980
    %v6109 = vadd.f32 %v5341, %v5981
    %v6110 = vadd.f32 %v5342, %v5982
    %v6111 = vadd.f32 %v5343, %v5983
    %v6112 = vadd.f32 %v5344, %v5984
    %v6113 = vadd.f32 %v5345, %v5985
    %v6114 = vadd.f32 %v5346, %v5986
    %v6115 = vadd.f32 %v5347, %v5987
    %v6116 = vadd.f32 %v5348, %v5988
    %v6117 = vadd.f32 %v5349, %v5989
    %v6118 = vadd.f32 %v5350, %v5990
    %v6119 = vadd.f32 %v5351, %v5991
    %v6120 = vadd.f32 %v5352, %v5992
    %v6121 = vadd.f32 %v5353, %v5993
    %v6122 = vadd.f32 %v5354, %v5994
    %v6123 = vadd.f32 %v5355, %v5995
    %v6124 = vadd.f32 %v5356, %v5996
    %v6125 = vadd.f32 %v5357, %v5997
    %v6126 = vadd.f32 %v5358, %v5998
    %v6127 = vadd.f32 %v5359, %v5999
    %v6128 = vadd.f32 %v5360, %v6000
    %v6129 = vadd.f32 %v5361, %v6001
    %v6130 = vadd.f32 %v5362, %v6002
    %v6131 = vadd.f32 %v5363, %v6003
    %v6132 = vadd.f32 %v5364, %v6004
    %v6133 = vadd.f32 %v5365, %v6005
    %v6134 = vadd.f32 %v5366, %v6006
    %v6135 = vadd.f32 %v5367, %v6007
    %v6136 = vadd.f32 %v5368, %v6008
    %v6137 = vadd.f32 %v5369, %v6009
    %v6138 = vadd.f32 %v5370, %v6010
    %v6139 = vadd.f32 %v5371, %v6011
    %v6140 = vadd.f32 %v5372, %v6012
    %v6141 = vadd.f32 %v5373, %v6013
    %v6142 = vadd.f32 %v5374, %v6014
    %v6143 = vadd.f32 %v5375, %v6015
    %v6144 = vadd.f32 %v5376, %v6016
    %v6145 = vadd.f32 %v5377, %v6017
    %v6146 = vadd.f32 %v5378, %v6018
    %v6147 = vadd.f32 %v5379, %v6019
    %v6148 = vadd.f32 %v5380, %v6020
    %v6149 = vadd.f32 %v5381, %v6021
    %v6150 = vadd.f32 %v5382, %v6022
    %v6151 = vadd.f32 %v5383, %v6023
    %v6152 = vadd.f32 %v5384, %v6024
    %v6153 = vadd.f32 %v5385, %v6025
    %v6154 = vadd.f32 %v5386, %v6026
    %v6155 = vadd.f32 %v5387, %v6027
    %v6156 = vadd.f32 %v5388, %v6028
    %v6157 = vadd.f32 %v5389, %v6029
    %v6158 = vadd.f32 %v5390, %v6030
    %v6159 = vadd.f32 %v5391, %v6031
    %v6160 = vadd.f32 %v5392, %v6032
    %v6161 = vadd.f32 %v5393, %v6033
    %v6162 = vadd.f32 %v5394, %v6034
    %v6163 = vadd.f32 %v5395, %v6035
    %v6164 = vadd.f32 %v5396, %v6036
    %v6165 = vadd.f32 %v5397, %v6037
    %v6166 = vadd.f32 %v5398, %v6038
    %v6167 = vadd.f32 %v5399, %v6039
    %v6168 = vadd.f32 %v5400, %v6040
    %v6169 = vadd.f32 %v5401, %v6041
    %v6170 = vadd.f32 %v5402, %v6042
    %v6171 = vadd.f32 %v5403, %v6043
    %v6172 = vadd.f32 %v5404, %v6044
    %v6173 = vadd.f32 %v5405, %v6045
    %v6174 = vadd.f32 %v5406, %v6046
    %v6175 = vadd.f32 %v5407, %v6047
    %v6176 = vadd.f32 %v5408, %v6048
    %v6177 = vadd.f32 %v5409, %v6049
    %v6178 = vadd.f32 %v5410, %v6050
    %v6179 = vadd.f32 %v5411, %v6051
    %v6180 = vadd.f32 %v5412, %v6052
    %v6181 = vadd.f32 %v5413, %v6053
    %v6182 = vadd.f32 %v5414, %v6054
    %v6183 = vadd.f32 %v5415, %v6055
    %v6184 = vadd.f32 %v5416, %v6056
    %v6185 = vadd.f32 %v5417, %v6057
    %v6186 = vadd.f32 %v5418, %v6058
    %v6187 = vadd.f32 %v5419, %v6059
    %v6188 = vadd.f32 %v5420, %v6060
    %v6189 = vadd.f32 %v5421, %v6061
    %v6190 = vadd.f32 %v5422, %v6062
    %v6191 = vadd.f32 %v5423, %v6063
    %v6192 = vadd.f32 %v5424, %v6064
    %v6193 = vadd.f32 %v5425, %v6065
    %v6194 = vadd.f32 %v5426, %v6066
    %v6195 = vadd.f32 %v5427, %v6067
    %v6196 = vadd.f32 %v5428, %v6068
    %v6197 = vadd.f32 %v5429, %v6069
    %v6198 = vadd.f32 %v5430, %v6070
    %v6199 = vadd.f32 %v5431, %v6071
    %v6200 = vadd.f32 %v5432, %v6072
    %v6201 = vadd.f32 %v5433, %v6073
    %v6202 = vadd.f32 %v5434, %v6074
    %v6203 = vadd.f32 %v5435, %v6075
    %v6204 = vadd.f32 %v5436, %v6076
    %v6205 = vadd.f32 %v5437, %v6077
    %v6206 = vadd.f32 %v5438, %v6078
    %v6207 = vadd.f32 %v5439, %v6079
    %v6208 = vadd.f32 %v5440, %v6080
    %6209 = vset.pattern.permute.xlu0 2
    %6210 = vperm.xlu0 %6209, %v4545
    %v6211 = vpop.permute.xlu0 %6210
    %6213 = vset.pattern.permute.xlu0 2
    %6214 = vperm.xlu0 %6213, %v4546
    %v6215 = vpop.permute.xlu0 %6214
    %6217 = vset.pattern.permute.xlu0 2
    %6218 = vperm.xlu0 %6217, %v4547
    %v6219 = vpop.permute.xlu0 %6218
    %6221 = vset.pattern.permute.xlu0 2
    %6222 = vperm.xlu0 %6221, %v4548
    %v6223 = vpop.permute.xlu0 %6222
    %6225 = vset.pattern.permute.xlu0 2
    %6226 = vperm.xlu0 %6225, %v4549
    %v6227 = vpop.permute.xlu0 %6226
    %6229 = vset.pattern.permute.xlu0 2
    %6230 = vperm.xlu0 %6229, %v4550
    %v6231 = vpop.permute.xlu0 %6230
    %6233 = vset.pattern.permute.xlu0 2
    %6234 = vperm.xlu0 %6233, %v4551
    %v6235 = vpop.permute.xlu0 %6234
    %6237 = vset.pattern.permute.xlu0 2
    %6238 = vperm.xlu0 %6237, %v4552
    %v6239 = vpop.permute.xlu0 %6238
    %6241 = vset.pattern.permute.xlu0 2
    %6242 = vperm.xlu0 %6241, %v4553
    %v6243 = vpop.permute.xlu0 %6242
    %6245 = vset.pattern.permute.xlu0 2
    %6246 = vperm.xlu0 %6245, %v4554
    %v6247 = vpop.permute.xlu0 %6246
    %6249 = vset.pattern.permute.xlu0 2
    %6250 = vperm.xlu0 %6249, %v4555
    %v6251 = vpop.permute.xlu0 %6250
    %6253 = vset.pattern.permute.xlu0 2
    %6254 = vperm.xlu0 %6253, %v4556
    %v6255 = vpop.permute.xlu0 %6254
    %6257 = vset.pattern.permute.xlu0 2
    %6258 = vperm.xlu0 %6257, %v4557
    %v6259 = vpop.permute.xlu0 %6258
    %6261 = vset.pattern.permute.xlu0 2
    %6262 = vperm.xlu0 %6261, %v4558
    %v6263 = vpop.permute.xlu0 %6262
    %6265 = vset.pattern.permute.xlu0 2
    %6266 = vperm.xlu0 %6265, %v4559
    %v6267 = vpop.permute.xlu0 %6266
    %6269 = vset.pattern.permute.xlu0 2
    %6270 = vperm.xlu0 %6269, %v4560
    %v6271 = vpop.permute.xlu0 %6270
    %6273 = vset.pattern.permute.xlu0 2
    %6274 = vperm.xlu0 %6273, %v4561
    %v6275 = vpop.permute.xlu0 %6274
    %6277 = vset.pattern.permute.xlu0 2
    %6278 = vperm.xlu0 %6277, %v4562
    %v6279 = vpop.permute.xlu0 %6278
    %6281 = vset.pattern.permute.xlu0 2
    %6282 = vperm.xlu0 %6281, %v4563
    %v6283 = vpop.permute.xlu0 %6282
    %6285 = vset.pattern.permute.xlu0 2
    %6286 = vperm.xlu0 %6285, %v4564
    %v6287 = vpop.permute.xlu0 %6286
    %6289 = vset.pattern.permute.xlu0 2
    %6290 = vperm.xlu0 %6289, %v4565
    %v6291 = vpop.permute.xlu0 %6290
    %6293 = vset.pattern.permute.xlu0 2
    %6294 = vperm.xlu0 %6293, %v4566
    %v6295 = vpop.permute.xlu0 %6294
    %6297 = vset.pattern.permute.xlu0 2
    %6298 = vperm.xlu0 %6297, %v4567
    %v6299 = vpop.permute.xlu0 %6298
    %6301 = vset.pattern.permute.xlu0 2
    %6302 = vperm.xlu0 %6301, %v4568
    %v6303 = vpop.permute.xlu0 %6302
    %6305 = vset.pattern.permute.xlu0 2
    %6306 = vperm.xlu0 %6305, %v4569
    %v6307 = vpop.permute.xlu0 %6306
    %6309 = vset.pattern.permute.xlu0 2
    %6310 = vperm.xlu0 %6309, %v4570
    %v6311 = vpop.permute.xlu0 %6310
    %6313 = vset.pattern.permute.xlu0 2
    %6314 = vperm.xlu0 %6313, %v4571
    %v6315 = vpop.permute.xlu0 %6314
    %6317 = vset.pattern.permute.xlu0 2
    %6318 = vperm.xlu0 %6317, %v4572
    %v6319 = vpop.permute.xlu0 %6318
    %6321 = vset.pattern.permute.xlu0 2
    %6322 = vperm.xlu0 %6321, %v4573
    %v6323 = vpop.permute.xlu0 %6322
    %6325 = vset.pattern.permute.xlu0 2
    %6326 = vperm.xlu0 %6325, %v4574
    %v6327 = vpop.permute.xlu0 %6326
    %6329 = vset.pattern.permute.xlu0 2
    %6330 = vperm.xlu0 %6329, %v4575
    %v6331 = vpop.permute.xlu0 %6330
    %6333 = vset.pattern.permute.xlu0 2
    %6334 = vperm.xlu0 %6333, %v4576
    %v6335 = vpop.permute.xlu0 %6334
    %6337 = vset.pattern.permute.xlu0 2
    %6338 = vperm.xlu0 %6337, %v4577
    %v6339 = vpop.permute.xlu0 %6338
    %6341 = vset.pattern.permute.xlu0 2
    %6342 = vperm.xlu0 %6341, %v4578
    %v6343 = vpop.permute.xlu0 %6342
    %6345 = vset.pattern.permute.xlu0 2
    %6346 = vperm.xlu0 %6345, %v4579
    %v6347 = vpop.permute.xlu0 %6346
    %6349 = vset.pattern.permute.xlu0 2
    %6350 = vperm.xlu0 %6349, %v4580
    %v6351 = vpop.permute.xlu0 %6350
    %6353 = vset.pattern.permute.xlu0 2
    %6354 = vperm.xlu0 %6353, %v4581
    %v6355 = vpop.permute.xlu0 %6354
    %6357 = vset.pattern.permute.xlu0 2
    %6358 = vperm.xlu0 %6357, %v4582
    %v6359 = vpop.permute.xlu0 %6358
    %6361 = vset.pattern.permute.xlu0 2
    %6362 = vperm.xlu0 %6361, %v4583
    %v6363 = vpop.permute.xlu0 %6362
    %6365 = vset.pattern.permute.xlu0 2
    %6366 = vperm.xlu0 %6365, %v4584
    %v6367 = vpop.permute.xlu0 %6366
    %6369 = vset.pattern.permute.xlu0 2
    %6370 = vperm.xlu0 %6369, %v4585
    %v6371 = vpop.permute.xlu0 %6370
    %6373 = vset.pattern.permute.xlu0 2
    %6374 = vperm.xlu0 %6373, %v4586
    %v6375 = vpop.permute.xlu0 %6374
    %6377 = vset.pattern.permute.xlu0 2
    %6378 = vperm.xlu0 %6377, %v4587
    %v6379 = vpop.permute.xlu0 %6378
    %6381 = vset.pattern.permute.xlu0 2
    %6382 = vperm.xlu0 %6381, %v4588
    %v6383 = vpop.permute.xlu0 %6382
    %6385 = vset.pattern.permute.xlu0 2
    %6386 = vperm.xlu0 %6385, %v4589
    %v6387 = vpop.permute.xlu0 %6386
    %6389 = vset.pattern.permute.xlu0 2
    %6390 = vperm.xlu0 %6389, %v4590
    %v6391 = vpop.permute.xlu0 %6390
    %6393 = vset.pattern.permute.xlu0 2
    %6394 = vperm.xlu0 %6393, %v4591
    %v6395 = vpop.permute.xlu0 %6394
    %6397 = vset.pattern.permute.xlu0 2
    %6398 = vperm.xlu0 %6397, %v4592
    %v6399 = vpop.permute.xlu0 %6398
    %6401 = vset.pattern.permute.xlu0 2
    %6402 = vperm.xlu0 %6401, %v4593
    %v6403 = vpop.permute.xlu0 %6402
    %6405 = vset.pattern.permute.xlu0 2
    %6406 = vperm.xlu0 %6405, %v4594
    %v6407 = vpop.permute.xlu0 %6406
    %6409 = vset.pattern.permute.xlu0 2
    %6410 = vperm.xlu0 %6409, %v4595
    %v6411 = vpop.permute.xlu0 %6410
    %6413 = vset.pattern.permute.xlu0 2
    %6414 = vperm.xlu0 %6413, %v4596
    %v6415 = vpop.permute.xlu0 %6414
    %6417 = vset.pattern.permute.xlu0 2
    %6418 = vperm.xlu0 %6417, %v4597
    %v6419 = vpop.permute.xlu0 %6418
    %6421 = vset.pattern.permute.xlu0 2
    %6422 = vperm.xlu0 %6421, %v4598
    %v6423 = vpop.permute.xlu0 %6422
    %6425 = vset.pattern.permute.xlu0 2
    %6426 = vperm.xlu0 %6425, %v4599
    %v6427 = vpop.permute.xlu0 %6426
    %6429 = vset.pattern.permute.xlu0 2
    %6430 = vperm.xlu0 %6429, %v4600
    %v6431 = vpop.permute.xlu0 %6430
    %6433 = vset.pattern.permute.xlu0 2
    %6434 = vperm.xlu0 %6433, %v4601
    %v6435 = vpop.permute.xlu0 %6434
    %6437 = vset.pattern.permute.xlu0 2
    %6438 = vperm.xlu0 %6437, %v4602
    %v6439 = vpop.permute.xlu0 %6438
    %6441 = vset.pattern.permute.xlu0 2
    %6442 = vperm.xlu0 %6441, %v4603
    %v6443 = vpop.permute.xlu0 %6442
    %6445 = vset.pattern.permute.xlu0 2
    %6446 = vperm.xlu0 %6445, %v4604
    %v6447 = vpop.permute.xlu0 %6446
    %6449 = vset.pattern.permute.xlu0 2
    %6450 = vperm.xlu0 %6449, %v4605
    %v6451 = vpop.permute.xlu0 %6450
    %6453 = vset.pattern.permute.xlu0 2
    %6454 = vperm.xlu0 %6453, %v4606
    %v6455 = vpop.permute.xlu0 %6454
    %6457 = vset.pattern.permute.xlu0 2
    %6458 = vperm.xlu0 %6457, %v4607
    %v6459 = vpop.permute.xlu0 %6458
    %6461 = vset.pattern.permute.xlu0 2
    %6462 = vperm.xlu0 %6461, %v4608
    %v6463 = vpop.permute.xlu0 %6462
    %6465 = vset.pattern.permute.xlu0 2
    %6466 = vperm.xlu0 %6465, %v4609
    %v6467 = vpop.permute.xlu0 %6466
    %6469 = vset.pattern.permute.xlu0 2
    %6470 = vperm.xlu0 %6469, %v4610
    %v6471 = vpop.permute.xlu0 %6470
    %6473 = vset.pattern.permute.xlu0 2
    %6474 = vperm.xlu0 %6473, %v4611
    %v6475 = vpop.permute.xlu0 %6474
    %6477 = vset.pattern.permute.xlu0 2
    %6478 = vperm.xlu0 %6477, %v4612
    %v6479 = vpop.permute.xlu0 %6478
    %6481 = vset.pattern.permute.xlu0 2
    %6482 = vperm.xlu0 %6481, %v4613
    %v6483 = vpop.permute.xlu0 %6482
    %6485 = vset.pattern.permute.xlu0 2
    %6486 = vperm.xlu0 %6485, %v4614
    %v6487 = vpop.permute.xlu0 %6486
    %6489 = vset.pattern.permute.xlu0 2
    %6490 = vperm.xlu0 %6489, %v4615
    %v6491 = vpop.permute.xlu0 %6490
    %6493 = vset.pattern.permute.xlu0 2
    %6494 = vperm.xlu0 %6493, %v4616
    %v6495 = vpop.permute.xlu0 %6494
    %6497 = vset.pattern.permute.xlu0 2
    %6498 = vperm.xlu0 %6497, %v4617
    %v6499 = vpop.permute.xlu0 %6498
    %6501 = vset.pattern.permute.xlu0 2
    %6502 = vperm.xlu0 %6501, %v4618
    %v6503 = vpop.permute.xlu0 %6502
    %6505 = vset.pattern.permute.xlu0 2
    %6506 = vperm.xlu0 %6505, %v4619
    %v6507 = vpop.permute.xlu0 %6506
    %6509 = vset.pattern.permute.xlu0 2
    %6510 = vperm.xlu0 %6509, %v4620
    %v6511 = vpop.permute.xlu0 %6510
    %6513 = vset.pattern.permute.xlu0 2
    %6514 = vperm.xlu0 %6513, %v4621
    %v6515 = vpop.permute.xlu0 %6514
    %6517 = vset.pattern.permute.xlu0 2
    %6518 = vperm.xlu0 %6517, %v4622
    %v6519 = vpop.permute.xlu0 %6518
    %6521 = vset.pattern.permute.xlu0 2
    %6522 = vperm.xlu0 %6521, %v4623
    %v6523 = vpop.permute.xlu0 %6522
    %6525 = vset.pattern.permute.xlu0 2
    %6526 = vperm.xlu0 %6525, %v4624
    %v6527 = vpop.permute.xlu0 %6526
    %6529 = vset.pattern.permute.xlu0 2
    %6530 = vperm.xlu0 %6529, %v4625
    %v6531 = vpop.permute.xlu0 %6530
    %6533 = vset.pattern.permute.xlu0 2
    %6534 = vperm.xlu0 %6533, %v4626
    %v6535 = vpop.permute.xlu0 %6534
    %6537 = vset.pattern.permute.xlu0 2
    %6538 = vperm.xlu0 %6537, %v4627
    %v6539 = vpop.permute.xlu0 %6538
    %6541 = vset.pattern.permute.xlu0 2
    %6542 = vperm.xlu0 %6541, %v4628
    %v6543 = vpop.permute.xlu0 %6542
    %6545 = vset.pattern.permute.xlu0 2
    %6546 = vperm.xlu0 %6545, %v4629
    %v6547 = vpop.permute.xlu0 %6546
    %6549 = vset.pattern.permute.xlu0 2
    %6550 = vperm.xlu0 %6549, %v4630
    %v6551 = vpop.permute.xlu0 %6550
    %6553 = vset.pattern.permute.xlu0 2
    %6554 = vperm.xlu0 %6553, %v4631
    %v6555 = vpop.permute.xlu0 %6554
    %6557 = vset.pattern.permute.xlu0 2
    %6558 = vperm.xlu0 %6557, %v4632
    %v6559 = vpop.permute.xlu0 %6558
    %6561 = vset.pattern.permute.xlu0 2
    %6562 = vperm.xlu0 %6561, %v4633
    %v6563 = vpop.permute.xlu0 %6562
    %6565 = vset.pattern.permute.xlu0 2
    %6566 = vperm.xlu0 %6565, %v4634
    %v6567 = vpop.permute.xlu0 %6566
    %6569 = vset.pattern.permute.xlu0 2
    %6570 = vperm.xlu0 %6569, %v4635
    %v6571 = vpop.permute.xlu0 %6570
    %6573 = vset.pattern.permute.xlu0 2
    %6574 = vperm.xlu0 %6573, %v4636
    %v6575 = vpop.permute.xlu0 %6574
    %6577 = vset.pattern.permute.xlu0 2
    %6578 = vperm.xlu0 %6577, %v4637
    %v6579 = vpop.permute.xlu0 %6578
    %6581 = vset.pattern.permute.xlu0 2
    %6582 = vperm.xlu0 %6581, %v4638
    %v6583 = vpop.permute.xlu0 %6582
    %6585 = vset.pattern.permute.xlu0 2
    %6586 = vperm.xlu0 %6585, %v4639
    %v6587 = vpop.permute.xlu0 %6586
    %6589 = vset.pattern.permute.xlu0 2
    %6590 = vperm.xlu0 %6589, %v4640
    %v6591 = vpop.permute.xlu0 %6590
    %6593 = vset.pattern.permute.xlu0 2
    %6594 = vperm.xlu0 %6593, %v4641
    %v6595 = vpop.permute.xlu0 %6594
    %6597 = vset.pattern.permute.xlu0 2
    %6598 = vperm.xlu0 %6597, %v4642
    %v6599 = vpop.permute.xlu0 %6598
    %6601 = vset.pattern.permute.xlu0 2
    %6602 = vperm.xlu0 %6601, %v4643
    %v6603 = vpop.permute.xlu0 %6602
    %6605 = vset.pattern.permute.xlu0 2
    %6606 = vperm.xlu0 %6605, %v4644
    %v6607 = vpop.permute.xlu0 %6606
    %6609 = vset.pattern.permute.xlu0 2
    %6610 = vperm.xlu0 %6609, %v4645
    %v6611 = vpop.permute.xlu0 %6610
    %6613 = vset.pattern.permute.xlu0 2
    %6614 = vperm.xlu0 %6613, %v4646
    %v6615 = vpop.permute.xlu0 %6614
    %6617 = vset.pattern.permute.xlu0 2
    %6618 = vperm.xlu0 %6617, %v4647
    %v6619 = vpop.permute.xlu0 %6618
    %6621 = vset.pattern.permute.xlu0 2
    %6622 = vperm.xlu0 %6621, %v4648
    %v6623 = vpop.permute.xlu0 %6622
    %6625 = vset.pattern.permute.xlu0 2
    %6626 = vperm.xlu0 %6625, %v4649
    %v6627 = vpop.permute.xlu0 %6626
    %6629 = vset.pattern.permute.xlu0 2
    %6630 = vperm.xlu0 %6629, %v4650
    %v6631 = vpop.permute.xlu0 %6630
    %6633 = vset.pattern.permute.xlu0 2
    %6634 = vperm.xlu0 %6633, %v4651
    %v6635 = vpop.permute.xlu0 %6634
    %6637 = vset.pattern.permute.xlu0 2
    %6638 = vperm.xlu0 %6637, %v4652
    %v6639 = vpop.permute.xlu0 %6638
    %6641 = vset.pattern.permute.xlu0 2
    %6642 = vperm.xlu0 %6641, %v4653
    %v6643 = vpop.permute.xlu0 %6642
    %6645 = vset.pattern.permute.xlu0 2
    %6646 = vperm.xlu0 %6645, %v4654
    %v6647 = vpop.permute.xlu0 %6646
    %6649 = vset.pattern.permute.xlu0 2
    %6650 = vperm.xlu0 %6649, %v4655
    %v6651 = vpop.permute.xlu0 %6650
    %6653 = vset.pattern.permute.xlu0 2
    %6654 = vperm.xlu0 %6653, %v4656
    %v6655 = vpop.permute.xlu0 %6654
    %6657 = vset.pattern.permute.xlu0 2
    %6658 = vperm.xlu0 %6657, %v4657
    %v6659 = vpop.permute.xlu0 %6658
    %6661 = vset.pattern.permute.xlu0 2
    %6662 = vperm.xlu0 %6661, %v4658
    %v6663 = vpop.permute.xlu0 %6662
    %6665 = vset.pattern.permute.xlu0 2
    %6666 = vperm.xlu0 %6665, %v4659
    %v6667 = vpop.permute.xlu0 %6666
    %6669 = vset.pattern.permute.xlu0 2
    %6670 = vperm.xlu0 %6669, %v4660
    %v6671 = vpop.permute.xlu0 %6670
    %6673 = vset.pattern.permute.xlu0 2
    %6674 = vperm.xlu0 %6673, %v4661
    %v6675 = vpop.permute.xlu0 %6674
    %6677 = vset.pattern.permute.xlu0 2
    %6678 = vperm.xlu0 %6677, %v4662
    %v6679 = vpop.permute.xlu0 %6678
    %6681 = vset.pattern.permute.xlu0 2
    %6682 = vperm.xlu0 %6681, %v4663
    %v6683 = vpop.permute.xlu0 %6682
    %6685 = vset.pattern.permute.xlu0 2
    %6686 = vperm.xlu0 %6685, %v4664
    %v6687 = vpop.permute.xlu0 %6686
    %6689 = vset.pattern.permute.xlu0 2
    %6690 = vperm.xlu0 %6689, %v4665
    %v6691 = vpop.permute.xlu0 %6690
    %6693 = vset.pattern.permute.xlu0 2
    %6694 = vperm.xlu0 %6693, %v4666
    %v6695 = vpop.permute.xlu0 %6694
    %6697 = vset.pattern.permute.xlu0 2
    %6698 = vperm.xlu0 %6697, %v4667
    %v6699 = vpop.permute.xlu0 %6698
    %6701 = vset.pattern.permute.xlu0 2
    %6702 = vperm.xlu0 %6701, %v4668
    %v6703 = vpop.permute.xlu0 %6702
    %6705 = vset.pattern.permute.xlu0 2
    %6706 = vperm.xlu0 %6705, %v4669
    %v6707 = vpop.permute.xlu0 %6706
    %6709 = vset.pattern.permute.xlu0 2
    %6710 = vperm.xlu0 %6709, %v4670
    %v6711 = vpop.permute.xlu0 %6710
    %6713 = vset.pattern.permute.xlu0 2
    %6714 = vperm.xlu0 %6713, %v4671
    %v6715 = vpop.permute.xlu0 %6714
    %6717 = vset.pattern.permute.xlu0 2
    %6718 = vperm.xlu0 %6717, %v4672
    %v6719 = vpop.permute.xlu0 %6718
    %v6721 = vmul.f32 %v6211, %v2240
    %v6722 = vmul.f32 %v6215, %v2240
    %v6723 = vmul.f32 %v6219, %v2240
    %v6724 = vmul.f32 %v6223, %v2240
    %v6725 = vmul.f32 %v6227, %v2240
    %v6726 = vmul.f32 %v6231, %v2240
    %v6727 = vmul.f32 %v6235, %v2240
    %v6728 = vmul.f32 %v6239, %v2240
    %v6729 = vmul.f32 %v6243, %v2240
    %v6730 = vmul.f32 %v6247, %v2240
    %v6731 = vmul.f32 %v6251, %v2240
    %v6732 = vmul.f32 %v6255, %v2240
    %v6733 = vmul.f32 %v6259, %v2240
    %v6734 = vmul.f32 %v6263, %v2240
    %v6735 = vmul.f32 %v6267, %v2240
    %v6736 = vmul.f32 %v6271, %v2240
    %v6737 = vmul.f32 %v6275, %v2240
    %v6738 = vmul.f32 %v6279, %v2240
    %v6739 = vmul.f32 %v6283, %v2240
    %v6740 = vmul.f32 %v6287, %v2240
    %v6741 = vmul.f32 %v6291, %v2240
    %v6742 = vmul.f32 %v6295, %v2240
    %v6743 = vmul.f32 %v6299, %v2240
    %v6744 = vmul.f32 %v6303, %v2240
    %v6745 = vmul.f32 %v6307, %v2240
    %v6746 = vmul.f32 %v6311, %v2240
    %v6747 = vmul.f32 %v6315, %v2240
    %v6748 = vmul.f32 %v6319, %v2240
    %v6749 = vmul.f32 %v6323, %v2240
    %v6750 = vmul.f32 %v6327, %v2240
    %v6751 = vmul.f32 %v6331, %v2240
    %v6752 = vmul.f32 %v6335, %v2240
    %v6753 = vmul.f32 %v6339, %v2240
    %v6754 = vmul.f32 %v6343, %v2240
    %v6755 = vmul.f32 %v6347, %v2240
    %v6756 = vmul.f32 %v6351, %v2240
    %v6757 = vmul.f32 %v6355, %v2240
    %v6758 = vmul.f32 %v6359, %v2240
    %v6759 = vmul.f32 %v6363, %v2240
    %v6760 = vmul.f32 %v6367, %v2240
    %v6761 = vmul.f32 %v6371, %v2240
    %v6762 = vmul.f32 %v6375, %v2240
    %v6763 = vmul.f32 %v6379, %v2240
    %v6764 = vmul.f32 %v6383, %v2240
    %v6765 = vmul.f32 %v6387, %v2240
    %v6766 = vmul.f32 %v6391, %v2240
    %v6767 = vmul.f32 %v6395, %v2240
    %v6768 = vmul.f32 %v6399, %v2240
    %v6769 = vmul.f32 %v6403, %v2240
    %v6770 = vmul.f32 %v6407, %v2240
    %v6771 = vmul.f32 %v6411, %v2240
    %v6772 = vmul.f32 %v6415, %v2240
    %v6773 = vmul.f32 %v6419, %v2240
    %v6774 = vmul.f32 %v6423, %v2240
    %v6775 = vmul.f32 %v6427, %v2240
    %v6776 = vmul.f32 %v6431, %v2240
    %v6777 = vmul.f32 %v6435, %v2240
    %v6778 = vmul.f32 %v6439, %v2240
    %v6779 = vmul.f32 %v6443, %v2240
    %v6780 = vmul.f32 %v6447, %v2240
    %v6781 = vmul.f32 %v6451, %v2240
    %v6782 = vmul.f32 %v6455, %v2240
    %v6783 = vmul.f32 %v6459, %v2240
    %v6784 = vmul.f32 %v6463, %v2240
    %v6785 = vmul.f32 %v6467, %v2240
    %v6786 = vmul.f32 %v6471, %v2240
    %v6787 = vmul.f32 %v6475, %v2240
    %v6788 = vmul.f32 %v6479, %v2240
    %v6789 = vmul.f32 %v6483, %v2240
    %v6790 = vmul.f32 %v6487, %v2240
    %v6791 = vmul.f32 %v6491, %v2240
    %v6792 = vmul.f32 %v6495, %v2240
    %v6793 = vmul.f32 %v6499, %v2240
    %v6794 = vmul.f32 %v6503, %v2240
    %v6795 = vmul.f32 %v6507, %v2240
    %v6796 = vmul.f32 %v6511, %v2240
    %v6797 = vmul.f32 %v6515, %v2240
    %v6798 = vmul.f32 %v6519, %v2240
    %v6799 = vmul.f32 %v6523, %v2240
    %v6800 = vmul.f32 %v6527, %v2240
    %v6801 = vmul.f32 %v6531, %v2240
    %v6802 = vmul.f32 %v6535, %v2240
    %v6803 = vmul.f32 %v6539, %v2240
    %v6804 = vmul.f32 %v6543, %v2240
    %v6805 = vmul.f32 %v6547, %v2240
    %v6806 = vmul.f32 %v6551, %v2240
    %v6807 = vmul.f32 %v6555, %v2240
    %v6808 = vmul.f32 %v6559, %v2240
    %v6809 = vmul.f32 %v6563, %v2240
    %v6810 = vmul.f32 %v6567, %v2240
    %v6811 = vmul.f32 %v6571, %v2240
    %v6812 = vmul.f32 %v6575, %v2240
    %v6813 = vmul.f32 %v6579, %v2240
    %v6814 = vmul.f32 %v6583, %v2240
    %v6815 = vmul.f32 %v6587, %v2240
    %v6816 = vmul.f32 %v6591, %v2240
    %v6817 = vmul.f32 %v6595, %v2240
    %v6818 = vmul.f32 %v6599, %v2240
    %v6819 = vmul.f32 %v6603, %v2240
    %v6820 = vmul.f32 %v6607, %v2240
    %v6821 = vmul.f32 %v6611, %v2240
    %v6822 = vmul.f32 %v6615, %v2240
    %v6823 = vmul.f32 %v6619, %v2240
    %v6824 = vmul.f32 %v6623, %v2240
    %v6825 = vmul.f32 %v6627, %v2240
    %v6826 = vmul.f32 %v6631, %v2240
    %v6827 = vmul.f32 %v6635, %v2240
    %v6828 = vmul.f32 %v6639, %v2240
    %v6829 = vmul.f32 %v6643, %v2240
    %v6830 = vmul.f32 %v6647, %v2240
    %v6831 = vmul.f32 %v6651, %v2240
    %v6832 = vmul.f32 %v6655, %v2240
    %v6833 = vmul.f32 %v6659, %v2240
    %v6834 = vmul.f32 %v6663, %v2240
    %v6835 = vmul.f32 %v6667, %v2240
    %v6836 = vmul.f32 %v6671, %v2240
    %v6837 = vmul.f32 %v6675, %v2240
    %v6838 = vmul.f32 %v6679, %v2240
    %v6839 = vmul.f32 %v6683, %v2240
    %v6840 = vmul.f32 %v6687, %v2240
    %v6841 = vmul.f32 %v6691, %v2240
    %v6842 = vmul.f32 %v6695, %v2240
    %v6843 = vmul.f32 %v6699, %v2240
    %v6844 = vmul.f32 %v6703, %v2240
    %v6845 = vmul.f32 %v6707, %v2240
    %v6846 = vmul.f32 %v6711, %v2240
    %v6847 = vmul.f32 %v6715, %v2240
    %v6848 = vmul.f32 %v6719, %v2240
    %v6849 = vadd.f32 %v6081, %v6721
    %v6850 = vadd.f32 %v6082, %v6722
    %v6851 = vadd.f32 %v6083, %v6723
    %v6852 = vadd.f32 %v6084, %v6724
    %v6853 = vadd.f32 %v6085, %v6725
    %v6854 = vadd.f32 %v6086, %v6726
    %v6855 = vadd.f32 %v6087, %v6727
    %v6856 = vadd.f32 %v6088, %v6728
    %v6857 = vadd.f32 %v6089, %v6729
    %v6858 = vadd.f32 %v6090, %v6730
    %v6859 = vadd.f32 %v6091, %v6731
    %v6860 = vadd.f32 %v6092, %v6732
    %v6861 = vadd.f32 %v6093, %v6733
    %v6862 = vadd.f32 %v6094, %v6734
    %v6863 = vadd.f32 %v6095, %v6735
    %v6864 = vadd.f32 %v6096, %v6736
    %v6865 = vadd.f32 %v6097, %v6737
    %v6866 = vadd.f32 %v6098, %v6738
    %v6867 = vadd.f32 %v6099, %v6739
    %v6868 = vadd.f32 %v6100, %v6740
    %v6869 = vadd.f32 %v6101, %v6741
    %v6870 = vadd.f32 %v6102, %v6742
    %v6871 = vadd.f32 %v6103, %v6743
    %v6872 = vadd.f32 %v6104, %v6744
    %v6873 = vadd.f32 %v6105, %v6745
    %v6874 = vadd.f32 %v6106, %v6746
    %v6875 = vadd.f32 %v6107, %v6747
    %v6876 = vadd.f32 %v6108, %v6748
    %v6877 = vadd.f32 %v6109, %v6749
    %v6878 = vadd.f32 %v6110, %v6750
    %v6879 = vadd.f32 %v6111, %v6751
    %v6880 = vadd.f32 %v6112, %v6752
    %v6881 = vadd.f32 %v6113, %v6753
    %v6882 = vadd.f32 %v6114, %v6754
    %v6883 = vadd.f32 %v6115, %v6755
    %v6884 = vadd.f32 %v6116, %v6756
    %v6885 = vadd.f32 %v6117, %v6757
    %v6886 = vadd.f32 %v6118, %v6758
    %v6887 = vadd.f32 %v6119, %v6759
    %v6888 = vadd.f32 %v6120, %v6760
    %v6889 = vadd.f32 %v6121, %v6761
    %v6890 = vadd.f32 %v6122, %v6762
    %v6891 = vadd.f32 %v6123, %v6763
    %v6892 = vadd.f32 %v6124, %v6764
    %v6893 = vadd.f32 %v6125, %v6765
    %v6894 = vadd.f32 %v6126, %v6766
    %v6895 = vadd.f32 %v6127, %v6767
    %v6896 = vadd.f32 %v6128, %v6768
    %v6897 = vadd.f32 %v6129, %v6769
    %v6898 = vadd.f32 %v6130, %v6770
    %v6899 = vadd.f32 %v6131, %v6771
    %v6900 = vadd.f32 %v6132, %v6772
    %v6901 = vadd.f32 %v6133, %v6773
    %v6902 = vadd.f32 %v6134, %v6774
    %v6903 = vadd.f32 %v6135, %v6775
    %v6904 = vadd.f32 %v6136, %v6776
    %v6905 = vadd.f32 %v6137, %v6777
    %v6906 = vadd.f32 %v6138, %v6778
    %v6907 = vadd.f32 %v6139, %v6779
    %v6908 = vadd.f32 %v6140, %v6780
    %v6909 = vadd.f32 %v6141, %v6781
    %v6910 = vadd.f32 %v6142, %v6782
    %v6911 = vadd.f32 %v6143, %v6783
    %v6912 = vadd.f32 %v6144, %v6784
    %v6913 = vadd.f32 %v6145, %v6785
    %v6914 = vadd.f32 %v6146, %v6786
    %v6915 = vadd.f32 %v6147, %v6787
    %v6916 = vadd.f32 %v6148, %v6788
    %v6917 = vadd.f32 %v6149, %v6789
    %v6918 = vadd.f32 %v6150, %v6790
    %v6919 = vadd.f32 %v6151, %v6791
    %v6920 = vadd.f32 %v6152, %v6792
    %v6921 = vadd.f32 %v6153, %v6793
    %v6922 = vadd.f32 %v6154, %v6794
    %v6923 = vadd.f32 %v6155, %v6795
    %v6924 = vadd.f32 %v6156, %v6796
    %v6925 = vadd.f32 %v6157, %v6797
    %v6926 = vadd.f32 %v6158, %v6798
    %v6927 = vadd.f32 %v6159, %v6799
    %v6928 = vadd.f32 %v6160, %v6800
    %v6929 = vadd.f32 %v6161, %v6801
    %v6930 = vadd.f32 %v6162, %v6802
    %v6931 = vadd.f32 %v6163, %v6803
    %v6932 = vadd.f32 %v6164, %v6804
    %v6933 = vadd.f32 %v6165, %v6805
    %v6934 = vadd.f32 %v6166, %v6806
    %v6935 = vadd.f32 %v6167, %v6807
    %v6936 = vadd.f32 %v6168, %v6808
    %v6937 = vadd.f32 %v6169, %v6809
    %v6938 = vadd.f32 %v6170, %v6810
    %v6939 = vadd.f32 %v6171, %v6811
    %v6940 = vadd.f32 %v6172, %v6812
    %v6941 = vadd.f32 %v6173, %v6813
    %v6942 = vadd.f32 %v6174, %v6814
    %v6943 = vadd.f32 %v6175, %v6815
    %v6944 = vadd.f32 %v6176, %v6816
    %v6945 = vadd.f32 %v6177, %v6817
    %v6946 = vadd.f32 %v6178, %v6818
    %v6947 = vadd.f32 %v6179, %v6819
    %v6948 = vadd.f32 %v6180, %v6820
    %v6949 = vadd.f32 %v6181, %v6821
    %v6950 = vadd.f32 %v6182, %v6822
    %v6951 = vadd.f32 %v6183, %v6823
    %v6952 = vadd.f32 %v6184, %v6824
    %v6953 = vadd.f32 %v6185, %v6825
    %v6954 = vadd.f32 %v6186, %v6826
    %v6955 = vadd.f32 %v6187, %v6827
    %v6956 = vadd.f32 %v6188, %v6828
    %v6957 = vadd.f32 %v6189, %v6829
    %v6958 = vadd.f32 %v6190, %v6830
    %v6959 = vadd.f32 %v6191, %v6831
    %v6960 = vadd.f32 %v6192, %v6832
    %v6961 = vadd.f32 %v6193, %v6833
    %v6962 = vadd.f32 %v6194, %v6834
    %v6963 = vadd.f32 %v6195, %v6835
    %v6964 = vadd.f32 %v6196, %v6836
    %v6965 = vadd.f32 %v6197, %v6837
    %v6966 = vadd.f32 %v6198, %v6838
    %v6967 = vadd.f32 %v6199, %v6839
    %v6968 = vadd.f32 %v6200, %v6840
    %v6969 = vadd.f32 %v6201, %v6841
    %v6970 = vadd.f32 %v6202, %v6842
    %v6971 = vadd.f32 %v6203, %v6843
    %v6972 = vadd.f32 %v6204, %v6844
    %v6973 = vadd.f32 %v6205, %v6845
    %v6974 = vadd.f32 %v6206, %v6846
    %v6975 = vadd.f32 %v6207, %v6847
    %v6976 = vadd.f32 %v6208, %v6848
    %v6977 = vadd.f32 %v6849, %v2501
    %v6978 = vadd.f32 %v6850, %v2501
    %v6979 = vadd.f32 %v6851, %v2501
    %v6980 = vadd.f32 %v6852, %v2501
    %v6981 = vadd.f32 %v6853, %v2501
    %v6982 = vadd.f32 %v6854, %v2501
    %v6983 = vadd.f32 %v6855, %v2501
    %v6984 = vadd.f32 %v6856, %v2501
    %v6985 = vadd.f32 %v6857, %v2501
    %v6986 = vadd.f32 %v6858, %v2501
    %v6987 = vadd.f32 %v6859, %v2501
    %v6988 = vadd.f32 %v6860, %v2501
    %v6989 = vadd.f32 %v6861, %v2501
    %v6990 = vadd.f32 %v6862, %v2501
    %v6991 = vadd.f32 %v6863, %v2501
    %v6992 = vadd.f32 %v6864, %v2501
    %v6993 = vadd.f32 %v6865, %v2501
    %v6994 = vadd.f32 %v6866, %v2501
    %v6995 = vadd.f32 %v6867, %v2501
    %v6996 = vadd.f32 %v6868, %v2501
    %v6997 = vadd.f32 %v6869, %v2501
    %v6998 = vadd.f32 %v6870, %v2501
    %v6999 = vadd.f32 %v6871, %v2501
    %v7000 = vadd.f32 %v6872, %v2501
    %v7001 = vadd.f32 %v6873, %v2501
    %v7002 = vadd.f32 %v6874, %v2501
    %v7003 = vadd.f32 %v6875, %v2501
    %v7004 = vadd.f32 %v6876, %v2501
    %v7005 = vadd.f32 %v6877, %v2501
    %v7006 = vadd.f32 %v6878, %v2501
    %v7007 = vadd.f32 %v6879, %v2501
    %v7008 = vadd.f32 %v6880, %v2501
    %v7009 = vadd.f32 %v6881, %v2501
    %v7010 = vadd.f32 %v6882, %v2501
    %v7011 = vadd.f32 %v6883, %v2501
    %v7012 = vadd.f32 %v6884, %v2501
    %v7013 = vadd.f32 %v6885, %v2501
    %v7014 = vadd.f32 %v6886, %v2501
    %v7015 = vadd.f32 %v6887, %v2501
    %v7016 = vadd.f32 %v6888, %v2501
    %v7017 = vadd.f32 %v6889, %v2501
    %v7018 = vadd.f32 %v6890, %v2501
    %v7019 = vadd.f32 %v6891, %v2501
    %v7020 = vadd.f32 %v6892, %v2501
    %v7021 = vadd.f32 %v6893, %v2501
    %v7022 = vadd.f32 %v6894, %v2501
    %v7023 = vadd.f32 %v6895, %v2501
    %v7024 = vadd.f32 %v6896, %v2501
    %v7025 = vadd.f32 %v6897, %v2501
    %v7026 = vadd.f32 %v6898, %v2501
    %v7027 = vadd.f32 %v6899, %v2501
    %v7028 = vadd.f32 %v6900, %v2501
    %v7029 = vadd.f32 %v6901, %v2501
    %v7030 = vadd.f32 %v6902, %v2501
    %v7031 = vadd.f32 %v6903, %v2501
    %v7032 = vadd.f32 %v6904, %v2501
    %v7033 = vadd.f32 %v6905, %v2501
    %v7034 = vadd.f32 %v6906, %v2501
    %v7035 = vadd.f32 %v6907, %v2501
    %v7036 = vadd.f32 %v6908, %v2501
    %v7037 = vadd.f32 %v6909, %v2501
    %v7038 = vadd.f32 %v6910, %v2501
    %v7039 = vadd.f32 %v6911, %v2501
    %v7040 = vadd.f32 %v6912, %v2501
    %v7041 = vadd.f32 %v6913, %v2501
    %v7042 = vadd.f32 %v6914, %v2501
    %v7043 = vadd.f32 %v6915, %v2501
    %v7044 = vadd.f32 %v6916, %v2501
    %v7045 = vadd.f32 %v6917, %v2501
    %v7046 = vadd.f32 %v6918, %v2501
    %v7047 = vadd.f32 %v6919, %v2501
    %v7048 = vadd.f32 %v6920, %v2501
    %v7049 = vadd.f32 %v6921, %v2501
    %v7050 = vadd.f32 %v6922, %v2501
    %v7051 = vadd.f32 %v6923, %v2501
    %v7052 = vadd.f32 %v6924, %v2501
    %v7053 = vadd.f32 %v6925, %v2501
    %v7054 = vadd.f32 %v6926, %v2501
    %v7055 = vadd.f32 %v6927, %v2501
    %v7056 = vadd.f32 %v6928, %v2501
    %v7057 = vadd.f32 %v6929, %v2501
    %v7058 = vadd.f32 %v6930, %v2501
    %v7059 = vadd.f32 %v6931, %v2501
    %v7060 = vadd.f32 %v6932, %v2501
    %v7061 = vadd.f32 %v6933, %v2501
    %v7062 = vadd.f32 %v6934, %v2501
    %v7063 = vadd.f32 %v6935, %v2501
    %v7064 = vadd.f32 %v6936, %v2501
    %v7065 = vadd.f32 %v6937, %v2501
    %v7066 = vadd.f32 %v6938, %v2501
    %v7067 = vadd.f32 %v6939, %v2501
    %v7068 = vadd.f32 %v6940, %v2501
    %v7069 = vadd.f32 %v6941, %v2501
    %v7070 = vadd.f32 %v6942, %v2501
    %v7071 = vadd.f32 %v6943, %v2501
    %v7072 = vadd.f32 %v6944, %v2501
    %v7073 = vadd.f32 %v6945, %v2501
    %v7074 = vadd.f32 %v6946, %v2501
    %v7075 = vadd.f32 %v6947, %v2501
    %v7076 = vadd.f32 %v6948, %v2501
    %v7077 = vadd.f32 %v6949, %v2501
    %v7078 = vadd.f32 %v6950, %v2501
    %v7079 = vadd.f32 %v6951, %v2501
    %v7080 = vadd.f32 %v6952, %v2501
    %v7081 = vadd.f32 %v6953, %v2501
    %v7082 = vadd.f32 %v6954, %v2501
    %v7083 = vadd.f32 %v6955, %v2501
    %v7084 = vadd.f32 %v6956, %v2501
    %v7085 = vadd.f32 %v6957, %v2501
    %v7086 = vadd.f32 %v6958, %v2501
    %v7087 = vadd.f32 %v6959, %v2501
    %v7088 = vadd.f32 %v6960, %v2501
    %v7089 = vadd.f32 %v6961, %v2501
    %v7090 = vadd.f32 %v6962, %v2501
    %v7091 = vadd.f32 %v6963, %v2501
    %v7092 = vadd.f32 %v6964, %v2501
    %v7093 = vadd.f32 %v6965, %v2501
    %v7094 = vadd.f32 %v6966, %v2501
    %v7095 = vadd.f32 %v6967, %v2501
    %v7096 = vadd.f32 %v6968, %v2501
    %v7097 = vadd.f32 %v6969, %v2501
    %v7098 = vadd.f32 %v6970, %v2501
    %v7099 = vadd.f32 %v6971, %v2501
    %v7100 = vadd.f32 %v6972, %v2501
    %v7101 = vadd.f32 %v6973, %v2501
    %v7102 = vadd.f32 %v6974, %v2501
    %v7103 = vadd.f32 %v6975, %v2501
    %v7104 = vadd.f32 %v6976, %v2501
    %v7105 = vmax.f32 %v6977, 0.0
    %v7106 = vmax.f32 %v6978, 0.0
    %v7107 = vmax.f32 %v6979, 0.0
    %v7108 = vmax.f32 %v6980, 0.0
    %v7109 = vmax.f32 %v6981, 0.0
    %v7110 = vmax.f32 %v6982, 0.0
    %v7111 = vmax.f32 %v6983, 0.0
    %v7112 = vmax.f32 %v6984, 0.0
    %v7113 = vmax.f32 %v6985, 0.0
    %v7114 = vmax.f32 %v6986, 0.0
    %v7115 = vmax.f32 %v6987, 0.0
    %v7116 = vmax.f32 %v6988, 0.0
    %v7117 = vmax.f32 %v6989, 0.0
    %v7118 = vmax.f32 %v6990, 0.0
    %v7119 = vmax.f32 %v6991, 0.0
    %v7120 = vmax.f32 %v6992, 0.0
    %v7121 = vmax.f32 %v6993, 0.0
    %v7122 = vmax.f32 %v6994, 0.0
    %v7123 = vmax.f32 %v6995, 0.0
    %v7124 = vmax.f32 %v6996, 0.0
    %v7125 = vmax.f32 %v6997, 0.0
    %v7126 = vmax.f32 %v6998, 0.0
    %v7127 = vmax.f32 %v6999, 0.0
    %v7128 = vmax.f32 %v7000, 0.0
    %v7129 = vmax.f32 %v7001, 0.0
    %v7130 = vmax.f32 %v7002, 0.0
    %v7131 = vmax.f32 %v7003, 0.0
    %v7132 = vmax.f32 %v7004, 0.0
    %v7133 = vmax.f32 %v7005, 0.0
    %v7134 = vmax.f32 %v7006, 0.0
    %v7135 = vmax.f32 %v7007, 0.0
    %v7136 = vmax.f32 %v7008, 0.0
    %v7137 = vmax.f32 %v7009, 0.0
    %v7138 = vmax.f32 %v7010, 0.0
    %v7139 = vmax.f32 %v7011, 0.0
    %v7140 = vmax.f32 %v7012, 0.0
    %v7141 = vmax.f32 %v7013, 0.0
    %v7142 = vmax.f32 %v7014, 0.0
    %v7143 = vmax.f32 %v7015, 0.0
    %v7144 = vmax.f32 %v7016, 0.0
    %v7145 = vmax.f32 %v7017, 0.0
    %v7146 = vmax.f32 %v7018, 0.0
    %v7147 = vmax.f32 %v7019, 0.0
    %v7148 = vmax.f32 %v7020, 0.0
    %v7149 = vmax.f32 %v7021, 0.0
    %v7150 = vmax.f32 %v7022, 0.0
    %v7151 = vmax.f32 %v7023, 0.0
    %v7152 = vmax.f32 %v7024, 0.0
    %v7153 = vmax.f32 %v7025, 0.0
    %v7154 = vmax.f32 %v7026, 0.0
    %v7155 = vmax.f32 %v7027, 0.0
    %v7156 = vmax.f32 %v7028, 0.0
    %v7157 = vmax.f32 %v7029, 0.0
    %v7158 = vmax.f32 %v7030, 0.0
    %v7159 = vmax.f32 %v7031, 0.0
    %v7160 = vmax.f32 %v7032, 0.0
    %v7161 = vmax.f32 %v7033, 0.0
    %v7162 = vmax.f32 %v7034, 0.0
    %v7163 = vmax.f32 %v7035, 0.0
    %v7164 = vmax.f32 %v7036, 0.0
    %v7165 = vmax.f32 %v7037, 0.0
    %v7166 = vmax.f32 %v7038, 0.0
    %v7167 = vmax.f32 %v7039, 0.0
    %v7168 = vmax.f32 %v7040, 0.0
    %v7169 = vmax.f32 %v7041, 0.0
    %v7170 = vmax.f32 %v7042, 0.0
    %v7171 = vmax.f32 %v7043, 0.0
    %v7172 = vmax.f32 %v7044, 0.0
    %v7173 = vmax.f32 %v7045, 0.0
    %v7174 = vmax.f32 %v7046, 0.0
    %v7175 = vmax.f32 %v7047, 0.0
    %v7176 = vmax.f32 %v7048, 0.0
    %v7177 = vmax.f32 %v7049, 0.0
    %v7178 = vmax.f32 %v7050, 0.0
    %v7179 = vmax.f32 %v7051, 0.0
    %v7180 = vmax.f32 %v7052, 0.0
    %v7181 = vmax.f32 %v7053, 0.0
    %v7182 = vmax.f32 %v7054, 0.0
    %v7183 = vmax.f32 %v7055, 0.0
    %v7184 = vmax.f32 %v7056, 0.0
    %v7185 = vmax.f32 %v7057, 0.0
    %v7186 = vmax.f32 %v7058, 0.0
    %v7187 = vmax.f32 %v7059, 0.0
    %v7188 = vmax.f32 %v7060, 0.0
    %v7189 = vmax.f32 %v7061, 0.0
    %v7190 = vmax.f32 %v7062, 0.0
    %v7191 = vmax.f32 %v7063, 0.0
    %v7192 = vmax.f32 %v7064, 0.0
    %v7193 = vmax.f32 %v7065, 0.0
    %v7194 = vmax.f32 %v7066, 0.0
    %v7195 = vmax.f32 %v7067, 0.0
    %v7196 = vmax.f32 %v7068, 0.0
    %v7197 = vmax.f32 %v7069, 0.0
    %v7198 = vmax.f32 %v7070, 0.0
    %v7199 = vmax.f32 %v7071, 0.0
    %v7200 = vmax.f32 %v7072, 0.0
    %v7201 = vmax.f32 %v7073, 0.0
    %v7202 = vmax.f32 %v7074, 0.0
    %v7203 = vmax.f32 %v7075, 0.0
    %v7204 = vmax.f32 %v7076, 0.0
    %v7205 = vmax.f32 %v7077, 0.0
    %v7206 = vmax.f32 %v7078, 0.0
    %v7207 = vmax.f32 %v7079, 0.0
    %v7208 = vmax.f32 %v7080, 0.0
    %v7209 = vmax.f32 %v7081, 0.0
    %v7210 = vmax.f32 %v7082, 0.0
    %v7211 = vmax.f32 %v7083, 0.0
    %v7212 = vmax.f32 %v7084, 0.0
    %v7213 = vmax.f32 %v7085, 0.0
    %v7214 = vmax.f32 %v7086, 0.0
    %v7215 = vmax.f32 %v7087, 0.0
    %v7216 = vmax.f32 %v7088, 0.0
    %v7217 = vmax.f32 %v7089, 0.0
    %v7218 = vmax.f32 %v7090, 0.0
    %v7219 = vmax.f32 %v7091, 0.0
    %v7220 = vmax.f32 %v7092, 0.0
    %v7221 = vmax.f32 %v7093, 0.0
    %v7222 = vmax.f32 %v7094, 0.0
    %v7223 = vmax.f32 %v7095, 0.0
    %v7224 = vmax.f32 %v7096, 0.0
    %v7225 = vmax.f32 %v7097, 0.0
    %v7226 = vmax.f32 %v7098, 0.0
    %v7227 = vmax.f32 %v7099, 0.0
    %v7228 = vmax.f32 %v7100, 0.0
    %v7229 = vmax.f32 %v7101, 0.0
    %v7230 = vmax.f32 %v7102, 0.0
    %v7231 = vmax.f32 %v7103, 0.0
    %v7232 = vmax.f32 %v7104, 0.0
    %v7233 = vpack.c.bf16 %v7106, %v7105
    %v7234 = vpack.c.bf16 %v7108, %v7107
    %v7235 = vpack.c.bf16 %v7110, %v7109
    %v7236 = vpack.c.bf16 %v7112, %v7111
    %v7237 = vpack.c.bf16 %v7114, %v7113
    %v7238 = vpack.c.bf16 %v7116, %v7115
    %v7239 = vpack.c.bf16 %v7118, %v7117
    %v7240 = vpack.c.bf16 %v7120, %v7119
    %v7241 = vpack.c.bf16 %v7122, %v7121
    %v7242 = vpack.c.bf16 %v7124, %v7123
    %v7243 = vpack.c.bf16 %v7126, %v7125
    %v7244 = vpack.c.bf16 %v7128, %v7127
    %v7245 = vpack.c.bf16 %v7130, %v7129
    %v7246 = vpack.c.bf16 %v7132, %v7131
    %v7247 = vpack.c.bf16 %v7134, %v7133
    %v7248 = vpack.c.bf16 %v7136, %v7135
    %v7249 = vpack.c.bf16 %v7138, %v7137
    %v7250 = vpack.c.bf16 %v7140, %v7139
    %v7251 = vpack.c.bf16 %v7142, %v7141
    %v7252 = vpack.c.bf16 %v7144, %v7143
    %v7253 = vpack.c.bf16 %v7146, %v7145
    %v7254 = vpack.c.bf16 %v7148, %v7147
    %v7255 = vpack.c.bf16 %v7150, %v7149
    %v7256 = vpack.c.bf16 %v7152, %v7151
    %v7257 = vpack.c.bf16 %v7154, %v7153
    %v7258 = vpack.c.bf16 %v7156, %v7155
    %v7259 = vpack.c.bf16 %v7158, %v7157
    %v7260 = vpack.c.bf16 %v7160, %v7159
    %v7261 = vpack.c.bf16 %v7162, %v7161
    %v7262 = vpack.c.bf16 %v7164, %v7163
    %v7263 = vpack.c.bf16 %v7166, %v7165
    %v7264 = vpack.c.bf16 %v7168, %v7167
    %v7265 = vpack.c.bf16 %v7170, %v7169
    %v7266 = vpack.c.bf16 %v7172, %v7171
    %v7267 = vpack.c.bf16 %v7174, %v7173
    %v7268 = vpack.c.bf16 %v7176, %v7175
    %v7269 = vpack.c.bf16 %v7178, %v7177
    %v7270 = vpack.c.bf16 %v7180, %v7179
    %v7271 = vpack.c.bf16 %v7182, %v7181
    %v7272 = vpack.c.bf16 %v7184, %v7183
    %v7273 = vpack.c.bf16 %v7186, %v7185
    %v7274 = vpack.c.bf16 %v7188, %v7187
    %v7275 = vpack.c.bf16 %v7190, %v7189
    %v7276 = vpack.c.bf16 %v7192, %v7191
    %v7277 = vpack.c.bf16 %v7194, %v7193
    %v7278 = vpack.c.bf16 %v7196, %v7195
    %v7279 = vpack.c.bf16 %v7198, %v7197
    %v7280 = vpack.c.bf16 %v7200, %v7199
    %v7281 = vpack.c.bf16 %v7202, %v7201
    %v7282 = vpack.c.bf16 %v7204, %v7203
    %v7283 = vpack.c.bf16 %v7206, %v7205
    %v7284 = vpack.c.bf16 %v7208, %v7207
    %v7285 = vpack.c.bf16 %v7210, %v7209
    %v7286 = vpack.c.bf16 %v7212, %v7211
    %v7287 = vpack.c.bf16 %v7214, %v7213
    %v7288 = vpack.c.bf16 %v7216, %v7215
    %v7289 = vpack.c.bf16 %v7218, %v7217
    %v7290 = vpack.c.bf16 %v7220, %v7219
    %v7291 = vpack.c.bf16 %v7222, %v7221
    %v7292 = vpack.c.bf16 %v7224, %v7223
    %v7293 = vpack.c.bf16 %v7226, %v7225
    %v7294 = vpack.c.bf16 %v7228, %v7227
    %v7295 = vpack.c.bf16 %v7230, %v7229
    %v7296 = vpack.c.bf16 %v7232, %v7231
    %v7297 = vld [vmem:[%s3] sm:$0xf]
    %v7298 = vld [vmem:[%s3 + $0x4] sm:$0xf]
    %v7299 = vld [vmem:[%s3 + $0x8] sm:$0xf]
    %v7300 = vld [vmem:[%s3 + $0xc] sm:$0xf]
    %v7301 = vld [vmem:[%s3 + $0x10] sm:$0xf]
    %v7302 = vld [vmem:[%s3 + $0x14] sm:$0xf]
    %v7303 = vld [vmem:[%s3 + $0x18] sm:$0xf]
    %v7304 = vld [vmem:[%s3 + $0x1c] sm:$0xf]
    %v7305 = vld [vmem:[%s4] sm:$0x1]
    %v7307 = vlaneseq
    %v7308 = vshrl.u32 %v7307, 7
    %v7309 = vsub.s32 0, %v7308
    %v7310 = vrot.slane %v7305, %v7309
    %v7320 = vunpack.c.l.b16 %v7297
    %v7321 = vunpack.c.l.b16 %v7298
    %v7322 = vunpack.c.l.b16 %v7299
    %v7323 = vunpack.c.l.b16 %v7300
    %v7324 = vunpack.c.l.b16 %v7301
    %v7325 = vunpack.c.l.b16 %v7302
    %v7326 = vunpack.c.l.b16 %v7303
    %v7327 = vunpack.c.l.b16 %v7304
    %v7328 = vpack.c.b16 %v7321, %v7320
    %v7329 = vpack.c.b16 %v7323, %v7322
    %v7330 = vpack.c.b16 %v7325, %v7324
    %v7331 = vpack.c.b16 %v7327, %v7326
    %v7337 = vsel %vm2862, %v7233, 0
    %v7340 = vsel %vm2862, %v7234, 0
    %v7343 = vsel %vm2862, %v7235, 0
    %v7346 = vsel %vm2862, %v7236, 0
    %v7349 = vsel %vm2862, %v7237, 0
    %v7352 = vsel %vm2862, %v7238, 0
    %v7355 = vsel %vm2862, %v7239, 0
    %v7358 = vsel %vm2862, %v7240, 0
    %v7361 = vsel %vm2862, %v7241, 0
    %v7364 = vsel %vm2862, %v7242, 0
    %v7367 = vsel %vm2862, %v7243, 0
    %v7370 = vsel %vm2862, %v7244, 0
    %v7373 = vsel %vm2862, %v7245, 0
    %v7376 = vsel %vm2862, %v7246, 0
    %v7379 = vsel %vm2862, %v7247, 0
    %v7382 = vsel %vm2862, %v7248, 0
    %v7385 = vsel %vm2862, %v7249, 0
    %v7388 = vsel %vm2862, %v7250, 0
    %v7391 = vsel %vm2862, %v7251, 0
    %v7394 = vsel %vm2862, %v7252, 0
    %v7397 = vsel %vm2862, %v7253, 0
    %v7400 = vsel %vm2862, %v7254, 0
    %v7403 = vsel %vm2862, %v7255, 0
    %v7406 = vsel %vm2862, %v7256, 0
    %v7409 = vsel %vm2862, %v7257, 0
    %v7412 = vsel %vm2862, %v7258, 0
    %v7415 = vsel %vm2862, %v7259, 0
    %v7418 = vsel %vm2862, %v7260, 0
    %v7421 = vsel %vm2862, %v7261, 0
    %v7424 = vsel %vm2862, %v7262, 0
    %v7427 = vsel %vm2862, %v7263, 0
    %v7430 = vsel %vm2862, %v7264, 0
    %v7433 = vsel %vm2862, %v7265, 0
    %v7436 = vsel %vm2862, %v7266, 0
    %v7439 = vsel %vm2862, %v7267, 0
    %v7442 = vsel %vm2862, %v7268, 0
    %v7445 = vsel %vm2862, %v7269, 0
    %v7448 = vsel %vm2862, %v7270, 0
    %v7451 = vsel %vm2862, %v7271, 0
    %v7454 = vsel %vm2862, %v7272, 0
    %v7457 = vsel %vm2862, %v7273, 0
    %v7460 = vsel %vm2862, %v7274, 0
    %v7463 = vsel %vm2862, %v7275, 0
    %v7466 = vsel %vm2862, %v7276, 0
    %v7469 = vsel %vm2862, %v7277, 0
    %v7472 = vsel %vm2862, %v7278, 0
    %v7475 = vsel %vm2862, %v7279, 0
    %v7478 = vsel %vm2862, %v7280, 0
    %v7481 = vsel %vm2862, %v7281, 0
    %v7484 = vsel %vm2862, %v7282, 0
    %v7487 = vsel %vm2862, %v7283, 0
    %v7490 = vsel %vm2862, %v7284, 0
    %v7493 = vsel %vm2862, %v7285, 0
    %v7496 = vsel %vm2862, %v7286, 0
    %v7499 = vsel %vm2862, %v7287, 0
    %v7502 = vsel %vm2862, %v7288, 0
    %v7505 = vsel %vm2862, %v7289, 0
    %v7508 = vsel %vm2862, %v7290, 0
    %v7511 = vsel %vm2862, %v7291, 0
    %v7514 = vsel %vm2862, %v7292, 0
    %v7517 = vsel %vm2862, %v7293, 0
    %v7520 = vsel %vm2862, %v7294, 0
    %v7523 = vsel %vm2862, %v7295, 0
    %v7526 = vsel %vm2862, %v7296, 0
    %7528 = vmatprep.subr.bf16.mxu0 0
    %7529 = vmatpush1.bf16.msra.mxu0 %v7328
    %7530 = vmatprep.subr.bf16.mxu0 0
    %7531 = vmatpush1.bf16.msra.mxu0 %v7329
    %7532 = vmatprep.subr.bf16.mxu0 0
    %7533 = vmatpush1.bf16.msra.mxu0 %v7330
    %7534 = vmatprep.subr.bf16.mxu0 0
    %7535 = vmatpush1.bf16.msra.mxu0 %v7331
    %7536 = vmatprep.subr.bf16.mxu0 0
    %7537 = vmatpush1.bf16.msra.mxu0 0
    %7538 = vmatprep.subr.bf16.mxu0 0
    %7539 = vmatpush1.bf16.msra.mxu0 0
    %7540 = vmatprep.subr.bf16.mxu0 0
    %7541 = vmatpush1.bf16.msra.mxu0 0
    %7542 = vmatprep.subr.bf16.mxu0 0
    %7543 = vmatpush1.bf16.msra.mxu0 0
    %7544 = vmatprep.subr.bf16.mxu0 0
    %7545 = vmatpush1.bf16.msra.mxu0 0
    %7546 = vmatprep.subr.bf16.mxu0 0
    %7547 = vmatpush1.bf16.msra.mxu0 0
    %7548 = vmatprep.subr.bf16.mxu0 0
    %7549 = vmatpush1.bf16.msra.mxu0 0
    %7550 = vmatprep.subr.bf16.mxu0 0
    %7551 = vmatpush1.bf16.msra.mxu0 0
    %7552 = vmatprep.subr.bf16.mxu0 0
    %7553 = vmatpush1.bf16.msra.mxu0 0
    %7554 = vmatprep.subr.bf16.mxu0 0
    %7555 = vmatpush1.bf16.msra.mxu0 0
    %7556 = vmatprep.subr.bf16.mxu0 0
    %7557 = vmatpush1.bf16.msra.mxu0 0
    %7558 = vmatprep.subr.bf16.mxu0 0
    %7559 = vmatpush1.bf16.msra.mxu0 0
    %7560 = vmatprep.mubr.bf16.mxu0 0
    %7561 = vmatmul.mubr.bf16.gmra.mrb[0].mxu0 %v7337
    %v7562 = vpop.f32.mrb[0].mxu0
    %v7563 = vadd.f32 %v7310, %v7562
    %v7564 = vpop.f32.mrb[0].mxu0
    %v7565 = vpop.f32.mrb[0].mxu0
    %v7566 = vadd.f32 %v7310, %v7565
    %v7567 = vpop.f32.mrb[0].mxu0
    %7568 = vmatprep.mubr.bf16.mxu0 0
    %7569 = vmatmul.mubr.bf16.gmra.mrb[0].mxu0 %v7340
    %v7570 = vpop.f32.mrb[0].mxu0
    %v7571 = vadd.f32 %v7310, %v7570
    %v7572 = vpop.f32.mrb[0].mxu0
    %v7573 = vpop.f32.mrb[0].mxu0
    %v7574 = vadd.f32 %v7310, %v7573
    %v7575 = vpop.f32.mrb[0].mxu0
    %7576 = vmatprep.mubr.bf16.mxu0 0
    %7577 = vmatmul.mubr.bf16.gmra.mrb[0].mxu0 %v7343
    %v7578 = vpop.f32.mrb[0].mxu0
    %v7579 = vadd.f32 %v7310, %v7578
    %v7580 = vpop.f32.mrb[0].mxu0
    %v7581 = vpop.f32.mrb[0].mxu0
    %v7582 = vadd.f32 %v7310, %v7581
    %v7583 = vpop.f32.mrb[0].mxu0
    %7584 = vmatprep.mubr.bf16.mxu0 0
    %7585 = vmatmul.mubr.bf16.gmra.mrb[0].mxu0 %v7346
    %v7586 = vpop.f32.mrb[0].mxu0
    %v7587 = vadd.f32 %v7310, %v7586
    %v7588 = vpop.f32.mrb[0].mxu0
    %v7589 = vpop.f32.mrb[0].mxu0
    %v7590 = vadd.f32 %v7310, %v7589
    %v7591 = vpop.f32.mrb[0].mxu0
    %7592 = vmatprep.mubr.bf16.mxu0 0
    %7593 = vmatmul.mubr.bf16.gmra.mrb[0].mxu0 %v7349
    %v7594 = vpop.f32.mrb[0].mxu0
    %v7595 = vadd.f32 %v7310, %v7594
    %v7596 = vpop.f32.mrb[0].mxu0
    %v7597 = vpop.f32.mrb[0].mxu0
    %v7598 = vadd.f32 %v7310, %v7597
    %v7599 = vpop.f32.mrb[0].mxu0
    %7600 = vmatprep.mubr.bf16.mxu0 0
    %7601 = vmatmul.mubr.bf16.gmra.mrb[0].mxu0 %v7352
    %v7602 = vpop.f32.mrb[0].mxu0
    %v7603 = vadd.f32 %v7310, %v7602
    %v7604 = vpop.f32.mrb[0].mxu0
    %v7605 = vpop.f32.mrb[0].mxu0
    %v7606 = vadd.f32 %v7310, %v7605
    %v7607 = vpop.f32.mrb[0].mxu0
    %7608 = vmatprep.mubr.bf16.mxu0 0
    %7609 = vmatmul.mubr.bf16.gmra.mrb[0].mxu0 %v7355
    %v7610 = vpop.f32.mrb[0].mxu0
    %v7611 = vadd.f32 %v7310, %v7610
    %v7612 = vpop.f32.mrb[0].mxu0
    %v7613 = vpop.f32.mrb[0].mxu0
    %v7614 = vadd.f32 %v7310, %v7613
    %v7615 = vpop.f32.mrb[0].mxu0
    %7616 = vmatprep.mubr.bf16.mxu0 0
    %7617 = vmatmul.mubr.bf16.gmra.mrb[0].mxu0 %v7358
    %v7618 = vpop.f32.mrb[0].mxu0
    %v7619 = vadd.f32 %v7310, %v7618
    %v7620 = vpop.f32.mrb[0].mxu0
    %v7621 = vpop.f32.mrb[0].mxu0
    %v7622 = vadd.f32 %v7310, %v7621
    %v7623 = vpop.f32.mrb[0].mxu0
    %7624 = vmatprep.mubr.bf16.mxu0 0
    %7625 = vmatmul.mubr.bf16.gmra.mrb[0].mxu0 %v7361
    %v7626 = vpop.f32.mrb[0].mxu0
    %v7627 = vadd.f32 %v7310, %v7626
    %v7628 = vpop.f32.mrb[0].mxu0
    %v7629 = vpop.f32.mrb[0].mxu0
    %v7630 = vadd.f32 %v7310, %v7629
    %v7631 = vpop.f32.mrb[0].mxu0
    %7632 = vmatprep.mubr.bf16.mxu0 0
    %7633 = vmatmul.mubr.bf16.gmra.mrb[0].mxu0 %v7364
    %v7634 = vpop.f32.mrb[0].mxu0
    %v7635 = vadd.f32 %v7310, %v7634
    %v7636 = vpop.f32.mrb[0].mxu0
    %v7637 = vpop.f32.mrb[0].mxu0
    %v7638 = vadd.f32 %v7310, %v7637
    %v7639 = vpop.f32.mrb[0].mxu0
    %7640 = vmatprep.mubr.bf16.mxu0 0
    %7641 = vmatmul.mubr.bf16.gmra.mrb[0].mxu0 %v7367
    %v7642 = vpop.f32.mrb[0].mxu0
    %v7643 = vadd.f32 %v7310, %v7642
    %v7644 = vpop.f32.mrb[0].mxu0
    %v7645 = vpop.f32.mrb[0].mxu0
    %v7646 = vadd.f32 %v7310, %v7645
    %v7647 = vpop.f32.mrb[0].mxu0
    %7648 = vmatprep.mubr.bf16.mxu0 0
    %7649 = vmatmul.mubr.bf16.gmra.mrb[0].mxu0 %v7370
    %v7650 = vpop.f32.mrb[0].mxu0
    %v7651 = vadd.f32 %v7310, %v7650
    %v7652 = vpop.f32.mrb[0].mxu0
    %v7653 = vpop.f32.mrb[0].mxu0
    %v7654 = vadd.f32 %v7310, %v7653
    %v7655 = vpop.f32.mrb[0].mxu0
    %7656 = vmatprep.mubr.bf16.mxu0 0
    %7657 = vmatmul.mubr.bf16.gmra.mrb[0].mxu0 %v7373
    %v7658 = vpop.f32.mrb[0].mxu0
    %v7659 = vadd.f32 %v7310, %v7658
    %v7660 = vpop.f32.mrb[0].mxu0
    %v7661 = vpop.f32.mrb[0].mxu0
    %v7662 = vadd.f32 %v7310, %v7661
    %v7663 = vpop.f32.mrb[0].mxu0
    %7664 = vmatprep.mubr.bf16.mxu0 0
    %7665 = vmatmul.mubr.bf16.gmra.mrb[0].mxu0 %v7376
    %v7666 = vpop.f32.mrb[0].mxu0
    %v7667 = vadd.f32 %v7310, %v7666
    %v7668 = vpop.f32.mrb[0].mxu0
    %v7669 = vpop.f32.mrb[0].mxu0
    %v7670 = vadd.f32 %v7310, %v7669
    %v7671 = vpop.f32.mrb[0].mxu0
    %7672 = vmatprep.mubr.bf16.mxu0 0
    %7673 = vmatmul.mubr.bf16.gmra.mrb[0].mxu0 %v7379
    %v7674 = vpop.f32.mrb[0].mxu0
    %v7675 = vadd.f32 %v7310, %v7674
    %v7676 = vpop.f32.mrb[0].mxu0
    %v7677 = vpop.f32.mrb[0].mxu0
    %v7678 = vadd.f32 %v7310, %v7677
    %v7679 = vpop.f32.mrb[0].mxu0
    %7680 = vmatprep.mubr.bf16.mxu0 0
    %7681 = vmatmul.mubr.bf16.gmra.mrb[0].mxu0 %v7382
    %v7682 = vpop.f32.mrb[0].mxu0
    %v7683 = vadd.f32 %v7310, %v7682
    %v7684 = vpop.f32.mrb[0].mxu0
    %v7685 = vpop.f32.mrb[0].mxu0
    %v7686 = vadd.f32 %v7310, %v7685
    %v7687 = vpop.f32.mrb[0].mxu0
    %7688 = vmatprep.mubr.bf16.mxu0 0
    %7689 = vmatmul.mubr.bf16.gmra.mrb[0].mxu0 %v7385
    %v7690 = vpop.f32.mrb[0].mxu0
    %v7691 = vadd.f32 %v7310, %v7690
    %v7692 = vpop.f32.mrb[0].mxu0
    %v7693 = vpop.f32.mrb[0].mxu0
    %v7694 = vadd.f32 %v7310, %v7693
    %v7695 = vpop.f32.mrb[0].mxu0
    %7696 = vmatprep.mubr.bf16.mxu0 0
    %7697 = vmatmul.mubr.bf16.gmra.mrb[0].mxu0 %v7388
    %v7698 = vpop.f32.mrb[0].mxu0
    %v7699 = vadd.f32 %v7310, %v7698
    %v7700 = vpop.f32.mrb[0].mxu0
    %v7701 = vpop.f32.mrb[0].mxu0
    %v7702 = vadd.f32 %v7310, %v7701
    %v7703 = vpop.f32.mrb[0].mxu0
    %7704 = vmatprep.mubr.bf16.mxu0 0
    %7705 = vmatmul.mubr.bf16.gmra.mrb[0].mxu0 %v7391
    %v7706 = vpop.f32.mrb[0].mxu0
    %v7707 = vadd.f32 %v7310, %v7706
    %v7708 = vpop.f32.mrb[0].mxu0
    %v7709 = vpop.f32.mrb[0].mxu0
    %v7710 = vadd.f32 %v7310, %v7709
    %v7711 = vpop.f32.mrb[0].mxu0
    %7712 = vmatprep.mubr.bf16.mxu0 0
    %7713 = vmatmul.mubr.bf16.gmra.mrb[0].mxu0 %v7394
    %v7714 = vpop.f32.mrb[0].mxu0
    %v7715 = vadd.f32 %v7310, %v7714
    %v7716 = vpop.f32.mrb[0].mxu0
    %v7717 = vpop.f32.mrb[0].mxu0
    %v7718 = vadd.f32 %v7310, %v7717
    %v7719 = vpop.f32.mrb[0].mxu0
    %7720 = vmatprep.mubr.bf16.mxu0 0
    %7721 = vmatmul.mubr.bf16.gmra.mrb[0].mxu0 %v7397
    %v7722 = vpop.f32.mrb[0].mxu0
    %v7723 = vadd.f32 %v7310, %v7722
    %v7724 = vpop.f32.mrb[0].mxu0
    %v7725 = vpop.f32.mrb[0].mxu0
    %v7726 = vadd.f32 %v7310, %v7725
    %v7727 = vpop.f32.mrb[0].mxu0
    %7728 = vmatprep.mubr.bf16.mxu0 0
    %7729 = vmatmul.mubr.bf16.gmra.mrb[0].mxu0 %v7400
    %v7730 = vpop.f32.mrb[0].mxu0
    %v7731 = vadd.f32 %v7310, %v7730
    %v7732 = vpop.f32.mrb[0].mxu0
    %v7733 = vpop.f32.mrb[0].mxu0
    %v7734 = vadd.f32 %v7310, %v7733
    %v7735 = vpop.f32.mrb[0].mxu0
    %7736 = vmatprep.mubr.bf16.mxu0 0
    %7737 = vmatmul.mubr.bf16.gmra.mrb[0].mxu0 %v7403
    %v7738 = vpop.f32.mrb[0].mxu0
    %v7739 = vadd.f32 %v7310, %v7738
    %v7740 = vpop.f32.mrb[0].mxu0
    %v7741 = vpop.f32.mrb[0].mxu0
    %v7742 = vadd.f32 %v7310, %v7741
    %v7743 = vpop.f32.mrb[0].mxu0
    %7744 = vmatprep.mubr.bf16.mxu0 0
    %7745 = vmatmul.mubr.bf16.gmra.mrb[0].mxu0 %v7406
    %v7746 = vpop.f32.mrb[0].mxu0
    %v7747 = vadd.f32 %v7310, %v7746
    %v7748 = vpop.f32.mrb[0].mxu0
    %v7749 = vpop.f32.mrb[0].mxu0
    %v7750 = vadd.f32 %v7310, %v7749
    %v7751 = vpop.f32.mrb[0].mxu0
    %7752 = vmatprep.mubr.bf16.mxu0 0
    %7753 = vmatmul.mubr.bf16.gmra.mrb[0].mxu0 %v7409
    %v7754 = vpop.f32.mrb[0].mxu0
    %v7755 = vadd.f32 %v7310, %v7754
    %v7756 = vpop.f32.mrb[0].mxu0
    %v7757 = vpop.f32.mrb[0].mxu0
    %v7758 = vadd.f32 %v7310, %v7757
    %v7759 = vpop.f32.mrb[0].mxu0
    %7760 = vmatprep.mubr.bf16.mxu0 0
    %7761 = vmatmul.mubr.bf16.gmra.mrb[0].mxu0 %v7412
    %v7762 = vpop.f32.mrb[0].mxu0
    %v7763 = vadd.f32 %v7310, %v7762
    %v7764 = vpop.f32.mrb[0].mxu0
    %v7765 = vpop.f32.mrb[0].mxu0
    %v7766 = vadd.f32 %v7310, %v7765
    %v7767 = vpop.f32.mrb[0].mxu0
    %7768 = vmatprep.mubr.bf16.mxu0 0
    %7769 = vmatmul.mubr.bf16.gmra.mrb[0].mxu0 %v7415
    %v7770 = vpop.f32.mrb[0].mxu0
    %v7771 = vadd.f32 %v7310, %v7770
    %v7772 = vpop.f32.mrb[0].mxu0
    %v7773 = vpop.f32.mrb[0].mxu0
    %v7774 = vadd.f32 %v7310, %v7773
    %v7775 = vpop.f32.mrb[0].mxu0
    %7776 = vmatprep.mubr.bf16.mxu0 0
    %7777 = vmatmul.mubr.bf16.gmra.mrb[0].mxu0 %v7418
    %v7778 = vpop.f32.mrb[0].mxu0
    %v7779 = vadd.f32 %v7310, %v7778
    %v7780 = vpop.f32.mrb[0].mxu0
    %v7781 = vpop.f32.mrb[0].mxu0
    %v7782 = vadd.f32 %v7310, %v7781
    %v7783 = vpop.f32.mrb[0].mxu0
    %7784 = vmatprep.mubr.bf16.mxu0 0
    %7785 = vmatmul.mubr.bf16.gmra.mrb[0].mxu0 %v7421
    %v7786 = vpop.f32.mrb[0].mxu0
    %v7787 = vadd.f32 %v7310, %v7786
    %v7788 = vpop.f32.mrb[0].mxu0
    %v7789 = vpop.f32.mrb[0].mxu0
    %v7790 = vadd.f32 %v7310, %v7789
    %v7791 = vpop.f32.mrb[0].mxu0
    %7792 = vmatprep.mubr.bf16.mxu0 0
    %7793 = vmatmul.mubr.bf16.gmra.mrb[0].mxu0 %v7424
    %v7794 = vpop.f32.mrb[0].mxu0
    %v7795 = vadd.f32 %v7310, %v7794
    %v7796 = vpop.f32.mrb[0].mxu0
    %v7797 = vpop.f32.mrb[0].mxu0
    %v7798 = vadd.f32 %v7310, %v7797
    %v7799 = vpop.f32.mrb[0].mxu0
    %7800 = vmatprep.mubr.bf16.mxu0 0
    %7801 = vmatmul.mubr.bf16.gmra.mrb[0].mxu0 %v7427
    %v7802 = vpop.f32.mrb[0].mxu0
    %v7803 = vadd.f32 %v7310, %v7802
    %v7804 = vpop.f32.mrb[0].mxu0
    %v7805 = vpop.f32.mrb[0].mxu0
    %v7806 = vadd.f32 %v7310, %v7805
    %v7807 = vpop.f32.mrb[0].mxu0
    %7808 = vmatprep.mubr.bf16.mxu0 0
    %7809 = vmatmul.mubr.bf16.gmra.mrb[0].mxu0 %v7430
    %v7810 = vpop.f32.mrb[0].mxu0
    %v7811 = vadd.f32 %v7310, %v7810
    %v7812 = vpop.f32.mrb[0].mxu0
    %v7813 = vpop.f32.mrb[0].mxu0
    %v7814 = vadd.f32 %v7310, %v7813
    %v7815 = vpop.f32.mrb[0].mxu0
    %7816 = vmatprep.mubr.bf16.mxu0 0
    %7817 = vmatmul.mubr.bf16.gmra.mrb[0].mxu0 %v7433
    %v7818 = vpop.f32.mrb[0].mxu0
    %v7819 = vadd.f32 %v7310, %v7818
    %v7820 = vpop.f32.mrb[0].mxu0
    %v7821 = vpop.f32.mrb[0].mxu0
    %v7822 = vadd.f32 %v7310, %v7821
    %v7823 = vpop.f32.mrb[0].mxu0
    %7824 = vmatprep.mubr.bf16.mxu0 0
    %7825 = vmatmul.mubr.bf16.gmra.mrb[0].mxu0 %v7436
    %v7826 = vpop.f32.mrb[0].mxu0
    %v7827 = vadd.f32 %v7310, %v7826
    %v7828 = vpop.f32.mrb[0].mxu0
    %v7829 = vpop.f32.mrb[0].mxu0
    %v7830 = vadd.f32 %v7310, %v7829
    %v7831 = vpop.f32.mrb[0].mxu0
    %7832 = vmatprep.mubr.bf16.mxu0 0
    %7833 = vmatmul.mubr.bf16.gmra.mrb[0].mxu0 %v7439
    %v7834 = vpop.f32.mrb[0].mxu0
    %v7835 = vadd.f32 %v7310, %v7834
    %v7836 = vpop.f32.mrb[0].mxu0
    %v7837 = vpop.f32.mrb[0].mxu0
    %v7838 = vadd.f32 %v7310, %v7837
    %v7839 = vpop.f32.mrb[0].mxu0
    %7840 = vmatprep.mubr.bf16.mxu0 0
    %7841 = vmatmul.mubr.bf16.gmra.mrb[0].mxu0 %v7442
    %v7842 = vpop.f32.mrb[0].mxu0
    %v7843 = vadd.f32 %v7310, %v7842
    %v7844 = vpop.f32.mrb[0].mxu0
    %v7845 = vpop.f32.mrb[0].mxu0
    %v7846 = vadd.f32 %v7310, %v7845
    %v7847 = vpop.f32.mrb[0].mxu0
    %7848 = vmatprep.mubr.bf16.mxu0 0
    %7849 = vmatmul.mubr.bf16.gmra.mrb[0].mxu0 %v7445
    %v7850 = vpop.f32.mrb[0].mxu0
    %v7851 = vadd.f32 %v7310, %v7850
    %v7852 = vpop.f32.mrb[0].mxu0
    %v7853 = vpop.f32.mrb[0].mxu0
    %v7854 = vadd.f32 %v7310, %v7853
    %v7855 = vpop.f32.mrb[0].mxu0
    %7856 = vmatprep.mubr.bf16.mxu0 0
    %7857 = vmatmul.mubr.bf16.gmra.mrb[0].mxu0 %v7448
    %v7858 = vpop.f32.mrb[0].mxu0
    %v7859 = vadd.f32 %v7310, %v7858
    %v7860 = vpop.f32.mrb[0].mxu0
    %v7861 = vpop.f32.mrb[0].mxu0
    %v7862 = vadd.f32 %v7310, %v7861
    %v7863 = vpop.f32.mrb[0].mxu0
    %7864 = vmatprep.mubr.bf16.mxu0 0
    %7865 = vmatmul.mubr.bf16.gmra.mrb[0].mxu0 %v7451
    %v7866 = vpop.f32.mrb[0].mxu0
    %v7867 = vadd.f32 %v7310, %v7866
    %v7868 = vpop.f32.mrb[0].mxu0
    %v7869 = vpop.f32.mrb[0].mxu0
    %v7870 = vadd.f32 %v7310, %v7869
    %v7871 = vpop.f32.mrb[0].mxu0
    %7872 = vmatprep.mubr.bf16.mxu0 0
    %7873 = vmatmul.mubr.bf16.gmra.mrb[0].mxu0 %v7454
    %v7874 = vpop.f32.mrb[0].mxu0
    %v7875 = vadd.f32 %v7310, %v7874
    %v7876 = vpop.f32.mrb[0].mxu0
    %v7877 = vpop.f32.mrb[0].mxu0
    %v7878 = vadd.f32 %v7310, %v7877
    %v7879 = vpop.f32.mrb[0].mxu0
    %7880 = vmatprep.mubr.bf16.mxu0 0
    %7881 = vmatmul.mubr.bf16.gmra.mrb[0].mxu0 %v7457
    %v7882 = vpop.f32.mrb[0].mxu0
    %v7883 = vadd.f32 %v7310, %v7882
    %v7884 = vpop.f32.mrb[0].mxu0
    %v7885 = vpop.f32.mrb[0].mxu0
    %v7886 = vadd.f32 %v7310, %v7885
    %v7887 = vpop.f32.mrb[0].mxu0
    %7888 = vmatprep.mubr.bf16.mxu0 0
    %7889 = vmatmul.mubr.bf16.gmra.mrb[0].mxu0 %v7460
    %v7890 = vpop.f32.mrb[0].mxu0
    %v7891 = vadd.f32 %v7310, %v7890
    %v7892 = vpop.f32.mrb[0].mxu0
    %v7893 = vpop.f32.mrb[0].mxu0
    %v7894 = vadd.f32 %v7310, %v7893
    %v7895 = vpop.f32.mrb[0].mxu0
    %7896 = vmatprep.mubr.bf16.mxu0 0
    %7897 = vmatmul.mubr.bf16.gmra.mrb[0].mxu0 %v7463
    %v7898 = vpop.f32.mrb[0].mxu0
    %v7899 = vadd.f32 %v7310, %v7898
    %v7900 = vpop.f32.mrb[0].mxu0
    %v7901 = vpop.f32.mrb[0].mxu0
    %v7902 = vadd.f32 %v7310, %v7901
    %v7903 = vpop.f32.mrb[0].mxu0
    %7904 = vmatprep.mubr.bf16.mxu0 0
    %7905 = vmatmul.mubr.bf16.gmra.mrb[0].mxu0 %v7466
    %v7906 = vpop.f32.mrb[0].mxu0
    %v7907 = vadd.f32 %v7310, %v7906
    %v7908 = vpop.f32.mrb[0].mxu0
    %v7909 = vpop.f32.mrb[0].mxu0
    %v7910 = vadd.f32 %v7310, %v7909
    %v7911 = vpop.f32.mrb[0].mxu0
    %7912 = vmatprep.mubr.bf16.mxu0 0
    %7913 = vmatmul.mubr.bf16.gmra.mrb[0].mxu0 %v7469
    %v7914 = vpop.f32.mrb[0].mxu0
    %v7915 = vadd.f32 %v7310, %v7914
    %v7916 = vpop.f32.mrb[0].mxu0
    %v7917 = vpop.f32.mrb[0].mxu0
    %v7918 = vadd.f32 %v7310, %v7917
    %v7919 = vpop.f32.mrb[0].mxu0
    %7920 = vmatprep.mubr.bf16.mxu0 0
    %7921 = vmatmul.mubr.bf16.gmra.mrb[0].mxu0 %v7472
    %v7922 = vpop.f32.mrb[0].mxu0
    %v7923 = vadd.f32 %v7310, %v7922
    %v7924 = vpop.f32.mrb[0].mxu0
    %v7925 = vpop.f32.mrb[0].mxu0
    %v7926 = vadd.f32 %v7310, %v7925
    %v7927 = vpop.f32.mrb[0].mxu0
    %7928 = vmatprep.mubr.bf16.mxu0 0
    %7929 = vmatmul.mubr.bf16.gmra.mrb[0].mxu0 %v7475
    %v7930 = vpop.f32.mrb[0].mxu0
    %v7931 = vadd.f32 %v7310, %v7930
    %v7932 = vpop.f32.mrb[0].mxu0
    %v7933 = vpop.f32.mrb[0].mxu0
    %v7934 = vadd.f32 %v7310, %v7933
    %v7935 = vpop.f32.mrb[0].mxu0
    %7936 = vmatprep.mubr.bf16.mxu0 0
    %7937 = vmatmul.mubr.bf16.gmra.mrb[0].mxu0 %v7478
    %v7938 = vpop.f32.mrb[0].mxu0
    %v7939 = vadd.f32 %v7310, %v7938
    %v7940 = vpop.f32.mrb[0].mxu0
    %v7941 = vpop.f32.mrb[0].mxu0
    %v7942 = vadd.f32 %v7310, %v7941
    %v7943 = vpop.f32.mrb[0].mxu0
    %7944 = vmatprep.mubr.bf16.mxu0 0
    %7945 = vmatmul.mubr.bf16.gmra.mrb[0].mxu0 %v7481
    %v7946 = vpop.f32.mrb[0].mxu0
    %v7947 = vadd.f32 %v7310, %v7946
    %v7948 = vpop.f32.mrb[0].mxu0
    %v7949 = vpop.f32.mrb[0].mxu0
    %v7950 = vadd.f32 %v7310, %v7949
    %v7951 = vpop.f32.mrb[0].mxu0
    %7952 = vmatprep.mubr.bf16.mxu0 0
    %7953 = vmatmul.mubr.bf16.gmra.mrb[0].mxu0 %v7484
    %v7954 = vpop.f32.mrb[0].mxu0
    %v7955 = vadd.f32 %v7310, %v7954
    %v7956 = vpop.f32.mrb[0].mxu0
    %v7957 = vpop.f32.mrb[0].mxu0
    %v7958 = vadd.f32 %v7310, %v7957
    %v7959 = vpop.f32.mrb[0].mxu0
    %7960 = vmatprep.mubr.bf16.mxu0 0
    %7961 = vmatmul.mubr.bf16.gmra.mrb[0].mxu0 %v7487
    %v7962 = vpop.f32.mrb[0].mxu0
    %v7963 = vadd.f32 %v7310, %v7962
    %v7964 = vpop.f32.mrb[0].mxu0
    %v7965 = vpop.f32.mrb[0].mxu0
    %v7966 = vadd.f32 %v7310, %v7965
    %v7967 = vpop.f32.mrb[0].mxu0
    %7968 = vmatprep.mubr.bf16.mxu0 0
    %7969 = vmatmul.mubr.bf16.gmra.mrb[0].mxu0 %v7490
    %v7970 = vpop.f32.mrb[0].mxu0
    %v7971 = vadd.f32 %v7310, %v7970
    %v7972 = vpop.f32.mrb[0].mxu0
    %v7973 = vpop.f32.mrb[0].mxu0
    %v7974 = vadd.f32 %v7310, %v7973
    %v7975 = vpop.f32.mrb[0].mxu0
    %7976 = vmatprep.mubr.bf16.mxu0 0
    %7977 = vmatmul.mubr.bf16.gmra.mrb[0].mxu0 %v7493
    %v7978 = vpop.f32.mrb[0].mxu0
    %v7979 = vadd.f32 %v7310, %v7978
    %v7980 = vpop.f32.mrb[0].mxu0
    %v7981 = vpop.f32.mrb[0].mxu0
    %v7982 = vadd.f32 %v7310, %v7981
    %v7983 = vpop.f32.mrb[0].mxu0
    %7984 = vmatprep.mubr.bf16.mxu0 0
    %7985 = vmatmul.mubr.bf16.gmra.mrb[0].mxu0 %v7496
    %v7986 = vpop.f32.mrb[0].mxu0
    %v7987 = vadd.f32 %v7310, %v7986
    %v7988 = vpop.f32.mrb[0].mxu0
    %v7989 = vpop.f32.mrb[0].mxu0
    %v7990 = vadd.f32 %v7310, %v7989
    %v7991 = vpop.f32.mrb[0].mxu0
    %7992 = vmatprep.mubr.bf16.mxu0 0
    %7993 = vmatmul.mubr.bf16.gmra.mrb[0].mxu0 %v7499
    %v7994 = vpop.f32.mrb[0].mxu0
    %v7995 = vadd.f32 %v7310, %v7994
    %v7996 = vpop.f32.mrb[0].mxu0
    %v7997 = vpop.f32.mrb[0].mxu0
    %v7998 = vadd.f32 %v7310, %v7997
    %v7999 = vpop.f32.mrb[0].mxu0
    %8000 = vmatprep.mubr.bf16.mxu0 0
    %8001 = vmatmul.mubr.bf16.gmra.mrb[0].mxu0 %v7502
    %v8002 = vpop.f32.mrb[0].mxu0
    %v8003 = vadd.f32 %v7310, %v8002
    %v8004 = vpop.f32.mrb[0].mxu0
    %v8005 = vpop.f32.mrb[0].mxu0
    %v8006 = vadd.f32 %v7310, %v8005
    %v8007 = vpop.f32.mrb[0].mxu0
    %8008 = vmatprep.mubr.bf16.mxu0 0
    %8009 = vmatmul.mubr.bf16.gmra.mrb[0].mxu0 %v7505
    %v8010 = vpop.f32.mrb[0].mxu0
    %v8011 = vadd.f32 %v7310, %v8010
    %v8012 = vpop.f32.mrb[0].mxu0
    %v8013 = vpop.f32.mrb[0].mxu0
    %v8014 = vadd.f32 %v7310, %v8013
    %v8015 = vpop.f32.mrb[0].mxu0
    %8016 = vmatprep.mubr.bf16.mxu0 0
    %8017 = vmatmul.mubr.bf16.gmra.mrb[0].mxu0 %v7508
    %v8018 = vpop.f32.mrb[0].mxu0
    %v8019 = vadd.f32 %v7310, %v8018
    %v8020 = vpop.f32.mrb[0].mxu0
    %v8021 = vpop.f32.mrb[0].mxu0
    %v8022 = vadd.f32 %v7310, %v8021
    %v8023 = vpop.f32.mrb[0].mxu0
    %8024 = vmatprep.mubr.bf16.mxu0 0
    %8025 = vmatmul.mubr.bf16.gmra.mrb[0].mxu0 %v7511
    %v8026 = vpop.f32.mrb[0].mxu0
    %v8027 = vadd.f32 %v7310, %v8026
    %v8028 = vpop.f32.mrb[0].mxu0
    %v8029 = vpop.f32.mrb[0].mxu0
    %v8030 = vadd.f32 %v7310, %v8029
    %v8031 = vpop.f32.mrb[0].mxu0
    %8032 = vmatprep.mubr.bf16.mxu0 0
    %8033 = vmatmul.mubr.bf16.gmra.mrb[0].mxu0 %v7514
    %v8034 = vpop.f32.mrb[0].mxu0
    %v8035 = vadd.f32 %v7310, %v8034
    %v8036 = vpop.f32.mrb[0].mxu0
    %v8037 = vpop.f32.mrb[0].mxu0
    %v8038 = vadd.f32 %v7310, %v8037
    %v8039 = vpop.f32.mrb[0].mxu0
    %8040 = vmatprep.mubr.bf16.mxu0 0
    %8041 = vmatmul.mubr.bf16.gmra.mrb[0].mxu0 %v7517
    %v8042 = vpop.f32.mrb[0].mxu0
    %v8043 = vadd.f32 %v7310, %v8042
    %v8044 = vpop.f32.mrb[0].mxu0
    %v8045 = vpop.f32.mrb[0].mxu0
    %v8046 = vadd.f32 %v7310, %v8045
    %v8047 = vpop.f32.mrb[0].mxu0
    %8048 = vmatprep.mubr.bf16.mxu0 0
    %8049 = vmatmul.mubr.bf16.gmra.mrb[0].mxu0 %v7520
    %v8050 = vpop.f32.mrb[0].mxu0
    %v8051 = vadd.f32 %v7310, %v8050
    %v8052 = vpop.f32.mrb[0].mxu0
    %v8053 = vpop.f32.mrb[0].mxu0
    %v8054 = vadd.f32 %v7310, %v8053
    %v8055 = vpop.f32.mrb[0].mxu0
    %8056 = vmatprep.mubr.bf16.mxu0 0
    %8057 = vmatmul.mubr.bf16.gmra.mrb[0].mxu0 %v7523
    %v8058 = vpop.f32.mrb[0].mxu0
    %v8059 = vadd.f32 %v7310, %v8058
    %v8060 = vpop.f32.mrb[0].mxu0
    %v8061 = vpop.f32.mrb[0].mxu0
    %v8062 = vadd.f32 %v7310, %v8061
    %v8063 = vpop.f32.mrb[0].mxu0
    %8064 = vmatprep.mubr.bf16.mxu0 0
    %8065 = vmatmul.mubr.bf16.gmra.mrb[0].mxu0 %v7526
    %v8066 = vpop.f32.mrb[0].mxu0
    %v8067 = vadd.f32 %v7310, %v8066
    %v8068 = vpop.f32.mrb[0].mxu0
    %v8069 = vpop.f32.mrb[0].mxu0
    %v8070 = vadd.f32 %v7310, %v8069
    %v8071 = vpop.f32.mrb[0].mxu0
    %8072 = vdwg.mxu0
    %v8073 = vmax.f32 %v7563, 0.0
    %v8074 = vmax.f32 %v7566, 0.0
    %v8075 = vmax.f32 %v7571, 0.0
    %v8076 = vmax.f32 %v7574, 0.0
    %v8077 = vmax.f32 %v7579, 0.0
    %v8078 = vmax.f32 %v7582, 0.0
    %v8079 = vmax.f32 %v7587, 0.0
    %v8080 = vmax.f32 %v7590, 0.0
    %v8081 = vmax.f32 %v7595, 0.0
    %v8082 = vmax.f32 %v7598, 0.0
    %v8083 = vmax.f32 %v7603, 0.0
    %v8084 = vmax.f32 %v7606, 0.0
    %v8085 = vmax.f32 %v7611, 0.0
    %v8086 = vmax.f32 %v7614, 0.0
    %v8087 = vmax.f32 %v7619, 0.0
    %v8088 = vmax.f32 %v7622, 0.0
    %v8089 = vmax.f32 %v7627, 0.0
    %v8090 = vmax.f32 %v7630, 0.0
    %v8091 = vmax.f32 %v7635, 0.0
    %v8092 = vmax.f32 %v7638, 0.0
    %v8093 = vmax.f32 %v7643, 0.0
    %v8094 = vmax.f32 %v7646, 0.0
    %v8095 = vmax.f32 %v7651, 0.0
    %v8096 = vmax.f32 %v7654, 0.0
    %v8097 = vmax.f32 %v7659, 0.0
    %v8098 = vmax.f32 %v7662, 0.0
    %v8099 = vmax.f32 %v7667, 0.0
    %v8100 = vmax.f32 %v7670, 0.0
    %v8101 = vmax.f32 %v7675, 0.0
    %v8102 = vmax.f32 %v7678, 0.0
    %v8103 = vmax.f32 %v7683, 0.0
    %v8104 = vmax.f32 %v7686, 0.0
    %v8105 = vmax.f32 %v7691, 0.0
    %v8106 = vmax.f32 %v7694, 0.0
    %v8107 = vmax.f32 %v7699, 0.0
    %v8108 = vmax.f32 %v7702, 0.0
    %v8109 = vmax.f32 %v7707, 0.0
    %v8110 = vmax.f32 %v7710, 0.0
    %v8111 = vmax.f32 %v7715, 0.0
    %v8112 = vmax.f32 %v7718, 0.0
    %v8113 = vmax.f32 %v7723, 0.0
    %v8114 = vmax.f32 %v7726, 0.0
    %v8115 = vmax.f32 %v7731, 0.0
    %v8116 = vmax.f32 %v7734, 0.0
    %v8117 = vmax.f32 %v7739, 0.0
    %v8118 = vmax.f32 %v7742, 0.0
    %v8119 = vmax.f32 %v7747, 0.0
    %v8120 = vmax.f32 %v7750, 0.0
    %v8121 = vmax.f32 %v7755, 0.0
    %v8122 = vmax.f32 %v7758, 0.0
    %v8123 = vmax.f32 %v7763, 0.0
    %v8124 = vmax.f32 %v7766, 0.0
    %v8125 = vmax.f32 %v7771, 0.0
    %v8126 = vmax.f32 %v7774, 0.0
    %v8127 = vmax.f32 %v7779, 0.0
    %v8128 = vmax.f32 %v7782, 0.0
    %v8129 = vmax.f32 %v7787, 0.0
    %v8130 = vmax.f32 %v7790, 0.0
    %v8131 = vmax.f32 %v7795, 0.0
    %v8132 = vmax.f32 %v7798, 0.0
    %v8133 = vmax.f32 %v7803, 0.0
    %v8134 = vmax.f32 %v7806, 0.0
    %v8135 = vmax.f32 %v7811, 0.0
    %v8136 = vmax.f32 %v7814, 0.0
    %v8137 = vmax.f32 %v7819, 0.0
    %v8138 = vmax.f32 %v7822, 0.0
    %v8139 = vmax.f32 %v7827, 0.0
    %v8140 = vmax.f32 %v7830, 0.0
    %v8141 = vmax.f32 %v7835, 0.0
    %v8142 = vmax.f32 %v7838, 0.0
    %v8143 = vmax.f32 %v7843, 0.0
    %v8144 = vmax.f32 %v7846, 0.0
    %v8145 = vmax.f32 %v7851, 0.0
    %v8146 = vmax.f32 %v7854, 0.0
    %v8147 = vmax.f32 %v7859, 0.0
    %v8148 = vmax.f32 %v7862, 0.0
    %v8149 = vmax.f32 %v7867, 0.0
    %v8150 = vmax.f32 %v7870, 0.0
    %v8151 = vmax.f32 %v7875, 0.0
    %v8152 = vmax.f32 %v7878, 0.0
    %v8153 = vmax.f32 %v7883, 0.0
    %v8154 = vmax.f32 %v7886, 0.0
    %v8155 = vmax.f32 %v7891, 0.0
    %v8156 = vmax.f32 %v7894, 0.0
    %v8157 = vmax.f32 %v7899, 0.0
    %v8158 = vmax.f32 %v7902, 0.0
    %v8159 = vmax.f32 %v7907, 0.0
    %v8160 = vmax.f32 %v7910, 0.0
    %v8161 = vmax.f32 %v7915, 0.0
    %v8162 = vmax.f32 %v7918, 0.0
    %v8163 = vmax.f32 %v7923, 0.0
    %v8164 = vmax.f32 %v7926, 0.0
    %v8165 = vmax.f32 %v7931, 0.0
    %v8166 = vmax.f32 %v7934, 0.0
    %v8167 = vmax.f32 %v7939, 0.0
    %v8168 = vmax.f32 %v7942, 0.0
    %v8169 = vmax.f32 %v7947, 0.0
    %v8170 = vmax.f32 %v7950, 0.0
    %v8171 = vmax.f32 %v7955, 0.0
    %v8172 = vmax.f32 %v7958, 0.0
    %v8173 = vmax.f32 %v7963, 0.0
    %v8174 = vmax.f32 %v7966, 0.0
    %v8175 = vmax.f32 %v7971, 0.0
    %v8176 = vmax.f32 %v7974, 0.0
    %v8177 = vmax.f32 %v7979, 0.0
    %v8178 = vmax.f32 %v7982, 0.0
    %v8179 = vmax.f32 %v7987, 0.0
    %v8180 = vmax.f32 %v7990, 0.0
    %v8181 = vmax.f32 %v7995, 0.0
    %v8182 = vmax.f32 %v7998, 0.0
    %v8183 = vmax.f32 %v8003, 0.0
    %v8184 = vmax.f32 %v8006, 0.0
    %v8185 = vmax.f32 %v8011, 0.0
    %v8186 = vmax.f32 %v8014, 0.0
    %v8187 = vmax.f32 %v8019, 0.0
    %v8188 = vmax.f32 %v8022, 0.0
    %v8189 = vmax.f32 %v8027, 0.0
    %v8190 = vmax.f32 %v8030, 0.0
    %v8191 = vmax.f32 %v8035, 0.0
    %v8192 = vmax.f32 %v8038, 0.0
    %v8193 = vmax.f32 %v8043, 0.0
    %v8194 = vmax.f32 %v8046, 0.0
    %v8195 = vmax.f32 %v8051, 0.0
    %v8196 = vmax.f32 %v8054, 0.0
    %v8197 = vmax.f32 %v8059, 0.0
    %v8198 = vmax.f32 %v8062, 0.0
    %v8199 = vmax.f32 %v8067, 0.0
    %v8200 = vmax.f32 %v8070, 0.0
    %v8201 = vpack.c.bf16 %v8074, %v8073
    %v8202 = vpack.c.bf16 %v8076, %v8075
    %v8203 = vpack.c.bf16 %v8078, %v8077
    %v8204 = vpack.c.bf16 %v8080, %v8079
    %v8205 = vpack.c.bf16 %v8082, %v8081
    %v8206 = vpack.c.bf16 %v8084, %v8083
    %v8207 = vpack.c.bf16 %v8086, %v8085
    %v8208 = vpack.c.bf16 %v8088, %v8087
    %v8209 = vpack.c.bf16 %v8090, %v8089
    %v8210 = vpack.c.bf16 %v8092, %v8091
    %v8211 = vpack.c.bf16 %v8094, %v8093
    %v8212 = vpack.c.bf16 %v8096, %v8095
    %v8213 = vpack.c.bf16 %v8098, %v8097
    %v8214 = vpack.c.bf16 %v8100, %v8099
    %v8215 = vpack.c.bf16 %v8102, %v8101
    %v8216 = vpack.c.bf16 %v8104, %v8103
    %v8217 = vpack.c.bf16 %v8106, %v8105
    %v8218 = vpack.c.bf16 %v8108, %v8107
    %v8219 = vpack.c.bf16 %v8110, %v8109
    %v8220 = vpack.c.bf16 %v8112, %v8111
    %v8221 = vpack.c.bf16 %v8114, %v8113
    %v8222 = vpack.c.bf16 %v8116, %v8115
    %v8223 = vpack.c.bf16 %v8118, %v8117
    %v8224 = vpack.c.bf16 %v8120, %v8119
    %v8225 = vpack.c.bf16 %v8122, %v8121
    %v8226 = vpack.c.bf16 %v8124, %v8123
    %v8227 = vpack.c.bf16 %v8126, %v8125
    %v8228 = vpack.c.bf16 %v8128, %v8127
    %v8229 = vpack.c.bf16 %v8130, %v8129
    %v8230 = vpack.c.bf16 %v8132, %v8131
    %v8231 = vpack.c.bf16 %v8134, %v8133
    %v8232 = vpack.c.bf16 %v8136, %v8135
    %v8233 = vpack.c.bf16 %v8138, %v8137
    %v8234 = vpack.c.bf16 %v8140, %v8139
    %v8235 = vpack.c.bf16 %v8142, %v8141
    %v8236 = vpack.c.bf16 %v8144, %v8143
    %v8237 = vpack.c.bf16 %v8146, %v8145
    %v8238 = vpack.c.bf16 %v8148, %v8147
    %v8239 = vpack.c.bf16 %v8150, %v8149
    %v8240 = vpack.c.bf16 %v8152, %v8151
    %v8241 = vpack.c.bf16 %v8154, %v8153
    %v8242 = vpack.c.bf16 %v8156, %v8155
    %v8243 = vpack.c.bf16 %v8158, %v8157
    %v8244 = vpack.c.bf16 %v8160, %v8159
    %v8245 = vpack.c.bf16 %v8162, %v8161
    %v8246 = vpack.c.bf16 %v8164, %v8163
    %v8247 = vpack.c.bf16 %v8166, %v8165
    %v8248 = vpack.c.bf16 %v8168, %v8167
    %v8249 = vpack.c.bf16 %v8170, %v8169
    %v8250 = vpack.c.bf16 %v8172, %v8171
    %v8251 = vpack.c.bf16 %v8174, %v8173
    %v8252 = vpack.c.bf16 %v8176, %v8175
    %v8253 = vpack.c.bf16 %v8178, %v8177
    %v8254 = vpack.c.bf16 %v8180, %v8179
    %v8255 = vpack.c.bf16 %v8182, %v8181
    %v8256 = vpack.c.bf16 %v8184, %v8183
    %v8257 = vpack.c.bf16 %v8186, %v8185
    %v8258 = vpack.c.bf16 %v8188, %v8187
    %v8259 = vpack.c.bf16 %v8190, %v8189
    %v8260 = vpack.c.bf16 %v8192, %v8191
    %v8261 = vpack.c.bf16 %v8194, %v8193
    %v8262 = vpack.c.bf16 %v8196, %v8195
    %v8263 = vpack.c.bf16 %v8198, %v8197
    %v8264 = vpack.c.bf16 %v8200, %v8199
    %v8265 = vld [vmem:[%s5] sm:$0xf]
    %v8266 = vld [vmem:[%s5 + $0x4] sm:$0xf]
    %v8267 = vld [vmem:[%s5 + $0x8] sm:$0xf]
    %v8268 = vld [vmem:[%s5 + $0xc] sm:$0xf]
    %v8269 = vld [vmem:[%s5 + $0x10] sm:$0xf]
    %v8270 = vld [vmem:[%s5 + $0x14] sm:$0xf]
    %v8271 = vld [vmem:[%s5 + $0x18] sm:$0xf]
    %v8272 = vld [vmem:[%s5 + $0x1c] sm:$0xf]
    %v8273 = vld [vmem:[%s5 + $0x20] sm:$0xf]
    %v8274 = vld [vmem:[%s5 + $0x24] sm:$0xf]
    %v8275 = vld [vmem:[%s5 + $0x28] sm:$0xf]
    %v8276 = vld [vmem:[%s5 + $0x2c] sm:$0xf]
    %v8277 = vld [vmem:[%s5 + $0x30] sm:$0xf]
    %v8278 = vld [vmem:[%s5 + $0x34] sm:$0xf]
    %v8279 = vld [vmem:[%s5 + $0x38] sm:$0xf]
    %v8280 = vld [vmem:[%s5 + $0x3c] sm:$0xf]
    %v8281 = vld [vmem:[%s6] sm:$0x1]
    %v8283 = vlaneseq
    %v8284 = vshrl.u32 %v8283, 7
    %v8285 = vsub.s32 0, %v8284
    %v8286 = vrot.slane %v8281, %v8285
    %v8304 = vunpack.c.l.b16 %v8265
    %v8305 = vunpack.c.l.b16 %v8266
    %v8306 = vunpack.c.l.b16 %v8267
    %v8307 = vunpack.c.l.b16 %v8268
    %v8308 = vunpack.c.l.b16 %v8269
    %v8309 = vunpack.c.l.b16 %v8270
    %v8310 = vunpack.c.l.b16 %v8271
    %v8311 = vunpack.c.l.b16 %v8272
    %v8312 = vunpack.c.l.b16 %v8273
    %v8313 = vunpack.c.l.b16 %v8274
    %v8314 = vunpack.c.l.b16 %v8275
    %v8315 = vunpack.c.l.b16 %v8276
    %v8316 = vunpack.c.l.b16 %v8277
    %v8317 = vunpack.c.l.b16 %v8278
    %v8318 = vunpack.c.l.b16 %v8279
    %v8319 = vunpack.c.l.b16 %v8280
    %v8320 = vpack.c.b16 %v8305, %v8304
    %v8321 = vpack.c.b16 %v8307, %v8306
    %v8322 = vpack.c.b16 %v8309, %v8308
    %v8323 = vpack.c.b16 %v8311, %v8310
    %v8324 = vpack.c.b16 %v8313, %v8312
    %v8325 = vpack.c.b16 %v8315, %v8314
    %v8326 = vpack.c.b16 %v8317, %v8316
    %v8327 = vpack.c.b16 %v8319, %v8318
    %8336 = vmatprep.subr.bf16.mxu0 0
    %8337 = vmatpush1.bf16.msra.mxu0 %v8320
    %8338 = vmatprep.subr.bf16.mxu0 0
    %8339 = vmatpush1.bf16.msra.mxu0 %v8321
    %8340 = vmatprep.subr.bf16.mxu0 0
    %8341 = vmatpush1.bf16.msra.mxu0 %v8322
    %8342 = vmatprep.subr.bf16.mxu0 0
    %8343 = vmatpush1.bf16.msra.mxu0 %v8323
    %8344 = vmatprep.subr.bf16.mxu0 0
    %8345 = vmatpush1.bf16.msra.mxu0 %v8324
    %8346 = vmatprep.subr.bf16.mxu0 0
    %8347 = vmatpush1.bf16.msra.mxu0 %v8325
    %8348 = vmatprep.subr.bf16.mxu0 0
    %8349 = vmatpush1.bf16.msra.mxu0 %v8326
    %8350 = vmatprep.subr.bf16.mxu0 0
    %8351 = vmatpush1.bf16.msra.mxu0 %v8327
    %8352 = vmatprep.subr.bf16.mxu0 0
    %8353 = vmatpush1.bf16.msra.mxu0 0
    %8354 = vmatprep.subr.bf16.mxu0 0
    %8355 = vmatpush1.bf16.msra.mxu0 0
    %8356 = vmatprep.subr.bf16.mxu0 0
    %8357 = vmatpush1.bf16.msra.mxu0 0
    %8358 = vmatprep.subr.bf16.mxu0 0
    %8359 = vmatpush1.bf16.msra.mxu0 0
    %8360 = vmatprep.subr.bf16.mxu0 0
    %8361 = vmatpush1.bf16.msra.mxu0 0
    %8362 = vmatprep.subr.bf16.mxu0 0
    %8363 = vmatpush1.bf16.msra.mxu0 0
    %8364 = vmatprep.subr.bf16.mxu0 0
    %8365 = vmatpush1.bf16.msra.mxu0 0
    %8366 = vmatprep.subr.bf16.mxu0 0
    %8367 = vmatpush1.bf16.msra.mxu0 0
    %8368 = vmatprep.mubr.bf16.mxu0 0
    %8369 = vmatmul.mubr.bf16.gmra.mrb[0].mxu0 %v8201
    %v8370 = vpop.f32.mrb[0].mxu0
    %v8371 = vadd.f32 %v8286, %v8370
    %v8372 = vpop.f32.mrb[0].mxu0
    %v8373 = vpop.f32.mrb[0].mxu0
    %v8374 = vadd.f32 %v8286, %v8373
    %v8375 = vpop.f32.mrb[0].mxu0
    %8376 = vmatprep.mubr.bf16.mxu0 0
    %8377 = vmatmul.mubr.bf16.gmra.mrb[0].mxu0 %v8202
    %v8378 = vpop.f32.mrb[0].mxu0
    %v8379 = vadd.f32 %v8286, %v8378
    %v8380 = vpop.f32.mrb[0].mxu0
    %v8381 = vpop.f32.mrb[0].mxu0
    %v8382 = vadd.f32 %v8286, %v8381
    %v8383 = vpop.f32.mrb[0].mxu0
    %8384 = vmatprep.mubr.bf16.mxu0 0
    %8385 = vmatmul.mubr.bf16.gmra.mrb[0].mxu0 %v8203
    %v8386 = vpop.f32.mrb[0].mxu0
    %v8387 = vadd.f32 %v8286, %v8386
    %v8388 = vpop.f32.mrb[0].mxu0
    %v8389 = vpop.f32.mrb[0].mxu0
    %v8390 = vadd.f32 %v8286, %v8389
    %v8391 = vpop.f32.mrb[0].mxu0
    %8392 = vmatprep.mubr.bf16.mxu0 0
    %8393 = vmatmul.mubr.bf16.gmra.mrb[0].mxu0 %v8204
    %v8394 = vpop.f32.mrb[0].mxu0
    %v8395 = vadd.f32 %v8286, %v8394
    %v8396 = vpop.f32.mrb[0].mxu0
    %v8397 = vpop.f32.mrb[0].mxu0
    %v8398 = vadd.f32 %v8286, %v8397
    %v8399 = vpop.f32.mrb[0].mxu0
    %8400 = vmatprep.mubr.bf16.mxu0 0
    %8401 = vmatmul.mubr.bf16.gmra.mrb[0].mxu0 %v8205
    %v8402 = vpop.f32.mrb[0].mxu0
    %v8403 = vadd.f32 %v8286, %v8402
    %v8404 = vpop.f32.mrb[0].mxu0
    %v8405 = vpop.f32.mrb[0].mxu0
    %v8406 = vadd.f32 %v8286, %v8405
    %v8407 = vpop.f32.mrb[0].mxu0
    %8408 = vmatprep.mubr.bf16.mxu0 0
    %8409 = vmatmul.mubr.bf16.gmra.mrb[0].mxu0 %v8206
    %v8410 = vpop.f32.mrb[0].mxu0
    %v8411 = vadd.f32 %v8286, %v8410
    %v8412 = vpop.f32.mrb[0].mxu0
    %v8413 = vpop.f32.mrb[0].mxu0
    %v8414 = vadd.f32 %v8286, %v8413
    %v8415 = vpop.f32.mrb[0].mxu0
    %8416 = vmatprep.mubr.bf16.mxu0 0
    %8417 = vmatmul.mubr.bf16.gmra.mrb[0].mxu0 %v8207
    %v8418 = vpop.f32.mrb[0].mxu0
    %v8419 = vadd.f32 %v8286, %v8418
    %v8420 = vpop.f32.mrb[0].mxu0
    %v8421 = vpop.f32.mrb[0].mxu0
    %v8422 = vadd.f32 %v8286, %v8421
    %v8423 = vpop.f32.mrb[0].mxu0
    %8424 = vmatprep.mubr.bf16.mxu0 0
    %8425 = vmatmul.mubr.bf16.gmra.mrb[0].mxu0 %v8208
    %v8426 = vpop.f32.mrb[0].mxu0
    %v8427 = vadd.f32 %v8286, %v8426
    %v8428 = vpop.f32.mrb[0].mxu0
    %v8429 = vpop.f32.mrb[0].mxu0
    %v8430 = vadd.f32 %v8286, %v8429
    %v8431 = vpop.f32.mrb[0].mxu0
    %8432 = vmatprep.mubr.bf16.mxu0 0
    %8433 = vmatmul.mubr.bf16.gmra.mrb[0].mxu0 %v8209
    %v8434 = vpop.f32.mrb[0].mxu0
    %v8435 = vadd.f32 %v8286, %v8434
    %v8436 = vpop.f32.mrb[0].mxu0
    %v8437 = vpop.f32.mrb[0].mxu0
    %v8438 = vadd.f32 %v8286, %v8437
    %v8439 = vpop.f32.mrb[0].mxu0
    %8440 = vmatprep.mubr.bf16.mxu0 0
    %8441 = vmatmul.mubr.bf16.gmra.mrb[0].mxu0 %v8210
    %v8442 = vpop.f32.mrb[0].mxu0
    %v8443 = vadd.f32 %v8286, %v8442
    %v8444 = vpop.f32.mrb[0].mxu0
    %v8445 = vpop.f32.mrb[0].mxu0
    %v8446 = vadd.f32 %v8286, %v8445
    %v8447 = vpop.f32.mrb[0].mxu0
    %8448 = vmatprep.mubr.bf16.mxu0 0
    %8449 = vmatmul.mubr.bf16.gmra.mrb[0].mxu0 %v8211
    %v8450 = vpop.f32.mrb[0].mxu0
    %v8451 = vadd.f32 %v8286, %v8450
    %v8452 = vpop.f32.mrb[0].mxu0
    %v8453 = vpop.f32.mrb[0].mxu0
    %v8454 = vadd.f32 %v8286, %v8453
    %v8455 = vpop.f32.mrb[0].mxu0
    %8456 = vmatprep.mubr.bf16.mxu0 0
    %8457 = vmatmul.mubr.bf16.gmra.mrb[0].mxu0 %v8212
    %v8458 = vpop.f32.mrb[0].mxu0
    %v8459 = vadd.f32 %v8286, %v8458
    %v8460 = vpop.f32.mrb[0].mxu0
    %v8461 = vpop.f32.mrb[0].mxu0
    %v8462 = vadd.f32 %v8286, %v8461
    %v8463 = vpop.f32.mrb[0].mxu0
    %8464 = vmatprep.mubr.bf16.mxu0 0
    %8465 = vmatmul.mubr.bf16.gmra.mrb[0].mxu0 %v8213
    %v8466 = vpop.f32.mrb[0].mxu0
    %v8467 = vadd.f32 %v8286, %v8466
    %v8468 = vpop.f32.mrb[0].mxu0
    %v8469 = vpop.f32.mrb[0].mxu0
    %v8470 = vadd.f32 %v8286, %v8469
    %v8471 = vpop.f32.mrb[0].mxu0
    %8472 = vmatprep.mubr.bf16.mxu0 0
    %8473 = vmatmul.mubr.bf16.gmra.mrb[0].mxu0 %v8214
    %v8474 = vpop.f32.mrb[0].mxu0
    %v8475 = vadd.f32 %v8286, %v8474
    %v8476 = vpop.f32.mrb[0].mxu0
    %v8477 = vpop.f32.mrb[0].mxu0
    %v8478 = vadd.f32 %v8286, %v8477
    %v8479 = vpop.f32.mrb[0].mxu0
    %8480 = vmatprep.mubr.bf16.mxu0 0
    %8481 = vmatmul.mubr.bf16.gmra.mrb[0].mxu0 %v8215
    %v8482 = vpop.f32.mrb[0].mxu0
    %v8483 = vadd.f32 %v8286, %v8482
    %v8484 = vpop.f32.mrb[0].mxu0
    %v8485 = vpop.f32.mrb[0].mxu0
    %v8486 = vadd.f32 %v8286, %v8485
    %v8487 = vpop.f32.mrb[0].mxu0
    %8488 = vmatprep.mubr.bf16.mxu0 0
    %8489 = vmatmul.mubr.bf16.gmra.mrb[0].mxu0 %v8216
    %v8490 = vpop.f32.mrb[0].mxu0
    %v8491 = vadd.f32 %v8286, %v8490
    %v8492 = vpop.f32.mrb[0].mxu0
    %v8493 = vpop.f32.mrb[0].mxu0
    %v8494 = vadd.f32 %v8286, %v8493
    %v8495 = vpop.f32.mrb[0].mxu0
    %8496 = vmatprep.mubr.bf16.mxu0 0
    %8497 = vmatmul.mubr.bf16.gmra.mrb[0].mxu0 %v8217
    %v8498 = vpop.f32.mrb[0].mxu0
    %v8499 = vadd.f32 %v8286, %v8498
    %v8500 = vpop.f32.mrb[0].mxu0
    %v8501 = vpop.f32.mrb[0].mxu0
    %v8502 = vadd.f32 %v8286, %v8501
    %v8503 = vpop.f32.mrb[0].mxu0
    %8504 = vmatprep.mubr.bf16.mxu0 0
    %8505 = vmatmul.mubr.bf16.gmra.mrb[0].mxu0 %v8218
    %v8506 = vpop.f32.mrb[0].mxu0
    %v8507 = vadd.f32 %v8286, %v8506
    %v8508 = vpop.f32.mrb[0].mxu0
    %v8509 = vpop.f32.mrb[0].mxu0
    %v8510 = vadd.f32 %v8286, %v8509
    %v8511 = vpop.f32.mrb[0].mxu0
    %8512 = vmatprep.mubr.bf16.mxu0 0
    %8513 = vmatmul.mubr.bf16.gmra.mrb[0].mxu0 %v8219
    %v8514 = vpop.f32.mrb[0].mxu0
    %v8515 = vadd.f32 %v8286, %v8514
    %v8516 = vpop.f32.mrb[0].mxu0
    %v8517 = vpop.f32.mrb[0].mxu0
    %v8518 = vadd.f32 %v8286, %v8517
    %v8519 = vpop.f32.mrb[0].mxu0
    %8520 = vmatprep.mubr.bf16.mxu0 0
    %8521 = vmatmul.mubr.bf16.gmra.mrb[0].mxu0 %v8220
    %v8522 = vpop.f32.mrb[0].mxu0
    %v8523 = vadd.f32 %v8286, %v8522
    %v8524 = vpop.f32.mrb[0].mxu0
    %v8525 = vpop.f32.mrb[0].mxu0
    %v8526 = vadd.f32 %v8286, %v8525
    %v8527 = vpop.f32.mrb[0].mxu0
    %8528 = vmatprep.mubr.bf16.mxu0 0
    %8529 = vmatmul.mubr.bf16.gmra.mrb[0].mxu0 %v8221
    %v8530 = vpop.f32.mrb[0].mxu0
    %v8531 = vadd.f32 %v8286, %v8530
    %v8532 = vpop.f32.mrb[0].mxu0
    %v8533 = vpop.f32.mrb[0].mxu0
    %v8534 = vadd.f32 %v8286, %v8533
    %v8535 = vpop.f32.mrb[0].mxu0
    %8536 = vmatprep.mubr.bf16.mxu0 0
    %8537 = vmatmul.mubr.bf16.gmra.mrb[0].mxu0 %v8222
    %v8538 = vpop.f32.mrb[0].mxu0
    %v8539 = vadd.f32 %v8286, %v8538
    %v8540 = vpop.f32.mrb[0].mxu0
    %v8541 = vpop.f32.mrb[0].mxu0
    %v8542 = vadd.f32 %v8286, %v8541
    %v8543 = vpop.f32.mrb[0].mxu0
    %8544 = vmatprep.mubr.bf16.mxu0 0
    %8545 = vmatmul.mubr.bf16.gmra.mrb[0].mxu0 %v8223
    %v8546 = vpop.f32.mrb[0].mxu0
    %v8547 = vadd.f32 %v8286, %v8546
    %v8548 = vpop.f32.mrb[0].mxu0
    %v8549 = vpop.f32.mrb[0].mxu0
    %v8550 = vadd.f32 %v8286, %v8549
    %v8551 = vpop.f32.mrb[0].mxu0
    %8552 = vmatprep.mubr.bf16.mxu0 0
    %8553 = vmatmul.mubr.bf16.gmra.mrb[0].mxu0 %v8224
    %v8554 = vpop.f32.mrb[0].mxu0
    %v8555 = vadd.f32 %v8286, %v8554
    %v8556 = vpop.f32.mrb[0].mxu0
    %v8557 = vpop.f32.mrb[0].mxu0
    %v8558 = vadd.f32 %v8286, %v8557
    %v8559 = vpop.f32.mrb[0].mxu0
    %8560 = vmatprep.mubr.bf16.mxu0 0
    %8561 = vmatmul.mubr.bf16.gmra.mrb[0].mxu0 %v8225
    %v8562 = vpop.f32.mrb[0].mxu0
    %v8563 = vadd.f32 %v8286, %v8562
    %v8564 = vpop.f32.mrb[0].mxu0
    %v8565 = vpop.f32.mrb[0].mxu0
    %v8566 = vadd.f32 %v8286, %v8565
    %v8567 = vpop.f32.mrb[0].mxu0
    %8568 = vmatprep.mubr.bf16.mxu0 0
    %8569 = vmatmul.mubr.bf16.gmra.mrb[0].mxu0 %v8226
    %v8570 = vpop.f32.mrb[0].mxu0
    %v8571 = vadd.f32 %v8286, %v8570
    %v8572 = vpop.f32.mrb[0].mxu0
    %v8573 = vpop.f32.mrb[0].mxu0
    %v8574 = vadd.f32 %v8286, %v8573
    %v8575 = vpop.f32.mrb[0].mxu0
    %8576 = vmatprep.mubr.bf16.mxu0 0
    %8577 = vmatmul.mubr.bf16.gmra.mrb[0].mxu0 %v8227
    %v8578 = vpop.f32.mrb[0].mxu0
    %v8579 = vadd.f32 %v8286, %v8578
    %v8580 = vpop.f32.mrb[0].mxu0
    %v8581 = vpop.f32.mrb[0].mxu0
    %v8582 = vadd.f32 %v8286, %v8581
    %v8583 = vpop.f32.mrb[0].mxu0
    %8584 = vmatprep.mubr.bf16.mxu0 0
    %8585 = vmatmul.mubr.bf16.gmra.mrb[0].mxu0 %v8228
    %v8586 = vpop.f32.mrb[0].mxu0
    %v8587 = vadd.f32 %v8286, %v8586
    %v8588 = vpop.f32.mrb[0].mxu0
    %v8589 = vpop.f32.mrb[0].mxu0
    %v8590 = vadd.f32 %v8286, %v8589
    %v8591 = vpop.f32.mrb[0].mxu0
    %8592 = vmatprep.mubr.bf16.mxu0 0
    %8593 = vmatmul.mubr.bf16.gmra.mrb[0].mxu0 %v8229
    %v8594 = vpop.f32.mrb[0].mxu0
    %v8595 = vadd.f32 %v8286, %v8594
    %v8596 = vpop.f32.mrb[0].mxu0
    %v8597 = vpop.f32.mrb[0].mxu0
    %v8598 = vadd.f32 %v8286, %v8597
    %v8599 = vpop.f32.mrb[0].mxu0
    %8600 = vmatprep.mubr.bf16.mxu0 0
    %8601 = vmatmul.mubr.bf16.gmra.mrb[0].mxu0 %v8230
    %v8602 = vpop.f32.mrb[0].mxu0
    %v8603 = vadd.f32 %v8286, %v8602
    %v8604 = vpop.f32.mrb[0].mxu0
    %v8605 = vpop.f32.mrb[0].mxu0
    %v8606 = vadd.f32 %v8286, %v8605
    %v8607 = vpop.f32.mrb[0].mxu0
    %8608 = vmatprep.mubr.bf16.mxu0 0
    %8609 = vmatmul.mubr.bf16.gmra.mrb[0].mxu0 %v8231
    %v8610 = vpop.f32.mrb[0].mxu0
    %v8611 = vadd.f32 %v8286, %v8610
    %v8612 = vpop.f32.mrb[0].mxu0
    %v8613 = vpop.f32.mrb[0].mxu0
    %v8614 = vadd.f32 %v8286, %v8613
    %v8615 = vpop.f32.mrb[0].mxu0
    %8616 = vmatprep.mubr.bf16.mxu0 0
    %8617 = vmatmul.mubr.bf16.gmra.mrb[0].mxu0 %v8232
    %v8618 = vpop.f32.mrb[0].mxu0
    %v8619 = vadd.f32 %v8286, %v8618
    %v8620 = vpop.f32.mrb[0].mxu0
    %v8621 = vpop.f32.mrb[0].mxu0
    %v8622 = vadd.f32 %v8286, %v8621
    %v8623 = vpop.f32.mrb[0].mxu0
    %8624 = vmatprep.mubr.bf16.mxu0 0
    %8625 = vmatmul.mubr.bf16.gmra.mrb[0].mxu0 %v8233
    %v8626 = vpop.f32.mrb[0].mxu0
    %v8627 = vadd.f32 %v8286, %v8626
    %v8628 = vpop.f32.mrb[0].mxu0
    %v8629 = vpop.f32.mrb[0].mxu0
    %v8630 = vadd.f32 %v8286, %v8629
    %v8631 = vpop.f32.mrb[0].mxu0
    %8632 = vmatprep.mubr.bf16.mxu0 0
    %8633 = vmatmul.mubr.bf16.gmra.mrb[0].mxu0 %v8234
    %v8634 = vpop.f32.mrb[0].mxu0
    %v8635 = vadd.f32 %v8286, %v8634
    %v8636 = vpop.f32.mrb[0].mxu0
    %v8637 = vpop.f32.mrb[0].mxu0
    %v8638 = vadd.f32 %v8286, %v8637
    %v8639 = vpop.f32.mrb[0].mxu0
    %8640 = vmatprep.mubr.bf16.mxu0 0
    %8641 = vmatmul.mubr.bf16.gmra.mrb[0].mxu0 %v8235
    %v8642 = vpop.f32.mrb[0].mxu0
    %v8643 = vadd.f32 %v8286, %v8642
    %v8644 = vpop.f32.mrb[0].mxu0
    %v8645 = vpop.f32.mrb[0].mxu0
    %v8646 = vadd.f32 %v8286, %v8645
    %v8647 = vpop.f32.mrb[0].mxu0
    %8648 = vmatprep.mubr.bf16.mxu0 0
    %8649 = vmatmul.mubr.bf16.gmra.mrb[0].mxu0 %v8236
    %v8650 = vpop.f32.mrb[0].mxu0
    %v8651 = vadd.f32 %v8286, %v8650
    %v8652 = vpop.f32.mrb[0].mxu0
    %v8653 = vpop.f32.mrb[0].mxu0
    %v8654 = vadd.f32 %v8286, %v8653
    %v8655 = vpop.f32.mrb[0].mxu0
    %8656 = vmatprep.mubr.bf16.mxu0 0
    %8657 = vmatmul.mubr.bf16.gmra.mrb[0].mxu0 %v8237
    %v8658 = vpop.f32.mrb[0].mxu0
    %v8659 = vadd.f32 %v8286, %v8658
    %v8660 = vpop.f32.mrb[0].mxu0
    %v8661 = vpop.f32.mrb[0].mxu0
    %v8662 = vadd.f32 %v8286, %v8661
    %v8663 = vpop.f32.mrb[0].mxu0
    %8664 = vmatprep.mubr.bf16.mxu0 0
    %8665 = vmatmul.mubr.bf16.gmra.mrb[0].mxu0 %v8238
    %v8666 = vpop.f32.mrb[0].mxu0
    %v8667 = vadd.f32 %v8286, %v8666
    %v8668 = vpop.f32.mrb[0].mxu0
    %v8669 = vpop.f32.mrb[0].mxu0
    %v8670 = vadd.f32 %v8286, %v8669
    %v8671 = vpop.f32.mrb[0].mxu0
    %8672 = vmatprep.mubr.bf16.mxu0 0
    %8673 = vmatmul.mubr.bf16.gmra.mrb[0].mxu0 %v8239
    %v8674 = vpop.f32.mrb[0].mxu0
    %v8675 = vadd.f32 %v8286, %v8674
    %v8676 = vpop.f32.mrb[0].mxu0
    %v8677 = vpop.f32.mrb[0].mxu0
    %v8678 = vadd.f32 %v8286, %v8677
    %v8679 = vpop.f32.mrb[0].mxu0
    %8680 = vmatprep.mubr.bf16.mxu0 0
    %8681 = vmatmul.mubr.bf16.gmra.mrb[0].mxu0 %v8240
    %v8682 = vpop.f32.mrb[0].mxu0
    %v8683 = vadd.f32 %v8286, %v8682
    %v8684 = vpop.f32.mrb[0].mxu0
    %v8685 = vpop.f32.mrb[0].mxu0
    %v8686 = vadd.f32 %v8286, %v8685
    %v8687 = vpop.f32.mrb[0].mxu0
    %8688 = vmatprep.mubr.bf16.mxu0 0
    %8689 = vmatmul.mubr.bf16.gmra.mrb[0].mxu0 %v8241
    %v8690 = vpop.f32.mrb[0].mxu0
    %v8691 = vadd.f32 %v8286, %v8690
    %v8692 = vpop.f32.mrb[0].mxu0
    %v8693 = vpop.f32.mrb[0].mxu0
    %v8694 = vadd.f32 %v8286, %v8693
    %v8695 = vpop.f32.mrb[0].mxu0
    %8696 = vmatprep.mubr.bf16.mxu0 0
    %8697 = vmatmul.mubr.bf16.gmra.mrb[0].mxu0 %v8242
    %v8698 = vpop.f32.mrb[0].mxu0
    %v8699 = vadd.f32 %v8286, %v8698
    %v8700 = vpop.f32.mrb[0].mxu0
    %v8701 = vpop.f32.mrb[0].mxu0
    %v8702 = vadd.f32 %v8286, %v8701
    %v8703 = vpop.f32.mrb[0].mxu0
    %8704 = vmatprep.mubr.bf16.mxu0 0
    %8705 = vmatmul.mubr.bf16.gmra.mrb[0].mxu0 %v8243
    %v8706 = vpop.f32.mrb[0].mxu0
    %v8707 = vadd.f32 %v8286, %v8706
    %v8708 = vpop.f32.mrb[0].mxu0
    %v8709 = vpop.f32.mrb[0].mxu0
    %v8710 = vadd.f32 %v8286, %v8709
    %v8711 = vpop.f32.mrb[0].mxu0
    %8712 = vmatprep.mubr.bf16.mxu0 0
    %8713 = vmatmul.mubr.bf16.gmra.mrb[0].mxu0 %v8244
    %v8714 = vpop.f32.mrb[0].mxu0
    %v8715 = vadd.f32 %v8286, %v8714
    %v8716 = vpop.f32.mrb[0].mxu0
    %v8717 = vpop.f32.mrb[0].mxu0
    %v8718 = vadd.f32 %v8286, %v8717
    %v8719 = vpop.f32.mrb[0].mxu0
    %8720 = vmatprep.mubr.bf16.mxu0 0
    %8721 = vmatmul.mubr.bf16.gmra.mrb[0].mxu0 %v8245
    %v8722 = vpop.f32.mrb[0].mxu0
    %v8723 = vadd.f32 %v8286, %v8722
    %v8724 = vpop.f32.mrb[0].mxu0
    %v8725 = vpop.f32.mrb[0].mxu0
    %v8726 = vadd.f32 %v8286, %v8725
    %v8727 = vpop.f32.mrb[0].mxu0
    %8728 = vmatprep.mubr.bf16.mxu0 0
    %8729 = vmatmul.mubr.bf16.gmra.mrb[0].mxu0 %v8246
    %v8730 = vpop.f32.mrb[0].mxu0
    %v8731 = vadd.f32 %v8286, %v8730
    %v8732 = vpop.f32.mrb[0].mxu0
    %v8733 = vpop.f32.mrb[0].mxu0
    %v8734 = vadd.f32 %v8286, %v8733
    %v8735 = vpop.f32.mrb[0].mxu0
    %8736 = vmatprep.mubr.bf16.mxu0 0
    %8737 = vmatmul.mubr.bf16.gmra.mrb[0].mxu0 %v8247
    %v8738 = vpop.f32.mrb[0].mxu0
    %v8739 = vadd.f32 %v8286, %v8738
    %v8740 = vpop.f32.mrb[0].mxu0
    %v8741 = vpop.f32.mrb[0].mxu0
    %v8742 = vadd.f32 %v8286, %v8741
    %v8743 = vpop.f32.mrb[0].mxu0
    %8744 = vmatprep.mubr.bf16.mxu0 0
    %8745 = vmatmul.mubr.bf16.gmra.mrb[0].mxu0 %v8248
    %v8746 = vpop.f32.mrb[0].mxu0
    %v8747 = vadd.f32 %v8286, %v8746
    %v8748 = vpop.f32.mrb[0].mxu0
    %v8749 = vpop.f32.mrb[0].mxu0
    %v8750 = vadd.f32 %v8286, %v8749
    %v8751 = vpop.f32.mrb[0].mxu0
    %8752 = vmatprep.mubr.bf16.mxu0 0
    %8753 = vmatmul.mubr.bf16.gmra.mrb[0].mxu0 %v8249
    %v8754 = vpop.f32.mrb[0].mxu0
    %v8755 = vadd.f32 %v8286, %v8754
    %v8756 = vpop.f32.mrb[0].mxu0
    %v8757 = vpop.f32.mrb[0].mxu0
    %v8758 = vadd.f32 %v8286, %v8757
    %v8759 = vpop.f32.mrb[0].mxu0
    %8760 = vmatprep.mubr.bf16.mxu0 0
    %8761 = vmatmul.mubr.bf16.gmra.mrb[0].mxu0 %v8250
    %v8762 = vpop.f32.mrb[0].mxu0
    %v8763 = vadd.f32 %v8286, %v8762
    %v8764 = vpop.f32.mrb[0].mxu0
    %v8765 = vpop.f32.mrb[0].mxu0
    %v8766 = vadd.f32 %v8286, %v8765
    %v8767 = vpop.f32.mrb[0].mxu0
    %8768 = vmatprep.mubr.bf16.mxu0 0
    %8769 = vmatmul.mubr.bf16.gmra.mrb[0].mxu0 %v8251
    %v8770 = vpop.f32.mrb[0].mxu0
    %v8771 = vadd.f32 %v8286, %v8770
    %v8772 = vpop.f32.mrb[0].mxu0
    %v8773 = vpop.f32.mrb[0].mxu0
    %v8774 = vadd.f32 %v8286, %v8773
    %v8775 = vpop.f32.mrb[0].mxu0
    %8776 = vmatprep.mubr.bf16.mxu0 0
    %8777 = vmatmul.mubr.bf16.gmra.mrb[0].mxu0 %v8252
    %v8778 = vpop.f32.mrb[0].mxu0
    %v8779 = vadd.f32 %v8286, %v8778
    %v8780 = vpop.f32.mrb[0].mxu0
    %v8781 = vpop.f32.mrb[0].mxu0
    %v8782 = vadd.f32 %v8286, %v8781
    %v8783 = vpop.f32.mrb[0].mxu0
    %8784 = vmatprep.mubr.bf16.mxu0 0
    %8785 = vmatmul.mubr.bf16.gmra.mrb[0].mxu0 %v8253
    %v8786 = vpop.f32.mrb[0].mxu0
    %v8787 = vadd.f32 %v8286, %v8786
    %v8788 = vpop.f32.mrb[0].mxu0
    %v8789 = vpop.f32.mrb[0].mxu0
    %v8790 = vadd.f32 %v8286, %v8789
    %v8791 = vpop.f32.mrb[0].mxu0
    %8792 = vmatprep.mubr.bf16.mxu0 0
    %8793 = vmatmul.mubr.bf16.gmra.mrb[0].mxu0 %v8254
    %v8794 = vpop.f32.mrb[0].mxu0
    %v8795 = vadd.f32 %v8286, %v8794
    %v8796 = vpop.f32.mrb[0].mxu0
    %v8797 = vpop.f32.mrb[0].mxu0
    %v8798 = vadd.f32 %v8286, %v8797
    %v8799 = vpop.f32.mrb[0].mxu0
    %8800 = vmatprep.mubr.bf16.mxu0 0
    %8801 = vmatmul.mubr.bf16.gmra.mrb[0].mxu0 %v8255
    %v8802 = vpop.f32.mrb[0].mxu0
    %v8803 = vadd.f32 %v8286, %v8802
    %v8804 = vpop.f32.mrb[0].mxu0
    %v8805 = vpop.f32.mrb[0].mxu0
    %v8806 = vadd.f32 %v8286, %v8805
    %v8807 = vpop.f32.mrb[0].mxu0
    %8808 = vmatprep.mubr.bf16.mxu0 0
    %8809 = vmatmul.mubr.bf16.gmra.mrb[0].mxu0 %v8256
    %v8810 = vpop.f32.mrb[0].mxu0
    %v8811 = vadd.f32 %v8286, %v8810
    %v8812 = vpop.f32.mrb[0].mxu0
    %v8813 = vpop.f32.mrb[0].mxu0
    %v8814 = vadd.f32 %v8286, %v8813
    %v8815 = vpop.f32.mrb[0].mxu0
    %8816 = vmatprep.mubr.bf16.mxu0 0
    %8817 = vmatmul.mubr.bf16.gmra.mrb[0].mxu0 %v8257
    %v8818 = vpop.f32.mrb[0].mxu0
    %v8819 = vadd.f32 %v8286, %v8818
    %v8820 = vpop.f32.mrb[0].mxu0
    %v8821 = vpop.f32.mrb[0].mxu0
    %v8822 = vadd.f32 %v8286, %v8821
    %v8823 = vpop.f32.mrb[0].mxu0
    %8824 = vmatprep.mubr.bf16.mxu0 0
    %8825 = vmatmul.mubr.bf16.gmra.mrb[0].mxu0 %v8258
    %v8826 = vpop.f32.mrb[0].mxu0
    %v8827 = vadd.f32 %v8286, %v8826
    %v8828 = vpop.f32.mrb[0].mxu0
    %v8829 = vpop.f32.mrb[0].mxu0
    %v8830 = vadd.f32 %v8286, %v8829
    %v8831 = vpop.f32.mrb[0].mxu0
    %8832 = vmatprep.mubr.bf16.mxu0 0
    %8833 = vmatmul.mubr.bf16.gmra.mrb[0].mxu0 %v8259
    %v8834 = vpop.f32.mrb[0].mxu0
    %v8835 = vadd.f32 %v8286, %v8834
    %v8836 = vpop.f32.mrb[0].mxu0
    %v8837 = vpop.f32.mrb[0].mxu0
    %v8838 = vadd.f32 %v8286, %v8837
    %v8839 = vpop.f32.mrb[0].mxu0
    %8840 = vmatprep.mubr.bf16.mxu0 0
    %8841 = vmatmul.mubr.bf16.gmra.mrb[0].mxu0 %v8260
    %v8842 = vpop.f32.mrb[0].mxu0
    %v8843 = vadd.f32 %v8286, %v8842
    %v8844 = vpop.f32.mrb[0].mxu0
    %v8845 = vpop.f32.mrb[0].mxu0
    %v8846 = vadd.f32 %v8286, %v8845
    %v8847 = vpop.f32.mrb[0].mxu0
    %8848 = vmatprep.mubr.bf16.mxu0 0
    %8849 = vmatmul.mubr.bf16.gmra.mrb[0].mxu0 %v8261
    %v8850 = vpop.f32.mrb[0].mxu0
    %v8851 = vadd.f32 %v8286, %v8850
    %v8852 = vpop.f32.mrb[0].mxu0
    %v8853 = vpop.f32.mrb[0].mxu0
    %v8854 = vadd.f32 %v8286, %v8853
    %v8855 = vpop.f32.mrb[0].mxu0
    %8856 = vmatprep.mubr.bf16.mxu0 0
    %8857 = vmatmul.mubr.bf16.gmra.mrb[0].mxu0 %v8262
    %v8858 = vpop.f32.mrb[0].mxu0
    %v8859 = vadd.f32 %v8286, %v8858
    %v8860 = vpop.f32.mrb[0].mxu0
    %v8861 = vpop.f32.mrb[0].mxu0
    %v8862 = vadd.f32 %v8286, %v8861
    %v8863 = vpop.f32.mrb[0].mxu0
    %8864 = vmatprep.mubr.bf16.mxu0 0
    %8865 = vmatmul.mubr.bf16.gmra.mrb[0].mxu0 %v8263
    %v8866 = vpop.f32.mrb[0].mxu0
    %v8867 = vadd.f32 %v8286, %v8866
    %v8868 = vpop.f32.mrb[0].mxu0
    %v8869 = vpop.f32.mrb[0].mxu0
    %v8870 = vadd.f32 %v8286, %v8869
    %v8871 = vpop.f32.mrb[0].mxu0
    %8872 = vmatprep.mubr.bf16.mxu0 0
    %8873 = vmatmul.mubr.bf16.gmra.mrb[0].mxu0 %v8264
    %v8874 = vpop.f32.mrb[0].mxu0
    %v8875 = vadd.f32 %v8286, %v8874
    %v8876 = vpop.f32.mrb[0].mxu0
    %v8877 = vpop.f32.mrb[0].mxu0
    %v8878 = vadd.f32 %v8286, %v8877
    %v8879 = vpop.f32.mrb[0].mxu0
    %8880 = vdwg.mxu0
    %v8881 = vmax.f32 %v8371, %v8387
    %v8882 = vmax.f32 %v8374, %v8390
    %v8883 = vmax.f32 %v8379, %v8395
    %v8884 = vmax.f32 %v8382, %v8398
    %v8885 = vmax.f32 %v8881, %v8403
    %v8886 = vmax.f32 %v8882, %v8406
    %v8887 = vmax.f32 %v8883, %v8411
    %v8888 = vmax.f32 %v8884, %v8414
    %v8889 = vmax.f32 %v8885, %v8419
    %v8890 = vmax.f32 %v8886, %v8422
    %v8891 = vmax.f32 %v8887, %v8427
    %v8892 = vmax.f32 %v8888, %v8430
    %v8893 = vmax.f32 %v8889, %v8435
    %v8894 = vmax.f32 %v8890, %v8438
    %v8895 = vmax.f32 %v8891, %v8443
    %v8896 = vmax.f32 %v8892, %v8446
    %v8897 = vmax.f32 %v8893, %v8451
    %v8898 = vmax.f32 %v8894, %v8454
    %v8899 = vmax.f32 %v8895, %v8459
    %v8900 = vmax.f32 %v8896, %v8462
    %v8901 = vmax.f32 %v8897, %v8467
    %v8902 = vmax.f32 %v8898, %v8470
    %v8903 = vmax.f32 %v8899, %v8475
    %v8904 = vmax.f32 %v8900, %v8478
    %v8905 = vmax.f32 %v8901, %v8483
    %v8906 = vmax.f32 %v8902, %v8486
    %v8907 = vmax.f32 %v8903, %v8491
    %v8908 = vmax.f32 %v8904, %v8494
    %v8909 = vmax.f32 %v8905, %v8499
    %v8910 = vmax.f32 %v8906, %v8502
    %v8911 = vmax.f32 %v8907, %v8507
    %v8912 = vmax.f32 %v8908, %v8510
    %v8913 = vmax.f32 %v8909, %v8515
    %v8914 = vmax.f32 %v8910, %v8518
    %v8915 = vmax.f32 %v8911, %v8523
    %v8916 = vmax.f32 %v8912, %v8526
    %v8917 = vmax.f32 %v8913, %v8531
    %v8918 = vmax.f32 %v8914, %v8534
    %v8919 = vmax.f32 %v8915, %v8539
    %v8920 = vmax.f32 %v8916, %v8542
    %v8921 = vmax.f32 %v8917, %v8547
    %v8922 = vmax.f32 %v8918, %v8550
    %v8923 = vmax.f32 %v8919, %v8555
    %v8924 = vmax.f32 %v8920, %v8558
    %v8925 = vmax.f32 %v8921, %v8563
    %v8926 = vmax.f32 %v8922, %v8566
    %v8927 = vmax.f32 %v8923, %v8571
    %v8928 = vmax.f32 %v8924, %v8574
    %v8929 = vmax.f32 %v8925, %v8579
    %v8930 = vmax.f32 %v8926, %v8582
    %v8931 = vmax.f32 %v8927, %v8587
    %v8932 = vmax.f32 %v8928, %v8590
    %v8933 = vmax.f32 %v8929, %v8595
    %v8934 = vmax.f32 %v8930, %v8598
    %v8935 = vmax.f32 %v8931, %v8603
    %v8936 = vmax.f32 %v8932, %v8606
    %v8937 = vmax.f32 %v8933, %v8611
    %v8938 = vmax.f32 %v8934, %v8614
    %v8939 = vmax.f32 %v8935, %v8619
    %v8940 = vmax.f32 %v8936, %v8622
    %v8941 = vmax.f32 %v8937, %v8627
    %v8942 = vmax.f32 %v8938, %v8630
    %v8943 = vmax.f32 %v8939, %v8635
    %v8944 = vmax.f32 %v8940, %v8638
    %v8945 = vmax.f32 %v8941, %v8643
    %v8946 = vmax.f32 %v8942, %v8646
    %v8947 = vmax.f32 %v8943, %v8651
    %v8948 = vmax.f32 %v8944, %v8654
    %v8949 = vmax.f32 %v8945, %v8659
    %v8950 = vmax.f32 %v8946, %v8662
    %v8951 = vmax.f32 %v8947, %v8667
    %v8952 = vmax.f32 %v8948, %v8670
    %v8953 = vmax.f32 %v8949, %v8675
    %v8954 = vmax.f32 %v8950, %v8678
    %v8955 = vmax.f32 %v8951, %v8683
    %v8956 = vmax.f32 %v8952, %v8686
    %v8957 = vmax.f32 %v8953, %v8691
    %v8958 = vmax.f32 %v8954, %v8694
    %v8959 = vmax.f32 %v8955, %v8699
    %v8960 = vmax.f32 %v8956, %v8702
    %v8961 = vmax.f32 %v8957, %v8707
    %v8962 = vmax.f32 %v8958, %v8710
    %v8963 = vmax.f32 %v8959, %v8715
    %v8964 = vmax.f32 %v8960, %v8718
    %v8965 = vmax.f32 %v8961, %v8723
    %v8966 = vmax.f32 %v8962, %v8726
    %v8967 = vmax.f32 %v8963, %v8731
    %v8968 = vmax.f32 %v8964, %v8734
    %v8969 = vmax.f32 %v8965, %v8739
    %v8970 = vmax.f32 %v8966, %v8742
    %v8971 = vmax.f32 %v8967, %v8747
    %v8972 = vmax.f32 %v8968, %v8750
    %v8973 = vmax.f32 %v8969, %v8755
    %v8974 = vmax.f32 %v8970, %v8758
    %v8975 = vmax.f32 %v8971, %v8763
    %v8976 = vmax.f32 %v8972, %v8766
    %v8977 = vmax.f32 %v8973, %v8771
    %v8978 = vmax.f32 %v8974, %v8774
    %v8979 = vmax.f32 %v8975, %v8779
    %v8980 = vmax.f32 %v8976, %v8782
    %v8981 = vmax.f32 %v8977, %v8787
    %v8982 = vmax.f32 %v8978, %v8790
    %v8983 = vmax.f32 %v8979, %v8795
    %v8984 = vmax.f32 %v8980, %v8798
    %v8985 = vmax.f32 %v8981, %v8803
    %v8986 = vmax.f32 %v8982, %v8806
    %v8987 = vmax.f32 %v8983, %v8811
    %v8988 = vmax.f32 %v8984, %v8814
    %v8989 = vmax.f32 %v8985, %v8819
    %v8990 = vmax.f32 %v8986, %v8822
    %v8991 = vmax.f32 %v8987, %v8827
    %v8992 = vmax.f32 %v8988, %v8830
    %v8993 = vmax.f32 %v8989, %v8835
    %v8994 = vmax.f32 %v8990, %v8838
    %v8995 = vmax.f32 %v8991, %v8843
    %v8996 = vmax.f32 %v8992, %v8846
    %v8997 = vmax.f32 %v8993, %v8851
    %v8998 = vmax.f32 %v8994, %v8854
    %v8999 = vmax.f32 %v8995, %v8859
    %v9000 = vmax.f32 %v8996, %v8862
    %v9001 = vmax.f32 %v8997, %v8867
    %v9002 = vmax.f32 %v8998, %v8870
    %v9003 = vmax.f32 %v8999, %v8875
    %v9004 = vmax.f32 %v9000, %v8878
    %v9005 = vmax.f32 %v9001, %v9002
    %v9006 = vmax.f32 %v9003, %v9004
    %v9007 = vmax.f32 %v9005, %v9006
    %v9008 = vrot.slane %v9007, 4
    %v9009 = vmax.f32 %v9007, %v9008
    %v9010 = vrot.slane %v9009, 2
    %v9011 = vmax.f32 %v9009, %v9010
    %v9012 = vrot.slane %v9011, 1
    %v9013 = vmax.f32 %v9011, %v9012
    %v9014 = vld [vmem:[#allocation2 + $0x1] sm:$0x1]
    %v9015 = vmax.f32 %v9014, %v9013
    %9016 = vst [vmem:[#allocation2 + $0x1] sm:$0x1] %v9015
    // Predicated region
    $region58: #{pointnet_encoder.1} parent=1 // pred_check
      %p9017 = pneg %p46
    $region59: #{pointnet_encoder.1} parent=1 // pred_check_branch
      %9019 = sbr.rel (%p9017) target = $region61
    $region60: #{pointnet_encoder.1} parent=1 // pred_region
      %v9020 = vld [vmem:[#allocation2] sm:$0x3]
      %v9021 = vld [vmem:[%s7] sm:$0xff]
      %v9022 = vld [vmem:[%s7 + $0x8] sm:$0xff]
      %v9023 = vld [vmem:[%s7 + $0x10] sm:$0xff]
      %v9024 = vld [vmem:[%s7 + $0x18] sm:$0xff]
      %v9025 = vld [vmem:[%s7 + $0x20] sm:$0xff]
      %v9026 = vld [vmem:[%s7 + $0x28] sm:$0xff]
      %v9027 = vld [vmem:[%s7 + $0x30] sm:$0xff]
      %v9028 = vld [vmem:[%s7 + $0x38] sm:$0xff]
      %v9029 = vld [vmem:[%s7 + $0x40] sm:$0xff]
      %v9030 = vld [vmem:[%s7 + $0x48] sm:$0xff]
      %v9031 = vld [vmem:[%s7 + $0x50] sm:$0xff]
      %v9032 = vld [vmem:[%s7 + $0x58] sm:$0xff]
      %v9033 = vld [vmem:[%s7 + $0x60] sm:$0xff]
      %v9034 = vld [vmem:[%s7 + $0x68] sm:$0xff]
      %v9035 = vld [vmem:[%s7 + $0x70] sm:$0xff]
      %v9036 = vld [vmem:[%s7 + $0x78] sm:$0xff]
      %v9037 = vld [vmem:[%s8] sm:$0x1]
      %v9039 = vlaneseq
      %v9040 = vshrl.u32 %v9039, 7
      %v9041 = vsub.s32 0, %v9040
      %v9042 = vrot.slane %v9037, %v9041
      %9044 = vmatprep.subr.mxu0 0.0
      %9045 = vmatpush1.msra.mxu0 %v9021
      %9046 = vmatprep.subr.mxu0 0.0
      %9047 = vmatpush1.msra.mxu0 %v9022
      %9048 = vmatprep.subr.mxu0 0.0
      %9049 = vmatpush1.msra.mxu0 %v9023
      %9050 = vmatprep.subr.mxu0 0.0
      %9051 = vmatpush1.msra.mxu0 %v9024
      %9052 = vmatprep.subr.mxu0 0.0
      %9053 = vmatpush1.msra.mxu0 %v9025
      %9054 = vmatprep.subr.mxu0 0.0
      %9055 = vmatpush1.msra.mxu0 %v9026
      %9056 = vmatprep.subr.mxu0 0.0
      %9057 = vmatpush1.msra.mxu0 %v9027
      %9058 = vmatprep.subr.mxu0 0.0
      %9059 = vmatpush1.msra.mxu0 %v9028
      %9060 = vmatprep.subr.mxu0 0.0
      %9061 = vmatpush1.msra.mxu0 %v9029
      %9062 = vmatprep.subr.mxu0 0.0
      %9063 = vmatpush1.msra.mxu0 %v9030
      %9064 = vmatprep.subr.mxu0 0.0
      %9065 = vmatpush1.msra.mxu0 %v9031
      %9066 = vmatprep.subr.mxu0 0.0
      %9067 = vmatpush1.msra.mxu0 %v9032
      %9068 = vmatprep.subr.mxu0 0.0
      %9069 = vmatpush1.msra.mxu0 %v9033
      %9070 = vmatprep.subr.mxu0 0.0
      %9071 = vmatpush1.msra.mxu0 %v9034
      %9072 = vmatprep.subr.mxu0 0.0
      %9073 = vmatpush1.msra.mxu0 %v9035
      %9074 = vmatprep.subr.mxu0 0.0
      %9075 = vmatpush1.msra.mxu0 %v9036
      %9076 = vmatprep.subr.mxu0 0.0
      %9077 = vmatpush1.msra.mxu0 0.0
      %9078 = vmatprep.subr.mxu0 0.0
      %9079 = vmatpush1.msra.mxu0 0.0
      %9080 = vmatprep.subr.mxu0 0.0
      %9081 = vmatpush1.msra.mxu0 0.0
      %9082 = vmatprep.subr.mxu0 0.0
      %9083 = vmatpush1.msra.mxu0 0.0
      %9084 = vmatprep.subr.mxu0 0.0
      %9085 = vmatpush1.msra.mxu0 0.0
      %9086 = vmatprep.subr.mxu0 0.0
      %9087 = vmatpush1.msra.mxu0 0.0
      %9088 = vmatprep.subr.mxu0 0.0
      %9089 = vmatpush1.msra.mxu0 0.0
      %9090 = vmatprep.subr.mxu0 0.0
      %9091 = vmatpush1.msra.mxu0 0.0
      %9092 = vmatprep.subr.mxu0 0.0
      %9093 = vmatpush1.msra.mxu0 0.0
      %9094 = vmatprep.subr.mxu0 0.0
      %9095 = vmatpush1.msra.mxu0 0.0
      %9096 = vmatprep.subr.mxu0 0.0
      %9097 = vmatpush1.msra.mxu0 0.0
      %9098 = vmatprep.subr.mxu0 0.0
      %9099 = vmatpush1.msra.mxu0 0.0
      %9100 = vmatprep.subr.mxu0 0.0
      %9101 = vmatpush1.msra.mxu0 0.0
      %9102 = vmatprep.subr.mxu0 0.0
      %9103 = vmatpush1.msra.mxu0 0.0
      %9104 = vmatprep.subr.mxu0 0.0
      %9105 = vmatpush1.msra.mxu0 0.0
      %9106 = vmatprep.subr.mxu0 0.0
      %9107 = vmatpush1.msra.mxu0 0.0
      %9108 = vmatprep.mubr.f32.mxu0 0.0
      %9109 = vmatmul.mubr.f32.gmra.mrb[0].mxu0 %v9020
      %v9110 = vpop.f32.mrb[0].mxu0
      %v9111 = vadd.f32 %v9042, %v9110
      %v9112 = vpop.f32.mrb[0].mxu0
      %9113 = vdwg.mxu0
      %v9114 = vmax.f32 %v9111, 0.0
      %v9115 = vld [vmem:[%s9] sm:$0xff]
      %v9116 = vld [vmem:[%s9 + $0x8] sm:$0xff]
      %v9117 = vld [vmem:[%s9 + $0x10] sm:$0xff]
      %v9118 = vld [vmem:[%s9 + $0x18] sm:$0xff]
      %v9119 = vld [vmem:[%s9 + $0x20] sm:$0xff]
      %v9120 = vld [vmem:[%s9 + $0x28] sm:$0xff]
      %v9121 = vld [vmem:[%s9 + $0x30] sm:$0xff]
      %v9122 = vld [vmem:[%s9 + $0x38] sm:$0xff]
      %v9123 = vld [vmem:[%s10] sm:$0x1]
      %v9125 = vlaneseq
      %v9126 = vshrl.u32 %v9125, 7
      %v9127 = vsub.s32 0, %v9126
      %v9128 = vrot.slane %v9123, %v9127
      %v9131 = vsel %vm2862, %v9114, 0
      %9133 = vmatprep.subr.mxu0 0.0
      %9134 = vmatpush1.msra.mxu0 %v9115
      %9135 = vmatprep.subr.mxu0 0.0
      %9136 = vmatpush1.msra.mxu0 %v9116
      %9137 = vmatprep.subr.mxu0 0.0
      %9138 = vmatpush1.msra.mxu0 %v9117
      %9139 = vmatprep.subr.mxu0 0.0
      %9140 = vmatpush1.msra.mxu0 %v9118
      %9141 = vmatprep.subr.mxu0 0.0
      %9142 = vmatpush1.msra.mxu0 %v9119
      %9143 = vmatprep.subr.mxu0 0.0
      %9144 = vmatpush1.msra.mxu0 %v9120
      %9145 = vmatprep.subr.mxu0 0.0
      %9146 = vmatpush1.msra.mxu0 %v9121
      %9147 = vmatprep.subr.mxu0 0.0
      %9148 = vmatpush1.msra.mxu0 %v9122
      %9149 = vmatprep.subr.mxu0 0.0
      %9150 = vmatpush1.msra.mxu0 0.0
      %9151 = vmatprep.subr.mxu0 0.0
      %9152 = vmatpush1.msra.mxu0 0.0
      %9153 = vmatprep.subr.mxu0 0.0
      %9154 = vmatpush1.msra.mxu0 0.0
      %9155 = vmatprep.subr.mxu0 0.0
      %9156 = vmatpush1.msra.mxu0 0.0
      %9157 = vmatprep.subr.mxu0 0.0
      %9158 = vmatpush1.msra.mxu0 0.0
      %9159 = vmatprep.subr.mxu0 0.0
      %9160 = vmatpush1.msra.mxu0 0.0
      %9161 = vmatprep.subr.mxu0 0.0
      %9162 = vmatpush1.msra.mxu0 0.0
      %9163 = vmatprep.subr.mxu0 0.0
      %9164 = vmatpush1.msra.mxu0 0.0
      %9165 = vmatprep.subr.mxu0 0.0
      %9166 = vmatpush1.msra.mxu0 0.0
      %9167 = vmatprep.subr.mxu0 0.0
      %9168 = vmatpush1.msra.mxu0 0.0
      %9169 = vmatprep.subr.mxu0 0.0
      %9170 = vmatpush1.msra.mxu0 0.0
      %9171 = vmatprep.subr.mxu0 0.0
      %9172 = vmatpush1.msra.mxu0 0.0
      %9173 = vmatprep.subr.mxu0 0.0
      %9174 = vmatpush1.msra.mxu0 0.0
      %9175 = vmatprep.subr.mxu0 0.0
      %9176 = vmatpush1.msra.mxu0 0.0
      %9177 = vmatprep.subr.mxu0 0.0
      %9178 = vmatpush1.msra.mxu0 0.0
      %9179 = vmatprep.subr.mxu0 0.0
      %9180 = vmatpush1.msra.mxu0 0.0
      %9181 = vmatprep.subr.mxu0 0.0
      %9182 = vmatpush1.msra.mxu0 0.0
      %9183 = vmatprep.subr.mxu0 0.0
      %9184 = vmatpush1.msra.mxu0 0.0
      %9185 = vmatprep.subr.mxu0 0.0
      %9186 = vmatpush1.msra.mxu0 0.0
      %9187 = vmatprep.subr.mxu0 0.0
      %9188 = vmatpush1.msra.mxu0 0.0
      %9189 = vmatprep.subr.mxu0 0.0
      %9190 = vmatpush1.msra.mxu0 0.0
      %9191 = vmatprep.subr.mxu0 0.0
      %9192 = vmatpush1.msra.mxu0 0.0
      %9193 = vmatprep.subr.mxu0 0.0
      %9194 = vmatpush1.msra.mxu0 0.0
      %9195 = vmatprep.subr.mxu0 0.0
      %9196 = vmatpush1.msra.mxu0 0.0
      %9197 = vmatprep.mubr.f32.mxu0 0.0
      %9198 = vmatmul.mubr.f32.gmra.mrb[0].mxu0 %v9131
      %v9199 = vpop.f32.mrb[0].mxu0
      %v9200 = vadd.f32 %v9128, %v9199
      %v9201 = vpop.f32.mrb[0].mxu0
      %9202 = vdwg.mxu0
      %v9203 = vmax.f32 %v9200, 0.0
      %v9204 = vld [vmem:[%s11] sm:$0xff]
      %v9205 = vld [vmem:[%s11 + $0x8] sm:$0xff]
      %v9206 = vld [vmem:[%s11 + $0x10] sm:$0xff]
      %v9207 = vld [vmem:[%s11 + $0x18] sm:$0xff]
      %v9208 = vld [vmem:[%s11 + $0x20] sm:$0xff]
      %v9209 = vld [vmem:[%s11 + $0x28] sm:$0xff]
      %v9210 = vld [vmem:[%s11 + $0x30] sm:$0xff]
      %v9211 = vld [vmem:[%s11 + $0x38] sm:$0xff]
      %v9212 = vld [vmem:[%s12] sm:$0x1]
      %v9214 = vlaneseq
      %v9215 = vshrl.u32 %v9214, 7
      %v9216 = vsub.s32 0, %v9215
      %v9217 = vrot.slane %v9212, %v9216
      %v9220 = vsel %vm2862, %v9203, 0
      %9222 = vmatprep.subr.mxu0 0.0
      %9223 = vmatpush1.msra.mxu0 %v9204
      %9224 = vmatprep.subr.mxu0 0.0
      %9225 = vmatpush1.msra.mxu0 %v9205
      %9226 = vmatprep.subr.mxu0 0.0
      %9227 = vmatpush1.msra.mxu0 %v9206
      %9228 = vmatprep.subr.mxu0 0.0
      %9229 = vmatpush1.msra.mxu0 %v9207
      %9230 = vmatprep.subr.mxu0 0.0
      %9231 = vmatpush1.msra.mxu0 %v9208
      %9232 = vmatprep.subr.mxu0 0.0
      %9233 = vmatpush1.msra.mxu0 %v9209
      %9234 = vmatprep.subr.mxu0 0.0
      %9235 = vmatpush1.msra.mxu0 %v9210
      %9236 = vmatprep.subr.mxu0 0.0
      %9237 = vmatpush1.msra.mxu0 %v9211
      %9238 = vmatprep.subr.mxu0 0.0
      %9239 = vmatpush1.msra.mxu0 0.0
      %9240 = vmatprep.subr.mxu0 0.0
      %9241 = vmatpush1.msra.mxu0 0.0
      %9242 = vmatprep.subr.mxu0 0.0
      %9243 = vmatpush1.msra.mxu0 0.0
      %9244 = vmatprep.subr.mxu0 0.0
      %9245 = vmatpush1.msra.mxu0 0.0
      %9246 = vmatprep.subr.mxu0 0.0
      %9247 = vmatpush1.msra.mxu0 0.0
      %9248 = vmatprep.subr.mxu0 0.0
      %9249 = vmatpush1.msra.mxu0 0.0
      %9250 = vmatprep.subr.mxu0 0.0
      %9251 = vmatpush1.msra.mxu0 0.0
      %9252 = vmatprep.subr.mxu0 0.0
      %9253 = vmatpush1.msra.mxu0 0.0
      %9254 = vmatprep.subr.mxu0 0.0
      %9255 = vmatpush1.msra.mxu0 0.0
      %9256 = vmatprep.subr.mxu0 0.0
      %9257 = vmatpush1.msra.mxu0 0.0
      %9258 = vmatprep.subr.mxu0 0.0
      %9259 = vmatpush1.msra.mxu0 0.0
      %9260 = vmatprep.subr.mxu0 0.0
      %9261 = vmatpush1.msra.mxu0 0.0
      %9262 = vmatprep.subr.mxu0 0.0
      %9263 = vmatpush1.msra.mxu0 0.0
      %9264 = vmatprep.subr.mxu0 0.0
      %9265 = vmatpush1.msra.mxu0 0.0
      %9266 = vmatprep.subr.mxu0 0.0
      %9267 = vmatpush1.msra.mxu0 0.0
      %9268 = vmatprep.subr.mxu0 0.0
      %9269 = vmatpush1.msra.mxu0 0.0
      %9270 = vmatprep.subr.mxu0 0.0
      %9271 = vmatpush1.msra.mxu0 0.0
      %9272 = vmatprep.subr.mxu0 0.0
      %9273 = vmatpush1.msra.mxu0 0.0
      %9274 = vmatprep.subr.mxu0 0.0
      %9275 = vmatpush1.msra.mxu0 0.0
      %9276 = vmatprep.subr.mxu0 0.0
      %9277 = vmatpush1.msra.mxu0 0.0
      %9278 = vmatprep.subr.mxu0 0.0
      %9279 = vmatpush1.msra.mxu0 0.0
      %9280 = vmatprep.subr.mxu0 0.0
      %9281 = vmatpush1.msra.mxu0 0.0
      %9282 = vmatprep.subr.mxu0 0.0
      %9283 = vmatpush1.msra.mxu0 0.0
      %9284 = vmatprep.subr.mxu0 0.0
      %9285 = vmatpush1.msra.mxu0 0.0
      %9286 = vmatprep.mubr.f32.mxu0 0.0
      %9287 = vmatmul.mubr.f32.gmra.mrb[0].mxu0 %v9220
      %v9288 = vpop.f32.mrb[0].mxu0
      %v9289 = vadd.f32 %v9217, %v9288
      %v9290 = vpop.f32.mrb[0].mxu0
      %9291 = vdwg.mxu0
      %v9292 = vtanh.pop %v9289
      %vm9293 = vcmask 254976
      %9294 = vst.msk [vmem:[#allocation3] sm:$0x3] %vm9293, %v9292
    $region61: #{pointnet_encoder.1} parent=1 // pred_fallthru
      _
    // Predicated region
    $region62: #{pointnet_encoder.1} parent=1 // pred_check
      _
    $region63: #{pointnet_encoder.1} parent=1 // pred_check_branch
      %9296 = sbr.rel (0) target = $region65
    $region64: #{pointnet_encoder.1} parent=1 // pred_region
      %s9298 = ssub.s32 32, 32
      %9299 = vsyncadd [#allocation4], %s9298
      %s9301 = sshll.u32 [#allocation3], 4
      %s9302 = int_to_ptr.vmem [resolvable:$true] %s9301
      %9304 = dma.vmem_to_hbm [thread:$0]  %s9302, 32, %s13, [#allocation4]
    $region65: #{pointnet_encoder.1} parent=1 // pred_fallthru
      _
    // Predicated region
    $region66: #{pointnet_encoder.1} parent=1 // pred_check
      _
    $region67: #{pointnet_encoder.1} parent=1 // pred_check_branch
      %9306 = sbr.rel (0) target = $region69
    $region68: #{pointnet_encoder.1} parent=1 // pred_region
      %9307 = dma.done [#allocation4], 32
    $region69: #{pointnet_encoder.1} parent=1 // pred_fallthru
      _
    %9308 = vsyncpa [#allocation4], 1

</llo_original>
